<compile_context>
chip_gen: v5e
topology: v5e:2x2
jax: 0.10.0
libtpu: 0.0.40
codegen_flags: <defaults>
</compile_context>

<pallas_src>
import math
import numpy as np
import jax
import jax.numpy as jnp
from jax import lax
from jax.experimental import pallas as pl
from jax.experimental.pallas import tpu as pltpu

# ------------------------------------------------------------------ config ---
SAMPLE_RATE = 16000
NUM_CHANNELS = 2
EMBEDDING_SIZE = 128
WINDOW_SIZE_MS = 1000
N_MELS = 64
N_FFT = 1024
HOP_LENGTH = 320
WIN_LENGTH = 640
N_FREQS = N_FFT // 2 + 1                                          # 513
NUM_FRAMES = int(WINDOW_SIZE_MS / 1000.0 * SAMPLE_RATE) // HOP_LENGTH + 1   # 51
NUM_COMBS = 1                                                     # nCr(2, 2)
INPUT_SIZE = NUM_FRAMES * N_MELS * (NUM_CHANNELS + NUM_COMBS)     # 9792

F_PAD = 640            # 513 freq bins padded to 5*128 lanes
T_PAD = 56             # 51 frames padded to a multiple of 8/16 sublanes
CT_PAD = NUM_CHANNELS * T_PAD                                     # 112
K_PAD = 10240          # 9792 projection rows padded to 80*128
PROJ_TK = 2560         # K-tile for the projection (4 grid steps)
DB_SCALE = 20.0 / math.log(10.0)                                  # 20*log10

# frame construction by reshape/interleave relies on 50% overlap
assert 2 * HOP_LENGTH == WIN_LENGTH
assert K_PAD % PROJ_TK == 0 and PROJ_TK % 128 == 0


# ------------------------------------------------------- parameter builders ---
def melscale_fbanks_htk(n_freqs, f_min, f_max, n_mels, sample_rate):
    """torchaudio.functional.melscale_fbanks, mel_scale='htk', norm=None."""
    all_freqs = np.linspace(0, sample_rate // 2, n_freqs)
    hz_to_mel = lambda f: 2595.0 * np.log10(1.0 + f / 700.0)
    mel_to_hz = lambda m: 700.0 * (10.0 ** (m / 2595.0) - 1.0)
    m_pts = np.linspace(hz_to_mel(f_min), hz_to_mel(f_max), n_mels + 2)
    f_pts = mel_to_hz(m_pts)
    f_diff = f_pts[1:] - f_pts[:-1]
    slopes = f_pts[None, :] - all_freqs[:, None]
    down = -slopes[:, :-2] / f_diff[:-1]
    up = slopes[:, 2:] / f_diff[1:]
    fb = np.maximum(0.0, np.minimum(down, up))
    return fb.astype(np.float64)                                  # (n_freqs, n_mels)


def build_constants():
    # Periodic Hann window, placed at its centered position inside the n_fft
    # frame (torch.stft pads the window with (n_fft - win_length)//2 zeros on
    # each side).
    n = np.arange(WIN_LENGTH)
    hann = 0.5 - 0.5 * np.cos(2.0 * np.pi * n / WIN_LENGTH)
    lpad = (N_FFT - WIN_LENGTH) // 2                              # 192

    # Window-folded, trimmed rfft basis (only the 640 samples the window
    # touches contribute): X[k] = sum_j hann[j] x[lpad+j] e^{-2i pi k (lpad+j)/N}
    # Packed as one (640, 1280) matrix: columns [0:640)=Re basis, [640:1280)=Im.
    kk = np.arange(N_FREQS)
    ang = 2.0 * np.pi * np.outer(lpad + n, kk) / N_FFT            # (640, 513)
    dft = np.zeros((WIN_LENGTH, 2 * F_PAD), dtype=np.float64)
    dft[:, :N_FREQS] = hann[:, None] * np.cos(ang)
    dft[:, F_PAD:F_PAD + N_FREQS] = -hann[:, None] * np.sin(ang)

    # Mel filterbank, zero padded to lane-dense (640, 128).
    fb = melscale_fbanks_htk(N_FREQS, 0.0, SAMPLE_RATE / 2, N_MELS, SAMPLE_RATE)
    mel = np.zeros((F_PAD, 128), dtype=np.float64)
    mel[:N_FREQS, :N_MELS] = fb

    # GCC-PHAT basis: irfft(n=1024) restricted to the 64 shifted output bins
    # [-n_mels/2 .. -1, 0 .. n_mels/2-1], split into Re/Im halves so
    # gcc = nr @ gccr + ni @ gcci (no packed phase scratch needed).
    m_sel = np.concatenate([np.arange(N_FFT - N_MELS // 2, N_FFT),
                            np.arange(N_MELS // 2)])
    w = np.full(N_FREQS, 2.0)
    w[0] = 1.0
    w[-1] = 1.0
    ang2 = 2.0 * np.pi * np.outer(kk, m_sel) / N_FFT              # (513, 64)
    gccr = np.zeros((F_PAD, 128), dtype=np.float64)
    gcci = np.zeros((F_PAD, 128), dtype=np.float64)
    gccr[:N_FREQS, :N_MELS] = (w[:, None] / N_FFT) * np.cos(ang2)
    gcci[:N_FREQS, :N_MELS] = -(w[:, None] / N_FFT) * np.sin(ang2)

    bf16 = lambda a: jnp.asarray(a, jnp.bfloat16)
    return dict(dft=bf16(dft), mel=bf16(mel), gccr=bf16(gccr), gcci=bf16(gcci))


# --------------------------------------------------------- fused feature kernel
def _fused_kernel(frames_ref, dft_ref, mel_ref, gccr_ref, gcci_ref,
                  feat_ref, reim_ref):
    # 1) windowed DFT: one wide bf16 MXU matmul -> [Re | Im] in f32  (112, 1280)
    reim_ref[...] = jnp.dot(frames_ref[0], dft_ref[...],
                            preferred_element_type=jnp.float32)

    # 2) power -> mel -> dB  (amplitude_to_DB: multiplier=20, amin=1e-10,
    #    db_multiplier=0, top_db=80, max taken per batch item over C/T/mels).
    re = reim_ref[:, :F_PAD]
    im = reim_ref[:, F_PAD:]
    power = re * re + im * im                                     # (112, 640) f32
    spec = jnp.dot(power.astype(jnp.bfloat16), mel_ref[...],
                   preferred_element_type=jnp.float32)            # (112, 128)
    x_db = DB_SCALE * jnp.log(jnp.maximum(spec, 1e-10))
    # pad rows/cols sit exactly at the -200 dB amin floor, so they can never
    # raise the per-item max; the clamp is therefore exact.
    x_db = jnp.maximum(x_db, jnp.max(x_db) - 80.0)                # (112, 128)
    feat_ref[0, 0] = x_db[:T_PAD]                                 # channel 0 mels
    feat_ref[0, 1] = x_db[T_PAD:]                                 # channel 1 mels

    # 3) GCC-PHAT for the single (ch0, ch1) pair.
    r1 = reim_ref[:T_PAD, :F_PAD]
    i1 = reim_ref[:T_PAD, F_PAD:]
    r2 = reim_ref[T_PAD:, :F_PAD]
    i2 = reim_ref[T_PAD:, F_PAD:]
    cr = r1 * r2 + i1 * i2                                        # Re(X1*conj(X2))
    ci = i1 * r2 - r1 * i2                                        # Im(X1*conj(X2))
    mag2 = cr * cr + ci * ci
    safe = mag2 > 0.0
    inv = lax.rsqrt(jnp.where(safe, mag2, 1.0))                   # EUP rsqrt
    nr = jnp.where(safe, cr * inv, 1.0)                           # angle(0)=0 -> 1
    ni = jnp.where(safe, ci * inv, 0.0)                           # angle(0)=0 -> 0
    feat_ref[0, 2] = (
        jnp.dot(nr.astype(jnp.bfloat16), gccr_ref[...],
                preferred_element_type=jnp.float32)
        + jnp.dot(ni.astype(jnp.bfloat16), gcci_ref[...],
                  preferred_element_type=jnp.float32))            # (56, 128)


def melspec_gcc_features(frames, dft, mel, gccr, gcci):
    B = frames.shape[0]
    # One batch item per grid step keeps the "parallel" axis free for the two
    # v7x TensorCores at small B; batch 2 items per step only once B >> cores.
    return pl.pallas_call(
        _fused_kernel,
        out_shape=jax.ShapeDtypeStruct((B, 3, T_PAD, 128), jnp.float32),
        grid=(B,),
        in_specs=[pl.BlockSpec((1, CT_PAD, WIN_LENGTH), lambda b: (b, 0, 0)),
                  pl.BlockSpec((WIN_LENGTH, 2 * F_PAD), lambda b: (0, 0)),
                  pl.BlockSpec((F_PAD, 128), lambda b: (0, 0)),
                  pl.BlockSpec((F_PAD, 128), lambda b: (0, 0)),
                  pl.BlockSpec((F_PAD, 128), lambda b: (0, 0))],
        out_specs=pl.BlockSpec((1, 3, T_PAD, 128), lambda b: (b, 0, 0, 0)),
        scratch_shapes=[pltpu.VMEM((CT_PAD, 2 * F_PAD), jnp.float32)],
        compiler_params=pltpu.CompilerParams(
            dimension_semantics=("parallel",)),
    )(frames, dft, mel, gccr, gcci)


# ------------------------------------------------------------ projection kernel
def _proj_kernel(x_ref, w_ref, o_ref):
    @pl.when(pl.program_id(0) == 0)
    def _():
        o_ref[...] = jnp.zeros_like(o_ref)
    o_ref[...] += jnp.dot(x_ref[...].astype(jnp.bfloat16), w_ref[...],
                          preferred_element_type=jnp.float32)


def project(x, w_bf16):
    B, K = x.shape
    E = w_bf16.shape[1]
    nk = K // PROJ_TK
    return pl.pallas_call(
        _proj_kernel,
        out_shape=jax.ShapeDtypeStruct((B, E), jnp.float32),
        grid=(nk,),
        in_specs=[pl.BlockSpec((B, PROJ_TK), lambda k: (0, k)),
                  pl.BlockSpec((PROJ_TK, E), lambda k: (k, 0))],
        out_specs=pl.BlockSpec((B, E), lambda k: (0, 0)),
        compiler_params=pltpu.CompilerParams(
            dimension_semantics=("arbitrary",)),
    )(x, w_bf16)


# ------------------------------------------------------------------ forward ---
def forward(audio, consts, projection_padded_bf16):
    B, C, S = audio.shape
    assert C == NUM_CHANNELS
    assert 1 + S // HOP_LENGTH == NUM_FRAMES, \
        "audio length must yield the module's fixed frame count"

    # Framing for torch.stft(center=True, pad_mode='constant').  The Hann
    # window is folded into the DFT basis and is zero outside its 640-sample
    # support, so frame t only needs original samples [t*hop-320, t*hop+320).
    # Because hop == win/2, frames are built from two contiguous reshapes of
    # the padded audio (even / odd frames) instead of an XLA gather.
    half = WIN_LENGTH // 2
    audio_p = jnp.pad(audio.astype(jnp.float32), ((0, 0), (0, 0), (half, half)))
    n_even = (NUM_FRAMES + 1) // 2                                # 26
    n_odd = NUM_FRAMES // 2                                       # 25
    even = audio_p[:, :, :n_even * WIN_LENGTH].reshape(B, C, n_even, WIN_LENGTH)
    odd = audio_p[:, :, half:half + n_odd * WIN_LENGTH].reshape(B, C, n_odd,
                                                                WIN_LENGTH)
    frames = jnp.concatenate(
        [jnp.stack([even[:, :, :n_odd], odd], axis=3)
             .reshape(B, C, 2 * n_odd, WIN_LENGTH),
         even[:, :, n_odd:]], axis=2)                             # (B, C, 51, 640)
    frames = jnp.pad(frames, ((0, 0), (0, 0), (0, T_PAD - NUM_FRAMES), (0, 0)))
    frames = frames.reshape(B, CT_PAD, WIN_LENGTH).astype(jnp.bfloat16)

    feat = melspec_gcc_features(frames, consts["dft"], consts["mel"],
                                consts["gccr"], consts["gcci"])   # (B,3,56,128)

    # Strip frame/mel padding and flatten exactly like
    # torch.cat([spec, gcc], dim=1).flatten(start_dim=1).
    x = feat[:, :, :NUM_FRAMES, :N_MELS].reshape(B, INPUT_SIZE)   # (B, 9792)
    x = jnp.pad(x, ((0, 0), (0, K_PAD - INPUT_SIZE)))             # (B, 10240)
    return project(x, projection_padded_bf16)


# --------------------------------------------------------------------- main ---
if __name__ == "__main__":
    consts = build_constants()

    key = jax.random.PRNGKey(0)
    k_proj, k_audio = jax.random.split(key)
    # deterministic stand-in for torch.rand(input_size, 128) / sqrt(n_mels)
    projection = jax.random.uniform(
        k_proj, (INPUT_SIZE, EMBEDDING_SIZE), dtype=jnp.float32) / math.sqrt(N_MELS)
    # pre-pad the projection rows to the lane-aligned K (zero rows -> exact),
    # stream it in bf16 (the projection is purely weight-DMA bound).
    projection_padded = jnp.pad(
        projection, ((0, K_PAD - INPUT_SIZE), (0, 0))).astype(jnp.bfloat16)

    # one 1000 ms stereo window per clip, batch=2  ->  (2, 2, 16000)
    audio = 0.1 * jax.random.normal(k_audio, (2, NUM_CHANNELS, SAMPLE_RATE),
                                    dtype=jnp.float32)

    fwd = jax.jit(lambda a: forward(a, consts, projection_padded))
    emb = fwd(audio)
    jax.block_until_ready(emb)
    assert emb.shape == (2, EMBEDDING_SIZE) and emb.dtype == jnp.float32
    assert bool(jnp.all(jnp.isfinite(emb)))
    print("KERNEL_OK")
</pallas_src>

<mosaic_0001>
module attributes {stable_mosaic.version = 11 : i64} {
  func.func @_fused_kernel(%arg0: i32, %arg1: memref<1x112x640xbf16, #tpu.memory_space<vmem>>, %arg2: memref<640x1280xbf16, #tpu.memory_space<vmem>>, %arg3: memref<640x128xbf16, #tpu.memory_space<vmem>>, %arg4: memref<640x128xbf16, #tpu.memory_space<vmem>>, %arg5: memref<640x128xbf16, #tpu.memory_space<vmem>>, %arg6: memref<1x3x56x128xf32, #tpu.memory_space<vmem>>, %arg7: memref<112x1280xf32, #tpu.memory_space<vmem>>) attributes {dimension_semantics = [#tpu.dimension_semantics<parallel>], iteration_bounds = array<i64: 2>, scalar_prefetch = 0 : i64, scratch_operands = 1 : i64, tpu.core_type = #tpu.core_type<tc>, window_params = [{transform_indices = @transform_0, window_bounds = array<i64: 1, 112, 640>}, {pipeline_mode = #tpu.pipeline_mode<synchronous>, transform_indices = @transform_1, window_bounds = array<i64: 640, 1280>}, {pipeline_mode = #tpu.pipeline_mode<synchronous>, transform_indices = @transform_2, window_bounds = array<i64: 640, 128>}, {pipeline_mode = #tpu.pipeline_mode<synchronous>, transform_indices = @transform_3, window_bounds = array<i64: 640, 128>}, {pipeline_mode = #tpu.pipeline_mode<synchronous>, transform_indices = @transform_4, window_bounds = array<i64: 640, 128>}, {transform_indices = @transform_5, window_bounds = array<i64: 1, 3, 56, 128>}]} {
    %c0 = arith.constant 0 : index
    %c0_0 = arith.constant 0 : index
    %c0_1 = arith.constant 0 : index
    %0 = vector.load %arg1[%c0, %c0_0, %c0_1] : memref<1x112x640xbf16, #tpu.memory_space<vmem>>, vector<1x112x640xbf16>
    %1 = vector.shape_cast %0 : vector<1x112x640xbf16> to vector<112x640xbf16>
    %c0_2 = arith.constant 0 : index
    %c0_3 = arith.constant 0 : index
    %2 = vector.load %arg2[%c0_2, %c0_3] : memref<640x1280xbf16, #tpu.memory_space<vmem>>, vector<640x1280xbf16>
    %cst = arith.constant dense<0.000000e+00> : vector<112x1280xf32>
    %3 = tpu.matmul %1, %2, %cst {dimension_numbers = #tpu.dot_dimension_numbers<[1], [0], [0], [1], [0, 0, 1, 1], [], []>} : vector<112x640xbf16>, vector<640x1280xbf16>, vector<112x1280xf32> -> vector<112x1280xf32>
    %c0_4 = arith.constant 0 : index
    %c0_5 = arith.constant 0 : index
    %4 = vector.load %arg7[%c0_4, %c0_5] : memref<112x1280xf32, #tpu.memory_space<vmem>>, vector<112x1280xf32>
    tpu.vector_store %arg7[%c0_4, %c0_5], %3 {strides = array<i32>} : memref<112x1280xf32, #tpu.memory_space<vmem>>, vector<112x1280xf32>,
    %c0_6 = arith.constant 0 : index
    %c0_7 = arith.constant 0 : index
    %5 = vector.load %arg7[%c0_6, %c0_7] : memref<112x1280xf32, #tpu.memory_space<vmem>>, vector<112x640xf32>
    %c0_8 = arith.constant 0 : index
    %c640 = arith.constant 640 : index
    %6 = vector.load %arg7[%c0_8, %c640] : memref<112x1280xf32, #tpu.memory_space<vmem>>, vector<112x640xf32>
    %7 = arith.mulf %5, %5 : vector<112x640xf32>
    %8 = arith.mulf %6, %6 : vector<112x640xf32>
    %9 = arith.addf %7, %8 : vector<112x640xf32>
    %10 = arith.truncf %9 : vector<112x640xf32> to vector<112x640xbf16>
    %c0_9 = arith.constant 0 : index
    %c0_10 = arith.constant 0 : index
    %11 = vector.load %arg3[%c0_9, %c0_10] : memref<640x128xbf16, #tpu.memory_space<vmem>>, vector<640x128xbf16>
    %cst_11 = arith.constant dense<0.000000e+00> : vector<112x128xf32>
    %12 = tpu.matmul %10, %11, %cst_11 {dimension_numbers = #tpu.dot_dimension_numbers<[1], [0], [0], [1], [0, 0, 1, 1], [], []>} : vector<112x640xbf16>, vector<640x128xbf16>, vector<112x128xf32> -> vector<112x128xf32>
    %cst_12 = arith.constant 1.000000e-10 : f32
    %13 = vector.broadcast %cst_12 : f32 to vector<112x128xf32>
    %14 = arith.maximumf %12, %13 : vector<112x128xf32>
    %15 = math.log %14 : vector<112x128xf32>
    %cst_13 = arith.constant 8.68588924 : f32
    %16 = vector.broadcast %cst_13 : f32 to vector<112x128xf32>
    %17 = arith.mulf %16, %15 : vector<112x128xf32>
    %18 = vector.shape_cast %17 : vector<112x128xf32> to vector<1x112x128xf32>
    %cst_14 = arith.constant dense<0xFF800000> : vector<1xf32>
    %19 = vector.multi_reduction <maximumf>, %18, %cst_14 [1, 2] : vector<1x112x128xf32> to vector<1xf32>
    %20 = vector.shape_cast %19 : vector<1xf32> to vector<1x1x1xf32>
    %21 = vector.extract %20[0, 0, 0] : f32 from vector<1x1x1xf32>
    %cst_15 = arith.constant 8.000000e+01 : f32
    %22 = arith.subf %21, %cst_15 : f32
    %23 = vector.broadcast %22 : f32 to vector<112x128xf32>
    %24 = arith.maximumf %17, %23 : vector<112x128xf32>
    %25 = vector.extract_strided_slice %24 {offsets = [0, 0], sizes = [56, 128], strides = [1, 1]} : vector<112x128xf32> to vector<56x128xf32>
    %c0_16 = arith.constant 0 : index
    %c0_17 = arith.constant 0 : index
    %c0_18 = arith.constant 0 : index
    %c0_19 = arith.constant 0 : index
    %26 = vector.load %arg6[%c0_16, %c0_17, %c0_18, %c0_19] : memref<1x3x56x128xf32, #tpu.memory_space<vmem>>, vector<1x1x56x128xf32>
    %27 = vector.shape_cast %26 : vector<1x1x56x128xf32> to vector<56x128xf32>
    %28 = vector.shape_cast %25 : vector<56x128xf32> to vector<1x1x56x128xf32>
    tpu.vector_store %arg6[%c0_16, %c0_17, %c0_18, %c0_19], %28 {strides = array<i32>} : memref<1x3x56x128xf32, #tpu.memory_space<vmem>>, vector<1x1x56x128xf32>,
    %29 = vector.extract_strided_slice %24 {offsets = [56, 0], sizes = [56, 128], strides = [1, 1]} : vector<112x128xf32> to vector<56x128xf32>
    %c0_20 = arith.constant 0 : index
    %c1 = arith.constant 1 : index
    %c0_21 = arith.constant 0 : index
    %c0_22 = arith.constant 0 : index
    %30 = vector.load %arg6[%c0_20, %c1, %c0_21, %c0_22] : memref<1x3x56x128xf32, #tpu.memory_space<vmem>>, vector<1x1x56x128xf32>
    %31 = vector.shape_cast %30 : vector<1x1x56x128xf32> to vector<56x128xf32>
    %32 = vector.shape_cast %29 : vector<56x128xf32> to vector<1x1x56x128xf32>
    tpu.vector_store %arg6[%c0_20, %c1, %c0_21, %c0_22], %32 {strides = array<i32>} : memref<1x3x56x128xf32, #tpu.memory_space<vmem>>, vector<1x1x56x128xf32>,
    %c0_23 = arith.constant 0 : index
    %c0_24 = arith.constant 0 : index
    %33 = vector.load %arg7[%c0_23, %c0_24] : memref<112x1280xf32, #tpu.memory_space<vmem>>, vector<56x640xf32>
    %c0_25 = arith.constant 0 : index
    %c640_26 = arith.constant 640 : index
    %34 = vector.load %arg7[%c0_25, %c640_26] : memref<112x1280xf32, #tpu.memory_space<vmem>>, vector<56x640xf32>
    %c56 = arith.constant 56 : index
    %c0_27 = arith.constant 0 : index
    %35 = vector.load %arg7[%c56, %c0_27] : memref<112x1280xf32, #tpu.memory_space<vmem>>, vector<56x640xf32>
    %c56_28 = arith.constant 56 : index
    %c640_29 = arith.constant 640 : index
    %36 = vector.load %arg7[%c56_28, %c640_29] : memref<112x1280xf32, #tpu.memory_space<vmem>>, vector<56x640xf32>
    %37 = arith.mulf %33, %35 : vector<56x640xf32>
    %38 = arith.mulf %34, %36 : vector<56x640xf32>
    %39 = arith.addf %37, %38 : vector<56x640xf32>
    %40 = arith.mulf %34, %35 : vector<56x640xf32>
    %41 = arith.mulf %33, %36 : vector<56x640xf32>
    %42 = arith.subf %40, %41 : vector<56x640xf32>
    %43 = arith.mulf %39, %39 : vector<56x640xf32>
    %44 = arith.mulf %42, %42 : vector<56x640xf32>
    %45 = arith.addf %43, %44 : vector<56x640xf32>
    %cst_30 = arith.constant 0.000000e+00 : f32
    %46 = vector.broadcast %cst_30 : f32 to vector<56x640xf32>
    %47 = arith.cmpf ogt, %45, %46 : vector<56x640xf32>
    %cst_31 = arith.constant 1.000000e+00 : f32
    %48 = vector.broadcast %cst_31 : f32 to vector<56x640xf32>
    %49 = arith.select %47, %45, %48 : vector<56x640xi1>, vector<56x640xf32>
    %50 = math.rsqrt %49 : vector<56x640xf32>
    %51 = arith.mulf %39, %50 : vector<56x640xf32>
    %cst_32 = arith.constant 1.000000e+00 : f32
    %52 = vector.broadcast %cst_32 : f32 to vector<56x640xf32>
    %53 = arith.select %47, %51, %52 : vector<56x640xi1>, vector<56x640xf32>
    %54 = arith.mulf %42, %50 : vector<56x640xf32>
    %cst_33 = arith.constant 0.000000e+00 : f32
    %55 = vector.broadcast %cst_33 : f32 to vector<56x640xf32>
    %56 = arith.select %47, %54, %55 : vector<56x640xi1>, vector<56x640xf32>
    %57 = arith.truncf %53 : vector<56x640xf32> to vector<56x640xbf16>
    %c0_34 = arith.constant 0 : index
    %c0_35 = arith.constant 0 : index
    %58 = vector.load %arg4[%c0_34, %c0_35] : memref<640x128xbf16, #tpu.memory_space<vmem>>, vector<640x128xbf16>
    %cst_36 = arith.constant dense<0.000000e+00> : vector<56x128xf32>
    %59 = tpu.matmul %57, %58, %cst_36 {dimension_numbers = #tpu.dot_dimension_numbers<[1], [0], [0], [1], [0, 0, 1, 1], [], []>} : vector<56x640xbf16>, vector<640x128xbf16>, vector<56x128xf32> -> vector<56x128xf32>
    %60 = arith.truncf %56 : vector<56x640xf32> to vector<56x640xbf16>
    %c0_37 = arith.constant 0 : index
    %c0_38 = arith.constant 0 : index
    %61 = vector.load %arg5[%c0_37, %c0_38] : memref<640x128xbf16, #tpu.memory_space<vmem>>, vector<640x128xbf16>
    %cst_39 = arith.constant dense<0.000000e+00> : vector<56x128xf32>
    %62 = tpu.matmul %60, %61, %cst_39 {dimension_numbers = #tpu.dot_dimension_numbers<[1], [0], [0], [1], [0, 0, 1, 1], [], []>} : vector<56x640xbf16>, vector<640x128xbf16>, vector<56x128xf32> -> vector<56x128xf32>
    %63 = arith.addf %59, %62 : vector<56x128xf32>
    %c0_40 = arith.constant 0 : index
    %c2 = arith.constant 2 : index
    %c0_41 = arith.constant 0 : index
    %c0_42 = arith.constant 0 : index
    %64 = vector.load %arg6[%c0_40, %c2, %c0_41, %c0_42] : memref<1x3x56x128xf32, #tpu.memory_space<vmem>>, vector<1x1x56x128xf32>
    %65 = vector.shape_cast %64 : vector<1x1x56x128xf32> to vector<56x128xf32>
    %66 = vector.shape_cast %63 : vector<56x128xf32> to vector<1x1x56x128xf32>
    tpu.vector_store %arg6[%c0_40, %c2, %c0_41, %c0_42], %66 {strides = array<i32>} : memref<1x3x56x128xf32, #tpu.memory_space<vmem>>, vector<1x1x56x128xf32>,
    return
  }
  func.func @transform_0(%arg0: i32) -> (i32, i32, i32) {
    %c0_i32 = arith.constant 0 : i32
    %c0_i32_0 = arith.constant 0 : i32
    %c0_i32_1 = arith.constant 0 : i32
    return %arg0, %c0_i32, %c0_i32_0 : i32, i32, i32
  }
  func.func @transform_1(%arg0: i32) -> (i32, i32) {
    %c0_i32 = arith.constant 0 : i32
    %c0_i32_0 = arith.constant 0 : i32
    %c0_i32_1 = arith.constant 0 : i32
    return %c0_i32, %c0_i32_0 : i32, i32
  }
  func.func @transform_2(%arg0: i32) -> (i32, i32) {
    %c0_i32 = arith.constant 0 : i32
    %c0_i32_0 = arith.constant 0 : i32
    %c0_i32_1 = arith.constant 0 : i32
    return %c0_i32, %c0_i32_0 : i32, i32
  }
  func.func @transform_3(%arg0: i32) -> (i32, i32) {
    %c0_i32 = arith.constant 0 : i32
    %c0_i32_0 = arith.constant 0 : i32
    %c0_i32_1 = arith.constant 0 : i32
    return %c0_i32, %c0_i32_0 : i32, i32
  }
  func.func @transform_4(%arg0: i32) -> (i32, i32) {
    %c0_i32 = arith.constant 0 : i32
    %c0_i32_0 = arith.constant 0 : i32
    %c0_i32_1 = arith.constant 0 : i32
    return %c0_i32, %c0_i32_0 : i32, i32
  }
  func.func @transform_5(%arg0: i32) -> (i32, i32, i32, i32) {
    %c0_i32 = arith.constant 0 : i32
    %c0_i32_0 = arith.constant 0 : i32
    %c0_i32_1 = arith.constant 0 : i32
    %c0_i32_2 = arith.constant 0 : i32
    return %arg0, %c0_i32, %c0_i32_0, %c0_i32_1 : i32, i32, i32, i32
  }
}

module attributes {stable_mosaic.version = 11 : i64} {
  func.func @_proj_kernel(%arg0: i32, %arg1: memref<2x2560xf32, #tpu.memory_space<vmem>>, %arg2: memref<2560x128xbf16, #tpu.memory_space<vmem>>, %arg3: memref<2x128xf32, #tpu.memory_space<vmem>>) attributes {dimension_semantics = [#tpu.dimension_semantics<arbitrary>], iteration_bounds = array<i64: 4>, scalar_prefetch = 0 : i64, scratch_operands = 0 : i64, tpu.core_type = #tpu.core_type<tc>, window_params = [{transform_indices = @transform_0, window_bounds = array<i64: 2, 2560>}, {transform_indices = @transform_1, window_bounds = array<i64: 2560, 128>}, {pipeline_mode = #tpu.pipeline_mode<synchronous>, transform_indices = @transform_2, window_bounds = array<i64: 2, 128>}]} {
    %c0_i32 = arith.constant 0 : i32
    %0 = arith.cmpi eq, %arg0, %c0_i32 : i32
    %1 = arith.extui %0 : i1 to i32
    %c0_i32_0 = arith.constant 0 : i32
    %2 = arith.cmpi ne, %1, %c0_i32_0 : i32
    scf.if %2 {
      %cst_8 = arith.constant 0.000000e+00 : f32
      %10 = vector.broadcast %cst_8 : f32 to vector<2x128xf32>
      %c0_9 = arith.constant 0 : index
      %c0_10 = arith.constant 0 : index
      %11 = vector.load %arg3[%c0_9, %c0_10] : memref<2x128xf32, #tpu.memory_space<vmem>>, vector<2x128xf32>
      tpu.vector_store %arg3[%c0_9, %c0_10], %10 {strides = array<i32>} : memref<2x128xf32, #tpu.memory_space<vmem>>, vector<2x128xf32>,
    } else {
    }
    %c0 = arith.constant 0 : index
    %c0_1 = arith.constant 0 : index
    %3 = vector.load %arg3[%c0, %c0_1] : memref<2x128xf32, #tpu.memory_space<vmem>>, vector<2x128xf32>
    %c0_2 = arith.constant 0 : index
    %c0_3 = arith.constant 0 : index
    %4 = vector.load %arg1[%c0_2, %c0_3] : memref<2x2560xf32, #tpu.memory_space<vmem>>, vector<2x2560xf32>
    %5 = arith.truncf %4 : vector<2x2560xf32> to vector<2x2560xbf16>
    %c0_4 = arith.constant 0 : index
    %c0_5 = arith.constant 0 : index
    %6 = vector.load %arg2[%c0_4, %c0_5] : memref<2560x128xbf16, #tpu.memory_space<vmem>>, vector<2560x128xbf16>
    %cst = arith.constant dense<0.000000e+00> : vector<2x128xf32>
    %7 = tpu.matmul %5, %6, %cst {dimension_numbers = #tpu.dot_dimension_numbers<[1], [0], [0], [1], [0, 0, 1, 1], [], []>} : vector<2x2560xbf16>, vector<2560x128xbf16>, vector<2x128xf32> -> vector<2x128xf32>
    %8 = arith.addf %3, %7 : vector<2x128xf32>
    %c0_6 = arith.constant 0 : index
    %c0_7 = arith.constant 0 : index
    %9 = vector.load %arg3[%c0_6, %c0_7] : memref<2x128xf32, #tpu.memory_space<vmem>>, vector<2x128xf32>
    tpu.vector_store %arg3[%c0_6, %c0_7], %8 {strides = array<i32>} : memref<2x128xf32, #tpu.memory_space<vmem>>, vector<2x128xf32>,
    return
  }
  func.func @transform_0(%arg0: i32) -> (i32, i32) {
    %c0_i32 = arith.constant 0 : i32
    %c0_i32_0 = arith.constant 0 : i32
    return %c0_i32, %arg0 : i32, i32
  }
  func.func @transform_1(%arg0: i32) -> (i32, i32) {
    %c0_i32 = arith.constant 0 : i32
    %c0_i32_0 = arith.constant 0 : i32
    return %arg0, %c0_i32 : i32, i32
  }
  func.func @transform_2(%arg0: i32) -> (i32, i32) {
    %c0_i32 = arith.constant 0 : i32
    %c0_i32_0 = arith.constant 0 : i32
    %c0_i32_1 = arith.constant 0 : i32
    return %c0_i32, %c0_i32_0 : i32, i32
  }
}

</mosaic_0001>

<llo_original>
// kernel: _lambda_.3
$region0: #{_lambda_.3}
  #allocation0 [shape = 'u32[]', space=smem, size = 0x4, offset = 0x4, fixed_abs, tag = 'smem constant byte address 0x4 - core index']
  #allocation1 [shape = 'u32[72,128]{1,0:T(1,128)}', space=vmem, size = 0x9000, scoped, tag = 'internal scratch']
  %s0 = inlined_call_operand.vmem [shape: f32[2,10240], index: 0, kind: input, shape index: {}]
  %s1 = inlined_call_operand.vmem [shape: bf16[10240,128], index: 1, kind: input, shape index: {}]
  %s2 = inlined_call_operand.hbm [shape: f32[2,128], index: 2, kind: output, shape index: {}]
  %s3 = sld [smem:[#allocation0]]
  $region45: #{_lambda_.3} parent=0
    _
  %s5 = ssub.s32 1, %s3
  %s6 = scalar_select 0, %s5, %s3
  $region1: #{_lambda_.3} parent=0
    #allocation2 [shape = 'u8[1024]{0}', space=vmem, size = 0x400, scoped, tag = 'output window, operand 0, single buffered']
    #allocation3 [shape = 's32[2]{0}', space=sflag, size = 0x8, scoped, tag = 'scoped memory for _lambda_.3']
    %7 = vsyncpa [#allocation3], 0
    loop: start=0, step=1, limit=6
    $region2: #{_lambda_.3} parent=1 // loop_pre_header
      _
    $region3: #{_lambda_.3} parent=1 // loop_header
      %s9 = sphi 0, %s13
      %p10 = scmp.ge.s32.totalorder %s9, 6
      %s19 = sphi 0, %s21
      %s22 = sphi 0, %s19
      %s23 = sphi 0, %s22
      %s39 = sphi 0, %s23
      %s45 = sphi 0, %s47
      %s48 = sphi 0, %s45
      %s49 = sphi 0, %s48
      %s65 = sphi 0, %s49
      %s69 = sphi 0, %s69
      %s71 = sphi 0, %s69
      %s72 = sphi 0, %s71
      %s86 = sphi 0, %s72
    $region4: #{_lambda_.3} parent=1 // loop_header_branch
      %12 = sbr.rel (%p10) target = $region8
    $region5: #{_lambda_.3} parent=1 // loop_body
      %s14 = ssub.s32 %s9, 1
      %s15 = ssub.s32 %s9, 2
      %s16 = sadd.s32 %s9, 1
      %s17 = ssub.s32 %s9, %s16
      %p18 = scmp.eq.s32.totalorder %s17, 0
      %s20 = sadd.s32 %s19, 1
      %s21 = scalar_select %p18, %s19, %s20
      %p24 = pneg %p18
      %p25 = scmp.eq.s32.totalorder %s9, 3
      %p26 = por %p24, %p25
      %p27 = scmp.ne.s32.totalorder %s19, %s22
      %p28 = scmp.eq.s32.totalorder %s9, 0
      %p29 = por %p27, %p28
      %p30 = scmp.ne.s32.totalorder %s19, %s22
      %p31 = scmp.eq.s32.totalorder %s14, 3
      %p32 = por %p30, %p31
      %p33 = scmp.ne.s32.totalorder %s22, %s23
      %p34 = scmp.eq.s32.totalorder %s14, 0
      %p35 = por %p33, %p34
      %p36 = scmp.ne.s32.totalorder %s22, %s23
      %p37 = scmp.eq.s32.totalorder %s15, 3
      %p38 = por %p36, %p37
      %p40 = scmp.ne.s32.totalorder %s23, %s39
      %p41 = scmp.eq.s32.totalorder %s15, 0
      %p42 = por %p40, %p41
      %s43 = ssub.s32 %s9, %s16
      %p44 = scmp.eq.s32.totalorder %s43, 0
      %s46 = sadd.s32 %s45, 1
      %s47 = scalar_select %p44, %s45, %s46
      %p50 = pneg %p44
      %p51 = scmp.eq.s32.totalorder %s9, 3
      %p52 = por %p50, %p51
      %p53 = scmp.ne.s32.totalorder %s45, %s48
      %p54 = scmp.eq.s32.totalorder %s9, 0
      %p55 = por %p53, %p54
      %p56 = scmp.ne.s32.totalorder %s45, %s48
      %p57 = scmp.eq.s32.totalorder %s14, 3
      %p58 = por %p56, %p57
      %p59 = scmp.ne.s32.totalorder %s48, %s49
      %p60 = scmp.eq.s32.totalorder %s14, 0
      %p61 = por %p59, %p60
      %p62 = scmp.ne.s32.totalorder %s48, %s49
      %p63 = scmp.eq.s32.totalorder %s15, 3
      %p64 = por %p62, %p63
      %p66 = scmp.ne.s32.totalorder %s49, %s65
      %p67 = scmp.eq.s32.totalorder %s15, 0
      %p68 = por %p66, %p67
      %s70 = sadd.s32 %s69, 1
      %p73 = scmp.eq.s32.totalorder %s9, 3
      %p74 = scmp.ne.s32.totalorder %s69, %s71
      %p75 = scmp.eq.s32.totalorder %s9, 0
      %p76 = por %p74, %p75
      %p77 = scmp.ne.s32.totalorder %s69, %s71
      %p78 = scmp.eq.s32.totalorder %s14, 3
      %p79 = por %p77, %p78
      %p80 = scmp.ne.s32.totalorder %s71, %s72
      %p81 = scmp.eq.s32.totalorder %s14, 0
      %p82 = por %p80, %p81
      %p83 = scmp.ne.s32.totalorder %s71, %s72
      %p84 = scmp.eq.s32.totalorder %s15, 3
      %p85 = por %p83, %p84
      %p87 = scmp.ne.s32.totalorder %s72, %s86
      %p88 = scmp.eq.s32.totalorder %s15, 0
      %p89 = por %p87, %p88
      %p90 = scmp.le.s32.totalorder 1, %s9
      %p91 = scmp.lt.s32.totalorder %s9, 5
      %p92 = pnand %p90, %p91
      %p93 = pneg %p92
      // Predicated region
      $region9: #{_lambda_.3} parent=5 // pred_check
        _
      $region10: #{_lambda_.3} parent=5 // pred_check_branch
        %95 = sbr.rel (%p92) target = $region12
      $region11: #{_lambda_.3} parent=5 // pred_region
        %s96 = ssub.s32 %s9, 1
      $region12: #{_lambda_.3} parent=5 // pred_fallthru
        _
      %p97 = scmp.lt.s32.totalorder %s9, 4
      // Predicated region
      $region13: #{_lambda_.3} parent=5 // pred_check
        %p98 = pneg %p97
      $region14: #{_lambda_.3} parent=5 // pred_check_branch
        %100 = sbr.rel (%p98) target = $region16
      $region15: #{_lambda_.3} parent=5 // pred_region
        // Predicated region
        $region17: #{_lambda_.3} parent=15 // pred_check
          %p101 = pneg %p29
        $region18: #{_lambda_.3} parent=15 // pred_check_branch
          %103 = sbr.rel (%p101) target = $region20
        $region19: #{_lambda_.3} parent=15 // pred_region
          %s104 = smul.u32 20, %s9
          %p105 = scmp.lt.s32.totalorder %s104, 79
          %s106 = scalar_select %p105, %s104, 79
          %s107 = smul.addr %s106, 2
          %s108 = scalar_lea.vmem %s0, %s107
          %s109 = smul.u32 20, %s9
        $region20: #{_lambda_.3} parent=15 // pred_fallthru
          _
        // Predicated region
        $region21: #{_lambda_.3} parent=15 // pred_check
          %p110 = pneg %p55
        $region22: #{_lambda_.3} parent=15 // pred_check_branch
          %112 = sbr.rel (%p110) target = $region24
        $region23: #{_lambda_.3} parent=15 // pred_region
          %s113 = smul.u32 320, %s9
          %p114 = scmp.lt.s32.totalorder %s113, 1279
          %s115 = scalar_select %p114, %s113, 1279
          %s116 = smul.addr %s115, 4
          %s117 = scalar_lea.vmem %s1, %s116
          %s118 = smul.u32 320, %s9
        $region24: #{_lambda_.3} parent=15 // pred_fallthru
          _
      $region16: #{_lambda_.3} parent=5 // pred_fallthru
        _
      %p119 = scmp.le.s32.totalorder 1, %s9
      %p120 = scmp.lt.s32.totalorder %s9, 5
      %p121 = pnand %p119, %p120
      %p122 = pneg %p121
      // Predicated region
      $region25: #{_lambda_.3} parent=5 // pred_check
        _
      $region26: #{_lambda_.3} parent=5 // pred_check_branch
        %124 = sbr.rel (%p121) target = $region28
      $region27: #{_lambda_.3} parent=5 // pred_region
        %s125 = ssub.s32 %s9, 1
        %s126 = smul.u32 20, %s14
        %p127 = scmp.lt.s32.totalorder %s126, 79
        %s128 = scalar_select %p127, %s126, 79
        %s129 = smul.addr %s128, 2
        %s130 = scalar_lea.vmem %s0, %s129
        %p131 = pneg %p35
        %p132 = pneg %p32
        %s133 = smul.u32 320, %s14
        %p134 = scmp.lt.s32.totalorder %s133, 1279
        %s135 = scalar_select %p134, %s133, 1279
        %s136 = smul.addr %s135, 4
        %s137 = scalar_lea.vmem %s1, %s136
        %p138 = pneg %p61
        %p139 = pneg %p58
        %p140 = pneg %p82
        %p141 = pneg %p79
        %s142 = smul.u32 20, %s14
        %p143 = scmp.lt.s32.totalorder %s142, 79
        %s144 = scalar_select %p143, %s142, 79
        %s145 = smul.addr %s144, 2
        %s146 = scalar_lea.vmem %s0, %s145
        %s147 = smul.u32 20, %s14
        %s148 = smul.u32 320, %s14
        %p149 = scmp.lt.s32.totalorder %s148, 1279
        %s150 = scalar_select %p149, %s148, 1279
        %s151 = smul.addr %s150, 4
        %s152 = scalar_lea.vmem %s1, %s151
        %s153 = smul.u32 320, %s14
        %p154 = scmp.eq.s32.totalorder %s14, 0
        // Predicated region
        $region29: #{_lambda_.3} parent=27 // pred_check
          %p155 = pneg %p154
        $region30: #{_lambda_.3} parent=27 // pred_check_branch
          %157 = sbr.rel (%p155) target = $region32
        $region31: #{_lambda_.3} parent=27 // pred_region
          %158 = vst [vmem:[#allocation2] sm:$0x3] 0.0
        $region32: #{_lambda_.3} parent=27 // pred_fallthru
          _
        %v159 = vld [vmem:[#allocation2] sm:$0x3]
        %v160 = vld [vmem:[%s146] sm:$0xff]
        %v161 = vld [vmem:[%s146 + $0x8] sm:$0xff]
        %v162 = vld [vmem:[%s146 + $0x10] sm:$0xff]
        %v163 = vld [vmem:[%s146 + $0x18] sm:$0xff]
        %v164 = vld [vmem:[%s146 + $0x20] sm:$0xff]
        %170 = vst [vmem:[#allocation1] ss:$4 sm:$0xff] %v160
        %s171 = scalar_lea.vmem [#allocation1], 32
        %172 = vst [vmem:[%s171] ss:$4 sm:$0xff] %v161
        %v173 = vld.sshfl [vmem:[#allocation1] sm:$0xff pattern:$0x73625140]
        %v174 = vld.sshfl [vmem:[#allocation1 + $0x8] sm:$0xff pattern:$0x73625140]
        %v175 = vld.sshfl [vmem:[#allocation1 + $0x10] sm:$0xff pattern:$0x73625140]
        %v176 = vld.sshfl [vmem:[#allocation1 + $0x18] sm:$0xff pattern:$0x73625140]
        %v177 = vld.sshfl [vmem:[#allocation1 + $0x20] sm:$0xff pattern:$0x73625140]
        %v178 = vld.sshfl [vmem:[#allocation1 + $0x28] sm:$0xff pattern:$0x73625140]
        %v179 = vld.sshfl [vmem:[#allocation1 + $0x30] sm:$0xff pattern:$0x73625140]
        %v180 = vld.sshfl [vmem:[#allocation1 + $0x38] sm:$0xff pattern:$0x73625140]
        %181 = vst [vmem:[#allocation1] ss:$4 sm:$0xff] %v162
        %182 = vst [vmem:[%s171] ss:$4 sm:$0xff] %v163
        %v183 = vld.sshfl [vmem:[#allocation1] sm:$0xff pattern:$0x73625140]
        %v184 = vld.sshfl [vmem:[#allocation1 + $0x8] sm:$0xff pattern:$0x73625140]
        %v185 = vld.sshfl [vmem:[#allocation1 + $0x10] sm:$0xff pattern:$0x73625140]
        %v186 = vld.sshfl [vmem:[#allocation1 + $0x18] sm:$0xff pattern:$0x73625140]
        %v187 = vld.sshfl [vmem:[#allocation1 + $0x20] sm:$0xff pattern:$0x73625140]
        %v188 = vld.sshfl [vmem:[#allocation1 + $0x28] sm:$0xff pattern:$0x73625140]
        %v189 = vld.sshfl [vmem:[#allocation1 + $0x30] sm:$0xff pattern:$0x73625140]
        %v190 = vld.sshfl [vmem:[#allocation1 + $0x38] sm:$0xff pattern:$0x73625140]
        %191 = vst [vmem:[#allocation1] ss:$4 sm:$0xff] %v164
        %v192 = vld.sshfl [vmem:[#allocation1] sm:$0xff pattern:$0x73625140]
        %v193 = vld.sshfl [vmem:[#allocation1 + $0x8] sm:$0xff pattern:$0x73625140]
        %v194 = vld.sshfl [vmem:[#allocation1 + $0x10] sm:$0xff pattern:$0x73625140]
        %v195 = vld.sshfl [vmem:[#allocation1 + $0x18] sm:$0xff pattern:$0x73625140]
        %v216 = vpack.c.bf16 %v173, %v173
        %v217 = vpack.c.bf16 %v174, %v174
        %v218 = vpack.c.bf16 %v175, %v175
        %v219 = vpack.c.bf16 %v176, %v176
        %v220 = vpack.c.bf16 %v177, %v177
        %v221 = vpack.c.bf16 %v178, %v178
        %v222 = vpack.c.bf16 %v179, %v179
        %v223 = vpack.c.bf16 %v180, %v180
        %v224 = vpack.c.bf16 %v183, %v183
        %v225 = vpack.c.bf16 %v184, %v184
        %v226 = vpack.c.bf16 %v185, %v185
        %v227 = vpack.c.bf16 %v186, %v186
        %v228 = vpack.c.bf16 %v187, %v187
        %v229 = vpack.c.bf16 %v188, %v188
        %v230 = vpack.c.bf16 %v189, %v189
        %v231 = vpack.c.bf16 %v190, %v190
        %v232 = vpack.c.bf16 %v192, %v192
        %v233 = vpack.c.bf16 %v193, %v193
        %v234 = vpack.c.bf16 %v194, %v194
        %v235 = vpack.c.bf16 %v195, %v195
        %v236 = vld [vmem:[%s152] sm:$0xf]
        %v237 = vld [vmem:[%s152 + $0x4] sm:$0xf]
        %v238 = vld [vmem:[%s152 + $0x8] sm:$0xf]
        %v239 = vld [vmem:[%s152 + $0xc] sm:$0xf]
        %v240 = vld [vmem:[%s152 + $0x10] sm:$0xf]
        %v241 = vld [vmem:[%s152 + $0x14] sm:$0xf]
        %v242 = vld [vmem:[%s152 + $0x18] sm:$0xf]
        %v243 = vld [vmem:[%s152 + $0x1c] sm:$0xf]
        %v244 = vld [vmem:[%s152 + $0x20] sm:$0xf]
        %v245 = vld [vmem:[%s152 + $0x24] sm:$0xf]
        %v246 = vld [vmem:[%s152 + $0x28] sm:$0xf]
        %v247 = vld [vmem:[%s152 + $0x2c] sm:$0xf]
        %v248 = vld [vmem:[%s152 + $0x30] sm:$0xf]
        %v249 = vld [vmem:[%s152 + $0x34] sm:$0xf]
        %v250 = vld [vmem:[%s152 + $0x38] sm:$0xf]
        %v251 = vld [vmem:[%s152 + $0x3c] sm:$0xf]
        %v252 = vld [vmem:[%s152 + $0x40] sm:$0xf]
        %v253 = vld [vmem:[%s152 + $0x44] sm:$0xf]
        %v254 = vld [vmem:[%s152 + $0x48] sm:$0xf]
        %v255 = vld [vmem:[%s152 + $0x4c] sm:$0xf]
        %v256 = vld [vmem:[%s152 + $0x50] sm:$0xf]
        %v257 = vld [vmem:[%s152 + $0x54] sm:$0xf]
        %v258 = vld [vmem:[%s152 + $0x58] sm:$0xf]
        %v259 = vld [vmem:[%s152 + $0x5c] sm:$0xf]
        %v260 = vld [vmem:[%s152 + $0x60] sm:$0xf]
        %v261 = vld [vmem:[%s152 + $0x64] sm:$0xf]
        %v262 = vld [vmem:[%s152 + $0x68] sm:$0xf]
        %v263 = vld [vmem:[%s152 + $0x6c] sm:$0xf]
        %v264 = vld [vmem:[%s152 + $0x70] sm:$0xf]
        %v265 = vld [vmem:[%s152 + $0x74] sm:$0xf]
        %v266 = vld [vmem:[%s152 + $0x78] sm:$0xf]
        %v267 = vld [vmem:[%s152 + $0x7c] sm:$0xf]
        %v268 = vld [vmem:[%s152 + $0x80] sm:$0xf]
        %v269 = vld [vmem:[%s152 + $0x84] sm:$0xf]
        %v270 = vld [vmem:[%s152 + $0x88] sm:$0xf]
        %v271 = vld [vmem:[%s152 + $0x8c] sm:$0xf]
        %v272 = vld [vmem:[%s152 + $0x90] sm:$0xf]
        %v273 = vld [vmem:[%s152 + $0x94] sm:$0xf]
        %v274 = vld [vmem:[%s152 + $0x98] sm:$0xf]
        %v275 = vld [vmem:[%s152 + $0x9c] sm:$0xf]
        %v276 = vld [vmem:[%s152 + $0xa0] sm:$0xf]
        %v277 = vld [vmem:[%s152 + $0xa4] sm:$0xf]
        %v278 = vld [vmem:[%s152 + $0xa8] sm:$0xf]
        %v279 = vld [vmem:[%s152 + $0xac] sm:$0xf]
        %v280 = vld [vmem:[%s152 + $0xb0] sm:$0xf]
        %v281 = vld [vmem:[%s152 + $0xb4] sm:$0xf]
        %v282 = vld [vmem:[%s152 + $0xb8] sm:$0xf]
        %v283 = vld [vmem:[%s152 + $0xbc] sm:$0xf]
        %v284 = vld [vmem:[%s152 + $0xc0] sm:$0xf]
        %v285 = vld [vmem:[%s152 + $0xc4] sm:$0xf]
        %v286 = vld [vmem:[%s152 + $0xc8] sm:$0xf]
        %v287 = vld [vmem:[%s152 + $0xcc] sm:$0xf]
        %v288 = vld [vmem:[%s152 + $0xd0] sm:$0xf]
        %v289 = vld [vmem:[%s152 + $0xd4] sm:$0xf]
        %v290 = vld [vmem:[%s152 + $0xd8] sm:$0xf]
        %v291 = vld [vmem:[%s152 + $0xdc] sm:$0xf]
        %v292 = vld [vmem:[%s152 + $0xe0] sm:$0xf]
        %v293 = vld [vmem:[%s152 + $0xe4] sm:$0xf]
        %v294 = vld [vmem:[%s152 + $0xe8] sm:$0xf]
        %v295 = vld [vmem:[%s152 + $0xec] sm:$0xf]
        %v296 = vld [vmem:[%s152 + $0xf0] sm:$0xf]
        %v297 = vld [vmem:[%s152 + $0xf4] sm:$0xf]
        %v298 = vld [vmem:[%s152 + $0xf8] sm:$0xf]
        %v299 = vld [vmem:[%s152 + $0xfc] sm:$0xf]
        %v300 = vld [vmem:[%s152 + $0x100] sm:$0xf]
        %v301 = vld [vmem:[%s152 + $0x104] sm:$0xf]
        %v302 = vld [vmem:[%s152 + $0x108] sm:$0xf]
        %v303 = vld [vmem:[%s152 + $0x10c] sm:$0xf]
        %v304 = vld [vmem:[%s152 + $0x110] sm:$0xf]
        %v305 = vld [vmem:[%s152 + $0x114] sm:$0xf]
        %v306 = vld [vmem:[%s152 + $0x118] sm:$0xf]
        %v307 = vld [vmem:[%s152 + $0x11c] sm:$0xf]
        %v308 = vld [vmem:[%s152 + $0x120] sm:$0xf]
        %v309 = vld [vmem:[%s152 + $0x124] sm:$0xf]
        %v310 = vld [vmem:[%s152 + $0x128] sm:$0xf]
        %v311 = vld [vmem:[%s152 + $0x12c] sm:$0xf]
        %v312 = vld [vmem:[%s152 + $0x130] sm:$0xf]
        %v313 = vld [vmem:[%s152 + $0x134] sm:$0xf]
        %v314 = vld [vmem:[%s152 + $0x138] sm:$0xf]
        %v315 = vld [vmem:[%s152 + $0x13c] sm:$0xf]
        %v316 = vld [vmem:[%s152 + $0x140] sm:$0xf]
        %v317 = vld [vmem:[%s152 + $0x144] sm:$0xf]
        %v318 = vld [vmem:[%s152 + $0x148] sm:$0xf]
        %v319 = vld [vmem:[%s152 + $0x14c] sm:$0xf]
        %v320 = vld [vmem:[%s152 + $0x150] sm:$0xf]
        %v321 = vld [vmem:[%s152 + $0x154] sm:$0xf]
        %v322 = vld [vmem:[%s152 + $0x158] sm:$0xf]
        %v323 = vld [vmem:[%s152 + $0x15c] sm:$0xf]
        %v324 = vld [vmem:[%s152 + $0x160] sm:$0xf]
        %v325 = vld [vmem:[%s152 + $0x164] sm:$0xf]
        %v326 = vld [vmem:[%s152 + $0x168] sm:$0xf]
        %v327 = vld [vmem:[%s152 + $0x16c] sm:$0xf]
        %v328 = vld [vmem:[%s152 + $0x170] sm:$0xf]
        %v329 = vld [vmem:[%s152 + $0x174] sm:$0xf]
        %v330 = vld [vmem:[%s152 + $0x178] sm:$0xf]
        %v331 = vld [vmem:[%s152 + $0x17c] sm:$0xf]
        %v332 = vld [vmem:[%s152 + $0x180] sm:$0xf]
        %v333 = vld [vmem:[%s152 + $0x184] sm:$0xf]
        %v334 = vld [vmem:[%s152 + $0x188] sm:$0xf]
        %v335 = vld [vmem:[%s152 + $0x18c] sm:$0xf]
        %v336 = vld [vmem:[%s152 + $0x190] sm:$0xf]
        %v337 = vld [vmem:[%s152 + $0x194] sm:$0xf]
        %v338 = vld [vmem:[%s152 + $0x198] sm:$0xf]
        %v339 = vld [vmem:[%s152 + $0x19c] sm:$0xf]
        %v340 = vld [vmem:[%s152 + $0x1a0] sm:$0xf]
        %v341 = vld [vmem:[%s152 + $0x1a4] sm:$0xf]
        %v342 = vld [vmem:[%s152 + $0x1a8] sm:$0xf]
        %v343 = vld [vmem:[%s152 + $0x1ac] sm:$0xf]
        %v344 = vld [vmem:[%s152 + $0x1b0] sm:$0xf]
        %v345 = vld [vmem:[%s152 + $0x1b4] sm:$0xf]
        %v346 = vld [vmem:[%s152 + $0x1b8] sm:$0xf]
        %v347 = vld [vmem:[%s152 + $0x1bc] sm:$0xf]
        %v348 = vld [vmem:[%s152 + $0x1c0] sm:$0xf]
        %v349 = vld [vmem:[%s152 + $0x1c4] sm:$0xf]
        %v350 = vld [vmem:[%s152 + $0x1c8] sm:$0xf]
        %v351 = vld [vmem:[%s152 + $0x1cc] sm:$0xf]
        %v352 = vld [vmem:[%s152 + $0x1d0] sm:$0xf]
        %v353 = vld [vmem:[%s152 + $0x1d4] sm:$0xf]
        %v354 = vld [vmem:[%s152 + $0x1d8] sm:$0xf]
        %v355 = vld [vmem:[%s152 + $0x1dc] sm:$0xf]
        %v356 = vld [vmem:[%s152 + $0x1e0] sm:$0xf]
        %v357 = vld [vmem:[%s152 + $0x1e4] sm:$0xf]
        %v358 = vld [vmem:[%s152 + $0x1e8] sm:$0xf]
        %v359 = vld [vmem:[%s152 + $0x1ec] sm:$0xf]
        %v360 = vld [vmem:[%s152 + $0x1f0] sm:$0xf]
        %v361 = vld [vmem:[%s152 + $0x1f4] sm:$0xf]
        %v362 = vld [vmem:[%s152 + $0x1f8] sm:$0xf]
        %v363 = vld [vmem:[%s152 + $0x1fc] sm:$0xf]
        %v364 = vld [vmem:[%s152 + $0x200] sm:$0xf]
        %v365 = vld [vmem:[%s152 + $0x204] sm:$0xf]
        %v366 = vld [vmem:[%s152 + $0x208] sm:$0xf]
        %v367 = vld [vmem:[%s152 + $0x20c] sm:$0xf]
        %v368 = vld [vmem:[%s152 + $0x210] sm:$0xf]
        %v369 = vld [vmem:[%s152 + $0x214] sm:$0xf]
        %v370 = vld [vmem:[%s152 + $0x218] sm:$0xf]
        %v371 = vld [vmem:[%s152 + $0x21c] sm:$0xf]
        %v372 = vld [vmem:[%s152 + $0x220] sm:$0xf]
        %v373 = vld [vmem:[%s152 + $0x224] sm:$0xf]
        %v374 = vld [vmem:[%s152 + $0x228] sm:$0xf]
        %v375 = vld [vmem:[%s152 + $0x22c] sm:$0xf]
        %v376 = vld [vmem:[%s152 + $0x230] sm:$0xf]
        %v377 = vld [vmem:[%s152 + $0x234] sm:$0xf]
        %v378 = vld [vmem:[%s152 + $0x238] sm:$0xf]
        %v379 = vld [vmem:[%s152 + $0x23c] sm:$0xf]
        %v380 = vld [vmem:[%s152 + $0x240] sm:$0xf]
        %v381 = vld [vmem:[%s152 + $0x244] sm:$0xf]
        %v382 = vld [vmem:[%s152 + $0x248] sm:$0xf]
        %v383 = vld [vmem:[%s152 + $0x24c] sm:$0xf]
        %v384 = vld [vmem:[%s152 + $0x250] sm:$0xf]
        %v385 = vld [vmem:[%s152 + $0x254] sm:$0xf]
        %v386 = vld [vmem:[%s152 + $0x258] sm:$0xf]
        %v387 = vld [vmem:[%s152 + $0x25c] sm:$0xf]
        %v388 = vld [vmem:[%s152 + $0x260] sm:$0xf]
        %v389 = vld [vmem:[%s152 + $0x264] sm:$0xf]
        %v390 = vld [vmem:[%s152 + $0x268] sm:$0xf]
        %v391 = vld [vmem:[%s152 + $0x26c] sm:$0xf]
        %v392 = vld [vmem:[%s152 + $0x270] sm:$0xf]
        %v393 = vld [vmem:[%s152 + $0x274] sm:$0xf]
        %v394 = vld [vmem:[%s152 + $0x278] sm:$0xf]
        %v395 = vld [vmem:[%s152 + $0x27c] sm:$0xf]
        %v396 = vld [vmem:[%s152 + $0x280] sm:$0xf]
        %v397 = vld [vmem:[%s152 + $0x284] sm:$0xf]
        %v398 = vld [vmem:[%s152 + $0x288] sm:$0xf]
        %v399 = vld [vmem:[%s152 + $0x28c] sm:$0xf]
        %v400 = vld [vmem:[%s152 + $0x290] sm:$0xf]
        %v401 = vld [vmem:[%s152 + $0x294] sm:$0xf]
        %v402 = vld [vmem:[%s152 + $0x298] sm:$0xf]
        %v403 = vld [vmem:[%s152 + $0x29c] sm:$0xf]
        %v404 = vld [vmem:[%s152 + $0x2a0] sm:$0xf]
        %v405 = vld [vmem:[%s152 + $0x2a4] sm:$0xf]
        %v406 = vld [vmem:[%s152 + $0x2a8] sm:$0xf]
        %v407 = vld [vmem:[%s152 + $0x2ac] sm:$0xf]
        %v408 = vld [vmem:[%s152 + $0x2b0] sm:$0xf]
        %v409 = vld [vmem:[%s152 + $0x2b4] sm:$0xf]
        %v410 = vld [vmem:[%s152 + $0x2b8] sm:$0xf]
        %v411 = vld [vmem:[%s152 + $0x2bc] sm:$0xf]
        %v412 = vld [vmem:[%s152 + $0x2c0] sm:$0xf]
        %v413 = vld [vmem:[%s152 + $0x2c4] sm:$0xf]
        %v414 = vld [vmem:[%s152 + $0x2c8] sm:$0xf]
        %v415 = vld [vmem:[%s152 + $0x2cc] sm:$0xf]
        %v416 = vld [vmem:[%s152 + $0x2d0] sm:$0xf]
        %v417 = vld [vmem:[%s152 + $0x2d4] sm:$0xf]
        %v418 = vld [vmem:[%s152 + $0x2d8] sm:$0xf]
        %v419 = vld [vmem:[%s152 + $0x2dc] sm:$0xf]
        %v420 = vld [vmem:[%s152 + $0x2e0] sm:$0xf]
        %v421 = vld [vmem:[%s152 + $0x2e4] sm:$0xf]
        %v422 = vld [vmem:[%s152 + $0x2e8] sm:$0xf]
        %v423 = vld [vmem:[%s152 + $0x2ec] sm:$0xf]
        %v424 = vld [vmem:[%s152 + $0x2f0] sm:$0xf]
        %v425 = vld [vmem:[%s152 + $0x2f4] sm:$0xf]
        %v426 = vld [vmem:[%s152 + $0x2f8] sm:$0xf]
        %v427 = vld [vmem:[%s152 + $0x2fc] sm:$0xf]
        %v428 = vld [vmem:[%s152 + $0x300] sm:$0xf]
        %v429 = vld [vmem:[%s152 + $0x304] sm:$0xf]
        %v430 = vld [vmem:[%s152 + $0x308] sm:$0xf]
        %v431 = vld [vmem:[%s152 + $0x30c] sm:$0xf]
        %v432 = vld [vmem:[%s152 + $0x310] sm:$0xf]
        %v433 = vld [vmem:[%s152 + $0x314] sm:$0xf]
        %v434 = vld [vmem:[%s152 + $0x318] sm:$0xf]
        %v435 = vld [vmem:[%s152 + $0x31c] sm:$0xf]
        %v436 = vld [vmem:[%s152 + $0x320] sm:$0xf]
        %v437 = vld [vmem:[%s152 + $0x324] sm:$0xf]
        %v438 = vld [vmem:[%s152 + $0x328] sm:$0xf]
        %v439 = vld [vmem:[%s152 + $0x32c] sm:$0xf]
        %v440 = vld [vmem:[%s152 + $0x330] sm:$0xf]
        %v441 = vld [vmem:[%s152 + $0x334] sm:$0xf]
        %v442 = vld [vmem:[%s152 + $0x338] sm:$0xf]
        %v443 = vld [vmem:[%s152 + $0x33c] sm:$0xf]
        %v444 = vld [vmem:[%s152 + $0x340] sm:$0xf]
        %v445 = vld [vmem:[%s152 + $0x344] sm:$0xf]
        %v446 = vld [vmem:[%s152 + $0x348] sm:$0xf]
        %v447 = vld [vmem:[%s152 + $0x34c] sm:$0xf]
        %v448 = vld [vmem:[%s152 + $0x350] sm:$0xf]
        %v449 = vld [vmem:[%s152 + $0x354] sm:$0xf]
        %v450 = vld [vmem:[%s152 + $0x358] sm:$0xf]
        %v451 = vld [vmem:[%s152 + $0x35c] sm:$0xf]
        %v452 = vld [vmem:[%s152 + $0x360] sm:$0xf]
        %v453 = vld [vmem:[%s152 + $0x364] sm:$0xf]
        %v454 = vld [vmem:[%s152 + $0x368] sm:$0xf]
        %v455 = vld [vmem:[%s152 + $0x36c] sm:$0xf]
        %v456 = vld [vmem:[%s152 + $0x370] sm:$0xf]
        %v457 = vld [vmem:[%s152 + $0x374] sm:$0xf]
        %v458 = vld [vmem:[%s152 + $0x378] sm:$0xf]
        %v459 = vld [vmem:[%s152 + $0x37c] sm:$0xf]
        %v460 = vld [vmem:[%s152 + $0x380] sm:$0xf]
        %v461 = vld [vmem:[%s152 + $0x384] sm:$0xf]
        %v462 = vld [vmem:[%s152 + $0x388] sm:$0xf]
        %v463 = vld [vmem:[%s152 + $0x38c] sm:$0xf]
        %v464 = vld [vmem:[%s152 + $0x390] sm:$0xf]
        %v465 = vld [vmem:[%s152 + $0x394] sm:$0xf]
        %v466 = vld [vmem:[%s152 + $0x398] sm:$0xf]
        %v467 = vld [vmem:[%s152 + $0x39c] sm:$0xf]
        %v468 = vld [vmem:[%s152 + $0x3a0] sm:$0xf]
        %v469 = vld [vmem:[%s152 + $0x3a4] sm:$0xf]
        %v470 = vld [vmem:[%s152 + $0x3a8] sm:$0xf]
        %v471 = vld [vmem:[%s152 + $0x3ac] sm:$0xf]
        %v472 = vld [vmem:[%s152 + $0x3b0] sm:$0xf]
        %v473 = vld [vmem:[%s152 + $0x3b4] sm:$0xf]
        %v474 = vld [vmem:[%s152 + $0x3b8] sm:$0xf]
        %v475 = vld [vmem:[%s152 + $0x3bc] sm:$0xf]
        %v476 = vld [vmem:[%s152 + $0x3c0] sm:$0xf]
        %v477 = vld [vmem:[%s152 + $0x3c4] sm:$0xf]
        %v478 = vld [vmem:[%s152 + $0x3c8] sm:$0xf]
        %v479 = vld [vmem:[%s152 + $0x3cc] sm:$0xf]
        %v480 = vld [vmem:[%s152 + $0x3d0] sm:$0xf]
        %v481 = vld [vmem:[%s152 + $0x3d4] sm:$0xf]
        %v482 = vld [vmem:[%s152 + $0x3d8] sm:$0xf]
        %v483 = vld [vmem:[%s152 + $0x3dc] sm:$0xf]
        %v484 = vld [vmem:[%s152 + $0x3e0] sm:$0xf]
        %v485 = vld [vmem:[%s152 + $0x3e4] sm:$0xf]
        %v486 = vld [vmem:[%s152 + $0x3e8] sm:$0xf]
        %v487 = vld [vmem:[%s152 + $0x3ec] sm:$0xf]
        %v488 = vld [vmem:[%s152 + $0x3f0] sm:$0xf]
        %v489 = vld [vmem:[%s152 + $0x3f4] sm:$0xf]
        %v490 = vld [vmem:[%s152 + $0x3f8] sm:$0xf]
        %v491 = vld [vmem:[%s152 + $0x3fc] sm:$0xf]
        %v492 = vld [vmem:[%s152 + $0x400] sm:$0xf]
        %v493 = vld [vmem:[%s152 + $0x404] sm:$0xf]
        %v494 = vld [vmem:[%s152 + $0x408] sm:$0xf]
        %v495 = vld [vmem:[%s152 + $0x40c] sm:$0xf]
        %v496 = vld [vmem:[%s152 + $0x410] sm:$0xf]
        %v497 = vld [vmem:[%s152 + $0x414] sm:$0xf]
        %v498 = vld [vmem:[%s152 + $0x418] sm:$0xf]
        %v499 = vld [vmem:[%s152 + $0x41c] sm:$0xf]
        %v500 = vld [vmem:[%s152 + $0x420] sm:$0xf]
        %v501 = vld [vmem:[%s152 + $0x424] sm:$0xf]
        %v502 = vld [vmem:[%s152 + $0x428] sm:$0xf]
        %v503 = vld [vmem:[%s152 + $0x42c] sm:$0xf]
        %v504 = vld [vmem:[%s152 + $0x430] sm:$0xf]
        %v505 = vld [vmem:[%s152 + $0x434] sm:$0xf]
        %v506 = vld [vmem:[%s152 + $0x438] sm:$0xf]
        %v507 = vld [vmem:[%s152 + $0x43c] sm:$0xf]
        %v508 = vld [vmem:[%s152 + $0x440] sm:$0xf]
        %v509 = vld [vmem:[%s152 + $0x444] sm:$0xf]
        %v510 = vld [vmem:[%s152 + $0x448] sm:$0xf]
        %v511 = vld [vmem:[%s152 + $0x44c] sm:$0xf]
        %v512 = vld [vmem:[%s152 + $0x450] sm:$0xf]
        %v513 = vld [vmem:[%s152 + $0x454] sm:$0xf]
        %v514 = vld [vmem:[%s152 + $0x458] sm:$0xf]
        %v515 = vld [vmem:[%s152 + $0x45c] sm:$0xf]
        %v516 = vld [vmem:[%s152 + $0x460] sm:$0xf]
        %v517 = vld [vmem:[%s152 + $0x464] sm:$0xf]
        %v518 = vld [vmem:[%s152 + $0x468] sm:$0xf]
        %v519 = vld [vmem:[%s152 + $0x46c] sm:$0xf]
        %v520 = vld [vmem:[%s152 + $0x470] sm:$0xf]
        %v521 = vld [vmem:[%s152 + $0x474] sm:$0xf]
        %v522 = vld [vmem:[%s152 + $0x478] sm:$0xf]
        %v523 = vld [vmem:[%s152 + $0x47c] sm:$0xf]
        %v524 = vld [vmem:[%s152 + $0x480] sm:$0xf]
        %v525 = vld [vmem:[%s152 + $0x484] sm:$0xf]
        %v526 = vld [vmem:[%s152 + $0x488] sm:$0xf]
        %v527 = vld [vmem:[%s152 + $0x48c] sm:$0xf]
        %v528 = vld [vmem:[%s152 + $0x490] sm:$0xf]
        %v529 = vld [vmem:[%s152 + $0x494] sm:$0xf]
        %v530 = vld [vmem:[%s152 + $0x498] sm:$0xf]
        %v531 = vld [vmem:[%s152 + $0x49c] sm:$0xf]
        %v532 = vld [vmem:[%s152 + $0x4a0] sm:$0xf]
        %v533 = vld [vmem:[%s152 + $0x4a4] sm:$0xf]
        %v534 = vld [vmem:[%s152 + $0x4a8] sm:$0xf]
        %v535 = vld [vmem:[%s152 + $0x4ac] sm:$0xf]
        %v536 = vld [vmem:[%s152 + $0x4b0] sm:$0xf]
        %v537 = vld [vmem:[%s152 + $0x4b4] sm:$0xf]
        %v538 = vld [vmem:[%s152 + $0x4b8] sm:$0xf]
        %v539 = vld [vmem:[%s152 + $0x4bc] sm:$0xf]
        %v540 = vld [vmem:[%s152 + $0x4c0] sm:$0xf]
        %v541 = vld [vmem:[%s152 + $0x4c4] sm:$0xf]
        %v542 = vld [vmem:[%s152 + $0x4c8] sm:$0xf]
        %v543 = vld [vmem:[%s152 + $0x4cc] sm:$0xf]
        %v544 = vld [vmem:[%s152 + $0x4d0] sm:$0xf]
        %v545 = vld [vmem:[%s152 + $0x4d4] sm:$0xf]
        %v546 = vld [vmem:[%s152 + $0x4d8] sm:$0xf]
        %v547 = vld [vmem:[%s152 + $0x4dc] sm:$0xf]
        %v548 = vld [vmem:[%s152 + $0x4e0] sm:$0xf]
        %v549 = vld [vmem:[%s152 + $0x4e4] sm:$0xf]
        %v550 = vld [vmem:[%s152 + $0x4e8] sm:$0xf]
        %v551 = vld [vmem:[%s152 + $0x4ec] sm:$0xf]
        %v552 = vld [vmem:[%s152 + $0x4f0] sm:$0xf]
        %v553 = vld [vmem:[%s152 + $0x4f4] sm:$0xf]
        %v554 = vld [vmem:[%s152 + $0x4f8] sm:$0xf]
        %v555 = vld [vmem:[%s152 + $0x4fc] sm:$0xf]
        %v876 = vunpack.c.l.b16 %v236
        %v877 = vunpack.c.l.b16 %v237
        %v878 = vunpack.c.l.b16 %v238
        %v879 = vunpack.c.l.b16 %v239
        %v880 = vunpack.c.l.b16 %v240
        %v881 = vunpack.c.l.b16 %v241
        %v882 = vunpack.c.l.b16 %v242
        %v883 = vunpack.c.l.b16 %v243
        %v884 = vunpack.c.l.b16 %v244
        %v885 = vunpack.c.l.b16 %v245
        %v886 = vunpack.c.l.b16 %v246
        %v887 = vunpack.c.l.b16 %v247
        %v888 = vunpack.c.l.b16 %v248
        %v889 = vunpack.c.l.b16 %v249
        %v890 = vunpack.c.l.b16 %v250
        %v891 = vunpack.c.l.b16 %v251
        %v892 = vunpack.c.l.b16 %v252
        %v893 = vunpack.c.l.b16 %v253
        %v894 = vunpack.c.l.b16 %v254
        %v895 = vunpack.c.l.b16 %v255
        %v896 = vunpack.c.l.b16 %v256
        %v897 = vunpack.c.l.b16 %v257
        %v898 = vunpack.c.l.b16 %v258
        %v899 = vunpack.c.l.b16 %v259
        %v900 = vunpack.c.l.b16 %v260
        %v901 = vunpack.c.l.b16 %v261
        %v902 = vunpack.c.l.b16 %v262
        %v903 = vunpack.c.l.b16 %v263
        %v904 = vunpack.c.l.b16 %v264
        %v905 = vunpack.c.l.b16 %v265
        %v906 = vunpack.c.l.b16 %v266
        %v907 = vunpack.c.l.b16 %v267
        %v908 = vunpack.c.l.b16 %v268
        %v909 = vunpack.c.l.b16 %v269
        %v910 = vunpack.c.l.b16 %v270
        %v911 = vunpack.c.l.b16 %v271
        %v912 = vunpack.c.l.b16 %v272
        %v913 = vunpack.c.l.b16 %v273
        %v914 = vunpack.c.l.b16 %v274
        %v915 = vunpack.c.l.b16 %v275
        %v916 = vunpack.c.l.b16 %v276
        %v917 = vunpack.c.l.b16 %v277
        %v918 = vunpack.c.l.b16 %v278
        %v919 = vunpack.c.l.b16 %v279
        %v920 = vunpack.c.l.b16 %v280
        %v921 = vunpack.c.l.b16 %v281
        %v922 = vunpack.c.l.b16 %v282
        %v923 = vunpack.c.l.b16 %v283
        %v924 = vunpack.c.l.b16 %v284
        %v925 = vunpack.c.l.b16 %v285
        %v926 = vunpack.c.l.b16 %v286
        %v927 = vunpack.c.l.b16 %v287
        %v928 = vunpack.c.l.b16 %v288
        %v929 = vunpack.c.l.b16 %v289
        %v930 = vunpack.c.l.b16 %v290
        %v931 = vunpack.c.l.b16 %v291
        %v932 = vunpack.c.l.b16 %v292
        %v933 = vunpack.c.l.b16 %v293
        %v934 = vunpack.c.l.b16 %v294
        %v935 = vunpack.c.l.b16 %v295
        %v936 = vunpack.c.l.b16 %v296
        %v937 = vunpack.c.l.b16 %v297
        %v938 = vunpack.c.l.b16 %v298
        %v939 = vunpack.c.l.b16 %v299
        %v940 = vunpack.c.l.b16 %v300
        %v941 = vunpack.c.l.b16 %v301
        %v942 = vunpack.c.l.b16 %v302
        %v943 = vunpack.c.l.b16 %v303
        %v944 = vunpack.c.l.b16 %v304
        %v945 = vunpack.c.l.b16 %v305
        %v946 = vunpack.c.l.b16 %v306
        %v947 = vunpack.c.l.b16 %v307
        %v948 = vunpack.c.l.b16 %v308
        %v949 = vunpack.c.l.b16 %v309
        %v950 = vunpack.c.l.b16 %v310
        %v951 = vunpack.c.l.b16 %v311
        %v952 = vunpack.c.l.b16 %v312
        %v953 = vunpack.c.l.b16 %v313
        %v954 = vunpack.c.l.b16 %v314
        %v955 = vunpack.c.l.b16 %v315
        %v956 = vunpack.c.l.b16 %v316
        %v957 = vunpack.c.l.b16 %v317
        %v958 = vunpack.c.l.b16 %v318
        %v959 = vunpack.c.l.b16 %v319
        %v960 = vunpack.c.l.b16 %v320
        %v961 = vunpack.c.l.b16 %v321
        %v962 = vunpack.c.l.b16 %v322
        %v963 = vunpack.c.l.b16 %v323
        %v964 = vunpack.c.l.b16 %v324
        %v965 = vunpack.c.l.b16 %v325
        %v966 = vunpack.c.l.b16 %v326
        %v967 = vunpack.c.l.b16 %v327
        %v968 = vunpack.c.l.b16 %v328
        %v969 = vunpack.c.l.b16 %v329
        %v970 = vunpack.c.l.b16 %v330
        %v971 = vunpack.c.l.b16 %v331
        %v972 = vunpack.c.l.b16 %v332
        %v973 = vunpack.c.l.b16 %v333
        %v974 = vunpack.c.l.b16 %v334
        %v975 = vunpack.c.l.b16 %v335
        %v976 = vunpack.c.l.b16 %v336
        %v977 = vunpack.c.l.b16 %v337
        %v978 = vunpack.c.l.b16 %v338
        %v979 = vunpack.c.l.b16 %v339
        %v980 = vunpack.c.l.b16 %v340
        %v981 = vunpack.c.l.b16 %v341
        %v982 = vunpack.c.l.b16 %v342
        %v983 = vunpack.c.l.b16 %v343
        %v984 = vunpack.c.l.b16 %v344
        %v985 = vunpack.c.l.b16 %v345
        %v986 = vunpack.c.l.b16 %v346
        %v987 = vunpack.c.l.b16 %v347
        %v988 = vunpack.c.l.b16 %v348
        %v989 = vunpack.c.l.b16 %v349
        %v990 = vunpack.c.l.b16 %v350
        %v991 = vunpack.c.l.b16 %v351
        %v992 = vunpack.c.l.b16 %v352
        %v993 = vunpack.c.l.b16 %v353
        %v994 = vunpack.c.l.b16 %v354
        %v995 = vunpack.c.l.b16 %v355
        %v996 = vunpack.c.l.b16 %v356
        %v997 = vunpack.c.l.b16 %v357
        %v998 = vunpack.c.l.b16 %v358
        %v999 = vunpack.c.l.b16 %v359
        %v1000 = vunpack.c.l.b16 %v360
        %v1001 = vunpack.c.l.b16 %v361
        %v1002 = vunpack.c.l.b16 %v362
        %v1003 = vunpack.c.l.b16 %v363
        %v1004 = vunpack.c.l.b16 %v364
        %v1005 = vunpack.c.l.b16 %v365
        %v1006 = vunpack.c.l.b16 %v366
        %v1007 = vunpack.c.l.b16 %v367
        %v1008 = vunpack.c.l.b16 %v368
        %v1009 = vunpack.c.l.b16 %v369
        %v1010 = vunpack.c.l.b16 %v370
        %v1011 = vunpack.c.l.b16 %v371
        %v1012 = vunpack.c.l.b16 %v372
        %v1013 = vunpack.c.l.b16 %v373
        %v1014 = vunpack.c.l.b16 %v374
        %v1015 = vunpack.c.l.b16 %v375
        %v1016 = vunpack.c.l.b16 %v376
        %v1017 = vunpack.c.l.b16 %v377
        %v1018 = vunpack.c.l.b16 %v378
        %v1019 = vunpack.c.l.b16 %v379
        %v1020 = vunpack.c.l.b16 %v380
        %v1021 = vunpack.c.l.b16 %v381
        %v1022 = vunpack.c.l.b16 %v382
        %v1023 = vunpack.c.l.b16 %v383
        %v1024 = vunpack.c.l.b16 %v384
        %v1025 = vunpack.c.l.b16 %v385
        %v1026 = vunpack.c.l.b16 %v386
        %v1027 = vunpack.c.l.b16 %v387
        %v1028 = vunpack.c.l.b16 %v388
        %v1029 = vunpack.c.l.b16 %v389
        %v1030 = vunpack.c.l.b16 %v390
        %v1031 = vunpack.c.l.b16 %v391
        %v1032 = vunpack.c.l.b16 %v392
        %v1033 = vunpack.c.l.b16 %v393
        %v1034 = vunpack.c.l.b16 %v394
        %v1035 = vunpack.c.l.b16 %v395
        %v1036 = vunpack.c.l.b16 %v396
        %v1037 = vunpack.c.l.b16 %v397
        %v1038 = vunpack.c.l.b16 %v398
        %v1039 = vunpack.c.l.b16 %v399
        %v1040 = vunpack.c.l.b16 %v400
        %v1041 = vunpack.c.l.b16 %v401
        %v1042 = vunpack.c.l.b16 %v402
        %v1043 = vunpack.c.l.b16 %v403
        %v1044 = vunpack.c.l.b16 %v404
        %v1045 = vunpack.c.l.b16 %v405
        %v1046 = vunpack.c.l.b16 %v406
        %v1047 = vunpack.c.l.b16 %v407
        %v1048 = vunpack.c.l.b16 %v408
        %v1049 = vunpack.c.l.b16 %v409
        %v1050 = vunpack.c.l.b16 %v410
        %v1051 = vunpack.c.l.b16 %v411
        %v1052 = vunpack.c.l.b16 %v412
        %v1053 = vunpack.c.l.b16 %v413
        %v1054 = vunpack.c.l.b16 %v414
        %v1055 = vunpack.c.l.b16 %v415
        %v1056 = vunpack.c.l.b16 %v416
        %v1057 = vunpack.c.l.b16 %v417
        %v1058 = vunpack.c.l.b16 %v418
        %v1059 = vunpack.c.l.b16 %v419
        %v1060 = vunpack.c.l.b16 %v420
        %v1061 = vunpack.c.l.b16 %v421
        %v1062 = vunpack.c.l.b16 %v422
        %v1063 = vunpack.c.l.b16 %v423
        %v1064 = vunpack.c.l.b16 %v424
        %v1065 = vunpack.c.l.b16 %v425
        %v1066 = vunpack.c.l.b16 %v426
        %v1067 = vunpack.c.l.b16 %v427
        %v1068 = vunpack.c.l.b16 %v428
        %v1069 = vunpack.c.l.b16 %v429
        %v1070 = vunpack.c.l.b16 %v430
        %v1071 = vunpack.c.l.b16 %v431
        %v1072 = vunpack.c.l.b16 %v432
        %v1073 = vunpack.c.l.b16 %v433
        %v1074 = vunpack.c.l.b16 %v434
        %v1075 = vunpack.c.l.b16 %v435
        %v1076 = vunpack.c.l.b16 %v436
        %v1077 = vunpack.c.l.b16 %v437
        %v1078 = vunpack.c.l.b16 %v438
        %v1079 = vunpack.c.l.b16 %v439
        %v1080 = vunpack.c.l.b16 %v440
        %v1081 = vunpack.c.l.b16 %v441
        %v1082 = vunpack.c.l.b16 %v442
        %v1083 = vunpack.c.l.b16 %v443
        %v1084 = vunpack.c.l.b16 %v444
        %v1085 = vunpack.c.l.b16 %v445
        %v1086 = vunpack.c.l.b16 %v446
        %v1087 = vunpack.c.l.b16 %v447
        %v1088 = vunpack.c.l.b16 %v448
        %v1089 = vunpack.c.l.b16 %v449
        %v1090 = vunpack.c.l.b16 %v450
        %v1091 = vunpack.c.l.b16 %v451
        %v1092 = vunpack.c.l.b16 %v452
        %v1093 = vunpack.c.l.b16 %v453
        %v1094 = vunpack.c.l.b16 %v454
        %v1095 = vunpack.c.l.b16 %v455
        %v1096 = vunpack.c.l.b16 %v456
        %v1097 = vunpack.c.l.b16 %v457
        %v1098 = vunpack.c.l.b16 %v458
        %v1099 = vunpack.c.l.b16 %v459
        %v1100 = vunpack.c.l.b16 %v460
        %v1101 = vunpack.c.l.b16 %v461
        %v1102 = vunpack.c.l.b16 %v462
        %v1103 = vunpack.c.l.b16 %v463
        %v1104 = vunpack.c.l.b16 %v464
        %v1105 = vunpack.c.l.b16 %v465
        %v1106 = vunpack.c.l.b16 %v466
        %v1107 = vunpack.c.l.b16 %v467
        %v1108 = vunpack.c.l.b16 %v468
        %v1109 = vunpack.c.l.b16 %v469
        %v1110 = vunpack.c.l.b16 %v470
        %v1111 = vunpack.c.l.b16 %v471
        %v1112 = vunpack.c.l.b16 %v472
        %v1113 = vunpack.c.l.b16 %v473
        %v1114 = vunpack.c.l.b16 %v474
        %v1115 = vunpack.c.l.b16 %v475
        %v1116 = vunpack.c.l.b16 %v476
        %v1117 = vunpack.c.l.b16 %v477
        %v1118 = vunpack.c.l.b16 %v478
        %v1119 = vunpack.c.l.b16 %v479
        %v1120 = vunpack.c.l.b16 %v480
        %v1121 = vunpack.c.l.b16 %v481
        %v1122 = vunpack.c.l.b16 %v482
        %v1123 = vunpack.c.l.b16 %v483
        %v1124 = vunpack.c.l.b16 %v484
        %v1125 = vunpack.c.l.b16 %v485
        %v1126 = vunpack.c.l.b16 %v486
        %v1127 = vunpack.c.l.b16 %v487
        %v1128 = vunpack.c.l.b16 %v488
        %v1129 = vunpack.c.l.b16 %v489
        %v1130 = vunpack.c.l.b16 %v490
        %v1131 = vunpack.c.l.b16 %v491
        %v1132 = vunpack.c.l.b16 %v492
        %v1133 = vunpack.c.l.b16 %v493
        %v1134 = vunpack.c.l.b16 %v494
        %v1135 = vunpack.c.l.b16 %v495
        %v1136 = vunpack.c.l.b16 %v496
        %v1137 = vunpack.c.l.b16 %v497
        %v1138 = vunpack.c.l.b16 %v498
        %v1139 = vunpack.c.l.b16 %v499
        %v1140 = vunpack.c.l.b16 %v500
        %v1141 = vunpack.c.l.b16 %v501
        %v1142 = vunpack.c.l.b16 %v502
        %v1143 = vunpack.c.l.b16 %v503
        %v1144 = vunpack.c.l.b16 %v504
        %v1145 = vunpack.c.l.b16 %v505
        %v1146 = vunpack.c.l.b16 %v506
        %v1147 = vunpack.c.l.b16 %v507
        %v1148 = vunpack.c.l.b16 %v508
        %v1149 = vunpack.c.l.b16 %v509
        %v1150 = vunpack.c.l.b16 %v510
        %v1151 = vunpack.c.l.b16 %v511
        %v1152 = vunpack.c.l.b16 %v512
        %v1153 = vunpack.c.l.b16 %v513
        %v1154 = vunpack.c.l.b16 %v514
        %v1155 = vunpack.c.l.b16 %v515
        %v1156 = vunpack.c.l.b16 %v516
        %v1157 = vunpack.c.l.b16 %v517
        %v1158 = vunpack.c.l.b16 %v518
        %v1159 = vunpack.c.l.b16 %v519
        %v1160 = vunpack.c.l.b16 %v520
        %v1161 = vunpack.c.l.b16 %v521
        %v1162 = vunpack.c.l.b16 %v522
        %v1163 = vunpack.c.l.b16 %v523
        %v1164 = vunpack.c.l.b16 %v524
        %v1165 = vunpack.c.l.b16 %v525
        %v1166 = vunpack.c.l.b16 %v526
        %v1167 = vunpack.c.l.b16 %v527
        %v1168 = vunpack.c.l.b16 %v528
        %v1169 = vunpack.c.l.b16 %v529
        %v1170 = vunpack.c.l.b16 %v530
        %v1171 = vunpack.c.l.b16 %v531
        %v1172 = vunpack.c.l.b16 %v532
        %v1173 = vunpack.c.l.b16 %v533
        %v1174 = vunpack.c.l.b16 %v534
        %v1175 = vunpack.c.l.b16 %v535
        %v1176 = vunpack.c.l.b16 %v536
        %v1177 = vunpack.c.l.b16 %v537
        %v1178 = vunpack.c.l.b16 %v538
        %v1179 = vunpack.c.l.b16 %v539
        %v1180 = vunpack.c.l.b16 %v540
        %v1181 = vunpack.c.l.b16 %v541
        %v1182 = vunpack.c.l.b16 %v542
        %v1183 = vunpack.c.l.b16 %v543
        %v1184 = vunpack.c.l.b16 %v544
        %v1185 = vunpack.c.l.b16 %v545
        %v1186 = vunpack.c.l.b16 %v546
        %v1187 = vunpack.c.l.b16 %v547
        %v1188 = vunpack.c.l.b16 %v548
        %v1189 = vunpack.c.l.b16 %v549
        %v1190 = vunpack.c.l.b16 %v550
        %v1191 = vunpack.c.l.b16 %v551
        %v1192 = vunpack.c.l.b16 %v552
        %v1193 = vunpack.c.l.b16 %v553
        %v1194 = vunpack.c.l.b16 %v554
        %v1195 = vunpack.c.l.b16 %v555
        %v1196 = vpack.c.b16 %v877, %v876
        %v1197 = vpack.c.b16 %v879, %v878
        %v1198 = vpack.c.b16 %v881, %v880
        %v1199 = vpack.c.b16 %v883, %v882
        %v1200 = vpack.c.b16 %v885, %v884
        %v1201 = vpack.c.b16 %v887, %v886
        %v1202 = vpack.c.b16 %v889, %v888
        %v1203 = vpack.c.b16 %v891, %v890
        %v1204 = vpack.c.b16 %v893, %v892
        %v1205 = vpack.c.b16 %v895, %v894
        %v1206 = vpack.c.b16 %v897, %v896
        %v1207 = vpack.c.b16 %v899, %v898
        %v1208 = vpack.c.b16 %v901, %v900
        %v1209 = vpack.c.b16 %v903, %v902
        %v1210 = vpack.c.b16 %v905, %v904
        %v1211 = vpack.c.b16 %v907, %v906
        %v1212 = vpack.c.b16 %v909, %v908
        %v1213 = vpack.c.b16 %v911, %v910
        %v1214 = vpack.c.b16 %v913, %v912
        %v1215 = vpack.c.b16 %v915, %v914
        %v1216 = vpack.c.b16 %v917, %v916
        %v1217 = vpack.c.b16 %v919, %v918
        %v1218 = vpack.c.b16 %v921, %v920
        %v1219 = vpack.c.b16 %v923, %v922
        %v1220 = vpack.c.b16 %v925, %v924
        %v1221 = vpack.c.b16 %v927, %v926
        %v1222 = vpack.c.b16 %v929, %v928
        %v1223 = vpack.c.b16 %v931, %v930
        %v1224 = vpack.c.b16 %v933, %v932
        %v1225 = vpack.c.b16 %v935, %v934
        %v1226 = vpack.c.b16 %v937, %v936
        %v1227 = vpack.c.b16 %v939, %v938
        %v1228 = vpack.c.b16 %v941, %v940
        %v1229 = vpack.c.b16 %v943, %v942
        %v1230 = vpack.c.b16 %v945, %v944
        %v1231 = vpack.c.b16 %v947, %v946
        %v1232 = vpack.c.b16 %v949, %v948
        %v1233 = vpack.c.b16 %v951, %v950
        %v1234 = vpack.c.b16 %v953, %v952
        %v1235 = vpack.c.b16 %v955, %v954
        %v1236 = vpack.c.b16 %v957, %v956
        %v1237 = vpack.c.b16 %v959, %v958
        %v1238 = vpack.c.b16 %v961, %v960
        %v1239 = vpack.c.b16 %v963, %v962
        %v1240 = vpack.c.b16 %v965, %v964
        %v1241 = vpack.c.b16 %v967, %v966
        %v1242 = vpack.c.b16 %v969, %v968
        %v1243 = vpack.c.b16 %v971, %v970
        %v1244 = vpack.c.b16 %v973, %v972
        %v1245 = vpack.c.b16 %v975, %v974
        %v1246 = vpack.c.b16 %v977, %v976
        %v1247 = vpack.c.b16 %v979, %v978
        %v1248 = vpack.c.b16 %v981, %v980
        %v1249 = vpack.c.b16 %v983, %v982
        %v1250 = vpack.c.b16 %v985, %v984
        %v1251 = vpack.c.b16 %v987, %v986
        %v1252 = vpack.c.b16 %v989, %v988
        %v1253 = vpack.c.b16 %v991, %v990
        %v1254 = vpack.c.b16 %v993, %v992
        %v1255 = vpack.c.b16 %v995, %v994
        %v1256 = vpack.c.b16 %v997, %v996
        %v1257 = vpack.c.b16 %v999, %v998
        %v1258 = vpack.c.b16 %v1001, %v1000
        %v1259 = vpack.c.b16 %v1003, %v1002
        %v1260 = vpack.c.b16 %v1005, %v1004
        %v1261 = vpack.c.b16 %v1007, %v1006
        %v1262 = vpack.c.b16 %v1009, %v1008
        %v1263 = vpack.c.b16 %v1011, %v1010
        %v1264 = vpack.c.b16 %v1013, %v1012
        %v1265 = vpack.c.b16 %v1015, %v1014
        %v1266 = vpack.c.b16 %v1017, %v1016
        %v1267 = vpack.c.b16 %v1019, %v1018
        %v1268 = vpack.c.b16 %v1021, %v1020
        %v1269 = vpack.c.b16 %v1023, %v1022
        %v1270 = vpack.c.b16 %v1025, %v1024
        %v1271 = vpack.c.b16 %v1027, %v1026
        %v1272 = vpack.c.b16 %v1029, %v1028
        %v1273 = vpack.c.b16 %v1031, %v1030
        %v1274 = vpack.c.b16 %v1033, %v1032
        %v1275 = vpack.c.b16 %v1035, %v1034
        %v1276 = vpack.c.b16 %v1037, %v1036
        %v1277 = vpack.c.b16 %v1039, %v1038
        %v1278 = vpack.c.b16 %v1041, %v1040
        %v1279 = vpack.c.b16 %v1043, %v1042
        %v1280 = vpack.c.b16 %v1045, %v1044
        %v1281 = vpack.c.b16 %v1047, %v1046
        %v1282 = vpack.c.b16 %v1049, %v1048
        %v1283 = vpack.c.b16 %v1051, %v1050
        %v1284 = vpack.c.b16 %v1053, %v1052
        %v1285 = vpack.c.b16 %v1055, %v1054
        %v1286 = vpack.c.b16 %v1057, %v1056
        %v1287 = vpack.c.b16 %v1059, %v1058
        %v1288 = vpack.c.b16 %v1061, %v1060
        %v1289 = vpack.c.b16 %v1063, %v1062
        %v1290 = vpack.c.b16 %v1065, %v1064
        %v1291 = vpack.c.b16 %v1067, %v1066
        %v1292 = vpack.c.b16 %v1069, %v1068
        %v1293 = vpack.c.b16 %v1071, %v1070
        %v1294 = vpack.c.b16 %v1073, %v1072
        %v1295 = vpack.c.b16 %v1075, %v1074
        %v1296 = vpack.c.b16 %v1077, %v1076
        %v1297 = vpack.c.b16 %v1079, %v1078
        %v1298 = vpack.c.b16 %v1081, %v1080
        %v1299 = vpack.c.b16 %v1083, %v1082
        %v1300 = vpack.c.b16 %v1085, %v1084
        %v1301 = vpack.c.b16 %v1087, %v1086
        %v1302 = vpack.c.b16 %v1089, %v1088
        %v1303 = vpack.c.b16 %v1091, %v1090
        %v1304 = vpack.c.b16 %v1093, %v1092
        %v1305 = vpack.c.b16 %v1095, %v1094
        %v1306 = vpack.c.b16 %v1097, %v1096
        %v1307 = vpack.c.b16 %v1099, %v1098
        %v1308 = vpack.c.b16 %v1101, %v1100
        %v1309 = vpack.c.b16 %v1103, %v1102
        %v1310 = vpack.c.b16 %v1105, %v1104
        %v1311 = vpack.c.b16 %v1107, %v1106
        %v1312 = vpack.c.b16 %v1109, %v1108
        %v1313 = vpack.c.b16 %v1111, %v1110
        %v1314 = vpack.c.b16 %v1113, %v1112
        %v1315 = vpack.c.b16 %v1115, %v1114
        %v1316 = vpack.c.b16 %v1117, %v1116
        %v1317 = vpack.c.b16 %v1119, %v1118
        %v1318 = vpack.c.b16 %v1121, %v1120
        %v1319 = vpack.c.b16 %v1123, %v1122
        %v1320 = vpack.c.b16 %v1125, %v1124
        %v1321 = vpack.c.b16 %v1127, %v1126
        %v1322 = vpack.c.b16 %v1129, %v1128
        %v1323 = vpack.c.b16 %v1131, %v1130
        %v1324 = vpack.c.b16 %v1133, %v1132
        %v1325 = vpack.c.b16 %v1135, %v1134
        %v1326 = vpack.c.b16 %v1137, %v1136
        %v1327 = vpack.c.b16 %v1139, %v1138
        %v1328 = vpack.c.b16 %v1141, %v1140
        %v1329 = vpack.c.b16 %v1143, %v1142
        %v1330 = vpack.c.b16 %v1145, %v1144
        %v1331 = vpack.c.b16 %v1147, %v1146
        %v1332 = vpack.c.b16 %v1149, %v1148
        %v1333 = vpack.c.b16 %v1151, %v1150
        %v1334 = vpack.c.b16 %v1153, %v1152
        %v1335 = vpack.c.b16 %v1155, %v1154
        %v1336 = vpack.c.b16 %v1157, %v1156
        %v1337 = vpack.c.b16 %v1159, %v1158
        %v1338 = vpack.c.b16 %v1161, %v1160
        %v1339 = vpack.c.b16 %v1163, %v1162
        %v1340 = vpack.c.b16 %v1165, %v1164
        %v1341 = vpack.c.b16 %v1167, %v1166
        %v1342 = vpack.c.b16 %v1169, %v1168
        %v1343 = vpack.c.b16 %v1171, %v1170
        %v1344 = vpack.c.b16 %v1173, %v1172
        %v1345 = vpack.c.b16 %v1175, %v1174
        %v1346 = vpack.c.b16 %v1177, %v1176
        %v1347 = vpack.c.b16 %v1179, %v1178
        %v1348 = vpack.c.b16 %v1181, %v1180
        %v1349 = vpack.c.b16 %v1183, %v1182
        %v1350 = vpack.c.b16 %v1185, %v1184
        %v1351 = vpack.c.b16 %v1187, %v1186
        %v1352 = vpack.c.b16 %v1189, %v1188
        %v1353 = vpack.c.b16 %v1191, %v1190
        %v1354 = vpack.c.b16 %v1193, %v1192
        %v1355 = vpack.c.b16 %v1195, %v1194
        %1516 = vmatpush.bf16.msra.mxu0 %v1203
        %1517 = vmatpush.bf16.msra.mxu0 %v1202
        %1518 = vmatpush.bf16.msra.mxu0 %v1201
        %1519 = vmatpush.bf16.msra.mxu0 %v1200
        %1520 = vmatpush.bf16.msra.mxu0 %v1199
        %1521 = vmatpush.bf16.msra.mxu0 %v1198
        %1522 = vmatpush.bf16.msra.mxu0 %v1197
        %1523 = vmatpush.bf16.msra.mxu0 %v1196
        %1524 = vmatmul.bf16.gmra.mxu0 %v216
        %v1525 = vpop.f32.mrf.mxu0
        %v1526 = vadd.f32 0.0, %v1525
        %v1527 = vpop.f32.mrf.mxu0
        %1528 = vdwg.mxu0
        %1529 = vmatpush.bf16.msra.mxu0 %v1211
        %1530 = vmatpush.bf16.msra.mxu0 %v1210
        %1531 = vmatpush.bf16.msra.mxu0 %v1209
        %1532 = vmatpush.bf16.msra.mxu0 %v1208
        %1533 = vmatpush.bf16.msra.mxu0 %v1207
        %1534 = vmatpush.bf16.msra.mxu0 %v1206
        %1535 = vmatpush.bf16.msra.mxu0 %v1205
        %1536 = vmatpush.bf16.msra.mxu0 %v1204
        %1537 = vmatmul.bf16.gmra.mxu0 %v217
        %v1538 = vpop.f32.mrf.mxu0
        %v1539 = vadd.f32 %v1526, %v1538
        %v1540 = vpop.f32.mrf.mxu0
        %1541 = vdwg.mxu0
        %1542 = vmatpush.bf16.msra.mxu0 %v1219
        %1543 = vmatpush.bf16.msra.mxu0 %v1218
        %1544 = vmatpush.bf16.msra.mxu0 %v1217
        %1545 = vmatpush.bf16.msra.mxu0 %v1216
        %1546 = vmatpush.bf16.msra.mxu0 %v1215
        %1547 = vmatpush.bf16.msra.mxu0 %v1214
        %1548 = vmatpush.bf16.msra.mxu0 %v1213
        %1549 = vmatpush.bf16.msra.mxu0 %v1212
        %1550 = vmatmul.bf16.gmra.mxu0 %v218
        %v1551 = vpop.f32.mrf.mxu0
        %v1552 = vadd.f32 %v1539, %v1551
        %v1553 = vpop.f32.mrf.mxu0
        %1554 = vdwg.mxu0
        %1555 = vmatpush.bf16.msra.mxu0 %v1227
        %1556 = vmatpush.bf16.msra.mxu0 %v1226
        %1557 = vmatpush.bf16.msra.mxu0 %v1225
        %1558 = vmatpush.bf16.msra.mxu0 %v1224
        %1559 = vmatpush.bf16.msra.mxu0 %v1223
        %1560 = vmatpush.bf16.msra.mxu0 %v1222
        %1561 = vmatpush.bf16.msra.mxu0 %v1221
        %1562 = vmatpush.bf16.msra.mxu0 %v1220
        %1563 = vmatmul.bf16.gmra.mxu0 %v219
        %v1564 = vpop.f32.mrf.mxu0
        %v1565 = vadd.f32 %v1552, %v1564
        %v1566 = vpop.f32.mrf.mxu0
        %1567 = vdwg.mxu0
        %1568 = vmatpush.bf16.msra.mxu0 %v1235
        %1569 = vmatpush.bf16.msra.mxu0 %v1234
        %1570 = vmatpush.bf16.msra.mxu0 %v1233
        %1571 = vmatpush.bf16.msra.mxu0 %v1232
        %1572 = vmatpush.bf16.msra.mxu0 %v1231
        %1573 = vmatpush.bf16.msra.mxu0 %v1230
        %1574 = vmatpush.bf16.msra.mxu0 %v1229
        %1575 = vmatpush.bf16.msra.mxu0 %v1228
        %1576 = vmatmul.bf16.gmra.mxu0 %v220
        %v1577 = vpop.f32.mrf.mxu0
        %v1578 = vadd.f32 %v1565, %v1577
        %v1579 = vpop.f32.mrf.mxu0
        %1580 = vdwg.mxu0
        %1581 = vmatpush.bf16.msra.mxu0 %v1243
        %1582 = vmatpush.bf16.msra.mxu0 %v1242
        %1583 = vmatpush.bf16.msra.mxu0 %v1241
        %1584 = vmatpush.bf16.msra.mxu0 %v1240
        %1585 = vmatpush.bf16.msra.mxu0 %v1239
        %1586 = vmatpush.bf16.msra.mxu0 %v1238
        %1587 = vmatpush.bf16.msra.mxu0 %v1237
        %1588 = vmatpush.bf16.msra.mxu0 %v1236
        %1589 = vmatmul.bf16.gmra.mxu0 %v221
        %v1590 = vpop.f32.mrf.mxu0
        %v1591 = vadd.f32 %v1578, %v1590
        %v1592 = vpop.f32.mrf.mxu0
        %1593 = vdwg.mxu0
        %1594 = vmatpush.bf16.msra.mxu0 %v1251
        %1595 = vmatpush.bf16.msra.mxu0 %v1250
        %1596 = vmatpush.bf16.msra.mxu0 %v1249
        %1597 = vmatpush.bf16.msra.mxu0 %v1248
        %1598 = vmatpush.bf16.msra.mxu0 %v1247
        %1599 = vmatpush.bf16.msra.mxu0 %v1246
        %1600 = vmatpush.bf16.msra.mxu0 %v1245
        %1601 = vmatpush.bf16.msra.mxu0 %v1244
        %1602 = vmatmul.bf16.gmra.mxu0 %v222
        %v1603 = vpop.f32.mrf.mxu0
        %v1604 = vadd.f32 %v1591, %v1603
        %v1605 = vpop.f32.mrf.mxu0
        %1606 = vdwg.mxu0
        %1607 = vmatpush.bf16.msra.mxu0 %v1259
        %1608 = vmatpush.bf16.msra.mxu0 %v1258
        %1609 = vmatpush.bf16.msra.mxu0 %v1257
        %1610 = vmatpush.bf16.msra.mxu0 %v1256
        %1611 = vmatpush.bf16.msra.mxu0 %v1255
        %1612 = vmatpush.bf16.msra.mxu0 %v1254
        %1613 = vmatpush.bf16.msra.mxu0 %v1253
        %1614 = vmatpush.bf16.msra.mxu0 %v1252
        %1615 = vmatmul.bf16.gmra.mxu0 %v223
        %v1616 = vpop.f32.mrf.mxu0
        %v1617 = vadd.f32 %v1604, %v1616
        %v1618 = vpop.f32.mrf.mxu0
        %1619 = vdwg.mxu0
        %1620 = vmatpush.bf16.msra.mxu0 %v1267
        %1621 = vmatpush.bf16.msra.mxu0 %v1266
        %1622 = vmatpush.bf16.msra.mxu0 %v1265
        %1623 = vmatpush.bf16.msra.mxu0 %v1264
        %1624 = vmatpush.bf16.msra.mxu0 %v1263
        %1625 = vmatpush.bf16.msra.mxu0 %v1262
        %1626 = vmatpush.bf16.msra.mxu0 %v1261
        %1627 = vmatpush.bf16.msra.mxu0 %v1260
        %1628 = vmatmul.bf16.gmra.mxu0 %v224
        %v1629 = vpop.f32.mrf.mxu0
        %v1630 = vadd.f32 %v1617, %v1629
        %v1631 = vpop.f32.mrf.mxu0
        %1632 = vdwg.mxu0
        %1633 = vmatpush.bf16.msra.mxu0 %v1275
        %1634 = vmatpush.bf16.msra.mxu0 %v1274
        %1635 = vmatpush.bf16.msra.mxu0 %v1273
        %1636 = vmatpush.bf16.msra.mxu0 %v1272
        %1637 = vmatpush.bf16.msra.mxu0 %v1271
        %1638 = vmatpush.bf16.msra.mxu0 %v1270
        %1639 = vmatpush.bf16.msra.mxu0 %v1269
        %1640 = vmatpush.bf16.msra.mxu0 %v1268
        %1641 = vmatmul.bf16.gmra.mxu0 %v225
        %v1642 = vpop.f32.mrf.mxu0
        %v1643 = vadd.f32 %v1630, %v1642
        %v1644 = vpop.f32.mrf.mxu0
        %1645 = vdwg.mxu0
        %1646 = vmatpush.bf16.msra.mxu0 %v1283
        %1647 = vmatpush.bf16.msra.mxu0 %v1282
        %1648 = vmatpush.bf16.msra.mxu0 %v1281
        %1649 = vmatpush.bf16.msra.mxu0 %v1280
        %1650 = vmatpush.bf16.msra.mxu0 %v1279
        %1651 = vmatpush.bf16.msra.mxu0 %v1278
        %1652 = vmatpush.bf16.msra.mxu0 %v1277
        %1653 = vmatpush.bf16.msra.mxu0 %v1276
        %1654 = vmatmul.bf16.gmra.mxu0 %v226
        %v1655 = vpop.f32.mrf.mxu0
        %v1656 = vadd.f32 %v1643, %v1655
        %v1657 = vpop.f32.mrf.mxu0
        %1658 = vdwg.mxu0
        %1659 = vmatpush.bf16.msra.mxu0 %v1291
        %1660 = vmatpush.bf16.msra.mxu0 %v1290
        %1661 = vmatpush.bf16.msra.mxu0 %v1289
        %1662 = vmatpush.bf16.msra.mxu0 %v1288
        %1663 = vmatpush.bf16.msra.mxu0 %v1287
        %1664 = vmatpush.bf16.msra.mxu0 %v1286
        %1665 = vmatpush.bf16.msra.mxu0 %v1285
        %1666 = vmatpush.bf16.msra.mxu0 %v1284
        %1667 = vmatmul.bf16.gmra.mxu0 %v227
        %v1668 = vpop.f32.mrf.mxu0
        %v1669 = vadd.f32 %v1656, %v1668
        %v1670 = vpop.f32.mrf.mxu0
        %1671 = vdwg.mxu0
        %1672 = vmatpush.bf16.msra.mxu0 %v1299
        %1673 = vmatpush.bf16.msra.mxu0 %v1298
        %1674 = vmatpush.bf16.msra.mxu0 %v1297
        %1675 = vmatpush.bf16.msra.mxu0 %v1296
        %1676 = vmatpush.bf16.msra.mxu0 %v1295
        %1677 = vmatpush.bf16.msra.mxu0 %v1294
        %1678 = vmatpush.bf16.msra.mxu0 %v1293
        %1679 = vmatpush.bf16.msra.mxu0 %v1292
        %1680 = vmatmul.bf16.gmra.mxu0 %v228
        %v1681 = vpop.f32.mrf.mxu0
        %v1682 = vadd.f32 %v1669, %v1681
        %v1683 = vpop.f32.mrf.mxu0
        %1684 = vdwg.mxu0
        %1685 = vmatpush.bf16.msra.mxu0 %v1307
        %1686 = vmatpush.bf16.msra.mxu0 %v1306
        %1687 = vmatpush.bf16.msra.mxu0 %v1305
        %1688 = vmatpush.bf16.msra.mxu0 %v1304
        %1689 = vmatpush.bf16.msra.mxu0 %v1303
        %1690 = vmatpush.bf16.msra.mxu0 %v1302
        %1691 = vmatpush.bf16.msra.mxu0 %v1301
        %1692 = vmatpush.bf16.msra.mxu0 %v1300
        %1693 = vmatmul.bf16.gmra.mxu0 %v229
        %v1694 = vpop.f32.mrf.mxu0
        %v1695 = vadd.f32 %v1682, %v1694
        %v1696 = vpop.f32.mrf.mxu0
        %1697 = vdwg.mxu0
        %1698 = vmatpush.bf16.msra.mxu0 %v1315
        %1699 = vmatpush.bf16.msra.mxu0 %v1314
        %1700 = vmatpush.bf16.msra.mxu0 %v1313
        %1701 = vmatpush.bf16.msra.mxu0 %v1312
        %1702 = vmatpush.bf16.msra.mxu0 %v1311
        %1703 = vmatpush.bf16.msra.mxu0 %v1310
        %1704 = vmatpush.bf16.msra.mxu0 %v1309
        %1705 = vmatpush.bf16.msra.mxu0 %v1308
        %1706 = vmatmul.bf16.gmra.mxu0 %v230
        %v1707 = vpop.f32.mrf.mxu0
        %v1708 = vadd.f32 %v1695, %v1707
        %v1709 = vpop.f32.mrf.mxu0
        %1710 = vdwg.mxu0
        %1711 = vmatpush.bf16.msra.mxu0 %v1323
        %1712 = vmatpush.bf16.msra.mxu0 %v1322
        %1713 = vmatpush.bf16.msra.mxu0 %v1321
        %1714 = vmatpush.bf16.msra.mxu0 %v1320
        %1715 = vmatpush.bf16.msra.mxu0 %v1319
        %1716 = vmatpush.bf16.msra.mxu0 %v1318
        %1717 = vmatpush.bf16.msra.mxu0 %v1317
        %1718 = vmatpush.bf16.msra.mxu0 %v1316
        %1719 = vmatmul.bf16.gmra.mxu0 %v231
        %v1720 = vpop.f32.mrf.mxu0
        %v1721 = vadd.f32 %v1708, %v1720
        %v1722 = vpop.f32.mrf.mxu0
        %1723 = vdwg.mxu0
        %1724 = vmatpush.bf16.msra.mxu0 %v1331
        %1725 = vmatpush.bf16.msra.mxu0 %v1330
        %1726 = vmatpush.bf16.msra.mxu0 %v1329
        %1727 = vmatpush.bf16.msra.mxu0 %v1328
        %1728 = vmatpush.bf16.msra.mxu0 %v1327
        %1729 = vmatpush.bf16.msra.mxu0 %v1326
        %1730 = vmatpush.bf16.msra.mxu0 %v1325
        %1731 = vmatpush.bf16.msra.mxu0 %v1324
        %1732 = vmatmul.bf16.gmra.mxu0 %v232
        %v1733 = vpop.f32.mrf.mxu0
        %v1734 = vadd.f32 %v1721, %v1733
        %v1735 = vpop.f32.mrf.mxu0
        %1736 = vdwg.mxu0
        %1737 = vmatpush.bf16.msra.mxu0 %v1339
        %1738 = vmatpush.bf16.msra.mxu0 %v1338
        %1739 = vmatpush.bf16.msra.mxu0 %v1337
        %1740 = vmatpush.bf16.msra.mxu0 %v1336
        %1741 = vmatpush.bf16.msra.mxu0 %v1335
        %1742 = vmatpush.bf16.msra.mxu0 %v1334
        %1743 = vmatpush.bf16.msra.mxu0 %v1333
        %1744 = vmatpush.bf16.msra.mxu0 %v1332
        %1745 = vmatmul.bf16.gmra.mxu0 %v233
        %v1746 = vpop.f32.mrf.mxu0
        %v1747 = vadd.f32 %v1734, %v1746
        %v1748 = vpop.f32.mrf.mxu0
        %1749 = vdwg.mxu0
        %1750 = vmatpush.bf16.msra.mxu0 %v1347
        %1751 = vmatpush.bf16.msra.mxu0 %v1346
        %1752 = vmatpush.bf16.msra.mxu0 %v1345
        %1753 = vmatpush.bf16.msra.mxu0 %v1344
        %1754 = vmatpush.bf16.msra.mxu0 %v1343
        %1755 = vmatpush.bf16.msra.mxu0 %v1342
        %1756 = vmatpush.bf16.msra.mxu0 %v1341
        %1757 = vmatpush.bf16.msra.mxu0 %v1340
        %1758 = vmatmul.bf16.gmra.mxu0 %v234
        %v1759 = vpop.f32.mrf.mxu0
        %v1760 = vadd.f32 %v1747, %v1759
        %v1761 = vpop.f32.mrf.mxu0
        %1762 = vdwg.mxu0
        %1763 = vmatpush.bf16.msra.mxu0 %v1355
        %1764 = vmatpush.bf16.msra.mxu0 %v1354
        %1765 = vmatpush.bf16.msra.mxu0 %v1353
        %1766 = vmatpush.bf16.msra.mxu0 %v1352
        %1767 = vmatpush.bf16.msra.mxu0 %v1351
        %1768 = vmatpush.bf16.msra.mxu0 %v1350
        %1769 = vmatpush.bf16.msra.mxu0 %v1349
        %1770 = vmatpush.bf16.msra.mxu0 %v1348
        %1771 = vmatmul.bf16.gmra.mxu0 %v235
        %v1772 = vpop.f32.mrf.mxu0
        %v1773 = vadd.f32 %v1760, %v1772
        %v1774 = vpop.f32.mrf.mxu0
        %1775 = vdwg.mxu0
        %v1776 = vadd.f32 %v159, %v1773
        %1777 = vst [vmem:[#allocation2] sm:$0x3] %v1776
        // Predicated region
        $region33: #{_lambda_.3} parent=27 // pred_check
          %p1778 = pneg %p79
        $region34: #{_lambda_.3} parent=27 // pred_check_branch
          %1780 = sbr.rel (%p1778) target = $region36
        $region35: #{_lambda_.3} parent=27 // pred_region
          %1782 = vsyncadd [#allocation3], 0
          %s1784 = sshll.u32 [#allocation2], 4
          %s1785 = int_to_ptr.vmem [resolvable:$true] %s1784
          %s1786 = sshll.u32 %s2, 4
          %s1787 = int_to_ptr.hbm [resolvable:$true] %s1786
          %1789 = dma.vmem_to_hbm [thread:$0]  %s1785, 32, %s1787, [#allocation3]
        $region36: #{_lambda_.3} parent=27 // pred_fallthru
          _
        // Predicated region
        $region37: #{_lambda_.3} parent=27 // pred_check
          %p1790 = pneg %p79
        $region38: #{_lambda_.3} parent=27 // pred_check_branch
          %1792 = sbr.rel (%p1790) target = $region40
        $region39: #{_lambda_.3} parent=27 // pred_region
          %1794 = dma.done [#allocation3], 32
        $region40: #{_lambda_.3} parent=27 // pred_fallthru
          _
      $region28: #{_lambda_.3} parent=5 // pred_fallthru
        _
      %p1795 = scmp.le.s32.totalorder 2, %s9
      // Predicated region
      $region41: #{_lambda_.3} parent=5 // pred_check
        %p1796 = pneg %p1795
      $region42: #{_lambda_.3} parent=5 // pred_check_branch
        %1798 = sbr.rel (%p1796) target = $region44
      $region43: #{_lambda_.3} parent=5 // pred_region
        %s1799 = ssub.s32 %s9, 2
      $region44: #{_lambda_.3} parent=5 // pred_fallthru
        _
    $region6: #{_lambda_.3} parent=1 // loop_footer
      %s13 = sadd.s32 1, %s9
    $region7: #{_lambda_.3} parent=1 // loop_footer_branch
      %8 = sbr.rel target = $region3
    $region8: #{_lambda_.3} parent=1 // loop_exit
      _
    %1800 = vsyncpa [#allocation3], 1
    %s1801 = scalar_lea.sflag [#allocation3], 1
    %1802 = vsyncpa %s1801, 1

// kernel: _lambda_.2
$region0: #{_lambda_.2}
  #allocation0 [shape = 'u32[]', space=smem, size = 0x4, offset = 0x4, fixed_abs, tag = 'smem constant byte address 0x4 - core index']
  #allocation1 [shape = 'u32[72,128]{1,0:T(1,128)}', space=vmem, size = 0x9000, scoped, tag = 'internal scratch']
  #allocation2 [shape = 'f32[112,1280]{1,0:T(8,128)}', space=vmem, size = 0x8c000, scoped, tag = 'scratch operand']
  %s0 = inlined_call_operand.vmem [shape: bf16[2,112,640], index: 0, kind: input, shape index: {}]
  %s1 = inlined_call_operand.vmem [shape: bf16[640,1280], index: 1, kind: input, shape index: {}]
  %s2 = inlined_call_operand.vmem [shape: bf16[640,128], index: 2, kind: input, shape index: {}]
  %s3 = inlined_call_operand.vmem [shape: bf16[640,128], index: 3, kind: input, shape index: {}]
  %s4 = inlined_call_operand.vmem [shape: bf16[640,128], index: 4, kind: input, shape index: {}]
  %s5 = inlined_call_operand.vmem [shape: f32[2,3,56,128], index: 5, kind: output, shape index: {}]
  %s6 = sld [smem:[#allocation0]]
  $region53: #{_lambda_.2} parent=0
    _
  %s8 = ssub.s32 1, %s6
  %s9 = scalar_select 0, %s8, %s6
  loop: start=0, step=1, limit=4
  $region2: #{_lambda_.2} parent=0 // loop_pre_header
    _
  $region3: #{_lambda_.2} parent=0 // loop_header
    %s11 = sphi 0, %s15
    %p12 = scmp.ge.s32.totalorder %s11, 4
    %s21 = sphi 0, %s23
    %s24 = sphi 0, %s21
    %s25 = sphi 0, %s24
    %s41 = sphi 0, %s25
    %s45 = sphi 0, %s45
    %s47 = sphi 0, %s45
    %s48 = sphi 0, %s47
    %s62 = sphi 0, %s48
    %s66 = sphi 0, %s66
    %s68 = sphi 0, %s66
    %s69 = sphi 0, %s68
    %s83 = sphi 0, %s69
    %s87 = sphi 0, %s87
    %s89 = sphi 0, %s87
    %s90 = sphi 0, %s89
    %s104 = sphi 0, %s90
    %s108 = sphi 0, %s108
    %s110 = sphi 0, %s108
    %s111 = sphi 0, %s110
    %s125 = sphi 0, %s111
    %s131 = sphi 0, %s133
    %s134 = sphi 0, %s131
    %s135 = sphi 0, %s134
    %s151 = sphi 0, %s135
  $region4: #{_lambda_.2} parent=0 // loop_header_branch
    %14 = sbr.rel (%p12) target = $region8
  $region5: #{_lambda_.2} parent=0 // loop_body
    %s16 = ssub.s32 %s11, 1
    %s17 = ssub.s32 %s11, 2
    %s18 = sadd.s32 %s11, 1
    %s19 = ssub.s32 %s11, %s18
    %p20 = scmp.eq.s32.totalorder %s19, 0
    %s22 = sadd.s32 %s21, 1
    %s23 = scalar_select %p20, %s21, %s22
    %p26 = pneg %p20
    %p27 = scmp.eq.s32.totalorder %s11, 1
    %p28 = por %p26, %p27
    %p29 = scmp.ne.s32.totalorder %s21, %s24
    %p30 = scmp.eq.s32.totalorder %s11, 0
    %p31 = por %p29, %p30
    %p32 = scmp.ne.s32.totalorder %s21, %s24
    %p33 = scmp.eq.s32.totalorder %s16, 1
    %p34 = por %p32, %p33
    %p35 = scmp.ne.s32.totalorder %s24, %s25
    %p36 = scmp.eq.s32.totalorder %s16, 0
    %p37 = por %p35, %p36
    %p38 = scmp.ne.s32.totalorder %s24, %s25
    %p39 = scmp.eq.s32.totalorder %s17, 1
    %p40 = por %p38, %p39
    %p42 = scmp.ne.s32.totalorder %s25, %s41
    %p43 = scmp.eq.s32.totalorder %s17, 0
    %p44 = por %p42, %p43
    %s46 = sadd.s32 %s45, 1
    %p49 = scmp.eq.s32.totalorder %s11, 1
    %p50 = scmp.ne.s32.totalorder %s45, %s47
    %p51 = scmp.eq.s32.totalorder %s11, 0
    %p52 = por %p50, %p51
    %p53 = scmp.ne.s32.totalorder %s45, %s47
    %p54 = scmp.eq.s32.totalorder %s16, 1
    %p55 = por %p53, %p54
    %p56 = scmp.ne.s32.totalorder %s47, %s48
    %p57 = scmp.eq.s32.totalorder %s16, 0
    %p58 = por %p56, %p57
    %p59 = scmp.ne.s32.totalorder %s47, %s48
    %p60 = scmp.eq.s32.totalorder %s17, 1
    %p61 = por %p59, %p60
    %p63 = scmp.ne.s32.totalorder %s48, %s62
    %p64 = scmp.eq.s32.totalorder %s17, 0
    %p65 = por %p63, %p64
    %s67 = sadd.s32 %s66, 1
    %p70 = scmp.eq.s32.totalorder %s11, 1
    %p71 = scmp.ne.s32.totalorder %s66, %s68
    %p72 = scmp.eq.s32.totalorder %s11, 0
    %p73 = por %p71, %p72
    %p74 = scmp.ne.s32.totalorder %s66, %s68
    %p75 = scmp.eq.s32.totalorder %s16, 1
    %p76 = por %p74, %p75
    %p77 = scmp.ne.s32.totalorder %s68, %s69
    %p78 = scmp.eq.s32.totalorder %s16, 0
    %p79 = por %p77, %p78
    %p80 = scmp.ne.s32.totalorder %s68, %s69
    %p81 = scmp.eq.s32.totalorder %s17, 1
    %p82 = por %p80, %p81
    %p84 = scmp.ne.s32.totalorder %s69, %s83
    %p85 = scmp.eq.s32.totalorder %s17, 0
    %p86 = por %p84, %p85
    %s88 = sadd.s32 %s87, 1
    %p91 = scmp.eq.s32.totalorder %s11, 1
    %p92 = scmp.ne.s32.totalorder %s87, %s89
    %p93 = scmp.eq.s32.totalorder %s11, 0
    %p94 = por %p92, %p93
    %p95 = scmp.ne.s32.totalorder %s87, %s89
    %p96 = scmp.eq.s32.totalorder %s16, 1
    %p97 = por %p95, %p96
    %p98 = scmp.ne.s32.totalorder %s89, %s90
    %p99 = scmp.eq.s32.totalorder %s16, 0
    %p100 = por %p98, %p99
    %p101 = scmp.ne.s32.totalorder %s89, %s90
    %p102 = scmp.eq.s32.totalorder %s17, 1
    %p103 = por %p101, %p102
    %p105 = scmp.ne.s32.totalorder %s90, %s104
    %p106 = scmp.eq.s32.totalorder %s17, 0
    %p107 = por %p105, %p106
    %s109 = sadd.s32 %s108, 1
    %p112 = scmp.eq.s32.totalorder %s11, 1
    %p113 = scmp.ne.s32.totalorder %s108, %s110
    %p114 = scmp.eq.s32.totalorder %s11, 0
    %p115 = por %p113, %p114
    %p116 = scmp.ne.s32.totalorder %s108, %s110
    %p117 = scmp.eq.s32.totalorder %s16, 1
    %p118 = por %p116, %p117
    %p119 = scmp.ne.s32.totalorder %s110, %s111
    %p120 = scmp.eq.s32.totalorder %s16, 0
    %p121 = por %p119, %p120
    %p122 = scmp.ne.s32.totalorder %s110, %s111
    %p123 = scmp.eq.s32.totalorder %s17, 1
    %p124 = por %p122, %p123
    %p126 = scmp.ne.s32.totalorder %s111, %s125
    %p127 = scmp.eq.s32.totalorder %s17, 0
    %p128 = por %p126, %p127
    %s129 = ssub.s32 %s11, %s18
    %p130 = scmp.eq.s32.totalorder %s129, 0
    %s132 = sadd.s32 %s131, 1
    %s133 = scalar_select %p130, %s131, %s132
    %p136 = pneg %p130
    %p137 = scmp.eq.s32.totalorder %s11, 1
    %p138 = por %p136, %p137
    %p139 = scmp.ne.s32.totalorder %s131, %s134
    %p140 = scmp.eq.s32.totalorder %s11, 0
    %p141 = por %p139, %p140
    %p142 = scmp.ne.s32.totalorder %s131, %s134
    %p143 = scmp.eq.s32.totalorder %s16, 1
    %p144 = por %p142, %p143
    %p145 = scmp.ne.s32.totalorder %s134, %s135
    %p146 = scmp.eq.s32.totalorder %s16, 0
    %p147 = por %p145, %p146
    %p148 = scmp.ne.s32.totalorder %s134, %s135
    %p149 = scmp.eq.s32.totalorder %s17, 1
    %p150 = por %p148, %p149
    %p152 = scmp.ne.s32.totalorder %s135, %s151
    %p153 = scmp.eq.s32.totalorder %s17, 0
    %p154 = por %p152, %p153
    %p155 = scmp.le.s32.totalorder 1, %s11
    %p156 = scmp.lt.s32.totalorder %s11, 3
    %p157 = pnand %p155, %p156
    %p158 = pneg %p157
    // Predicated region
    $region9: #{_lambda_.2} parent=5 // pred_check
      _
    $region10: #{_lambda_.2} parent=5 // pred_check_branch
      %160 = sbr.rel (%p157) target = $region12
    $region11: #{_lambda_.2} parent=5 // pred_region
      %s161 = ssub.s32 %s11, 1
      // Predicated region
      $region13: #{_lambda_.2} parent=11 // pred_check
        %p162 = pneg %p58
      $region14: #{_lambda_.2} parent=11 // pred_check_branch
        %164 = sbr.rel (%p162) target = $region16
      $region15: #{_lambda_.2} parent=11 // pred_region
        _
      $region16: #{_lambda_.2} parent=11 // pred_fallthru
        _
      // Predicated region
      $region17: #{_lambda_.2} parent=11 // pred_check
        %p165 = pneg %p79
      $region18: #{_lambda_.2} parent=11 // pred_check_branch
        %167 = sbr.rel (%p165) target = $region20
      $region19: #{_lambda_.2} parent=11 // pred_region
        _
      $region20: #{_lambda_.2} parent=11 // pred_fallthru
        _
      // Predicated region
      $region21: #{_lambda_.2} parent=11 // pred_check
        %p168 = pneg %p100
      $region22: #{_lambda_.2} parent=11 // pred_check_branch
        %170 = sbr.rel (%p168) target = $region24
      $region23: #{_lambda_.2} parent=11 // pred_region
        _
      $region24: #{_lambda_.2} parent=11 // pred_fallthru
        _
      // Predicated region
      $region25: #{_lambda_.2} parent=11 // pred_check
        %p171 = pneg %p121
      $region26: #{_lambda_.2} parent=11 // pred_check_branch
        %173 = sbr.rel (%p171) target = $region28
      $region27: #{_lambda_.2} parent=11 // pred_region
        _
      $region28: #{_lambda_.2} parent=11 // pred_fallthru
        _
    $region12: #{_lambda_.2} parent=5 // pred_fallthru
      _
    %p174 = scmp.lt.s32.totalorder %s11, 2
    // Predicated region
    $region29: #{_lambda_.2} parent=5 // pred_check
      %p175 = pneg %p174
    $region30: #{_lambda_.2} parent=5 // pred_check_branch
      %177 = sbr.rel (%p175) target = $region32
    $region31: #{_lambda_.2} parent=5 // pred_region
      // Predicated region
      $region33: #{_lambda_.2} parent=31 // pred_check
        %p178 = pneg %p31
      $region34: #{_lambda_.2} parent=31 // pred_check_branch
        %180 = sbr.rel (%p178) target = $region36
      $region35: #{_lambda_.2} parent=31 // pred_region
        %p181 = scmp.lt.s32.totalorder %s11, 1
        %s182 = scalar_select %p181, %s11, 1
        %s183 = smul.addr %s182, 70
        %s184 = smul.addr %s183, 4
        %s185 = scalar_lea.vmem %s0, %s184
      $region36: #{_lambda_.2} parent=31 // pred_fallthru
        _
    $region32: #{_lambda_.2} parent=5 // pred_fallthru
      _
    %p186 = scmp.le.s32.totalorder 1, %s11
    %p187 = scmp.lt.s32.totalorder %s11, 3
    %p188 = pnand %p186, %p187
    %p189 = pneg %p188
    // Predicated region
    $region37: #{_lambda_.2} parent=5 // pred_check
      _
    $region38: #{_lambda_.2} parent=5 // pred_check_branch
      %191 = sbr.rel (%p188) target = $region40
    $region39: #{_lambda_.2} parent=5 // pred_region
      %s192 = ssub.s32 %s11, 1
      %p193 = scmp.lt.s32.totalorder %s16, 1
      %s194 = scalar_select %p193, %s16, 1
      %s195 = smul.addr %s194, 70
      %s196 = smul.addr %s195, 4
      %s197 = scalar_lea.vmem %s0, %s196
      %p198 = pneg %p37
      %p199 = pneg %p34
      %p200 = pneg %p58
      %p201 = pneg %p55
      %p202 = pneg %p79
      %p203 = pneg %p76
      %p204 = pneg %p100
      %p205 = pneg %p97
      %p206 = pneg %p121
      %p207 = pneg %p118
      %p208 = pneg %p147
      %p209 = pneg %p144
      %p210 = scmp.lt.s32.totalorder %s16, 1
      %s211 = scalar_select %p210, %s16, 1
      %s212 = smul.addr %s211, 21
      %s213 = smul.addr %s212, 8
      %s214 = scalar_lea.vmem %s5, %s213
      %p215 = scmp.lt.s32.totalorder %s16, 1
      %s216 = scalar_select %p215, %s16, 1
      %s217 = smul.addr %s216, 70
      %s218 = smul.addr %s217, 4
      %s219 = scalar_lea.vmem %s0, %s218
      %p220 = scmp.lt.s32.totalorder %s16, 1
      %s221 = scalar_select %p220, %s16, 1
      %s222 = smul.addr %s221, 21
      %s223 = smul.addr %s222, 8
      %s224 = scalar_lea.vmem %s5, %s223
      %v225 = vld [vmem:[%s219] sm:$0xff]
      %v226 = vld [vmem:[%s219 + $0x8] sm:$0xff]
      %v227 = vld [vmem:[%s219 + $0x10] sm:$0xf]
      %v228 = vld [vmem:[%s219 + $0x14] sm:$0xff]
      %v229 = vld [vmem:[%s219 + $0x1c] sm:$0xff]
      %v230 = vld [vmem:[%s219 + $0x24] sm:$0xf]
      %v231 = vld [vmem:[%s219 + $0x28] sm:$0xff]
      %v232 = vld [vmem:[%s219 + $0x30] sm:$0xff]
      %v233 = vld [vmem:[%s219 + $0x38] sm:$0xf]
      %v234 = vld [vmem:[%s219 + $0x3c] sm:$0xff]
      %v235 = vld [vmem:[%s219 + $0x44] sm:$0xff]
      %v236 = vld [vmem:[%s219 + $0x4c] sm:$0xf]
      %v237 = vld [vmem:[%s219 + $0x50] sm:$0xff]
      %v238 = vld [vmem:[%s219 + $0x58] sm:$0xff]
      %v239 = vld [vmem:[%s219 + $0x60] sm:$0xf]
      %v240 = vld [vmem:[%s219 + $0x64] sm:$0xff]
      %v241 = vld [vmem:[%s219 + $0x6c] sm:$0xff]
      %v242 = vld [vmem:[%s219 + $0x74] sm:$0xf]
      %v243 = vld [vmem:[%s219 + $0x78] sm:$0xff]
      %v244 = vld [vmem:[%s219 + $0x80] sm:$0xff]
      %v245 = vld [vmem:[%s219 + $0x88] sm:$0xf]
      %v246 = vld [vmem:[%s219 + $0x8c] sm:$0xff]
      %v247 = vld [vmem:[%s219 + $0x94] sm:$0xff]
      %v248 = vld [vmem:[%s219 + $0x9c] sm:$0xf]
      %v249 = vld [vmem:[%s219 + $0xa0] sm:$0xff]
      %v250 = vld [vmem:[%s219 + $0xa8] sm:$0xff]
      %v251 = vld [vmem:[%s219 + $0xb0] sm:$0xf]
      %v252 = vld [vmem:[%s219 + $0xb4] sm:$0xff]
      %v253 = vld [vmem:[%s219 + $0xbc] sm:$0xff]
      %v254 = vld [vmem:[%s219 + $0xc4] sm:$0xf]
      %v255 = vld [vmem:[%s219 + $0xc8] sm:$0xff]
      %v256 = vld [vmem:[%s219 + $0xd0] sm:$0xff]
      %v257 = vld [vmem:[%s219 + $0xd8] sm:$0xf]
      %v258 = vld [vmem:[%s219 + $0xdc] sm:$0xff]
      %v259 = vld [vmem:[%s219 + $0xe4] sm:$0xff]
      %v260 = vld [vmem:[%s219 + $0xec] sm:$0xf]
      %v261 = vld [vmem:[%s219 + $0xf0] sm:$0xff]
      %v262 = vld [vmem:[%s219 + $0xf8] sm:$0xff]
      %v263 = vld [vmem:[%s219 + $0x100] sm:$0xf]
      %v264 = vld [vmem:[%s219 + $0x104] sm:$0xff]
      %v265 = vld [vmem:[%s219 + $0x10c] sm:$0xff]
      %v266 = vld [vmem:[%s219 + $0x114] sm:$0xf]
      %v267 = vld [vmem:[%s1] sm:$0xff]
      %v268 = vld [vmem:[%s1 + $0x8] sm:$0xff]
      %v269 = vld [vmem:[%s1 + $0x10] sm:$0xff]
      %v270 = vld [vmem:[%s1 + $0x18] sm:$0xff]
      %v271 = vld [vmem:[%s1 + $0x20] sm:$0xff]
      %v272 = vld [vmem:[%s1 + $0x28] sm:$0xff]
      %v273 = vld [vmem:[%s1 + $0x30] sm:$0xff]
      %v274 = vld [vmem:[%s1 + $0x38] sm:$0xff]
      %v275 = vld [vmem:[%s1 + $0x40] sm:$0xff]
      %v276 = vld [vmem:[%s1 + $0x48] sm:$0xff]
      %v277 = vld [vmem:[%s1 + $0x50] sm:$0xff]
      %v278 = vld [vmem:[%s1 + $0x58] sm:$0xff]
      %v279 = vld [vmem:[%s1 + $0x60] sm:$0xff]
      %v280 = vld [vmem:[%s1 + $0x68] sm:$0xff]
      %v281 = vld [vmem:[%s1 + $0x70] sm:$0xff]
      %v282 = vld [vmem:[%s1 + $0x78] sm:$0xff]
      %v283 = vld [vmem:[%s1 + $0x80] sm:$0xff]
      %v284 = vld [vmem:[%s1 + $0x88] sm:$0xff]
      %v285 = vld [vmem:[%s1 + $0x90] sm:$0xff]
      %v286 = vld [vmem:[%s1 + $0x98] sm:$0xff]
      %v287 = vld [vmem:[%s1 + $0xa0] sm:$0xff]
      %v288 = vld [vmem:[%s1 + $0xa8] sm:$0xff]
      %v289 = vld [vmem:[%s1 + $0xb0] sm:$0xff]
      %v290 = vld [vmem:[%s1 + $0xb8] sm:$0xff]
      %v291 = vld [vmem:[%s1 + $0xc0] sm:$0xff]
      %v292 = vld [vmem:[%s1 + $0xc8] sm:$0xff]
      %v293 = vld [vmem:[%s1 + $0xd0] sm:$0xff]
      %v294 = vld [vmem:[%s1 + $0xd8] sm:$0xff]
      %v295 = vld [vmem:[%s1 + $0xe0] sm:$0xff]
      %v296 = vld [vmem:[%s1 + $0xe8] sm:$0xff]
      %v297 = vld [vmem:[%s1 + $0xf0] sm:$0xff]
      %v298 = vld [vmem:[%s1 + $0xf8] sm:$0xff]
      %v299 = vld [vmem:[%s1 + $0x100] sm:$0xff]
      %v300 = vld [vmem:[%s1 + $0x108] sm:$0xff]
      %v301 = vld [vmem:[%s1 + $0x110] sm:$0xff]
      %v302 = vld [vmem:[%s1 + $0x118] sm:$0xff]
      %v303 = vld [vmem:[%s1 + $0x120] sm:$0xff]
      %v304 = vld [vmem:[%s1 + $0x128] sm:$0xff]
      %v305 = vld [vmem:[%s1 + $0x130] sm:$0xff]
      %v306 = vld [vmem:[%s1 + $0x138] sm:$0xff]
      %v307 = vld [vmem:[%s1 + $0x140] sm:$0xff]
      %v308 = vld [vmem:[%s1 + $0x148] sm:$0xff]
      %v309 = vld [vmem:[%s1 + $0x150] sm:$0xff]
      %v310 = vld [vmem:[%s1 + $0x158] sm:$0xff]
      %v311 = vld [vmem:[%s1 + $0x160] sm:$0xff]
      %v312 = vld [vmem:[%s1 + $0x168] sm:$0xff]
      %v313 = vld [vmem:[%s1 + $0x170] sm:$0xff]
      %v314 = vld [vmem:[%s1 + $0x178] sm:$0xff]
      %v315 = vld [vmem:[%s1 + $0x180] sm:$0xff]
      %v316 = vld [vmem:[%s1 + $0x188] sm:$0xff]
      %v317 = vld [vmem:[%s1 + $0x190] sm:$0xff]
      %v318 = vld [vmem:[%s1 + $0x198] sm:$0xff]
      %v319 = vld [vmem:[%s1 + $0x1a0] sm:$0xff]
      %v320 = vld [vmem:[%s1 + $0x1a8] sm:$0xff]
      %v321 = vld [vmem:[%s1 + $0x1b0] sm:$0xff]
      %v322 = vld [vmem:[%s1 + $0x1b8] sm:$0xff]
      %v323 = vld [vmem:[%s1 + $0x1c0] sm:$0xff]
      %v324 = vld [vmem:[%s1 + $0x1c8] sm:$0xff]
      %v325 = vld [vmem:[%s1 + $0x1d0] sm:$0xff]
      %v326 = vld [vmem:[%s1 + $0x1d8] sm:$0xff]
      %v327 = vld [vmem:[%s1 + $0x1e0] sm:$0xff]
      %v328 = vld [vmem:[%s1 + $0x1e8] sm:$0xff]
      %v329 = vld [vmem:[%s1 + $0x1f0] sm:$0xff]
      %v330 = vld [vmem:[%s1 + $0x1f8] sm:$0xff]
      %v331 = vld [vmem:[%s1 + $0x200] sm:$0xff]
      %v332 = vld [vmem:[%s1 + $0x208] sm:$0xff]
      %v333 = vld [vmem:[%s1 + $0x210] sm:$0xff]
      %v334 = vld [vmem:[%s1 + $0x218] sm:$0xff]
      %v335 = vld [vmem:[%s1 + $0x220] sm:$0xff]
      %v336 = vld [vmem:[%s1 + $0x228] sm:$0xff]
      %v337 = vld [vmem:[%s1 + $0x230] sm:$0xff]
      %v338 = vld [vmem:[%s1 + $0x238] sm:$0xff]
      %v339 = vld [vmem:[%s1 + $0x240] sm:$0xff]
      %v340 = vld [vmem:[%s1 + $0x248] sm:$0xff]
      %v341 = vld [vmem:[%s1 + $0x250] sm:$0xff]
      %v342 = vld [vmem:[%s1 + $0x258] sm:$0xff]
      %v343 = vld [vmem:[%s1 + $0x260] sm:$0xff]
      %v344 = vld [vmem:[%s1 + $0x268] sm:$0xff]
      %v345 = vld [vmem:[%s1 + $0x270] sm:$0xff]
      %v346 = vld [vmem:[%s1 + $0x278] sm:$0xff]
      %v347 = vld [vmem:[%s1 + $0x280] sm:$0xff]
      %v348 = vld [vmem:[%s1 + $0x288] sm:$0xff]
      %v349 = vld [vmem:[%s1 + $0x290] sm:$0xff]
      %v350 = vld [vmem:[%s1 + $0x298] sm:$0xff]
      %v351 = vld [vmem:[%s1 + $0x2a0] sm:$0xff]
      %v352 = vld [vmem:[%s1 + $0x2a8] sm:$0xff]
      %v353 = vld [vmem:[%s1 + $0x2b0] sm:$0xff]
      %v354 = vld [vmem:[%s1 + $0x2b8] sm:$0xff]
      %v355 = vld [vmem:[%s1 + $0x2c0] sm:$0xff]
      %v356 = vld [vmem:[%s1 + $0x2c8] sm:$0xff]
      %v357 = vld [vmem:[%s1 + $0x2d0] sm:$0xff]
      %v358 = vld [vmem:[%s1 + $0x2d8] sm:$0xff]
      %v359 = vld [vmem:[%s1 + $0x2e0] sm:$0xff]
      %v360 = vld [vmem:[%s1 + $0x2e8] sm:$0xff]
      %v361 = vld [vmem:[%s1 + $0x2f0] sm:$0xff]
      %v362 = vld [vmem:[%s1 + $0x2f8] sm:$0xff]
      %v363 = vld [vmem:[%s1 + $0x300] sm:$0xff]
      %v364 = vld [vmem:[%s1 + $0x308] sm:$0xff]
      %v365 = vld [vmem:[%s1 + $0x310] sm:$0xff]
      %v366 = vld [vmem:[%s1 + $0x318] sm:$0xff]
      %v367 = vld [vmem:[%s1 + $0x320] sm:$0xff]
      %v368 = vld [vmem:[%s1 + $0x328] sm:$0xff]
      %v369 = vld [vmem:[%s1 + $0x330] sm:$0xff]
      %v370 = vld [vmem:[%s1 + $0x338] sm:$0xff]
      %v371 = vld [vmem:[%s1 + $0x340] sm:$0xff]
      %v372 = vld [vmem:[%s1 + $0x348] sm:$0xff]
      %v373 = vld [vmem:[%s1 + $0x350] sm:$0xff]
      %v374 = vld [vmem:[%s1 + $0x358] sm:$0xff]
      %v375 = vld [vmem:[%s1 + $0x360] sm:$0xff]
      %v376 = vld [vmem:[%s1 + $0x368] sm:$0xff]
      %v377 = vld [vmem:[%s1 + $0x370] sm:$0xff]
      %v378 = vld [vmem:[%s1 + $0x378] sm:$0xff]
      %v379 = vld [vmem:[%s1 + $0x380] sm:$0xff]
      %v380 = vld [vmem:[%s1 + $0x388] sm:$0xff]
      %v381 = vld [vmem:[%s1 + $0x390] sm:$0xff]
      %v382 = vld [vmem:[%s1 + $0x398] sm:$0xff]
      %v383 = vld [vmem:[%s1 + $0x3a0] sm:$0xff]
      %v384 = vld [vmem:[%s1 + $0x3a8] sm:$0xff]
      %v385 = vld [vmem:[%s1 + $0x3b0] sm:$0xff]
      %v386 = vld [vmem:[%s1 + $0x3b8] sm:$0xff]
      %v387 = vld [vmem:[%s1 + $0x3c0] sm:$0xff]
      %v388 = vld [vmem:[%s1 + $0x3c8] sm:$0xff]
      %v389 = vld [vmem:[%s1 + $0x3d0] sm:$0xff]
      %v390 = vld [vmem:[%s1 + $0x3d8] sm:$0xff]
      %v391 = vld [vmem:[%s1 + $0x3e0] sm:$0xff]
      %v392 = vld [vmem:[%s1 + $0x3e8] sm:$0xff]
      %v393 = vld [vmem:[%s1 + $0x3f0] sm:$0xff]
      %v394 = vld [vmem:[%s1 + $0x3f8] sm:$0xff]
      %v395 = vld [vmem:[%s1 + $0x400] sm:$0xff]
      %v396 = vld [vmem:[%s1 + $0x408] sm:$0xff]
      %v397 = vld [vmem:[%s1 + $0x410] sm:$0xff]
      %v398 = vld [vmem:[%s1 + $0x418] sm:$0xff]
      %v399 = vld [vmem:[%s1 + $0x420] sm:$0xff]
      %v400 = vld [vmem:[%s1 + $0x428] sm:$0xff]
      %v401 = vld [vmem:[%s1 + $0x430] sm:$0xff]
      %v402 = vld [vmem:[%s1 + $0x438] sm:$0xff]
      %v403 = vld [vmem:[%s1 + $0x440] sm:$0xff]
      %v404 = vld [vmem:[%s1 + $0x448] sm:$0xff]
      %v405 = vld [vmem:[%s1 + $0x450] sm:$0xff]
      %v406 = vld [vmem:[%s1 + $0x458] sm:$0xff]
      %v407 = vld [vmem:[%s1 + $0x460] sm:$0xff]
      %v408 = vld [vmem:[%s1 + $0x468] sm:$0xff]
      %v409 = vld [vmem:[%s1 + $0x470] sm:$0xff]
      %v410 = vld [vmem:[%s1 + $0x478] sm:$0xff]
      %v411 = vld [vmem:[%s1 + $0x480] sm:$0xff]
      %v412 = vld [vmem:[%s1 + $0x488] sm:$0xff]
      %v413 = vld [vmem:[%s1 + $0x490] sm:$0xff]
      %v414 = vld [vmem:[%s1 + $0x498] sm:$0xff]
      %v415 = vld [vmem:[%s1 + $0x4a0] sm:$0xff]
      %v416 = vld [vmem:[%s1 + $0x4a8] sm:$0xff]
      %v417 = vld [vmem:[%s1 + $0x4b0] sm:$0xff]
      %v418 = vld [vmem:[%s1 + $0x4b8] sm:$0xff]
      %v419 = vld [vmem:[%s1 + $0x4c0] sm:$0xff]
      %v420 = vld [vmem:[%s1 + $0x4c8] sm:$0xff]
      %v421 = vld [vmem:[%s1 + $0x4d0] sm:$0xff]
      %v422 = vld [vmem:[%s1 + $0x4d8] sm:$0xff]
      %v423 = vld [vmem:[%s1 + $0x4e0] sm:$0xff]
      %v424 = vld [vmem:[%s1 + $0x4e8] sm:$0xff]
      %v425 = vld [vmem:[%s1 + $0x4f0] sm:$0xff]
      %v426 = vld [vmem:[%s1 + $0x4f8] sm:$0xff]
      %v427 = vld [vmem:[%s1 + $0x500] sm:$0xff]
      %v428 = vld [vmem:[%s1 + $0x508] sm:$0xff]
      %v429 = vld [vmem:[%s1 + $0x510] sm:$0xff]
      %v430 = vld [vmem:[%s1 + $0x518] sm:$0xff]
      %v431 = vld [vmem:[%s1 + $0x520] sm:$0xff]
      %v432 = vld [vmem:[%s1 + $0x528] sm:$0xff]
      %v433 = vld [vmem:[%s1 + $0x530] sm:$0xff]
      %v434 = vld [vmem:[%s1 + $0x538] sm:$0xff]
      %v435 = vld [vmem:[%s1 + $0x540] sm:$0xff]
      %v436 = vld [vmem:[%s1 + $0x548] sm:$0xff]
      %v437 = vld [vmem:[%s1 + $0x550] sm:$0xff]
      %v438 = vld [vmem:[%s1 + $0x558] sm:$0xff]
      %v439 = vld [vmem:[%s1 + $0x560] sm:$0xff]
      %v440 = vld [vmem:[%s1 + $0x568] sm:$0xff]
      %v441 = vld [vmem:[%s1 + $0x570] sm:$0xff]
      %v442 = vld [vmem:[%s1 + $0x578] sm:$0xff]
      %v443 = vld [vmem:[%s1 + $0x580] sm:$0xff]
      %v444 = vld [vmem:[%s1 + $0x588] sm:$0xff]
      %v445 = vld [vmem:[%s1 + $0x590] sm:$0xff]
      %v446 = vld [vmem:[%s1 + $0x598] sm:$0xff]
      %v447 = vld [vmem:[%s1 + $0x5a0] sm:$0xff]
      %v448 = vld [vmem:[%s1 + $0x5a8] sm:$0xff]
      %v449 = vld [vmem:[%s1 + $0x5b0] sm:$0xff]
      %v450 = vld [vmem:[%s1 + $0x5b8] sm:$0xff]
      %v451 = vld [vmem:[%s1 + $0x5c0] sm:$0xff]
      %v452 = vld [vmem:[%s1 + $0x5c8] sm:$0xff]
      %v453 = vld [vmem:[%s1 + $0x5d0] sm:$0xff]
      %v454 = vld [vmem:[%s1 + $0x5d8] sm:$0xff]
      %v455 = vld [vmem:[%s1 + $0x5e0] sm:$0xff]
      %v456 = vld [vmem:[%s1 + $0x5e8] sm:$0xff]
      %v457 = vld [vmem:[%s1 + $0x5f0] sm:$0xff]
      %v458 = vld [vmem:[%s1 + $0x5f8] sm:$0xff]
      %v459 = vld [vmem:[%s1 + $0x600] sm:$0xff]
      %v460 = vld [vmem:[%s1 + $0x608] sm:$0xff]
      %v461 = vld [vmem:[%s1 + $0x610] sm:$0xff]
      %v462 = vld [vmem:[%s1 + $0x618] sm:$0xff]
      %v463 = vld [vmem:[%s1 + $0x620] sm:$0xff]
      %v464 = vld [vmem:[%s1 + $0x628] sm:$0xff]
      %v465 = vld [vmem:[%s1 + $0x630] sm:$0xff]
      %v466 = vld [vmem:[%s1 + $0x638] sm:$0xff]
      %v467 = vld [vmem:[%s1 + $0x640] sm:$0xff]
      %v468 = vld [vmem:[%s1 + $0x648] sm:$0xff]
      %v469 = vld [vmem:[%s1 + $0x650] sm:$0xff]
      %v470 = vld [vmem:[%s1 + $0x658] sm:$0xff]
      %v471 = vld [vmem:[%s1 + $0x660] sm:$0xff]
      %v472 = vld [vmem:[%s1 + $0x668] sm:$0xff]
      %v473 = vld [vmem:[%s1 + $0x670] sm:$0xff]
      %v474 = vld [vmem:[%s1 + $0x678] sm:$0xff]
      %v475 = vld [vmem:[%s1 + $0x680] sm:$0xff]
      %v476 = vld [vmem:[%s1 + $0x688] sm:$0xff]
      %v477 = vld [vmem:[%s1 + $0x690] sm:$0xff]
      %v478 = vld [vmem:[%s1 + $0x698] sm:$0xff]
      %v479 = vld [vmem:[%s1 + $0x6a0] sm:$0xff]
      %v480 = vld [vmem:[%s1 + $0x6a8] sm:$0xff]
      %v481 = vld [vmem:[%s1 + $0x6b0] sm:$0xff]
      %v482 = vld [vmem:[%s1 + $0x6b8] sm:$0xff]
      %v483 = vld [vmem:[%s1 + $0x6c0] sm:$0xff]
      %v484 = vld [vmem:[%s1 + $0x6c8] sm:$0xff]
      %v485 = vld [vmem:[%s1 + $0x6d0] sm:$0xff]
      %v486 = vld [vmem:[%s1 + $0x6d8] sm:$0xff]
      %v487 = vld [vmem:[%s1 + $0x6e0] sm:$0xff]
      %v488 = vld [vmem:[%s1 + $0x6e8] sm:$0xff]
      %v489 = vld [vmem:[%s1 + $0x6f0] sm:$0xff]
      %v490 = vld [vmem:[%s1 + $0x6f8] sm:$0xff]
      %v491 = vld [vmem:[%s1 + $0x700] sm:$0xff]
      %v492 = vld [vmem:[%s1 + $0x708] sm:$0xff]
      %v493 = vld [vmem:[%s1 + $0x710] sm:$0xff]
      %v494 = vld [vmem:[%s1 + $0x718] sm:$0xff]
      %v495 = vld [vmem:[%s1 + $0x720] sm:$0xff]
      %v496 = vld [vmem:[%s1 + $0x728] sm:$0xff]
      %v497 = vld [vmem:[%s1 + $0x730] sm:$0xff]
      %v498 = vld [vmem:[%s1 + $0x738] sm:$0xff]
      %v499 = vld [vmem:[%s1 + $0x740] sm:$0xff]
      %v500 = vld [vmem:[%s1 + $0x748] sm:$0xff]
      %v501 = vld [vmem:[%s1 + $0x750] sm:$0xff]
      %v502 = vld [vmem:[%s1 + $0x758] sm:$0xff]
      %v503 = vld [vmem:[%s1 + $0x760] sm:$0xff]
      %v504 = vld [vmem:[%s1 + $0x768] sm:$0xff]
      %v505 = vld [vmem:[%s1 + $0x770] sm:$0xff]
      %v506 = vld [vmem:[%s1 + $0x778] sm:$0xff]
      %v507 = vld [vmem:[%s1 + $0x780] sm:$0xff]
      %v508 = vld [vmem:[%s1 + $0x788] sm:$0xff]
      %v509 = vld [vmem:[%s1 + $0x790] sm:$0xff]
      %v510 = vld [vmem:[%s1 + $0x798] sm:$0xff]
      %v511 = vld [vmem:[%s1 + $0x7a0] sm:$0xff]
      %v512 = vld [vmem:[%s1 + $0x7a8] sm:$0xff]
      %v513 = vld [vmem:[%s1 + $0x7b0] sm:$0xff]
      %v514 = vld [vmem:[%s1 + $0x7b8] sm:$0xff]
      %v515 = vld [vmem:[%s1 + $0x7c0] sm:$0xff]
      %v516 = vld [vmem:[%s1 + $0x7c8] sm:$0xff]
      %v517 = vld [vmem:[%s1 + $0x7d0] sm:$0xff]
      %v518 = vld [vmem:[%s1 + $0x7d8] sm:$0xff]
      %v519 = vld [vmem:[%s1 + $0x7e0] sm:$0xff]
      %v520 = vld [vmem:[%s1 + $0x7e8] sm:$0xff]
      %v521 = vld [vmem:[%s1 + $0x7f0] sm:$0xff]
      %v522 = vld [vmem:[%s1 + $0x7f8] sm:$0xff]
      %v523 = vld [vmem:[%s1 + $0x800] sm:$0xff]
      %v524 = vld [vmem:[%s1 + $0x808] sm:$0xff]
      %v525 = vld [vmem:[%s1 + $0x810] sm:$0xff]
      %v526 = vld [vmem:[%s1 + $0x818] sm:$0xff]
      %v527 = vld [vmem:[%s1 + $0x820] sm:$0xff]
      %v528 = vld [vmem:[%s1 + $0x828] sm:$0xff]
      %v529 = vld [vmem:[%s1 + $0x830] sm:$0xff]
      %v530 = vld [vmem:[%s1 + $0x838] sm:$0xff]
      %v531 = vld [vmem:[%s1 + $0x840] sm:$0xff]
      %v532 = vld [vmem:[%s1 + $0x848] sm:$0xff]
      %v533 = vld [vmem:[%s1 + $0x850] sm:$0xff]
      %v534 = vld [vmem:[%s1 + $0x858] sm:$0xff]
      %v535 = vld [vmem:[%s1 + $0x860] sm:$0xff]
      %v536 = vld [vmem:[%s1 + $0x868] sm:$0xff]
      %v537 = vld [vmem:[%s1 + $0x870] sm:$0xff]
      %v538 = vld [vmem:[%s1 + $0x878] sm:$0xff]
      %v539 = vld [vmem:[%s1 + $0x880] sm:$0xff]
      %v540 = vld [vmem:[%s1 + $0x888] sm:$0xff]
      %v541 = vld [vmem:[%s1 + $0x890] sm:$0xff]
      %v542 = vld [vmem:[%s1 + $0x898] sm:$0xff]
      %v543 = vld [vmem:[%s1 + $0x8a0] sm:$0xff]
      %v544 = vld [vmem:[%s1 + $0x8a8] sm:$0xff]
      %v545 = vld [vmem:[%s1 + $0x8b0] sm:$0xff]
      %v546 = vld [vmem:[%s1 + $0x8b8] sm:$0xff]
      %v547 = vld [vmem:[%s1 + $0x8c0] sm:$0xff]
      %v548 = vld [vmem:[%s1 + $0x8c8] sm:$0xff]
      %v549 = vld [vmem:[%s1 + $0x8d0] sm:$0xff]
      %v550 = vld [vmem:[%s1 + $0x8d8] sm:$0xff]
      %v551 = vld [vmem:[%s1 + $0x8e0] sm:$0xff]
      %v552 = vld [vmem:[%s1 + $0x8e8] sm:$0xff]
      %v553 = vld [vmem:[%s1 + $0x8f0] sm:$0xff]
      %v554 = vld [vmem:[%s1 + $0x8f8] sm:$0xff]
      %v555 = vld [vmem:[%s1 + $0x900] sm:$0xff]
      %v556 = vld [vmem:[%s1 + $0x908] sm:$0xff]
      %v557 = vld [vmem:[%s1 + $0x910] sm:$0xff]
      %v558 = vld [vmem:[%s1 + $0x918] sm:$0xff]
      %v559 = vld [vmem:[%s1 + $0x920] sm:$0xff]
      %v560 = vld [vmem:[%s1 + $0x928] sm:$0xff]
      %v561 = vld [vmem:[%s1 + $0x930] sm:$0xff]
      %v562 = vld [vmem:[%s1 + $0x938] sm:$0xff]
      %v563 = vld [vmem:[%s1 + $0x940] sm:$0xff]
      %v564 = vld [vmem:[%s1 + $0x948] sm:$0xff]
      %v565 = vld [vmem:[%s1 + $0x950] sm:$0xff]
      %v566 = vld [vmem:[%s1 + $0x958] sm:$0xff]
      %v567 = vld [vmem:[%s1 + $0x960] sm:$0xff]
      %v568 = vld [vmem:[%s1 + $0x968] sm:$0xff]
      %v569 = vld [vmem:[%s1 + $0x970] sm:$0xff]
      %v570 = vld [vmem:[%s1 + $0x978] sm:$0xff]
      %v571 = vld [vmem:[%s1 + $0x980] sm:$0xff]
      %v572 = vld [vmem:[%s1 + $0x988] sm:$0xff]
      %v573 = vld [vmem:[%s1 + $0x990] sm:$0xff]
      %v574 = vld [vmem:[%s1 + $0x998] sm:$0xff]
      %v575 = vld [vmem:[%s1 + $0x9a0] sm:$0xff]
      %v576 = vld [vmem:[%s1 + $0x9a8] sm:$0xff]
      %v577 = vld [vmem:[%s1 + $0x9b0] sm:$0xff]
      %v578 = vld [vmem:[%s1 + $0x9b8] sm:$0xff]
      %v579 = vld [vmem:[%s1 + $0x9c0] sm:$0xff]
      %v580 = vld [vmem:[%s1 + $0x9c8] sm:$0xff]
      %v581 = vld [vmem:[%s1 + $0x9d0] sm:$0xff]
      %v582 = vld [vmem:[%s1 + $0x9d8] sm:$0xff]
      %v583 = vld [vmem:[%s1 + $0x9e0] sm:$0xff]
      %v584 = vld [vmem:[%s1 + $0x9e8] sm:$0xff]
      %v585 = vld [vmem:[%s1 + $0x9f0] sm:$0xff]
      %v586 = vld [vmem:[%s1 + $0x9f8] sm:$0xff]
      %v587 = vld [vmem:[%s1 + $0xa00] sm:$0xff]
      %v588 = vld [vmem:[%s1 + $0xa08] sm:$0xff]
      %v589 = vld [vmem:[%s1 + $0xa10] sm:$0xff]
      %v590 = vld [vmem:[%s1 + $0xa18] sm:$0xff]
      %v591 = vld [vmem:[%s1 + $0xa20] sm:$0xff]
      %v592 = vld [vmem:[%s1 + $0xa28] sm:$0xff]
      %v593 = vld [vmem:[%s1 + $0xa30] sm:$0xff]
      %v594 = vld [vmem:[%s1 + $0xa38] sm:$0xff]
      %v595 = vld [vmem:[%s1 + $0xa40] sm:$0xff]
      %v596 = vld [vmem:[%s1 + $0xa48] sm:$0xff]
      %v597 = vld [vmem:[%s1 + $0xa50] sm:$0xff]
      %v598 = vld [vmem:[%s1 + $0xa58] sm:$0xff]
      %v599 = vld [vmem:[%s1 + $0xa60] sm:$0xff]
      %v600 = vld [vmem:[%s1 + $0xa68] sm:$0xff]
      %v601 = vld [vmem:[%s1 + $0xa70] sm:$0xff]
      %v602 = vld [vmem:[%s1 + $0xa78] sm:$0xff]
      %v603 = vld [vmem:[%s1 + $0xa80] sm:$0xff]
      %v604 = vld [vmem:[%s1 + $0xa88] sm:$0xff]
      %v605 = vld [vmem:[%s1 + $0xa90] sm:$0xff]
      %v606 = vld [vmem:[%s1 + $0xa98] sm:$0xff]
      %v607 = vld [vmem:[%s1 + $0xaa0] sm:$0xff]
      %v608 = vld [vmem:[%s1 + $0xaa8] sm:$0xff]
      %v609 = vld [vmem:[%s1 + $0xab0] sm:$0xff]
      %v610 = vld [vmem:[%s1 + $0xab8] sm:$0xff]
      %v611 = vld [vmem:[%s1 + $0xac0] sm:$0xff]
      %v612 = vld [vmem:[%s1 + $0xac8] sm:$0xff]
      %v613 = vld [vmem:[%s1 + $0xad0] sm:$0xff]
      %v614 = vld [vmem:[%s1 + $0xad8] sm:$0xff]
      %v615 = vld [vmem:[%s1 + $0xae0] sm:$0xff]
      %v616 = vld [vmem:[%s1 + $0xae8] sm:$0xff]
      %v617 = vld [vmem:[%s1 + $0xaf0] sm:$0xff]
      %v618 = vld [vmem:[%s1 + $0xaf8] sm:$0xff]
      %v619 = vld [vmem:[%s1 + $0xb00] sm:$0xff]
      %v620 = vld [vmem:[%s1 + $0xb08] sm:$0xff]
      %v621 = vld [vmem:[%s1 + $0xb10] sm:$0xff]
      %v622 = vld [vmem:[%s1 + $0xb18] sm:$0xff]
      %v623 = vld [vmem:[%s1 + $0xb20] sm:$0xff]
      %v624 = vld [vmem:[%s1 + $0xb28] sm:$0xff]
      %v625 = vld [vmem:[%s1 + $0xb30] sm:$0xff]
      %v626 = vld [vmem:[%s1 + $0xb38] sm:$0xff]
      %v627 = vld [vmem:[%s1 + $0xb40] sm:$0xff]
      %v628 = vld [vmem:[%s1 + $0xb48] sm:$0xff]
      %v629 = vld [vmem:[%s1 + $0xb50] sm:$0xff]
      %v630 = vld [vmem:[%s1 + $0xb58] sm:$0xff]
      %v631 = vld [vmem:[%s1 + $0xb60] sm:$0xff]
      %v632 = vld [vmem:[%s1 + $0xb68] sm:$0xff]
      %v633 = vld [vmem:[%s1 + $0xb70] sm:$0xff]
      %v634 = vld [vmem:[%s1 + $0xb78] sm:$0xff]
      %v635 = vld [vmem:[%s1 + $0xb80] sm:$0xff]
      %v636 = vld [vmem:[%s1 + $0xb88] sm:$0xff]
      %v637 = vld [vmem:[%s1 + $0xb90] sm:$0xff]
      %v638 = vld [vmem:[%s1 + $0xb98] sm:$0xff]
      %v639 = vld [vmem:[%s1 + $0xba0] sm:$0xff]
      %v640 = vld [vmem:[%s1 + $0xba8] sm:$0xff]
      %v641 = vld [vmem:[%s1 + $0xbb0] sm:$0xff]
      %v642 = vld [vmem:[%s1 + $0xbb8] sm:$0xff]
      %v643 = vld [vmem:[%s1 + $0xbc0] sm:$0xff]
      %v644 = vld [vmem:[%s1 + $0xbc8] sm:$0xff]
      %v645 = vld [vmem:[%s1 + $0xbd0] sm:$0xff]
      %v646 = vld [vmem:[%s1 + $0xbd8] sm:$0xff]
      %v647 = vld [vmem:[%s1 + $0xbe0] sm:$0xff]
      %v648 = vld [vmem:[%s1 + $0xbe8] sm:$0xff]
      %v649 = vld [vmem:[%s1 + $0xbf0] sm:$0xff]
      %v650 = vld [vmem:[%s1 + $0xbf8] sm:$0xff]
      %v651 = vld [vmem:[%s1 + $0xc00] sm:$0xff]
      %v652 = vld [vmem:[%s1 + $0xc08] sm:$0xff]
      %v653 = vld [vmem:[%s1 + $0xc10] sm:$0xff]
      %v654 = vld [vmem:[%s1 + $0xc18] sm:$0xff]
      %v655 = vld [vmem:[%s1 + $0xc20] sm:$0xff]
      %v656 = vld [vmem:[%s1 + $0xc28] sm:$0xff]
      %v657 = vld [vmem:[%s1 + $0xc30] sm:$0xff]
      %v658 = vld [vmem:[%s1 + $0xc38] sm:$0xff]
      %v659 = vld [vmem:[%s1 + $0xc40] sm:$0xff]
      %v660 = vld [vmem:[%s1 + $0xc48] sm:$0xff]
      %v661 = vld [vmem:[%s1 + $0xc50] sm:$0xff]
      %v662 = vld [vmem:[%s1 + $0xc58] sm:$0xff]
      %v663 = vld [vmem:[%s1 + $0xc60] sm:$0xff]
      %v664 = vld [vmem:[%s1 + $0xc68] sm:$0xff]
      %v665 = vld [vmem:[%s1 + $0xc70] sm:$0xff]
      %v666 = vld [vmem:[%s1 + $0xc78] sm:$0xff]
      %v709 = vunpack.c.l.b16 %v225
      %v710 = vunpack.c.h.b16 %v225
      %v711 = vunpack.c.l.b16 %v226
      %v712 = vunpack.c.h.b16 %v226
      %v713 = vunpack.c.l.b16 %v227
      %v714 = vunpack.c.l.b16 %v228
      %v715 = vunpack.c.h.b16 %v228
      %v716 = vunpack.c.l.b16 %v229
      %v717 = vunpack.c.h.b16 %v229
      %v718 = vunpack.c.l.b16 %v230
      %v719 = vunpack.c.l.b16 %v231
      %v720 = vunpack.c.h.b16 %v231
      %v721 = vunpack.c.l.b16 %v232
      %v722 = vunpack.c.h.b16 %v232
      %v723 = vunpack.c.l.b16 %v233
      %v724 = vunpack.c.l.b16 %v234
      %v725 = vunpack.c.h.b16 %v234
      %v726 = vunpack.c.l.b16 %v235
      %v727 = vunpack.c.h.b16 %v235
      %v728 = vunpack.c.l.b16 %v236
      %v729 = vunpack.c.l.b16 %v237
      %v730 = vunpack.c.h.b16 %v237
      %v731 = vunpack.c.l.b16 %v238
      %v732 = vunpack.c.h.b16 %v238
      %v733 = vunpack.c.l.b16 %v239
      %v734 = vunpack.c.l.b16 %v240
      %v735 = vunpack.c.h.b16 %v240
      %v736 = vunpack.c.l.b16 %v241
      %v737 = vunpack.c.h.b16 %v241
      %v738 = vunpack.c.l.b16 %v242
      %v739 = vunpack.c.l.b16 %v243
      %v740 = vunpack.c.h.b16 %v243
      %v741 = vunpack.c.l.b16 %v244
      %v742 = vunpack.c.h.b16 %v244
      %v743 = vunpack.c.l.b16 %v245
      %v744 = vunpack.c.l.b16 %v246
      %v745 = vunpack.c.h.b16 %v246
      %v746 = vunpack.c.l.b16 %v247
      %v747 = vunpack.c.h.b16 %v247
      %v748 = vunpack.c.l.b16 %v248
      %v749 = vunpack.c.l.b16 %v249
      %v750 = vunpack.c.h.b16 %v249
      %v751 = vunpack.c.l.b16 %v250
      %v752 = vunpack.c.h.b16 %v250
      %v753 = vunpack.c.l.b16 %v251
      %v754 = vunpack.c.l.b16 %v252
      %v755 = vunpack.c.h.b16 %v252
      %v756 = vunpack.c.l.b16 %v253
      %v757 = vunpack.c.h.b16 %v253
      %v758 = vunpack.c.l.b16 %v254
      %v759 = vunpack.c.l.b16 %v255
      %v760 = vunpack.c.h.b16 %v255
      %v761 = vunpack.c.l.b16 %v256
      %v762 = vunpack.c.h.b16 %v256
      %v763 = vunpack.c.l.b16 %v257
      %v764 = vunpack.c.l.b16 %v258
      %v765 = vunpack.c.h.b16 %v258
      %v766 = vunpack.c.l.b16 %v259
      %v767 = vunpack.c.h.b16 %v259
      %v768 = vunpack.c.l.b16 %v260
      %v769 = vunpack.c.l.b16 %v261
      %v770 = vunpack.c.h.b16 %v261
      %v771 = vunpack.c.l.b16 %v262
      %v772 = vunpack.c.h.b16 %v262
      %v773 = vunpack.c.l.b16 %v263
      %v774 = vunpack.c.l.b16 %v264
      %v775 = vunpack.c.h.b16 %v264
      %v776 = vunpack.c.l.b16 %v265
      %v777 = vunpack.c.h.b16 %v265
      %v778 = vunpack.c.l.b16 %v266
      %v779 = vpack.c.b16 %v714, %v709
      %v780 = vpack.c.b16 %v715, %v710
      %v781 = vpack.c.b16 %v716, %v711
      %v782 = vpack.c.b16 %v717, %v712
      %v783 = vpack.c.b16 %v718, %v713
      %v784 = vpack.c.b16 %v724, %v719
      %v785 = vpack.c.b16 %v725, %v720
      %v786 = vpack.c.b16 %v726, %v721
      %v787 = vpack.c.b16 %v727, %v722
      %v788 = vpack.c.b16 %v728, %v723
      %v789 = vpack.c.b16 %v734, %v729
      %v790 = vpack.c.b16 %v735, %v730
      %v791 = vpack.c.b16 %v736, %v731
      %v792 = vpack.c.b16 %v737, %v732
      %v793 = vpack.c.b16 %v738, %v733
      %v794 = vpack.c.b16 %v744, %v739
      %v795 = vpack.c.b16 %v745, %v740
      %v796 = vpack.c.b16 %v746, %v741
      %v797 = vpack.c.b16 %v747, %v742
      %v798 = vpack.c.b16 %v748, %v743
      %v799 = vpack.c.b16 %v754, %v749
      %v800 = vpack.c.b16 %v755, %v750
      %v801 = vpack.c.b16 %v756, %v751
      %v802 = vpack.c.b16 %v757, %v752
      %v803 = vpack.c.b16 %v758, %v753
      %v804 = vpack.c.b16 %v764, %v759
      %v805 = vpack.c.b16 %v765, %v760
      %v806 = vpack.c.b16 %v766, %v761
      %v807 = vpack.c.b16 %v767, %v762
      %v808 = vpack.c.b16 %v768, %v763
      %v809 = vpack.c.b16 %v774, %v769
      %v810 = vpack.c.b16 %v775, %v770
      %v811 = vpack.c.b16 %v776, %v771
      %v812 = vpack.c.b16 %v777, %v772
      %v813 = vpack.c.b16 %v778, %v773
      %v1249 = vunpack.c.l.b16 %v267
      %v1250 = vunpack.c.h.b16 %v267
      %v1251 = vunpack.c.l.b16 %v268
      %v1252 = vunpack.c.h.b16 %v268
      %v1253 = vunpack.c.l.b16 %v269
      %v1254 = vunpack.c.h.b16 %v269
      %v1255 = vunpack.c.l.b16 %v270
      %v1256 = vunpack.c.h.b16 %v270
      %v1257 = vunpack.c.l.b16 %v271
      %v1258 = vunpack.c.h.b16 %v271
      %v1259 = vunpack.c.l.b16 %v272
      %v1260 = vunpack.c.h.b16 %v272
      %v1261 = vunpack.c.l.b16 %v273
      %v1262 = vunpack.c.h.b16 %v273
      %v1263 = vunpack.c.l.b16 %v274
      %v1264 = vunpack.c.h.b16 %v274
      %v1265 = vunpack.c.l.b16 %v275
      %v1266 = vunpack.c.h.b16 %v275
      %v1267 = vunpack.c.l.b16 %v276
      %v1268 = vunpack.c.h.b16 %v276
      %v1269 = vunpack.c.l.b16 %v277
      %v1270 = vunpack.c.h.b16 %v277
      %v1271 = vunpack.c.l.b16 %v278
      %v1272 = vunpack.c.h.b16 %v278
      %v1273 = vunpack.c.l.b16 %v279
      %v1274 = vunpack.c.h.b16 %v279
      %v1275 = vunpack.c.l.b16 %v280
      %v1276 = vunpack.c.h.b16 %v280
      %v1277 = vunpack.c.l.b16 %v281
      %v1278 = vunpack.c.h.b16 %v281
      %v1279 = vunpack.c.l.b16 %v282
      %v1280 = vunpack.c.h.b16 %v282
      %v1281 = vunpack.c.l.b16 %v283
      %v1282 = vunpack.c.h.b16 %v283
      %v1283 = vunpack.c.l.b16 %v284
      %v1284 = vunpack.c.h.b16 %v284
      %v1285 = vunpack.c.l.b16 %v285
      %v1286 = vunpack.c.h.b16 %v285
      %v1287 = vunpack.c.l.b16 %v286
      %v1288 = vunpack.c.h.b16 %v286
      %v1289 = vunpack.c.l.b16 %v287
      %v1290 = vunpack.c.h.b16 %v287
      %v1291 = vunpack.c.l.b16 %v288
      %v1292 = vunpack.c.h.b16 %v288
      %v1293 = vunpack.c.l.b16 %v289
      %v1294 = vunpack.c.h.b16 %v289
      %v1295 = vunpack.c.l.b16 %v290
      %v1296 = vunpack.c.h.b16 %v290
      %v1297 = vunpack.c.l.b16 %v291
      %v1298 = vunpack.c.h.b16 %v291
      %v1299 = vunpack.c.l.b16 %v292
      %v1300 = vunpack.c.h.b16 %v292
      %v1301 = vunpack.c.l.b16 %v293
      %v1302 = vunpack.c.h.b16 %v293
      %v1303 = vunpack.c.l.b16 %v294
      %v1304 = vunpack.c.h.b16 %v294
      %v1305 = vunpack.c.l.b16 %v295
      %v1306 = vunpack.c.h.b16 %v295
      %v1307 = vunpack.c.l.b16 %v296
      %v1308 = vunpack.c.h.b16 %v296
      %v1309 = vunpack.c.l.b16 %v297
      %v1310 = vunpack.c.h.b16 %v297
      %v1311 = vunpack.c.l.b16 %v298
      %v1312 = vunpack.c.h.b16 %v298
      %v1313 = vunpack.c.l.b16 %v299
      %v1314 = vunpack.c.h.b16 %v299
      %v1315 = vunpack.c.l.b16 %v300
      %v1316 = vunpack.c.h.b16 %v300
      %v1317 = vunpack.c.l.b16 %v301
      %v1318 = vunpack.c.h.b16 %v301
      %v1319 = vunpack.c.l.b16 %v302
      %v1320 = vunpack.c.h.b16 %v302
      %v1321 = vunpack.c.l.b16 %v303
      %v1322 = vunpack.c.h.b16 %v303
      %v1323 = vunpack.c.l.b16 %v304
      %v1324 = vunpack.c.h.b16 %v304
      %v1325 = vunpack.c.l.b16 %v305
      %v1326 = vunpack.c.h.b16 %v305
      %v1327 = vunpack.c.l.b16 %v306
      %v1328 = vunpack.c.h.b16 %v306
      %v1329 = vunpack.c.l.b16 %v307
      %v1330 = vunpack.c.h.b16 %v307
      %v1331 = vunpack.c.l.b16 %v308
      %v1332 = vunpack.c.h.b16 %v308
      %v1333 = vunpack.c.l.b16 %v309
      %v1334 = vunpack.c.h.b16 %v309
      %v1335 = vunpack.c.l.b16 %v310
      %v1336 = vunpack.c.h.b16 %v310
      %v1337 = vunpack.c.l.b16 %v311
      %v1338 = vunpack.c.h.b16 %v311
      %v1339 = vunpack.c.l.b16 %v312
      %v1340 = vunpack.c.h.b16 %v312
      %v1341 = vunpack.c.l.b16 %v313
      %v1342 = vunpack.c.h.b16 %v313
      %v1343 = vunpack.c.l.b16 %v314
      %v1344 = vunpack.c.h.b16 %v314
      %v1345 = vunpack.c.l.b16 %v315
      %v1346 = vunpack.c.h.b16 %v315
      %v1347 = vunpack.c.l.b16 %v316
      %v1348 = vunpack.c.h.b16 %v316
      %v1349 = vunpack.c.l.b16 %v317
      %v1350 = vunpack.c.h.b16 %v317
      %v1351 = vunpack.c.l.b16 %v318
      %v1352 = vunpack.c.h.b16 %v318
      %v1353 = vunpack.c.l.b16 %v319
      %v1354 = vunpack.c.h.b16 %v319
      %v1355 = vunpack.c.l.b16 %v320
      %v1356 = vunpack.c.h.b16 %v320
      %v1357 = vunpack.c.l.b16 %v321
      %v1358 = vunpack.c.h.b16 %v321
      %v1359 = vunpack.c.l.b16 %v322
      %v1360 = vunpack.c.h.b16 %v322
      %v1361 = vunpack.c.l.b16 %v323
      %v1362 = vunpack.c.h.b16 %v323
      %v1363 = vunpack.c.l.b16 %v324
      %v1364 = vunpack.c.h.b16 %v324
      %v1365 = vunpack.c.l.b16 %v325
      %v1366 = vunpack.c.h.b16 %v325
      %v1367 = vunpack.c.l.b16 %v326
      %v1368 = vunpack.c.h.b16 %v326
      %v1369 = vunpack.c.l.b16 %v327
      %v1370 = vunpack.c.h.b16 %v327
      %v1371 = vunpack.c.l.b16 %v328
      %v1372 = vunpack.c.h.b16 %v328
      %v1373 = vunpack.c.l.b16 %v329
      %v1374 = vunpack.c.h.b16 %v329
      %v1375 = vunpack.c.l.b16 %v330
      %v1376 = vunpack.c.h.b16 %v330
      %v1377 = vunpack.c.l.b16 %v331
      %v1378 = vunpack.c.h.b16 %v331
      %v1379 = vunpack.c.l.b16 %v332
      %v1380 = vunpack.c.h.b16 %v332
      %v1381 = vunpack.c.l.b16 %v333
      %v1382 = vunpack.c.h.b16 %v333
      %v1383 = vunpack.c.l.b16 %v334
      %v1384 = vunpack.c.h.b16 %v334
      %v1385 = vunpack.c.l.b16 %v335
      %v1386 = vunpack.c.h.b16 %v335
      %v1387 = vunpack.c.l.b16 %v336
      %v1388 = vunpack.c.h.b16 %v336
      %v1389 = vunpack.c.l.b16 %v337
      %v1390 = vunpack.c.h.b16 %v337
      %v1391 = vunpack.c.l.b16 %v338
      %v1392 = vunpack.c.h.b16 %v338
      %v1393 = vunpack.c.l.b16 %v339
      %v1394 = vunpack.c.h.b16 %v339
      %v1395 = vunpack.c.l.b16 %v340
      %v1396 = vunpack.c.h.b16 %v340
      %v1397 = vunpack.c.l.b16 %v341
      %v1398 = vunpack.c.h.b16 %v341
      %v1399 = vunpack.c.l.b16 %v342
      %v1400 = vunpack.c.h.b16 %v342
      %v1401 = vunpack.c.l.b16 %v343
      %v1402 = vunpack.c.h.b16 %v343
      %v1403 = vunpack.c.l.b16 %v344
      %v1404 = vunpack.c.h.b16 %v344
      %v1405 = vunpack.c.l.b16 %v345
      %v1406 = vunpack.c.h.b16 %v345
      %v1407 = vunpack.c.l.b16 %v346
      %v1408 = vunpack.c.h.b16 %v346
      %v1409 = vunpack.c.l.b16 %v347
      %v1410 = vunpack.c.h.b16 %v347
      %v1411 = vunpack.c.l.b16 %v348
      %v1412 = vunpack.c.h.b16 %v348
      %v1413 = vunpack.c.l.b16 %v349
      %v1414 = vunpack.c.h.b16 %v349
      %v1415 = vunpack.c.l.b16 %v350
      %v1416 = vunpack.c.h.b16 %v350
      %v1417 = vunpack.c.l.b16 %v351
      %v1418 = vunpack.c.h.b16 %v351
      %v1419 = vunpack.c.l.b16 %v352
      %v1420 = vunpack.c.h.b16 %v352
      %v1421 = vunpack.c.l.b16 %v353
      %v1422 = vunpack.c.h.b16 %v353
      %v1423 = vunpack.c.l.b16 %v354
      %v1424 = vunpack.c.h.b16 %v354
      %v1425 = vunpack.c.l.b16 %v355
      %v1426 = vunpack.c.h.b16 %v355
      %v1427 = vunpack.c.l.b16 %v356
      %v1428 = vunpack.c.h.b16 %v356
      %v1429 = vunpack.c.l.b16 %v357
      %v1430 = vunpack.c.h.b16 %v357
      %v1431 = vunpack.c.l.b16 %v358
      %v1432 = vunpack.c.h.b16 %v358
      %v1433 = vunpack.c.l.b16 %v359
      %v1434 = vunpack.c.h.b16 %v359
      %v1435 = vunpack.c.l.b16 %v360
      %v1436 = vunpack.c.h.b16 %v360
      %v1437 = vunpack.c.l.b16 %v361
      %v1438 = vunpack.c.h.b16 %v361
      %v1439 = vunpack.c.l.b16 %v362
      %v1440 = vunpack.c.h.b16 %v362
      %v1441 = vunpack.c.l.b16 %v363
      %v1442 = vunpack.c.h.b16 %v363
      %v1443 = vunpack.c.l.b16 %v364
      %v1444 = vunpack.c.h.b16 %v364
      %v1445 = vunpack.c.l.b16 %v365
      %v1446 = vunpack.c.h.b16 %v365
      %v1447 = vunpack.c.l.b16 %v366
      %v1448 = vunpack.c.h.b16 %v366
      %v1449 = vunpack.c.l.b16 %v367
      %v1450 = vunpack.c.h.b16 %v367
      %v1451 = vunpack.c.l.b16 %v368
      %v1452 = vunpack.c.h.b16 %v368
      %v1453 = vunpack.c.l.b16 %v369
      %v1454 = vunpack.c.h.b16 %v369
      %v1455 = vunpack.c.l.b16 %v370
      %v1456 = vunpack.c.h.b16 %v370
      %v1457 = vunpack.c.l.b16 %v371
      %v1458 = vunpack.c.h.b16 %v371
      %v1459 = vunpack.c.l.b16 %v372
      %v1460 = vunpack.c.h.b16 %v372
      %v1461 = vunpack.c.l.b16 %v373
      %v1462 = vunpack.c.h.b16 %v373
      %v1463 = vunpack.c.l.b16 %v374
      %v1464 = vunpack.c.h.b16 %v374
      %v1465 = vunpack.c.l.b16 %v375
      %v1466 = vunpack.c.h.b16 %v375
      %v1467 = vunpack.c.l.b16 %v376
      %v1468 = vunpack.c.h.b16 %v376
      %v1469 = vunpack.c.l.b16 %v377
      %v1470 = vunpack.c.h.b16 %v377
      %v1471 = vunpack.c.l.b16 %v378
      %v1472 = vunpack.c.h.b16 %v378
      %v1473 = vunpack.c.l.b16 %v379
      %v1474 = vunpack.c.h.b16 %v379
      %v1475 = vunpack.c.l.b16 %v380
      %v1476 = vunpack.c.h.b16 %v380
      %v1477 = vunpack.c.l.b16 %v381
      %v1478 = vunpack.c.h.b16 %v381
      %v1479 = vunpack.c.l.b16 %v382
      %v1480 = vunpack.c.h.b16 %v382
      %v1481 = vunpack.c.l.b16 %v383
      %v1482 = vunpack.c.h.b16 %v383
      %v1483 = vunpack.c.l.b16 %v384
      %v1484 = vunpack.c.h.b16 %v384
      %v1485 = vunpack.c.l.b16 %v385
      %v1486 = vunpack.c.h.b16 %v385
      %v1487 = vunpack.c.l.b16 %v386
      %v1488 = vunpack.c.h.b16 %v386
      %v1489 = vunpack.c.l.b16 %v387
      %v1490 = vunpack.c.h.b16 %v387
      %v1491 = vunpack.c.l.b16 %v388
      %v1492 = vunpack.c.h.b16 %v388
      %v1493 = vunpack.c.l.b16 %v389
      %v1494 = vunpack.c.h.b16 %v389
      %v1495 = vunpack.c.l.b16 %v390
      %v1496 = vunpack.c.h.b16 %v390
      %v1497 = vunpack.c.l.b16 %v391
      %v1498 = vunpack.c.h.b16 %v391
      %v1499 = vunpack.c.l.b16 %v392
      %v1500 = vunpack.c.h.b16 %v392
      %v1501 = vunpack.c.l.b16 %v393
      %v1502 = vunpack.c.h.b16 %v393
      %v1503 = vunpack.c.l.b16 %v394
      %v1504 = vunpack.c.h.b16 %v394
      %v1505 = vunpack.c.l.b16 %v395
      %v1506 = vunpack.c.h.b16 %v395
      %v1507 = vunpack.c.l.b16 %v396
      %v1508 = vunpack.c.h.b16 %v396
      %v1509 = vunpack.c.l.b16 %v397
      %v1510 = vunpack.c.h.b16 %v397
      %v1511 = vunpack.c.l.b16 %v398
      %v1512 = vunpack.c.h.b16 %v398
      %v1513 = vunpack.c.l.b16 %v399
      %v1514 = vunpack.c.h.b16 %v399
      %v1515 = vunpack.c.l.b16 %v400
      %v1516 = vunpack.c.h.b16 %v400
      %v1517 = vunpack.c.l.b16 %v401
      %v1518 = vunpack.c.h.b16 %v401
      %v1519 = vunpack.c.l.b16 %v402
      %v1520 = vunpack.c.h.b16 %v402
      %v1521 = vunpack.c.l.b16 %v403
      %v1522 = vunpack.c.h.b16 %v403
      %v1523 = vunpack.c.l.b16 %v404
      %v1524 = vunpack.c.h.b16 %v404
      %v1525 = vunpack.c.l.b16 %v405
      %v1526 = vunpack.c.h.b16 %v405
      %v1527 = vunpack.c.l.b16 %v406
      %v1528 = vunpack.c.h.b16 %v406
      %v1529 = vunpack.c.l.b16 %v407
      %v1530 = vunpack.c.h.b16 %v407
      %v1531 = vunpack.c.l.b16 %v408
      %v1532 = vunpack.c.h.b16 %v408
      %v1533 = vunpack.c.l.b16 %v409
      %v1534 = vunpack.c.h.b16 %v409
      %v1535 = vunpack.c.l.b16 %v410
      %v1536 = vunpack.c.h.b16 %v410
      %v1537 = vunpack.c.l.b16 %v411
      %v1538 = vunpack.c.h.b16 %v411
      %v1539 = vunpack.c.l.b16 %v412
      %v1540 = vunpack.c.h.b16 %v412
      %v1541 = vunpack.c.l.b16 %v413
      %v1542 = vunpack.c.h.b16 %v413
      %v1543 = vunpack.c.l.b16 %v414
      %v1544 = vunpack.c.h.b16 %v414
      %v1545 = vunpack.c.l.b16 %v415
      %v1546 = vunpack.c.h.b16 %v415
      %v1547 = vunpack.c.l.b16 %v416
      %v1548 = vunpack.c.h.b16 %v416
      %v1549 = vunpack.c.l.b16 %v417
      %v1550 = vunpack.c.h.b16 %v417
      %v1551 = vunpack.c.l.b16 %v418
      %v1552 = vunpack.c.h.b16 %v418
      %v1553 = vunpack.c.l.b16 %v419
      %v1554 = vunpack.c.h.b16 %v419
      %v1555 = vunpack.c.l.b16 %v420
      %v1556 = vunpack.c.h.b16 %v420
      %v1557 = vunpack.c.l.b16 %v421
      %v1558 = vunpack.c.h.b16 %v421
      %v1559 = vunpack.c.l.b16 %v422
      %v1560 = vunpack.c.h.b16 %v422
      %v1561 = vunpack.c.l.b16 %v423
      %v1562 = vunpack.c.h.b16 %v423
      %v1563 = vunpack.c.l.b16 %v424
      %v1564 = vunpack.c.h.b16 %v424
      %v1565 = vunpack.c.l.b16 %v425
      %v1566 = vunpack.c.h.b16 %v425
      %v1567 = vunpack.c.l.b16 %v426
      %v1568 = vunpack.c.h.b16 %v426
      %v1569 = vunpack.c.l.b16 %v427
      %v1570 = vunpack.c.h.b16 %v427
      %v1571 = vunpack.c.l.b16 %v428
      %v1572 = vunpack.c.h.b16 %v428
      %v1573 = vunpack.c.l.b16 %v429
      %v1574 = vunpack.c.h.b16 %v429
      %v1575 = vunpack.c.l.b16 %v430
      %v1576 = vunpack.c.h.b16 %v430
      %v1577 = vunpack.c.l.b16 %v431
      %v1578 = vunpack.c.h.b16 %v431
      %v1579 = vunpack.c.l.b16 %v432
      %v1580 = vunpack.c.h.b16 %v432
      %v1581 = vunpack.c.l.b16 %v433
      %v1582 = vunpack.c.h.b16 %v433
      %v1583 = vunpack.c.l.b16 %v434
      %v1584 = vunpack.c.h.b16 %v434
      %v1585 = vunpack.c.l.b16 %v435
      %v1586 = vunpack.c.h.b16 %v435
      %v1587 = vunpack.c.l.b16 %v436
      %v1588 = vunpack.c.h.b16 %v436
      %v1589 = vunpack.c.l.b16 %v437
      %v1590 = vunpack.c.h.b16 %v437
      %v1591 = vunpack.c.l.b16 %v438
      %v1592 = vunpack.c.h.b16 %v438
      %v1593 = vunpack.c.l.b16 %v439
      %v1594 = vunpack.c.h.b16 %v439
      %v1595 = vunpack.c.l.b16 %v440
      %v1596 = vunpack.c.h.b16 %v440
      %v1597 = vunpack.c.l.b16 %v441
      %v1598 = vunpack.c.h.b16 %v441
      %v1599 = vunpack.c.l.b16 %v442
      %v1600 = vunpack.c.h.b16 %v442
      %v1601 = vunpack.c.l.b16 %v443
      %v1602 = vunpack.c.h.b16 %v443
      %v1603 = vunpack.c.l.b16 %v444
      %v1604 = vunpack.c.h.b16 %v444
      %v1605 = vunpack.c.l.b16 %v445
      %v1606 = vunpack.c.h.b16 %v445
      %v1607 = vunpack.c.l.b16 %v446
      %v1608 = vunpack.c.h.b16 %v446
      %v1609 = vunpack.c.l.b16 %v447
      %v1610 = vunpack.c.h.b16 %v447
      %v1611 = vunpack.c.l.b16 %v448
      %v1612 = vunpack.c.h.b16 %v448
      %v1613 = vunpack.c.l.b16 %v449
      %v1614 = vunpack.c.h.b16 %v449
      %v1615 = vunpack.c.l.b16 %v450
      %v1616 = vunpack.c.h.b16 %v450
      %v1617 = vunpack.c.l.b16 %v451
      %v1618 = vunpack.c.h.b16 %v451
      %v1619 = vunpack.c.l.b16 %v452
      %v1620 = vunpack.c.h.b16 %v452
      %v1621 = vunpack.c.l.b16 %v453
      %v1622 = vunpack.c.h.b16 %v453
      %v1623 = vunpack.c.l.b16 %v454
      %v1624 = vunpack.c.h.b16 %v454
      %v1625 = vunpack.c.l.b16 %v455
      %v1626 = vunpack.c.h.b16 %v455
      %v1627 = vunpack.c.l.b16 %v456
      %v1628 = vunpack.c.h.b16 %v456
      %v1629 = vunpack.c.l.b16 %v457
      %v1630 = vunpack.c.h.b16 %v457
      %v1631 = vunpack.c.l.b16 %v458
      %v1632 = vunpack.c.h.b16 %v458
      %v1633 = vunpack.c.l.b16 %v459
      %v1634 = vunpack.c.h.b16 %v459
      %v1635 = vunpack.c.l.b16 %v460
      %v1636 = vunpack.c.h.b16 %v460
      %v1637 = vunpack.c.l.b16 %v461
      %v1638 = vunpack.c.h.b16 %v461
      %v1639 = vunpack.c.l.b16 %v462
      %v1640 = vunpack.c.h.b16 %v462
      %v1641 = vunpack.c.l.b16 %v463
      %v1642 = vunpack.c.h.b16 %v463
      %v1643 = vunpack.c.l.b16 %v464
      %v1644 = vunpack.c.h.b16 %v464
      %v1645 = vunpack.c.l.b16 %v465
      %v1646 = vunpack.c.h.b16 %v465
      %v1647 = vunpack.c.l.b16 %v466
      %v1648 = vunpack.c.h.b16 %v466
      %v1649 = vunpack.c.l.b16 %v467
      %v1650 = vunpack.c.h.b16 %v467
      %v1651 = vunpack.c.l.b16 %v468
      %v1652 = vunpack.c.h.b16 %v468
      %v1653 = vunpack.c.l.b16 %v469
      %v1654 = vunpack.c.h.b16 %v469
      %v1655 = vunpack.c.l.b16 %v470
      %v1656 = vunpack.c.h.b16 %v470
      %v1657 = vunpack.c.l.b16 %v471
      %v1658 = vunpack.c.h.b16 %v471
      %v1659 = vunpack.c.l.b16 %v472
      %v1660 = vunpack.c.h.b16 %v472
      %v1661 = vunpack.c.l.b16 %v473
      %v1662 = vunpack.c.h.b16 %v473
      %v1663 = vunpack.c.l.b16 %v474
      %v1664 = vunpack.c.h.b16 %v474
      %v1665 = vunpack.c.l.b16 %v475
      %v1666 = vunpack.c.h.b16 %v475
      %v1667 = vunpack.c.l.b16 %v476
      %v1668 = vunpack.c.h.b16 %v476
      %v1669 = vunpack.c.l.b16 %v477
      %v1670 = vunpack.c.h.b16 %v477
      %v1671 = vunpack.c.l.b16 %v478
      %v1672 = vunpack.c.h.b16 %v478
      %v1673 = vunpack.c.l.b16 %v479
      %v1674 = vunpack.c.h.b16 %v479
      %v1675 = vunpack.c.l.b16 %v480
      %v1676 = vunpack.c.h.b16 %v480
      %v1677 = vunpack.c.l.b16 %v481
      %v1678 = vunpack.c.h.b16 %v481
      %v1679 = vunpack.c.l.b16 %v482
      %v1680 = vunpack.c.h.b16 %v482
      %v1681 = vunpack.c.l.b16 %v483
      %v1682 = vunpack.c.h.b16 %v483
      %v1683 = vunpack.c.l.b16 %v484
      %v1684 = vunpack.c.h.b16 %v484
      %v1685 = vunpack.c.l.b16 %v485
      %v1686 = vunpack.c.h.b16 %v485
      %v1687 = vunpack.c.l.b16 %v486
      %v1688 = vunpack.c.h.b16 %v486
      %v1689 = vunpack.c.l.b16 %v487
      %v1690 = vunpack.c.h.b16 %v487
      %v1691 = vunpack.c.l.b16 %v488
      %v1692 = vunpack.c.h.b16 %v488
      %v1693 = vunpack.c.l.b16 %v489
      %v1694 = vunpack.c.h.b16 %v489
      %v1695 = vunpack.c.l.b16 %v490
      %v1696 = vunpack.c.h.b16 %v490
      %v1697 = vunpack.c.l.b16 %v491
      %v1698 = vunpack.c.h.b16 %v491
      %v1699 = vunpack.c.l.b16 %v492
      %v1700 = vunpack.c.h.b16 %v492
      %v1701 = vunpack.c.l.b16 %v493
      %v1702 = vunpack.c.h.b16 %v493
      %v1703 = vunpack.c.l.b16 %v494
      %v1704 = vunpack.c.h.b16 %v494
      %v1705 = vunpack.c.l.b16 %v495
      %v1706 = vunpack.c.h.b16 %v495
      %v1707 = vunpack.c.l.b16 %v496
      %v1708 = vunpack.c.h.b16 %v496
      %v1709 = vunpack.c.l.b16 %v497
      %v1710 = vunpack.c.h.b16 %v497
      %v1711 = vunpack.c.l.b16 %v498
      %v1712 = vunpack.c.h.b16 %v498
      %v1713 = vunpack.c.l.b16 %v499
      %v1714 = vunpack.c.h.b16 %v499
      %v1715 = vunpack.c.l.b16 %v500
      %v1716 = vunpack.c.h.b16 %v500
      %v1717 = vunpack.c.l.b16 %v501
      %v1718 = vunpack.c.h.b16 %v501
      %v1719 = vunpack.c.l.b16 %v502
      %v1720 = vunpack.c.h.b16 %v502
      %v1721 = vunpack.c.l.b16 %v503
      %v1722 = vunpack.c.h.b16 %v503
      %v1723 = vunpack.c.l.b16 %v504
      %v1724 = vunpack.c.h.b16 %v504
      %v1725 = vunpack.c.l.b16 %v505
      %v1726 = vunpack.c.h.b16 %v505
      %v1727 = vunpack.c.l.b16 %v506
      %v1728 = vunpack.c.h.b16 %v506
      %v1729 = vunpack.c.l.b16 %v507
      %v1730 = vunpack.c.h.b16 %v507
      %v1731 = vunpack.c.l.b16 %v508
      %v1732 = vunpack.c.h.b16 %v508
      %v1733 = vunpack.c.l.b16 %v509
      %v1734 = vunpack.c.h.b16 %v509
      %v1735 = vunpack.c.l.b16 %v510
      %v1736 = vunpack.c.h.b16 %v510
      %v1737 = vunpack.c.l.b16 %v511
      %v1738 = vunpack.c.h.b16 %v511
      %v1739 = vunpack.c.l.b16 %v512
      %v1740 = vunpack.c.h.b16 %v512
      %v1741 = vunpack.c.l.b16 %v513
      %v1742 = vunpack.c.h.b16 %v513
      %v1743 = vunpack.c.l.b16 %v514
      %v1744 = vunpack.c.h.b16 %v514
      %v1745 = vunpack.c.l.b16 %v515
      %v1746 = vunpack.c.h.b16 %v515
      %v1747 = vunpack.c.l.b16 %v516
      %v1748 = vunpack.c.h.b16 %v516
      %v1749 = vunpack.c.l.b16 %v517
      %v1750 = vunpack.c.h.b16 %v517
      %v1751 = vunpack.c.l.b16 %v518
      %v1752 = vunpack.c.h.b16 %v518
      %v1753 = vunpack.c.l.b16 %v519
      %v1754 = vunpack.c.h.b16 %v519
      %v1755 = vunpack.c.l.b16 %v520
      %v1756 = vunpack.c.h.b16 %v520
      %v1757 = vunpack.c.l.b16 %v521
      %v1758 = vunpack.c.h.b16 %v521
      %v1759 = vunpack.c.l.b16 %v522
      %v1760 = vunpack.c.h.b16 %v522
      %v1761 = vunpack.c.l.b16 %v523
      %v1762 = vunpack.c.h.b16 %v523
      %v1763 = vunpack.c.l.b16 %v524
      %v1764 = vunpack.c.h.b16 %v524
      %v1765 = vunpack.c.l.b16 %v525
      %v1766 = vunpack.c.h.b16 %v525
      %v1767 = vunpack.c.l.b16 %v526
      %v1768 = vunpack.c.h.b16 %v526
      %v1769 = vunpack.c.l.b16 %v527
      %v1770 = vunpack.c.h.b16 %v527
      %v1771 = vunpack.c.l.b16 %v528
      %v1772 = vunpack.c.h.b16 %v528
      %v1773 = vunpack.c.l.b16 %v529
      %v1774 = vunpack.c.h.b16 %v529
      %v1775 = vunpack.c.l.b16 %v530
      %v1776 = vunpack.c.h.b16 %v530
      %v1777 = vunpack.c.l.b16 %v531
      %v1778 = vunpack.c.h.b16 %v531
      %v1779 = vunpack.c.l.b16 %v532
      %v1780 = vunpack.c.h.b16 %v532
      %v1781 = vunpack.c.l.b16 %v533
      %v1782 = vunpack.c.h.b16 %v533
      %v1783 = vunpack.c.l.b16 %v534
      %v1784 = vunpack.c.h.b16 %v534
      %v1785 = vunpack.c.l.b16 %v535
      %v1786 = vunpack.c.h.b16 %v535
      %v1787 = vunpack.c.l.b16 %v536
      %v1788 = vunpack.c.h.b16 %v536
      %v1789 = vunpack.c.l.b16 %v537
      %v1790 = vunpack.c.h.b16 %v537
      %v1791 = vunpack.c.l.b16 %v538
      %v1792 = vunpack.c.h.b16 %v538
      %v1793 = vunpack.c.l.b16 %v539
      %v1794 = vunpack.c.h.b16 %v539
      %v1795 = vunpack.c.l.b16 %v540
      %v1796 = vunpack.c.h.b16 %v540
      %v1797 = vunpack.c.l.b16 %v541
      %v1798 = vunpack.c.h.b16 %v541
      %v1799 = vunpack.c.l.b16 %v542
      %v1800 = vunpack.c.h.b16 %v542
      %v1801 = vunpack.c.l.b16 %v543
      %v1802 = vunpack.c.h.b16 %v543
      %v1803 = vunpack.c.l.b16 %v544
      %v1804 = vunpack.c.h.b16 %v544
      %v1805 = vunpack.c.l.b16 %v545
      %v1806 = vunpack.c.h.b16 %v545
      %v1807 = vunpack.c.l.b16 %v546
      %v1808 = vunpack.c.h.b16 %v546
      %v1809 = vunpack.c.l.b16 %v547
      %v1810 = vunpack.c.h.b16 %v547
      %v1811 = vunpack.c.l.b16 %v548
      %v1812 = vunpack.c.h.b16 %v548
      %v1813 = vunpack.c.l.b16 %v549
      %v1814 = vunpack.c.h.b16 %v549
      %v1815 = vunpack.c.l.b16 %v550
      %v1816 = vunpack.c.h.b16 %v550
      %v1817 = vunpack.c.l.b16 %v551
      %v1818 = vunpack.c.h.b16 %v551
      %v1819 = vunpack.c.l.b16 %v552
      %v1820 = vunpack.c.h.b16 %v552
      %v1821 = vunpack.c.l.b16 %v553
      %v1822 = vunpack.c.h.b16 %v553
      %v1823 = vunpack.c.l.b16 %v554
      %v1824 = vunpack.c.h.b16 %v554
      %v1825 = vunpack.c.l.b16 %v555
      %v1826 = vunpack.c.h.b16 %v555
      %v1827 = vunpack.c.l.b16 %v556
      %v1828 = vunpack.c.h.b16 %v556
      %v1829 = vunpack.c.l.b16 %v557
      %v1830 = vunpack.c.h.b16 %v557
      %v1831 = vunpack.c.l.b16 %v558
      %v1832 = vunpack.c.h.b16 %v558
      %v1833 = vunpack.c.l.b16 %v559
      %v1834 = vunpack.c.h.b16 %v559
      %v1835 = vunpack.c.l.b16 %v560
      %v1836 = vunpack.c.h.b16 %v560
      %v1837 = vunpack.c.l.b16 %v561
      %v1838 = vunpack.c.h.b16 %v561
      %v1839 = vunpack.c.l.b16 %v562
      %v1840 = vunpack.c.h.b16 %v562
      %v1841 = vunpack.c.l.b16 %v563
      %v1842 = vunpack.c.h.b16 %v563
      %v1843 = vunpack.c.l.b16 %v564
      %v1844 = vunpack.c.h.b16 %v564
      %v1845 = vunpack.c.l.b16 %v565
      %v1846 = vunpack.c.h.b16 %v565
      %v1847 = vunpack.c.l.b16 %v566
      %v1848 = vunpack.c.h.b16 %v566
      %v1849 = vunpack.c.l.b16 %v567
      %v1850 = vunpack.c.h.b16 %v567
      %v1851 = vunpack.c.l.b16 %v568
      %v1852 = vunpack.c.h.b16 %v568
      %v1853 = vunpack.c.l.b16 %v569
      %v1854 = vunpack.c.h.b16 %v569
      %v1855 = vunpack.c.l.b16 %v570
      %v1856 = vunpack.c.h.b16 %v570
      %v1857 = vunpack.c.l.b16 %v571
      %v1858 = vunpack.c.h.b16 %v571
      %v1859 = vunpack.c.l.b16 %v572
      %v1860 = vunpack.c.h.b16 %v572
      %v1861 = vunpack.c.l.b16 %v573
      %v1862 = vunpack.c.h.b16 %v573
      %v1863 = vunpack.c.l.b16 %v574
      %v1864 = vunpack.c.h.b16 %v574
      %v1865 = vunpack.c.l.b16 %v575
      %v1866 = vunpack.c.h.b16 %v575
      %v1867 = vunpack.c.l.b16 %v576
      %v1868 = vunpack.c.h.b16 %v576
      %v1869 = vunpack.c.l.b16 %v577
      %v1870 = vunpack.c.h.b16 %v577
      %v1871 = vunpack.c.l.b16 %v578
      %v1872 = vunpack.c.h.b16 %v578
      %v1873 = vunpack.c.l.b16 %v579
      %v1874 = vunpack.c.h.b16 %v579
      %v1875 = vunpack.c.l.b16 %v580
      %v1876 = vunpack.c.h.b16 %v580
      %v1877 = vunpack.c.l.b16 %v581
      %v1878 = vunpack.c.h.b16 %v581
      %v1879 = vunpack.c.l.b16 %v582
      %v1880 = vunpack.c.h.b16 %v582
      %v1881 = vunpack.c.l.b16 %v583
      %v1882 = vunpack.c.h.b16 %v583
      %v1883 = vunpack.c.l.b16 %v584
      %v1884 = vunpack.c.h.b16 %v584
      %v1885 = vunpack.c.l.b16 %v585
      %v1886 = vunpack.c.h.b16 %v585
      %v1887 = vunpack.c.l.b16 %v586
      %v1888 = vunpack.c.h.b16 %v586
      %v1889 = vunpack.c.l.b16 %v587
      %v1890 = vunpack.c.h.b16 %v587
      %v1891 = vunpack.c.l.b16 %v588
      %v1892 = vunpack.c.h.b16 %v588
      %v1893 = vunpack.c.l.b16 %v589
      %v1894 = vunpack.c.h.b16 %v589
      %v1895 = vunpack.c.l.b16 %v590
      %v1896 = vunpack.c.h.b16 %v590
      %v1897 = vunpack.c.l.b16 %v591
      %v1898 = vunpack.c.h.b16 %v591
      %v1899 = vunpack.c.l.b16 %v592
      %v1900 = vunpack.c.h.b16 %v592
      %v1901 = vunpack.c.l.b16 %v593
      %v1902 = vunpack.c.h.b16 %v593
      %v1903 = vunpack.c.l.b16 %v594
      %v1904 = vunpack.c.h.b16 %v594
      %v1905 = vunpack.c.l.b16 %v595
      %v1906 = vunpack.c.h.b16 %v595
      %v1907 = vunpack.c.l.b16 %v596
      %v1908 = vunpack.c.h.b16 %v596
      %v1909 = vunpack.c.l.b16 %v597
      %v1910 = vunpack.c.h.b16 %v597
      %v1911 = vunpack.c.l.b16 %v598
      %v1912 = vunpack.c.h.b16 %v598
      %v1913 = vunpack.c.l.b16 %v599
      %v1914 = vunpack.c.h.b16 %v599
      %v1915 = vunpack.c.l.b16 %v600
      %v1916 = vunpack.c.h.b16 %v600
      %v1917 = vunpack.c.l.b16 %v601
      %v1918 = vunpack.c.h.b16 %v601
      %v1919 = vunpack.c.l.b16 %v602
      %v1920 = vunpack.c.h.b16 %v602
      %v1921 = vunpack.c.l.b16 %v603
      %v1922 = vunpack.c.h.b16 %v603
      %v1923 = vunpack.c.l.b16 %v604
      %v1924 = vunpack.c.h.b16 %v604
      %v1925 = vunpack.c.l.b16 %v605
      %v1926 = vunpack.c.h.b16 %v605
      %v1927 = vunpack.c.l.b16 %v606
      %v1928 = vunpack.c.h.b16 %v606
      %v1929 = vunpack.c.l.b16 %v607
      %v1930 = vunpack.c.h.b16 %v607
      %v1931 = vunpack.c.l.b16 %v608
      %v1932 = vunpack.c.h.b16 %v608
      %v1933 = vunpack.c.l.b16 %v609
      %v1934 = vunpack.c.h.b16 %v609
      %v1935 = vunpack.c.l.b16 %v610
      %v1936 = vunpack.c.h.b16 %v610
      %v1937 = vunpack.c.l.b16 %v611
      %v1938 = vunpack.c.h.b16 %v611
      %v1939 = vunpack.c.l.b16 %v612
      %v1940 = vunpack.c.h.b16 %v612
      %v1941 = vunpack.c.l.b16 %v613
      %v1942 = vunpack.c.h.b16 %v613
      %v1943 = vunpack.c.l.b16 %v614
      %v1944 = vunpack.c.h.b16 %v614
      %v1945 = vunpack.c.l.b16 %v615
      %v1946 = vunpack.c.h.b16 %v615
      %v1947 = vunpack.c.l.b16 %v616
      %v1948 = vunpack.c.h.b16 %v616
      %v1949 = vunpack.c.l.b16 %v617
      %v1950 = vunpack.c.h.b16 %v617
      %v1951 = vunpack.c.l.b16 %v618
      %v1952 = vunpack.c.h.b16 %v618
      %v1953 = vunpack.c.l.b16 %v619
      %v1954 = vunpack.c.h.b16 %v619
      %v1955 = vunpack.c.l.b16 %v620
      %v1956 = vunpack.c.h.b16 %v620
      %v1957 = vunpack.c.l.b16 %v621
      %v1958 = vunpack.c.h.b16 %v621
      %v1959 = vunpack.c.l.b16 %v622
      %v1960 = vunpack.c.h.b16 %v622
      %v1961 = vunpack.c.l.b16 %v623
      %v1962 = vunpack.c.h.b16 %v623
      %v1963 = vunpack.c.l.b16 %v624
      %v1964 = vunpack.c.h.b16 %v624
      %v1965 = vunpack.c.l.b16 %v625
      %v1966 = vunpack.c.h.b16 %v625
      %v1967 = vunpack.c.l.b16 %v626
      %v1968 = vunpack.c.h.b16 %v626
      %v1969 = vunpack.c.l.b16 %v627
      %v1970 = vunpack.c.h.b16 %v627
      %v1971 = vunpack.c.l.b16 %v628
      %v1972 = vunpack.c.h.b16 %v628
      %v1973 = vunpack.c.l.b16 %v629
      %v1974 = vunpack.c.h.b16 %v629
      %v1975 = vunpack.c.l.b16 %v630
      %v1976 = vunpack.c.h.b16 %v630
      %v1977 = vunpack.c.l.b16 %v631
      %v1978 = vunpack.c.h.b16 %v631
      %v1979 = vunpack.c.l.b16 %v632
      %v1980 = vunpack.c.h.b16 %v632
      %v1981 = vunpack.c.l.b16 %v633
      %v1982 = vunpack.c.h.b16 %v633
      %v1983 = vunpack.c.l.b16 %v634
      %v1984 = vunpack.c.h.b16 %v634
      %v1985 = vunpack.c.l.b16 %v635
      %v1986 = vunpack.c.h.b16 %v635
      %v1987 = vunpack.c.l.b16 %v636
      %v1988 = vunpack.c.h.b16 %v636
      %v1989 = vunpack.c.l.b16 %v637
      %v1990 = vunpack.c.h.b16 %v637
      %v1991 = vunpack.c.l.b16 %v638
      %v1992 = vunpack.c.h.b16 %v638
      %v1993 = vunpack.c.l.b16 %v639
      %v1994 = vunpack.c.h.b16 %v639
      %v1995 = vunpack.c.l.b16 %v640
      %v1996 = vunpack.c.h.b16 %v640
      %v1997 = vunpack.c.l.b16 %v641
      %v1998 = vunpack.c.h.b16 %v641
      %v1999 = vunpack.c.l.b16 %v642
      %v2000 = vunpack.c.h.b16 %v642
      %v2001 = vunpack.c.l.b16 %v643
      %v2002 = vunpack.c.h.b16 %v643
      %v2003 = vunpack.c.l.b16 %v644
      %v2004 = vunpack.c.h.b16 %v644
      %v2005 = vunpack.c.l.b16 %v645
      %v2006 = vunpack.c.h.b16 %v645
      %v2007 = vunpack.c.l.b16 %v646
      %v2008 = vunpack.c.h.b16 %v646
      %v2009 = vunpack.c.l.b16 %v647
      %v2010 = vunpack.c.h.b16 %v647
      %v2011 = vunpack.c.l.b16 %v648
      %v2012 = vunpack.c.h.b16 %v648
      %v2013 = vunpack.c.l.b16 %v649
      %v2014 = vunpack.c.h.b16 %v649
      %v2015 = vunpack.c.l.b16 %v650
      %v2016 = vunpack.c.h.b16 %v650
      %v2017 = vunpack.c.l.b16 %v651
      %v2018 = vunpack.c.h.b16 %v651
      %v2019 = vunpack.c.l.b16 %v652
      %v2020 = vunpack.c.h.b16 %v652
      %v2021 = vunpack.c.l.b16 %v653
      %v2022 = vunpack.c.h.b16 %v653
      %v2023 = vunpack.c.l.b16 %v654
      %v2024 = vunpack.c.h.b16 %v654
      %v2025 = vunpack.c.l.b16 %v655
      %v2026 = vunpack.c.h.b16 %v655
      %v2027 = vunpack.c.l.b16 %v656
      %v2028 = vunpack.c.h.b16 %v656
      %v2029 = vunpack.c.l.b16 %v657
      %v2030 = vunpack.c.h.b16 %v657
      %v2031 = vunpack.c.l.b16 %v658
      %v2032 = vunpack.c.h.b16 %v658
      %v2033 = vunpack.c.l.b16 %v659
      %v2034 = vunpack.c.h.b16 %v659
      %v2035 = vunpack.c.l.b16 %v660
      %v2036 = vunpack.c.h.b16 %v660
      %v2037 = vunpack.c.l.b16 %v661
      %v2038 = vunpack.c.h.b16 %v661
      %v2039 = vunpack.c.l.b16 %v662
      %v2040 = vunpack.c.h.b16 %v662
      %v2041 = vunpack.c.l.b16 %v663
      %v2042 = vunpack.c.h.b16 %v663
      %v2043 = vunpack.c.l.b16 %v664
      %v2044 = vunpack.c.h.b16 %v664
      %v2045 = vunpack.c.l.b16 %v665
      %v2046 = vunpack.c.h.b16 %v665
      %v2047 = vunpack.c.l.b16 %v666
      %v2048 = vunpack.c.h.b16 %v666
      %v2049 = vpack.c.b16 %v1259, %v1249
      %v2050 = vpack.c.b16 %v1260, %v1250
      %v2051 = vpack.c.b16 %v1261, %v1251
      %v2052 = vpack.c.b16 %v1262, %v1252
      %v2053 = vpack.c.b16 %v1263, %v1253
      %v2054 = vpack.c.b16 %v1264, %v1254
      %v2055 = vpack.c.b16 %v1265, %v1255
      %v2056 = vpack.c.b16 %v1266, %v1256
      %v2057 = vpack.c.b16 %v1267, %v1257
      %v2058 = vpack.c.b16 %v1268, %v1258
      %v2059 = vpack.c.b16 %v1279, %v1269
      %v2060 = vpack.c.b16 %v1280, %v1270
      %v2061 = vpack.c.b16 %v1281, %v1271
      %v2062 = vpack.c.b16 %v1282, %v1272
      %v2063 = vpack.c.b16 %v1283, %v1273
      %v2064 = vpack.c.b16 %v1284, %v1274
      %v2065 = vpack.c.b16 %v1285, %v1275
      %v2066 = vpack.c.b16 %v1286, %v1276
      %v2067 = vpack.c.b16 %v1287, %v1277
      %v2068 = vpack.c.b16 %v1288, %v1278
      %v2069 = vpack.c.b16 %v1299, %v1289
      %v2070 = vpack.c.b16 %v1300, %v1290
      %v2071 = vpack.c.b16 %v1301, %v1291
      %v2072 = vpack.c.b16 %v1302, %v1292
      %v2073 = vpack.c.b16 %v1303, %v1293
      %v2074 = vpack.c.b16 %v1304, %v1294
      %v2075 = vpack.c.b16 %v1305, %v1295
      %v2076 = vpack.c.b16 %v1306, %v1296
      %v2077 = vpack.c.b16 %v1307, %v1297
      %v2078 = vpack.c.b16 %v1308, %v1298
      %v2079 = vpack.c.b16 %v1319, %v1309
      %v2080 = vpack.c.b16 %v1320, %v1310
      %v2081 = vpack.c.b16 %v1321, %v1311
      %v2082 = vpack.c.b16 %v1322, %v1312
      %v2083 = vpack.c.b16 %v1323, %v1313
      %v2084 = vpack.c.b16 %v1324, %v1314
      %v2085 = vpack.c.b16 %v1325, %v1315
      %v2086 = vpack.c.b16 %v1326, %v1316
      %v2087 = vpack.c.b16 %v1327, %v1317
      %v2088 = vpack.c.b16 %v1328, %v1318
      %v2089 = vpack.c.b16 %v1339, %v1329
      %v2090 = vpack.c.b16 %v1340, %v1330
      %v2091 = vpack.c.b16 %v1341, %v1331
      %v2092 = vpack.c.b16 %v1342, %v1332
      %v2093 = vpack.c.b16 %v1343, %v1333
      %v2094 = vpack.c.b16 %v1344, %v1334
      %v2095 = vpack.c.b16 %v1345, %v1335
      %v2096 = vpack.c.b16 %v1346, %v1336
      %v2097 = vpack.c.b16 %v1347, %v1337
      %v2098 = vpack.c.b16 %v1348, %v1338
      %v2099 = vpack.c.b16 %v1359, %v1349
      %v2100 = vpack.c.b16 %v1360, %v1350
      %v2101 = vpack.c.b16 %v1361, %v1351
      %v2102 = vpack.c.b16 %v1362, %v1352
      %v2103 = vpack.c.b16 %v1363, %v1353
      %v2104 = vpack.c.b16 %v1364, %v1354
      %v2105 = vpack.c.b16 %v1365, %v1355
      %v2106 = vpack.c.b16 %v1366, %v1356
      %v2107 = vpack.c.b16 %v1367, %v1357
      %v2108 = vpack.c.b16 %v1368, %v1358
      %v2109 = vpack.c.b16 %v1379, %v1369
      %v2110 = vpack.c.b16 %v1380, %v1370
      %v2111 = vpack.c.b16 %v1381, %v1371
      %v2112 = vpack.c.b16 %v1382, %v1372
      %v2113 = vpack.c.b16 %v1383, %v1373
      %v2114 = vpack.c.b16 %v1384, %v1374
      %v2115 = vpack.c.b16 %v1385, %v1375
      %v2116 = vpack.c.b16 %v1386, %v1376
      %v2117 = vpack.c.b16 %v1387, %v1377
      %v2118 = vpack.c.b16 %v1388, %v1378
      %v2119 = vpack.c.b16 %v1399, %v1389
      %v2120 = vpack.c.b16 %v1400, %v1390
      %v2121 = vpack.c.b16 %v1401, %v1391
      %v2122 = vpack.c.b16 %v1402, %v1392
      %v2123 = vpack.c.b16 %v1403, %v1393
      %v2124 = vpack.c.b16 %v1404, %v1394
      %v2125 = vpack.c.b16 %v1405, %v1395
      %v2126 = vpack.c.b16 %v1406, %v1396
      %v2127 = vpack.c.b16 %v1407, %v1397
      %v2128 = vpack.c.b16 %v1408, %v1398
      %v2129 = vpack.c.b16 %v1419, %v1409
      %v2130 = vpack.c.b16 %v1420, %v1410
      %v2131 = vpack.c.b16 %v1421, %v1411
      %v2132 = vpack.c.b16 %v1422, %v1412
      %v2133 = vpack.c.b16 %v1423, %v1413
      %v2134 = vpack.c.b16 %v1424, %v1414
      %v2135 = vpack.c.b16 %v1425, %v1415
      %v2136 = vpack.c.b16 %v1426, %v1416
      %v2137 = vpack.c.b16 %v1427, %v1417
      %v2138 = vpack.c.b16 %v1428, %v1418
      %v2139 = vpack.c.b16 %v1439, %v1429
      %v2140 = vpack.c.b16 %v1440, %v1430
      %v2141 = vpack.c.b16 %v1441, %v1431
      %v2142 = vpack.c.b16 %v1442, %v1432
      %v2143 = vpack.c.b16 %v1443, %v1433
      %v2144 = vpack.c.b16 %v1444, %v1434
      %v2145 = vpack.c.b16 %v1445, %v1435
      %v2146 = vpack.c.b16 %v1446, %v1436
      %v2147 = vpack.c.b16 %v1447, %v1437
      %v2148 = vpack.c.b16 %v1448, %v1438
      %v2149 = vpack.c.b16 %v1459, %v1449
      %v2150 = vpack.c.b16 %v1460, %v1450
      %v2151 = vpack.c.b16 %v1461, %v1451
      %v2152 = vpack.c.b16 %v1462, %v1452
      %v2153 = vpack.c.b16 %v1463, %v1453
      %v2154 = vpack.c.b16 %v1464, %v1454
      %v2155 = vpack.c.b16 %v1465, %v1455
      %v2156 = vpack.c.b16 %v1466, %v1456
      %v2157 = vpack.c.b16 %v1467, %v1457
      %v2158 = vpack.c.b16 %v1468, %v1458
      %v2159 = vpack.c.b16 %v1479, %v1469
      %v2160 = vpack.c.b16 %v1480, %v1470
      %v2161 = vpack.c.b16 %v1481, %v1471
      %v2162 = vpack.c.b16 %v1482, %v1472
      %v2163 = vpack.c.b16 %v1483, %v1473
      %v2164 = vpack.c.b16 %v1484, %v1474
      %v2165 = vpack.c.b16 %v1485, %v1475
      %v2166 = vpack.c.b16 %v1486, %v1476
      %v2167 = vpack.c.b16 %v1487, %v1477
      %v2168 = vpack.c.b16 %v1488, %v1478
      %v2169 = vpack.c.b16 %v1499, %v1489
      %v2170 = vpack.c.b16 %v1500, %v1490
      %v2171 = vpack.c.b16 %v1501, %v1491
      %v2172 = vpack.c.b16 %v1502, %v1492
      %v2173 = vpack.c.b16 %v1503, %v1493
      %v2174 = vpack.c.b16 %v1504, %v1494
      %v2175 = vpack.c.b16 %v1505, %v1495
      %v2176 = vpack.c.b16 %v1506, %v1496
      %v2177 = vpack.c.b16 %v1507, %v1497
      %v2178 = vpack.c.b16 %v1508, %v1498
      %v2179 = vpack.c.b16 %v1519, %v1509
      %v2180 = vpack.c.b16 %v1520, %v1510
      %v2181 = vpack.c.b16 %v1521, %v1511
      %v2182 = vpack.c.b16 %v1522, %v1512
      %v2183 = vpack.c.b16 %v1523, %v1513
      %v2184 = vpack.c.b16 %v1524, %v1514
      %v2185 = vpack.c.b16 %v1525, %v1515
      %v2186 = vpack.c.b16 %v1526, %v1516
      %v2187 = vpack.c.b16 %v1527, %v1517
      %v2188 = vpack.c.b16 %v1528, %v1518
      %v2189 = vpack.c.b16 %v1539, %v1529
      %v2190 = vpack.c.b16 %v1540, %v1530
      %v2191 = vpack.c.b16 %v1541, %v1531
      %v2192 = vpack.c.b16 %v1542, %v1532
      %v2193 = vpack.c.b16 %v1543, %v1533
      %v2194 = vpack.c.b16 %v1544, %v1534
      %v2195 = vpack.c.b16 %v1545, %v1535
      %v2196 = vpack.c.b16 %v1546, %v1536
      %v2197 = vpack.c.b16 %v1547, %v1537
      %v2198 = vpack.c.b16 %v1548, %v1538
      %v2199 = vpack.c.b16 %v1559, %v1549
      %v2200 = vpack.c.b16 %v1560, %v1550
      %v2201 = vpack.c.b16 %v1561, %v1551
      %v2202 = vpack.c.b16 %v1562, %v1552
      %v2203 = vpack.c.b16 %v1563, %v1553
      %v2204 = vpack.c.b16 %v1564, %v1554
      %v2205 = vpack.c.b16 %v1565, %v1555
      %v2206 = vpack.c.b16 %v1566, %v1556
      %v2207 = vpack.c.b16 %v1567, %v1557
      %v2208 = vpack.c.b16 %v1568, %v1558
      %v2209 = vpack.c.b16 %v1579, %v1569
      %v2210 = vpack.c.b16 %v1580, %v1570
      %v2211 = vpack.c.b16 %v1581, %v1571
      %v2212 = vpack.c.b16 %v1582, %v1572
      %v2213 = vpack.c.b16 %v1583, %v1573
      %v2214 = vpack.c.b16 %v1584, %v1574
      %v2215 = vpack.c.b16 %v1585, %v1575
      %v2216 = vpack.c.b16 %v1586, %v1576
      %v2217 = vpack.c.b16 %v1587, %v1577
      %v2218 = vpack.c.b16 %v1588, %v1578
      %v2219 = vpack.c.b16 %v1599, %v1589
      %v2220 = vpack.c.b16 %v1600, %v1590
      %v2221 = vpack.c.b16 %v1601, %v1591
      %v2222 = vpack.c.b16 %v1602, %v1592
      %v2223 = vpack.c.b16 %v1603, %v1593
      %v2224 = vpack.c.b16 %v1604, %v1594
      %v2225 = vpack.c.b16 %v1605, %v1595
      %v2226 = vpack.c.b16 %v1606, %v1596
      %v2227 = vpack.c.b16 %v1607, %v1597
      %v2228 = vpack.c.b16 %v1608, %v1598
      %v2229 = vpack.c.b16 %v1619, %v1609
      %v2230 = vpack.c.b16 %v1620, %v1610
      %v2231 = vpack.c.b16 %v1621, %v1611
      %v2232 = vpack.c.b16 %v1622, %v1612
      %v2233 = vpack.c.b16 %v1623, %v1613
      %v2234 = vpack.c.b16 %v1624, %v1614
      %v2235 = vpack.c.b16 %v1625, %v1615
      %v2236 = vpack.c.b16 %v1626, %v1616
      %v2237 = vpack.c.b16 %v1627, %v1617
      %v2238 = vpack.c.b16 %v1628, %v1618
      %v2239 = vpack.c.b16 %v1639, %v1629
      %v2240 = vpack.c.b16 %v1640, %v1630
      %v2241 = vpack.c.b16 %v1641, %v1631
      %v2242 = vpack.c.b16 %v1642, %v1632
      %v2243 = vpack.c.b16 %v1643, %v1633
      %v2244 = vpack.c.b16 %v1644, %v1634
      %v2245 = vpack.c.b16 %v1645, %v1635
      %v2246 = vpack.c.b16 %v1646, %v1636
      %v2247 = vpack.c.b16 %v1647, %v1637
      %v2248 = vpack.c.b16 %v1648, %v1638
      %v2249 = vpack.c.b16 %v1659, %v1649
      %v2250 = vpack.c.b16 %v1660, %v1650
      %v2251 = vpack.c.b16 %v1661, %v1651
      %v2252 = vpack.c.b16 %v1662, %v1652
      %v2253 = vpack.c.b16 %v1663, %v1653
      %v2254 = vpack.c.b16 %v1664, %v1654
      %v2255 = vpack.c.b16 %v1665, %v1655
      %v2256 = vpack.c.b16 %v1666, %v1656
      %v2257 = vpack.c.b16 %v1667, %v1657
      %v2258 = vpack.c.b16 %v1668, %v1658
      %v2259 = vpack.c.b16 %v1679, %v1669
      %v2260 = vpack.c.b16 %v1680, %v1670
      %v2261 = vpack.c.b16 %v1681, %v1671
      %v2262 = vpack.c.b16 %v1682, %v1672
      %v2263 = vpack.c.b16 %v1683, %v1673
      %v2264 = vpack.c.b16 %v1684, %v1674
      %v2265 = vpack.c.b16 %v1685, %v1675
      %v2266 = vpack.c.b16 %v1686, %v1676
      %v2267 = vpack.c.b16 %v1687, %v1677
      %v2268 = vpack.c.b16 %v1688, %v1678
      %v2269 = vpack.c.b16 %v1699, %v1689
      %v2270 = vpack.c.b16 %v1700, %v1690
      %v2271 = vpack.c.b16 %v1701, %v1691
      %v2272 = vpack.c.b16 %v1702, %v1692
      %v2273 = vpack.c.b16 %v1703, %v1693
      %v2274 = vpack.c.b16 %v1704, %v1694
      %v2275 = vpack.c.b16 %v1705, %v1695
      %v2276 = vpack.c.b16 %v1706, %v1696
      %v2277 = vpack.c.b16 %v1707, %v1697
      %v2278 = vpack.c.b16 %v1708, %v1698
      %v2279 = vpack.c.b16 %v1719, %v1709
      %v2280 = vpack.c.b16 %v1720, %v1710
      %v2281 = vpack.c.b16 %v1721, %v1711
      %v2282 = vpack.c.b16 %v1722, %v1712
      %v2283 = vpack.c.b16 %v1723, %v1713
      %v2284 = vpack.c.b16 %v1724, %v1714
      %v2285 = vpack.c.b16 %v1725, %v1715
      %v2286 = vpack.c.b16 %v1726, %v1716
      %v2287 = vpack.c.b16 %v1727, %v1717
      %v2288 = vpack.c.b16 %v1728, %v1718
      %v2289 = vpack.c.b16 %v1739, %v1729
      %v2290 = vpack.c.b16 %v1740, %v1730
      %v2291 = vpack.c.b16 %v1741, %v1731
      %v2292 = vpack.c.b16 %v1742, %v1732
      %v2293 = vpack.c.b16 %v1743, %v1733
      %v2294 = vpack.c.b16 %v1744, %v1734
      %v2295 = vpack.c.b16 %v1745, %v1735
      %v2296 = vpack.c.b16 %v1746, %v1736
      %v2297 = vpack.c.b16 %v1747, %v1737
      %v2298 = vpack.c.b16 %v1748, %v1738
      %v2299 = vpack.c.b16 %v1759, %v1749
      %v2300 = vpack.c.b16 %v1760, %v1750
      %v2301 = vpack.c.b16 %v1761, %v1751
      %v2302 = vpack.c.b16 %v1762, %v1752
      %v2303 = vpack.c.b16 %v1763, %v1753
      %v2304 = vpack.c.b16 %v1764, %v1754
      %v2305 = vpack.c.b16 %v1765, %v1755
      %v2306 = vpack.c.b16 %v1766, %v1756
      %v2307 = vpack.c.b16 %v1767, %v1757
      %v2308 = vpack.c.b16 %v1768, %v1758
      %v2309 = vpack.c.b16 %v1779, %v1769
      %v2310 = vpack.c.b16 %v1780, %v1770
      %v2311 = vpack.c.b16 %v1781, %v1771
      %v2312 = vpack.c.b16 %v1782, %v1772
      %v2313 = vpack.c.b16 %v1783, %v1773
      %v2314 = vpack.c.b16 %v1784, %v1774
      %v2315 = vpack.c.b16 %v1785, %v1775
      %v2316 = vpack.c.b16 %v1786, %v1776
      %v2317 = vpack.c.b16 %v1787, %v1777
      %v2318 = vpack.c.b16 %v1788, %v1778
      %v2319 = vpack.c.b16 %v1799, %v1789
      %v2320 = vpack.c.b16 %v1800, %v1790
      %v2321 = vpack.c.b16 %v1801, %v1791
      %v2322 = vpack.c.b16 %v1802, %v1792
      %v2323 = vpack.c.b16 %v1803, %v1793
      %v2324 = vpack.c.b16 %v1804, %v1794
      %v2325 = vpack.c.b16 %v1805, %v1795
      %v2326 = vpack.c.b16 %v1806, %v1796
      %v2327 = vpack.c.b16 %v1807, %v1797
      %v2328 = vpack.c.b16 %v1808, %v1798
      %v2329 = vpack.c.b16 %v1819, %v1809
      %v2330 = vpack.c.b16 %v1820, %v1810
      %v2331 = vpack.c.b16 %v1821, %v1811
      %v2332 = vpack.c.b16 %v1822, %v1812
      %v2333 = vpack.c.b16 %v1823, %v1813
      %v2334 = vpack.c.b16 %v1824, %v1814
      %v2335 = vpack.c.b16 %v1825, %v1815
      %v2336 = vpack.c.b16 %v1826, %v1816
      %v2337 = vpack.c.b16 %v1827, %v1817
      %v2338 = vpack.c.b16 %v1828, %v1818
      %v2339 = vpack.c.b16 %v1839, %v1829
      %v2340 = vpack.c.b16 %v1840, %v1830
      %v2341 = vpack.c.b16 %v1841, %v1831
      %v2342 = vpack.c.b16 %v1842, %v1832
      %v2343 = vpack.c.b16 %v1843, %v1833
      %v2344 = vpack.c.b16 %v1844, %v1834
      %v2345 = vpack.c.b16 %v1845, %v1835
      %v2346 = vpack.c.b16 %v1846, %v1836
      %v2347 = vpack.c.b16 %v1847, %v1837
      %v2348 = vpack.c.b16 %v1848, %v1838
      %v2349 = vpack.c.b16 %v1859, %v1849
      %v2350 = vpack.c.b16 %v1860, %v1850
      %v2351 = vpack.c.b16 %v1861, %v1851
      %v2352 = vpack.c.b16 %v1862, %v1852
      %v2353 = vpack.c.b16 %v1863, %v1853
      %v2354 = vpack.c.b16 %v1864, %v1854
      %v2355 = vpack.c.b16 %v1865, %v1855
      %v2356 = vpack.c.b16 %v1866, %v1856
      %v2357 = vpack.c.b16 %v1867, %v1857
      %v2358 = vpack.c.b16 %v1868, %v1858
      %v2359 = vpack.c.b16 %v1879, %v1869
      %v2360 = vpack.c.b16 %v1880, %v1870
      %v2361 = vpack.c.b16 %v1881, %v1871
      %v2362 = vpack.c.b16 %v1882, %v1872
      %v2363 = vpack.c.b16 %v1883, %v1873
      %v2364 = vpack.c.b16 %v1884, %v1874
      %v2365 = vpack.c.b16 %v1885, %v1875
      %v2366 = vpack.c.b16 %v1886, %v1876
      %v2367 = vpack.c.b16 %v1887, %v1877
      %v2368 = vpack.c.b16 %v1888, %v1878
      %v2369 = vpack.c.b16 %v1899, %v1889
      %v2370 = vpack.c.b16 %v1900, %v1890
      %v2371 = vpack.c.b16 %v1901, %v1891
      %v2372 = vpack.c.b16 %v1902, %v1892
      %v2373 = vpack.c.b16 %v1903, %v1893
      %v2374 = vpack.c.b16 %v1904, %v1894
      %v2375 = vpack.c.b16 %v1905, %v1895
      %v2376 = vpack.c.b16 %v1906, %v1896
      %v2377 = vpack.c.b16 %v1907, %v1897
      %v2378 = vpack.c.b16 %v1908, %v1898
      %v2379 = vpack.c.b16 %v1919, %v1909
      %v2380 = vpack.c.b16 %v1920, %v1910
      %v2381 = vpack.c.b16 %v1921, %v1911
      %v2382 = vpack.c.b16 %v1922, %v1912
      %v2383 = vpack.c.b16 %v1923, %v1913
      %v2384 = vpack.c.b16 %v1924, %v1914
      %v2385 = vpack.c.b16 %v1925, %v1915
      %v2386 = vpack.c.b16 %v1926, %v1916
      %v2387 = vpack.c.b16 %v1927, %v1917
      %v2388 = vpack.c.b16 %v1928, %v1918
      %v2389 = vpack.c.b16 %v1939, %v1929
      %v2390 = vpack.c.b16 %v1940, %v1930
      %v2391 = vpack.c.b16 %v1941, %v1931
      %v2392 = vpack.c.b16 %v1942, %v1932
      %v2393 = vpack.c.b16 %v1943, %v1933
      %v2394 = vpack.c.b16 %v1944, %v1934
      %v2395 = vpack.c.b16 %v1945, %v1935
      %v2396 = vpack.c.b16 %v1946, %v1936
      %v2397 = vpack.c.b16 %v1947, %v1937
      %v2398 = vpack.c.b16 %v1948, %v1938
      %v2399 = vpack.c.b16 %v1959, %v1949
      %v2400 = vpack.c.b16 %v1960, %v1950
      %v2401 = vpack.c.b16 %v1961, %v1951
      %v2402 = vpack.c.b16 %v1962, %v1952
      %v2403 = vpack.c.b16 %v1963, %v1953
      %v2404 = vpack.c.b16 %v1964, %v1954
      %v2405 = vpack.c.b16 %v1965, %v1955
      %v2406 = vpack.c.b16 %v1966, %v1956
      %v2407 = vpack.c.b16 %v1967, %v1957
      %v2408 = vpack.c.b16 %v1968, %v1958
      %v2409 = vpack.c.b16 %v1979, %v1969
      %v2410 = vpack.c.b16 %v1980, %v1970
      %v2411 = vpack.c.b16 %v1981, %v1971
      %v2412 = vpack.c.b16 %v1982, %v1972
      %v2413 = vpack.c.b16 %v1983, %v1973
      %v2414 = vpack.c.b16 %v1984, %v1974
      %v2415 = vpack.c.b16 %v1985, %v1975
      %v2416 = vpack.c.b16 %v1986, %v1976
      %v2417 = vpack.c.b16 %v1987, %v1977
      %v2418 = vpack.c.b16 %v1988, %v1978
      %v2419 = vpack.c.b16 %v1999, %v1989
      %v2420 = vpack.c.b16 %v2000, %v1990
      %v2421 = vpack.c.b16 %v2001, %v1991
      %v2422 = vpack.c.b16 %v2002, %v1992
      %v2423 = vpack.c.b16 %v2003, %v1993
      %v2424 = vpack.c.b16 %v2004, %v1994
      %v2425 = vpack.c.b16 %v2005, %v1995
      %v2426 = vpack.c.b16 %v2006, %v1996
      %v2427 = vpack.c.b16 %v2007, %v1997
      %v2428 = vpack.c.b16 %v2008, %v1998
      %v2429 = vpack.c.b16 %v2019, %v2009
      %v2430 = vpack.c.b16 %v2020, %v2010
      %v2431 = vpack.c.b16 %v2021, %v2011
      %v2432 = vpack.c.b16 %v2022, %v2012
      %v2433 = vpack.c.b16 %v2023, %v2013
      %v2434 = vpack.c.b16 %v2024, %v2014
      %v2435 = vpack.c.b16 %v2025, %v2015
      %v2436 = vpack.c.b16 %v2026, %v2016
      %v2437 = vpack.c.b16 %v2027, %v2017
      %v2438 = vpack.c.b16 %v2028, %v2018
      %v2439 = vpack.c.b16 %v2039, %v2029
      %v2440 = vpack.c.b16 %v2040, %v2030
      %v2441 = vpack.c.b16 %v2041, %v2031
      %v2442 = vpack.c.b16 %v2042, %v2032
      %v2443 = vpack.c.b16 %v2043, %v2033
      %v2444 = vpack.c.b16 %v2044, %v2034
      %v2445 = vpack.c.b16 %v2045, %v2035
      %v2446 = vpack.c.b16 %v2046, %v2036
      %v2447 = vpack.c.b16 %v2047, %v2037
      %v2448 = vpack.c.b16 %v2048, %v2038
      %2849 = vmatpush.bf16.msra.mxu0 %v2119
      %2850 = vmatpush.bf16.msra.mxu0 %v2109
      %2851 = vmatpush.bf16.msra.mxu0 %v2099
      %2852 = vmatpush.bf16.msra.mxu0 %v2089
      %2853 = vmatpush.bf16.msra.mxu0 %v2079
      %2854 = vmatpush.bf16.msra.mxu0 %v2069
      %2855 = vmatpush.bf16.msra.mxu0 %v2059
      %2856 = vmatpush.bf16.msra.mxu0 %v2049
      %2857 = vmatmul.bf16.gmra.mxu0 %v779
      %v2858 = vpop.f32.mrf.mxu0
      %v2859 = vadd.f32 0.0, %v2858
      %v2860 = vpop.f32.mrf.mxu0
      %v2861 = vadd.f32 0.0, %v2860
      %2862 = vmatmul.bf16.gmra.mxu0 %v784
      %v2863 = vpop.f32.mrf.mxu0
      %v2864 = vadd.f32 0.0, %v2863
      %v2865 = vpop.f32.mrf.mxu0
      %v2866 = vadd.f32 0.0, %v2865
      %2867 = vmatmul.bf16.gmra.mxu0 %v789
      %v2868 = vpop.f32.mrf.mxu0
      %v2869 = vadd.f32 0.0, %v2868
      %v2870 = vpop.f32.mrf.mxu0
      %v2871 = vadd.f32 0.0, %v2870
      %2872 = vmatmul.bf16.gmra.mxu0 %v794
      %v2873 = vpop.f32.mrf.mxu0
      %v2874 = vadd.f32 0.0, %v2873
      %v2875 = vpop.f32.mrf.mxu0
      %v2876 = vadd.f32 0.0, %v2875
      %2877 = vmatmul.bf16.gmra.mxu0 %v799
      %v2878 = vpop.f32.mrf.mxu0
      %v2879 = vadd.f32 0.0, %v2878
      %v2880 = vpop.f32.mrf.mxu0
      %v2881 = vadd.f32 0.0, %v2880
      %2882 = vmatmul.bf16.gmra.mxu0 %v804
      %v2883 = vpop.f32.mrf.mxu0
      %v2884 = vadd.f32 0.0, %v2883
      %v2885 = vpop.f32.mrf.mxu0
      %v2886 = vadd.f32 0.0, %v2885
      %2887 = vmatmul.bf16.gmra.mxu0 %v809
      %v2888 = vpop.f32.mrf.mxu0
      %v2889 = vadd.f32 0.0, %v2888
      %v2890 = vpop.f32.mrf.mxu0
      %v2891 = vadd.f32 0.0, %v2890
      %2892 = vdwg.mxu0
      %2893 = vmatpush.bf16.msra.mxu0 %v2199
      %2894 = vmatpush.bf16.msra.mxu0 %v2189
      %2895 = vmatpush.bf16.msra.mxu0 %v2179
      %2896 = vmatpush.bf16.msra.mxu0 %v2169
      %2897 = vmatpush.bf16.msra.mxu0 %v2159
      %2898 = vmatpush.bf16.msra.mxu0 %v2149
      %2899 = vmatpush.bf16.msra.mxu0 %v2139
      %2900 = vmatpush.bf16.msra.mxu0 %v2129
      %2901 = vmatmul.bf16.gmra.mxu0 %v780
      %v2902 = vpop.f32.mrf.mxu0
      %v2903 = vadd.f32 %v2859, %v2902
      %v2904 = vpop.f32.mrf.mxu0
      %v2905 = vadd.f32 %v2861, %v2904
      %2906 = vmatmul.bf16.gmra.mxu0 %v785
      %v2907 = vpop.f32.mrf.mxu0
      %v2908 = vadd.f32 %v2864, %v2907
      %v2909 = vpop.f32.mrf.mxu0
      %v2910 = vadd.f32 %v2866, %v2909
      %2911 = vmatmul.bf16.gmra.mxu0 %v790
      %v2912 = vpop.f32.mrf.mxu0
      %v2913 = vadd.f32 %v2869, %v2912
      %v2914 = vpop.f32.mrf.mxu0
      %v2915 = vadd.f32 %v2871, %v2914
      %2916 = vmatmul.bf16.gmra.mxu0 %v795
      %v2917 = vpop.f32.mrf.mxu0
      %v2918 = vadd.f32 %v2874, %v2917
      %v2919 = vpop.f32.mrf.mxu0
      %v2920 = vadd.f32 %v2876, %v2919
      %2921 = vmatmul.bf16.gmra.mxu0 %v800
      %v2922 = vpop.f32.mrf.mxu0
      %v2923 = vadd.f32 %v2879, %v2922
      %v2924 = vpop.f32.mrf.mxu0
      %v2925 = vadd.f32 %v2881, %v2924
      %2926 = vmatmul.bf16.gmra.mxu0 %v805
      %v2927 = vpop.f32.mrf.mxu0
      %v2928 = vadd.f32 %v2884, %v2927
      %v2929 = vpop.f32.mrf.mxu0
      %v2930 = vadd.f32 %v2886, %v2929
      %2931 = vmatmul.bf16.gmra.mxu0 %v810
      %v2932 = vpop.f32.mrf.mxu0
      %v2933 = vadd.f32 %v2889, %v2932
      %v2934 = vpop.f32.mrf.mxu0
      %v2935 = vadd.f32 %v2891, %v2934
      %2936 = vdwg.mxu0
      %2937 = vmatpush.bf16.msra.mxu0 %v2279
      %2938 = vmatpush.bf16.msra.mxu0 %v2269
      %2939 = vmatpush.bf16.msra.mxu0 %v2259
      %2940 = vmatpush.bf16.msra.mxu0 %v2249
      %2941 = vmatpush.bf16.msra.mxu0 %v2239
      %2942 = vmatpush.bf16.msra.mxu0 %v2229
      %2943 = vmatpush.bf16.msra.mxu0 %v2219
      %2944 = vmatpush.bf16.msra.mxu0 %v2209
      %2945 = vmatmul.bf16.gmra.mxu0 %v781
      %v2946 = vpop.f32.mrf.mxu0
      %v2947 = vadd.f32 %v2903, %v2946
      %v2948 = vpop.f32.mrf.mxu0
      %v2949 = vadd.f32 %v2905, %v2948
      %2950 = vmatmul.bf16.gmra.mxu0 %v786
      %v2951 = vpop.f32.mrf.mxu0
      %v2952 = vadd.f32 %v2908, %v2951
      %v2953 = vpop.f32.mrf.mxu0
      %v2954 = vadd.f32 %v2910, %v2953
      %2955 = vmatmul.bf16.gmra.mxu0 %v791
      %v2956 = vpop.f32.mrf.mxu0
      %v2957 = vadd.f32 %v2913, %v2956
      %v2958 = vpop.f32.mrf.mxu0
      %v2959 = vadd.f32 %v2915, %v2958
      %2960 = vmatmul.bf16.gmra.mxu0 %v796
      %v2961 = vpop.f32.mrf.mxu0
      %v2962 = vadd.f32 %v2918, %v2961
      %v2963 = vpop.f32.mrf.mxu0
      %v2964 = vadd.f32 %v2920, %v2963
      %2965 = vmatmul.bf16.gmra.mxu0 %v801
      %v2966 = vpop.f32.mrf.mxu0
      %v2967 = vadd.f32 %v2923, %v2966
      %v2968 = vpop.f32.mrf.mxu0
      %v2969 = vadd.f32 %v2925, %v2968
      %2970 = vmatmul.bf16.gmra.mxu0 %v806
      %v2971 = vpop.f32.mrf.mxu0
      %v2972 = vadd.f32 %v2928, %v2971
      %v2973 = vpop.f32.mrf.mxu0
      %v2974 = vadd.f32 %v2930, %v2973
      %2975 = vmatmul.bf16.gmra.mxu0 %v811
      %v2976 = vpop.f32.mrf.mxu0
      %v2977 = vadd.f32 %v2933, %v2976
      %v2978 = vpop.f32.mrf.mxu0
      %v2979 = vadd.f32 %v2935, %v2978
      %2980 = vdwg.mxu0
      %2981 = vmatpush.bf16.msra.mxu0 %v2359
      %2982 = vmatpush.bf16.msra.mxu0 %v2349
      %2983 = vmatpush.bf16.msra.mxu0 %v2339
      %2984 = vmatpush.bf16.msra.mxu0 %v2329
      %2985 = vmatpush.bf16.msra.mxu0 %v2319
      %2986 = vmatpush.bf16.msra.mxu0 %v2309
      %2987 = vmatpush.bf16.msra.mxu0 %v2299
      %2988 = vmatpush.bf16.msra.mxu0 %v2289
      %2989 = vmatmul.bf16.gmra.mxu0 %v782
      %v2990 = vpop.f32.mrf.mxu0
      %v2991 = vadd.f32 %v2947, %v2990
      %v2992 = vpop.f32.mrf.mxu0
      %v2993 = vadd.f32 %v2949, %v2992
      %2994 = vmatmul.bf16.gmra.mxu0 %v787
      %v2995 = vpop.f32.mrf.mxu0
      %v2996 = vadd.f32 %v2952, %v2995
      %v2997 = vpop.f32.mrf.mxu0
      %v2998 = vadd.f32 %v2954, %v2997
      %2999 = vmatmul.bf16.gmra.mxu0 %v792
      %v3000 = vpop.f32.mrf.mxu0
      %v3001 = vadd.f32 %v2957, %v3000
      %v3002 = vpop.f32.mrf.mxu0
      %v3003 = vadd.f32 %v2959, %v3002
      %3004 = vmatmul.bf16.gmra.mxu0 %v797
      %v3005 = vpop.f32.mrf.mxu0
      %v3006 = vadd.f32 %v2962, %v3005
      %v3007 = vpop.f32.mrf.mxu0
      %v3008 = vadd.f32 %v2964, %v3007
      %3009 = vmatmul.bf16.gmra.mxu0 %v802
      %v3010 = vpop.f32.mrf.mxu0
      %v3011 = vadd.f32 %v2967, %v3010
      %v3012 = vpop.f32.mrf.mxu0
      %v3013 = vadd.f32 %v2969, %v3012
      %3014 = vmatmul.bf16.gmra.mxu0 %v807
      %v3015 = vpop.f32.mrf.mxu0
      %v3016 = vadd.f32 %v2972, %v3015
      %v3017 = vpop.f32.mrf.mxu0
      %v3018 = vadd.f32 %v2974, %v3017
      %3019 = vmatmul.bf16.gmra.mxu0 %v812
      %v3020 = vpop.f32.mrf.mxu0
      %v3021 = vadd.f32 %v2977, %v3020
      %v3022 = vpop.f32.mrf.mxu0
      %v3023 = vadd.f32 %v2979, %v3022
      %3024 = vdwg.mxu0
      %3025 = vmatpush.bf16.msra.mxu0 %v2439
      %3026 = vmatpush.bf16.msra.mxu0 %v2429
      %3027 = vmatpush.bf16.msra.mxu0 %v2419
      %3028 = vmatpush.bf16.msra.mxu0 %v2409
      %3029 = vmatpush.bf16.msra.mxu0 %v2399
      %3030 = vmatpush.bf16.msra.mxu0 %v2389
      %3031 = vmatpush.bf16.msra.mxu0 %v2379
      %3032 = vmatpush.bf16.msra.mxu0 %v2369
      %3033 = vmatmul.bf16.gmra.mxu0 %v783
      %v3034 = vpop.f32.mrf.mxu0
      %v3035 = vadd.f32 %v2991, %v3034
      %v3036 = vpop.f32.mrf.mxu0
      %v3037 = vadd.f32 %v2993, %v3036
      %3038 = vmatmul.bf16.gmra.mxu0 %v788
      %v3039 = vpop.f32.mrf.mxu0
      %v3040 = vadd.f32 %v2996, %v3039
      %v3041 = vpop.f32.mrf.mxu0
      %v3042 = vadd.f32 %v2998, %v3041
      %3043 = vmatmul.bf16.gmra.mxu0 %v793
      %v3044 = vpop.f32.mrf.mxu0
      %v3045 = vadd.f32 %v3001, %v3044
      %v3046 = vpop.f32.mrf.mxu0
      %v3047 = vadd.f32 %v3003, %v3046
      %3048 = vmatmul.bf16.gmra.mxu0 %v798
      %v3049 = vpop.f32.mrf.mxu0
      %v3050 = vadd.f32 %v3006, %v3049
      %v3051 = vpop.f32.mrf.mxu0
      %v3052 = vadd.f32 %v3008, %v3051
      %3053 = vmatmul.bf16.gmra.mxu0 %v803
      %v3054 = vpop.f32.mrf.mxu0
      %v3055 = vadd.f32 %v3011, %v3054
      %v3056 = vpop.f32.mrf.mxu0
      %v3057 = vadd.f32 %v3013, %v3056
      %3058 = vmatmul.bf16.gmra.mxu0 %v808
      %v3059 = vpop.f32.mrf.mxu0
      %v3060 = vadd.f32 %v3016, %v3059
      %v3061 = vpop.f32.mrf.mxu0
      %v3062 = vadd.f32 %v3018, %v3061
      %3063 = vmatmul.bf16.gmra.mxu0 %v813
      %v3064 = vpop.f32.mrf.mxu0
      %v3065 = vadd.f32 %v3021, %v3064
      %v3066 = vpop.f32.mrf.mxu0
      %v3067 = vadd.f32 %v3023, %v3066
      %3068 = vdwg.mxu0
      %3069 = vmatpush.bf16.msra.mxu0 %v2120
      %3070 = vmatpush.bf16.msra.mxu0 %v2110
      %3071 = vmatpush.bf16.msra.mxu0 %v2100
      %3072 = vmatpush.bf16.msra.mxu0 %v2090
      %3073 = vmatpush.bf16.msra.mxu0 %v2080
      %3074 = vmatpush.bf16.msra.mxu0 %v2070
      %3075 = vmatpush.bf16.msra.mxu0 %v2060
      %3076 = vmatpush.bf16.msra.mxu0 %v2050
      %3077 = vmatmul.bf16.gmra.mxu0 %v779
      %v3078 = vpop.f32.mrf.mxu0
      %v3079 = vadd.f32 0.0, %v3078
      %v3080 = vpop.f32.mrf.mxu0
      %v3081 = vadd.f32 0.0, %v3080
      %3082 = vmatmul.bf16.gmra.mxu0 %v784
      %v3083 = vpop.f32.mrf.mxu0
      %v3084 = vadd.f32 0.0, %v3083
      %v3085 = vpop.f32.mrf.mxu0
      %v3086 = vadd.f32 0.0, %v3085
      %3087 = vmatmul.bf16.gmra.mxu0 %v789
      %v3088 = vpop.f32.mrf.mxu0
      %v3089 = vadd.f32 0.0, %v3088
      %v3090 = vpop.f32.mrf.mxu0
      %v3091 = vadd.f32 0.0, %v3090
      %3092 = vmatmul.bf16.gmra.mxu0 %v794
      %v3093 = vpop.f32.mrf.mxu0
      %v3094 = vadd.f32 0.0, %v3093
      %v3095 = vpop.f32.mrf.mxu0
      %v3096 = vadd.f32 0.0, %v3095
      %3097 = vmatmul.bf16.gmra.mxu0 %v799
      %v3098 = vpop.f32.mrf.mxu0
      %v3099 = vadd.f32 0.0, %v3098
      %v3100 = vpop.f32.mrf.mxu0
      %v3101 = vadd.f32 0.0, %v3100
      %3102 = vmatmul.bf16.gmra.mxu0 %v804
      %v3103 = vpop.f32.mrf.mxu0
      %v3104 = vadd.f32 0.0, %v3103
      %v3105 = vpop.f32.mrf.mxu0
      %v3106 = vadd.f32 0.0, %v3105
      %3107 = vmatmul.bf16.gmra.mxu0 %v809
      %v3108 = vpop.f32.mrf.mxu0
      %v3109 = vadd.f32 0.0, %v3108
      %v3110 = vpop.f32.mrf.mxu0
      %v3111 = vadd.f32 0.0, %v3110
      %3112 = vdwg.mxu0
      %3113 = vmatpush.bf16.msra.mxu0 %v2200
      %3114 = vmatpush.bf16.msra.mxu0 %v2190
      %3115 = vmatpush.bf16.msra.mxu0 %v2180
      %3116 = vmatpush.bf16.msra.mxu0 %v2170
      %3117 = vmatpush.bf16.msra.mxu0 %v2160
      %3118 = vmatpush.bf16.msra.mxu0 %v2150
      %3119 = vmatpush.bf16.msra.mxu0 %v2140
      %3120 = vmatpush.bf16.msra.mxu0 %v2130
      %3121 = vmatmul.bf16.gmra.mxu0 %v780
      %v3122 = vpop.f32.mrf.mxu0
      %v3123 = vadd.f32 %v3079, %v3122
      %v3124 = vpop.f32.mrf.mxu0
      %v3125 = vadd.f32 %v3081, %v3124
      %3126 = vmatmul.bf16.gmra.mxu0 %v785
      %v3127 = vpop.f32.mrf.mxu0
      %v3128 = vadd.f32 %v3084, %v3127
      %v3129 = vpop.f32.mrf.mxu0
      %v3130 = vadd.f32 %v3086, %v3129
      %3131 = vmatmul.bf16.gmra.mxu0 %v790
      %v3132 = vpop.f32.mrf.mxu0
      %v3133 = vadd.f32 %v3089, %v3132
      %v3134 = vpop.f32.mrf.mxu0
      %v3135 = vadd.f32 %v3091, %v3134
      %3136 = vmatmul.bf16.gmra.mxu0 %v795
      %v3137 = vpop.f32.mrf.mxu0
      %v3138 = vadd.f32 %v3094, %v3137
      %v3139 = vpop.f32.mrf.mxu0
      %v3140 = vadd.f32 %v3096, %v3139
      %3141 = vmatmul.bf16.gmra.mxu0 %v800
      %v3142 = vpop.f32.mrf.mxu0
      %v3143 = vadd.f32 %v3099, %v3142
      %v3144 = vpop.f32.mrf.mxu0
      %v3145 = vadd.f32 %v3101, %v3144
      %3146 = vmatmul.bf16.gmra.mxu0 %v805
      %v3147 = vpop.f32.mrf.mxu0
      %v3148 = vadd.f32 %v3104, %v3147
      %v3149 = vpop.f32.mrf.mxu0
      %v3150 = vadd.f32 %v3106, %v3149
      %3151 = vmatmul.bf16.gmra.mxu0 %v810
      %v3152 = vpop.f32.mrf.mxu0
      %v3153 = vadd.f32 %v3109, %v3152
      %v3154 = vpop.f32.mrf.mxu0
      %v3155 = vadd.f32 %v3111, %v3154
      %3156 = vdwg.mxu0
      %3157 = vmatpush.bf16.msra.mxu0 %v2280
      %3158 = vmatpush.bf16.msra.mxu0 %v2270
      %3159 = vmatpush.bf16.msra.mxu0 %v2260
      %3160 = vmatpush.bf16.msra.mxu0 %v2250
      %3161 = vmatpush.bf16.msra.mxu0 %v2240
      %3162 = vmatpush.bf16.msra.mxu0 %v2230
      %3163 = vmatpush.bf16.msra.mxu0 %v2220
      %3164 = vmatpush.bf16.msra.mxu0 %v2210
      %3165 = vmatmul.bf16.gmra.mxu0 %v781
      %v3166 = vpop.f32.mrf.mxu0
      %v3167 = vadd.f32 %v3123, %v3166
      %v3168 = vpop.f32.mrf.mxu0
      %v3169 = vadd.f32 %v3125, %v3168
      %3170 = vmatmul.bf16.gmra.mxu0 %v786
      %v3171 = vpop.f32.mrf.mxu0
      %v3172 = vadd.f32 %v3128, %v3171
      %v3173 = vpop.f32.mrf.mxu0
      %v3174 = vadd.f32 %v3130, %v3173
      %3175 = vmatmul.bf16.gmra.mxu0 %v791
      %v3176 = vpop.f32.mrf.mxu0
      %v3177 = vadd.f32 %v3133, %v3176
      %v3178 = vpop.f32.mrf.mxu0
      %v3179 = vadd.f32 %v3135, %v3178
      %3180 = vmatmul.bf16.gmra.mxu0 %v796
      %v3181 = vpop.f32.mrf.mxu0
      %v3182 = vadd.f32 %v3138, %v3181
      %v3183 = vpop.f32.mrf.mxu0
      %v3184 = vadd.f32 %v3140, %v3183
      %3185 = vmatmul.bf16.gmra.mxu0 %v801
      %v3186 = vpop.f32.mrf.mxu0
      %v3187 = vadd.f32 %v3143, %v3186
      %v3188 = vpop.f32.mrf.mxu0
      %v3189 = vadd.f32 %v3145, %v3188
      %3190 = vmatmul.bf16.gmra.mxu0 %v806
      %v3191 = vpop.f32.mrf.mxu0
      %v3192 = vadd.f32 %v3148, %v3191
      %v3193 = vpop.f32.mrf.mxu0
      %v3194 = vadd.f32 %v3150, %v3193
      %3195 = vmatmul.bf16.gmra.mxu0 %v811
      %v3196 = vpop.f32.mrf.mxu0
      %v3197 = vadd.f32 %v3153, %v3196
      %v3198 = vpop.f32.mrf.mxu0
      %v3199 = vadd.f32 %v3155, %v3198
      %3200 = vdwg.mxu0
      %3201 = vmatpush.bf16.msra.mxu0 %v2360
      %3202 = vmatpush.bf16.msra.mxu0 %v2350
      %3203 = vmatpush.bf16.msra.mxu0 %v2340
      %3204 = vmatpush.bf16.msra.mxu0 %v2330
      %3205 = vmatpush.bf16.msra.mxu0 %v2320
      %3206 = vmatpush.bf16.msra.mxu0 %v2310
      %3207 = vmatpush.bf16.msra.mxu0 %v2300
      %3208 = vmatpush.bf16.msra.mxu0 %v2290
      %3209 = vmatmul.bf16.gmra.mxu0 %v782
      %v3210 = vpop.f32.mrf.mxu0
      %v3211 = vadd.f32 %v3167, %v3210
      %v3212 = vpop.f32.mrf.mxu0
      %v3213 = vadd.f32 %v3169, %v3212
      %3214 = vmatmul.bf16.gmra.mxu0 %v787
      %v3215 = vpop.f32.mrf.mxu0
      %v3216 = vadd.f32 %v3172, %v3215
      %v3217 = vpop.f32.mrf.mxu0
      %v3218 = vadd.f32 %v3174, %v3217
      %3219 = vmatmul.bf16.gmra.mxu0 %v792
      %v3220 = vpop.f32.mrf.mxu0
      %v3221 = vadd.f32 %v3177, %v3220
      %v3222 = vpop.f32.mrf.mxu0
      %v3223 = vadd.f32 %v3179, %v3222
      %3224 = vmatmul.bf16.gmra.mxu0 %v797
      %v3225 = vpop.f32.mrf.mxu0
      %v3226 = vadd.f32 %v3182, %v3225
      %v3227 = vpop.f32.mrf.mxu0
      %v3228 = vadd.f32 %v3184, %v3227
      %3229 = vmatmul.bf16.gmra.mxu0 %v802
      %v3230 = vpop.f32.mrf.mxu0
      %v3231 = vadd.f32 %v3187, %v3230
      %v3232 = vpop.f32.mrf.mxu0
      %v3233 = vadd.f32 %v3189, %v3232
      %3234 = vmatmul.bf16.gmra.mxu0 %v807
      %v3235 = vpop.f32.mrf.mxu0
      %v3236 = vadd.f32 %v3192, %v3235
      %v3237 = vpop.f32.mrf.mxu0
      %v3238 = vadd.f32 %v3194, %v3237
      %3239 = vmatmul.bf16.gmra.mxu0 %v812
      %v3240 = vpop.f32.mrf.mxu0
      %v3241 = vadd.f32 %v3197, %v3240
      %v3242 = vpop.f32.mrf.mxu0
      %v3243 = vadd.f32 %v3199, %v3242
      %3244 = vdwg.mxu0
      %3245 = vmatpush.bf16.msra.mxu0 %v2440
      %3246 = vmatpush.bf16.msra.mxu0 %v2430
      %3247 = vmatpush.bf16.msra.mxu0 %v2420
      %3248 = vmatpush.bf16.msra.mxu0 %v2410
      %3249 = vmatpush.bf16.msra.mxu0 %v2400
      %3250 = vmatpush.bf16.msra.mxu0 %v2390
      %3251 = vmatpush.bf16.msra.mxu0 %v2380
      %3252 = vmatpush.bf16.msra.mxu0 %v2370
      %3253 = vmatmul.bf16.gmra.mxu0 %v783
      %v3254 = vpop.f32.mrf.mxu0
      %v3255 = vadd.f32 %v3211, %v3254
      %v3256 = vpop.f32.mrf.mxu0
      %v3257 = vadd.f32 %v3213, %v3256
      %3258 = vmatmul.bf16.gmra.mxu0 %v788
      %v3259 = vpop.f32.mrf.mxu0
      %v3260 = vadd.f32 %v3216, %v3259
      %v3261 = vpop.f32.mrf.mxu0
      %v3262 = vadd.f32 %v3218, %v3261
      %3263 = vmatmul.bf16.gmra.mxu0 %v793
      %v3264 = vpop.f32.mrf.mxu0
      %v3265 = vadd.f32 %v3221, %v3264
      %v3266 = vpop.f32.mrf.mxu0
      %v3267 = vadd.f32 %v3223, %v3266
      %3268 = vmatmul.bf16.gmra.mxu0 %v798
      %v3269 = vpop.f32.mrf.mxu0
      %v3270 = vadd.f32 %v3226, %v3269
      %v3271 = vpop.f32.mrf.mxu0
      %v3272 = vadd.f32 %v3228, %v3271
      %3273 = vmatmul.bf16.gmra.mxu0 %v803
      %v3274 = vpop.f32.mrf.mxu0
      %v3275 = vadd.f32 %v3231, %v3274
      %v3276 = vpop.f32.mrf.mxu0
      %v3277 = vadd.f32 %v3233, %v3276
      %3278 = vmatmul.bf16.gmra.mxu0 %v808
      %v3279 = vpop.f32.mrf.mxu0
      %v3280 = vadd.f32 %v3236, %v3279
      %v3281 = vpop.f32.mrf.mxu0
      %v3282 = vadd.f32 %v3238, %v3281
      %3283 = vmatmul.bf16.gmra.mxu0 %v813
      %v3284 = vpop.f32.mrf.mxu0
      %v3285 = vadd.f32 %v3241, %v3284
      %v3286 = vpop.f32.mrf.mxu0
      %v3287 = vadd.f32 %v3243, %v3286
      %3288 = vdwg.mxu0
      %3289 = vmatpush.bf16.msra.mxu0 %v2121
      %3290 = vmatpush.bf16.msra.mxu0 %v2111
      %3291 = vmatpush.bf16.msra.mxu0 %v2101
      %3292 = vmatpush.bf16.msra.mxu0 %v2091
      %3293 = vmatpush.bf16.msra.mxu0 %v2081
      %3294 = vmatpush.bf16.msra.mxu0 %v2071
      %3295 = vmatpush.bf16.msra.mxu0 %v2061
      %3296 = vmatpush.bf16.msra.mxu0 %v2051
      %3297 = vmatmul.bf16.gmra.mxu0 %v779
      %v3298 = vpop.f32.mrf.mxu0
      %v3299 = vadd.f32 0.0, %v3298
      %v3300 = vpop.f32.mrf.mxu0
      %v3301 = vadd.f32 0.0, %v3300
      %3302 = vmatmul.bf16.gmra.mxu0 %v784
      %v3303 = vpop.f32.mrf.mxu0
      %v3304 = vadd.f32 0.0, %v3303
      %v3305 = vpop.f32.mrf.mxu0
      %v3306 = vadd.f32 0.0, %v3305
      %3307 = vmatmul.bf16.gmra.mxu0 %v789
      %v3308 = vpop.f32.mrf.mxu0
      %v3309 = vadd.f32 0.0, %v3308
      %v3310 = vpop.f32.mrf.mxu0
      %v3311 = vadd.f32 0.0, %v3310
      %3312 = vmatmul.bf16.gmra.mxu0 %v794
      %v3313 = vpop.f32.mrf.mxu0
      %v3314 = vadd.f32 0.0, %v3313
      %v3315 = vpop.f32.mrf.mxu0
      %v3316 = vadd.f32 0.0, %v3315
      %3317 = vmatmul.bf16.gmra.mxu0 %v799
      %v3318 = vpop.f32.mrf.mxu0
      %v3319 = vadd.f32 0.0, %v3318
      %v3320 = vpop.f32.mrf.mxu0
      %v3321 = vadd.f32 0.0, %v3320
      %3322 = vmatmul.bf16.gmra.mxu0 %v804
      %v3323 = vpop.f32.mrf.mxu0
      %v3324 = vadd.f32 0.0, %v3323
      %v3325 = vpop.f32.mrf.mxu0
      %v3326 = vadd.f32 0.0, %v3325
      %3327 = vmatmul.bf16.gmra.mxu0 %v809
      %v3328 = vpop.f32.mrf.mxu0
      %v3329 = vadd.f32 0.0, %v3328
      %v3330 = vpop.f32.mrf.mxu0
      %v3331 = vadd.f32 0.0, %v3330
      %3332 = vdwg.mxu0
      %3333 = vmatpush.bf16.msra.mxu0 %v2201
      %3334 = vmatpush.bf16.msra.mxu0 %v2191
      %3335 = vmatpush.bf16.msra.mxu0 %v2181
      %3336 = vmatpush.bf16.msra.mxu0 %v2171
      %3337 = vmatpush.bf16.msra.mxu0 %v2161
      %3338 = vmatpush.bf16.msra.mxu0 %v2151
      %3339 = vmatpush.bf16.msra.mxu0 %v2141
      %3340 = vmatpush.bf16.msra.mxu0 %v2131
      %3341 = vmatmul.bf16.gmra.mxu0 %v780
      %v3342 = vpop.f32.mrf.mxu0
      %v3343 = vadd.f32 %v3299, %v3342
      %v3344 = vpop.f32.mrf.mxu0
      %v3345 = vadd.f32 %v3301, %v3344
      %3346 = vmatmul.bf16.gmra.mxu0 %v785
      %v3347 = vpop.f32.mrf.mxu0
      %v3348 = vadd.f32 %v3304, %v3347
      %v3349 = vpop.f32.mrf.mxu0
      %v3350 = vadd.f32 %v3306, %v3349
      %3351 = vmatmul.bf16.gmra.mxu0 %v790
      %v3352 = vpop.f32.mrf.mxu0
      %v3353 = vadd.f32 %v3309, %v3352
      %v3354 = vpop.f32.mrf.mxu0
      %v3355 = vadd.f32 %v3311, %v3354
      %3356 = vmatmul.bf16.gmra.mxu0 %v795
      %v3357 = vpop.f32.mrf.mxu0
      %v3358 = vadd.f32 %v3314, %v3357
      %v3359 = vpop.f32.mrf.mxu0
      %v3360 = vadd.f32 %v3316, %v3359
      %3361 = vmatmul.bf16.gmra.mxu0 %v800
      %v3362 = vpop.f32.mrf.mxu0
      %v3363 = vadd.f32 %v3319, %v3362
      %v3364 = vpop.f32.mrf.mxu0
      %v3365 = vadd.f32 %v3321, %v3364
      %3366 = vmatmul.bf16.gmra.mxu0 %v805
      %v3367 = vpop.f32.mrf.mxu0
      %v3368 = vadd.f32 %v3324, %v3367
      %v3369 = vpop.f32.mrf.mxu0
      %v3370 = vadd.f32 %v3326, %v3369
      %3371 = vmatmul.bf16.gmra.mxu0 %v810
      %v3372 = vpop.f32.mrf.mxu0
      %v3373 = vadd.f32 %v3329, %v3372
      %v3374 = vpop.f32.mrf.mxu0
      %v3375 = vadd.f32 %v3331, %v3374
      %3376 = vdwg.mxu0
      %3377 = vmatpush.bf16.msra.mxu0 %v2281
      %3378 = vmatpush.bf16.msra.mxu0 %v2271
      %3379 = vmatpush.bf16.msra.mxu0 %v2261
      %3380 = vmatpush.bf16.msra.mxu0 %v2251
      %3381 = vmatpush.bf16.msra.mxu0 %v2241
      %3382 = vmatpush.bf16.msra.mxu0 %v2231
      %3383 = vmatpush.bf16.msra.mxu0 %v2221
      %3384 = vmatpush.bf16.msra.mxu0 %v2211
      %3385 = vmatmul.bf16.gmra.mxu0 %v781
      %v3386 = vpop.f32.mrf.mxu0
      %v3387 = vadd.f32 %v3343, %v3386
      %v3388 = vpop.f32.mrf.mxu0
      %v3389 = vadd.f32 %v3345, %v3388
      %3390 = vmatmul.bf16.gmra.mxu0 %v786
      %v3391 = vpop.f32.mrf.mxu0
      %v3392 = vadd.f32 %v3348, %v3391
      %v3393 = vpop.f32.mrf.mxu0
      %v3394 = vadd.f32 %v3350, %v3393
      %3395 = vmatmul.bf16.gmra.mxu0 %v791
      %v3396 = vpop.f32.mrf.mxu0
      %v3397 = vadd.f32 %v3353, %v3396
      %v3398 = vpop.f32.mrf.mxu0
      %v3399 = vadd.f32 %v3355, %v3398
      %3400 = vmatmul.bf16.gmra.mxu0 %v796
      %v3401 = vpop.f32.mrf.mxu0
      %v3402 = vadd.f32 %v3358, %v3401
      %v3403 = vpop.f32.mrf.mxu0
      %v3404 = vadd.f32 %v3360, %v3403
      %3405 = vmatmul.bf16.gmra.mxu0 %v801
      %v3406 = vpop.f32.mrf.mxu0
      %v3407 = vadd.f32 %v3363, %v3406
      %v3408 = vpop.f32.mrf.mxu0
      %v3409 = vadd.f32 %v3365, %v3408
      %3410 = vmatmul.bf16.gmra.mxu0 %v806
      %v3411 = vpop.f32.mrf.mxu0
      %v3412 = vadd.f32 %v3368, %v3411
      %v3413 = vpop.f32.mrf.mxu0
      %v3414 = vadd.f32 %v3370, %v3413
      %3415 = vmatmul.bf16.gmra.mxu0 %v811
      %v3416 = vpop.f32.mrf.mxu0
      %v3417 = vadd.f32 %v3373, %v3416
      %v3418 = vpop.f32.mrf.mxu0
      %v3419 = vadd.f32 %v3375, %v3418
      %3420 = vdwg.mxu0
      %3421 = vmatpush.bf16.msra.mxu0 %v2361
      %3422 = vmatpush.bf16.msra.mxu0 %v2351
      %3423 = vmatpush.bf16.msra.mxu0 %v2341
      %3424 = vmatpush.bf16.msra.mxu0 %v2331
      %3425 = vmatpush.bf16.msra.mxu0 %v2321
      %3426 = vmatpush.bf16.msra.mxu0 %v2311
      %3427 = vmatpush.bf16.msra.mxu0 %v2301
      %3428 = vmatpush.bf16.msra.mxu0 %v2291
      %3429 = vmatmul.bf16.gmra.mxu0 %v782
      %v3430 = vpop.f32.mrf.mxu0
      %v3431 = vadd.f32 %v3387, %v3430
      %v3432 = vpop.f32.mrf.mxu0
      %v3433 = vadd.f32 %v3389, %v3432
      %3434 = vmatmul.bf16.gmra.mxu0 %v787
      %v3435 = vpop.f32.mrf.mxu0
      %v3436 = vadd.f32 %v3392, %v3435
      %v3437 = vpop.f32.mrf.mxu0
      %v3438 = vadd.f32 %v3394, %v3437
      %3439 = vmatmul.bf16.gmra.mxu0 %v792
      %v3440 = vpop.f32.mrf.mxu0
      %v3441 = vadd.f32 %v3397, %v3440
      %v3442 = vpop.f32.mrf.mxu0
      %v3443 = vadd.f32 %v3399, %v3442
      %3444 = vmatmul.bf16.gmra.mxu0 %v797
      %v3445 = vpop.f32.mrf.mxu0
      %v3446 = vadd.f32 %v3402, %v3445
      %v3447 = vpop.f32.mrf.mxu0
      %v3448 = vadd.f32 %v3404, %v3447
      %3449 = vmatmul.bf16.gmra.mxu0 %v802
      %v3450 = vpop.f32.mrf.mxu0
      %v3451 = vadd.f32 %v3407, %v3450
      %v3452 = vpop.f32.mrf.mxu0
      %v3453 = vadd.f32 %v3409, %v3452
      %3454 = vmatmul.bf16.gmra.mxu0 %v807
      %v3455 = vpop.f32.mrf.mxu0
      %v3456 = vadd.f32 %v3412, %v3455
      %v3457 = vpop.f32.mrf.mxu0
      %v3458 = vadd.f32 %v3414, %v3457
      %3459 = vmatmul.bf16.gmra.mxu0 %v812
      %v3460 = vpop.f32.mrf.mxu0
      %v3461 = vadd.f32 %v3417, %v3460
      %v3462 = vpop.f32.mrf.mxu0
      %v3463 = vadd.f32 %v3419, %v3462
      %3464 = vdwg.mxu0
      %3465 = vmatpush.bf16.msra.mxu0 %v2441
      %3466 = vmatpush.bf16.msra.mxu0 %v2431
      %3467 = vmatpush.bf16.msra.mxu0 %v2421
      %3468 = vmatpush.bf16.msra.mxu0 %v2411
      %3469 = vmatpush.bf16.msra.mxu0 %v2401
      %3470 = vmatpush.bf16.msra.mxu0 %v2391
      %3471 = vmatpush.bf16.msra.mxu0 %v2381
      %3472 = vmatpush.bf16.msra.mxu0 %v2371
      %3473 = vmatmul.bf16.gmra.mxu0 %v783
      %v3474 = vpop.f32.mrf.mxu0
      %v3475 = vadd.f32 %v3431, %v3474
      %v3476 = vpop.f32.mrf.mxu0
      %v3477 = vadd.f32 %v3433, %v3476
      %3478 = vmatmul.bf16.gmra.mxu0 %v788
      %v3479 = vpop.f32.mrf.mxu0
      %v3480 = vadd.f32 %v3436, %v3479
      %v3481 = vpop.f32.mrf.mxu0
      %v3482 = vadd.f32 %v3438, %v3481
      %3483 = vmatmul.bf16.gmra.mxu0 %v793
      %v3484 = vpop.f32.mrf.mxu0
      %v3485 = vadd.f32 %v3441, %v3484
      %v3486 = vpop.f32.mrf.mxu0
      %v3487 = vadd.f32 %v3443, %v3486
      %3488 = vmatmul.bf16.gmra.mxu0 %v798
      %v3489 = vpop.f32.mrf.mxu0
      %v3490 = vadd.f32 %v3446, %v3489
      %v3491 = vpop.f32.mrf.mxu0
      %v3492 = vadd.f32 %v3448, %v3491
      %3493 = vmatmul.bf16.gmra.mxu0 %v803
      %v3494 = vpop.f32.mrf.mxu0
      %v3495 = vadd.f32 %v3451, %v3494
      %v3496 = vpop.f32.mrf.mxu0
      %v3497 = vadd.f32 %v3453, %v3496
      %3498 = vmatmul.bf16.gmra.mxu0 %v808
      %v3499 = vpop.f32.mrf.mxu0
      %v3500 = vadd.f32 %v3456, %v3499
      %v3501 = vpop.f32.mrf.mxu0
      %v3502 = vadd.f32 %v3458, %v3501
      %3503 = vmatmul.bf16.gmra.mxu0 %v813
      %v3504 = vpop.f32.mrf.mxu0
      %v3505 = vadd.f32 %v3461, %v3504
      %v3506 = vpop.f32.mrf.mxu0
      %v3507 = vadd.f32 %v3463, %v3506
      %3508 = vdwg.mxu0
      %3509 = vmatpush.bf16.msra.mxu0 %v2122
      %3510 = vmatpush.bf16.msra.mxu0 %v2112
      %3511 = vmatpush.bf16.msra.mxu0 %v2102
      %3512 = vmatpush.bf16.msra.mxu0 %v2092
      %3513 = vmatpush.bf16.msra.mxu0 %v2082
      %3514 = vmatpush.bf16.msra.mxu0 %v2072
      %3515 = vmatpush.bf16.msra.mxu0 %v2062
      %3516 = vmatpush.bf16.msra.mxu0 %v2052
      %3517 = vmatmul.bf16.gmra.mxu0 %v779
      %v3518 = vpop.f32.mrf.mxu0
      %v3519 = vadd.f32 0.0, %v3518
      %v3520 = vpop.f32.mrf.mxu0
      %v3521 = vadd.f32 0.0, %v3520
      %3522 = vmatmul.bf16.gmra.mxu0 %v784
      %v3523 = vpop.f32.mrf.mxu0
      %v3524 = vadd.f32 0.0, %v3523
      %v3525 = vpop.f32.mrf.mxu0
      %v3526 = vadd.f32 0.0, %v3525
      %3527 = vmatmul.bf16.gmra.mxu0 %v789
      %v3528 = vpop.f32.mrf.mxu0
      %v3529 = vadd.f32 0.0, %v3528
      %v3530 = vpop.f32.mrf.mxu0
      %v3531 = vadd.f32 0.0, %v3530
      %3532 = vmatmul.bf16.gmra.mxu0 %v794
      %v3533 = vpop.f32.mrf.mxu0
      %v3534 = vadd.f32 0.0, %v3533
      %v3535 = vpop.f32.mrf.mxu0
      %v3536 = vadd.f32 0.0, %v3535
      %3537 = vmatmul.bf16.gmra.mxu0 %v799
      %v3538 = vpop.f32.mrf.mxu0
      %v3539 = vadd.f32 0.0, %v3538
      %v3540 = vpop.f32.mrf.mxu0
      %v3541 = vadd.f32 0.0, %v3540
      %3542 = vmatmul.bf16.gmra.mxu0 %v804
      %v3543 = vpop.f32.mrf.mxu0
      %v3544 = vadd.f32 0.0, %v3543
      %v3545 = vpop.f32.mrf.mxu0
      %v3546 = vadd.f32 0.0, %v3545
      %3547 = vmatmul.bf16.gmra.mxu0 %v809
      %v3548 = vpop.f32.mrf.mxu0
      %v3549 = vadd.f32 0.0, %v3548
      %v3550 = vpop.f32.mrf.mxu0
      %v3551 = vadd.f32 0.0, %v3550
      %3552 = vdwg.mxu0
      %3553 = vmatpush.bf16.msra.mxu0 %v2202
      %3554 = vmatpush.bf16.msra.mxu0 %v2192
      %3555 = vmatpush.bf16.msra.mxu0 %v2182
      %3556 = vmatpush.bf16.msra.mxu0 %v2172
      %3557 = vmatpush.bf16.msra.mxu0 %v2162
      %3558 = vmatpush.bf16.msra.mxu0 %v2152
      %3559 = vmatpush.bf16.msra.mxu0 %v2142
      %3560 = vmatpush.bf16.msra.mxu0 %v2132
      %3561 = vmatmul.bf16.gmra.mxu0 %v780
      %v3562 = vpop.f32.mrf.mxu0
      %v3563 = vadd.f32 %v3519, %v3562
      %v3564 = vpop.f32.mrf.mxu0
      %v3565 = vadd.f32 %v3521, %v3564
      %3566 = vmatmul.bf16.gmra.mxu0 %v785
      %v3567 = vpop.f32.mrf.mxu0
      %v3568 = vadd.f32 %v3524, %v3567
      %v3569 = vpop.f32.mrf.mxu0
      %v3570 = vadd.f32 %v3526, %v3569
      %3571 = vmatmul.bf16.gmra.mxu0 %v790
      %v3572 = vpop.f32.mrf.mxu0
      %v3573 = vadd.f32 %v3529, %v3572
      %v3574 = vpop.f32.mrf.mxu0
      %v3575 = vadd.f32 %v3531, %v3574
      %3576 = vmatmul.bf16.gmra.mxu0 %v795
      %v3577 = vpop.f32.mrf.mxu0
      %v3578 = vadd.f32 %v3534, %v3577
      %v3579 = vpop.f32.mrf.mxu0
      %v3580 = vadd.f32 %v3536, %v3579
      %3581 = vmatmul.bf16.gmra.mxu0 %v800
      %v3582 = vpop.f32.mrf.mxu0
      %v3583 = vadd.f32 %v3539, %v3582
      %v3584 = vpop.f32.mrf.mxu0
      %v3585 = vadd.f32 %v3541, %v3584
      %3586 = vmatmul.bf16.gmra.mxu0 %v805
      %v3587 = vpop.f32.mrf.mxu0
      %v3588 = vadd.f32 %v3544, %v3587
      %v3589 = vpop.f32.mrf.mxu0
      %v3590 = vadd.f32 %v3546, %v3589
      %3591 = vmatmul.bf16.gmra.mxu0 %v810
      %v3592 = vpop.f32.mrf.mxu0
      %v3593 = vadd.f32 %v3549, %v3592
      %v3594 = vpop.f32.mrf.mxu0
      %v3595 = vadd.f32 %v3551, %v3594
      %3596 = vdwg.mxu0
      %3597 = vmatpush.bf16.msra.mxu0 %v2282
      %3598 = vmatpush.bf16.msra.mxu0 %v2272
      %3599 = vmatpush.bf16.msra.mxu0 %v2262
      %3600 = vmatpush.bf16.msra.mxu0 %v2252
      %3601 = vmatpush.bf16.msra.mxu0 %v2242
      %3602 = vmatpush.bf16.msra.mxu0 %v2232
      %3603 = vmatpush.bf16.msra.mxu0 %v2222
      %3604 = vmatpush.bf16.msra.mxu0 %v2212
      %3605 = vmatmul.bf16.gmra.mxu0 %v781
      %v3606 = vpop.f32.mrf.mxu0
      %v3607 = vadd.f32 %v3563, %v3606
      %v3608 = vpop.f32.mrf.mxu0
      %v3609 = vadd.f32 %v3565, %v3608
      %3610 = vmatmul.bf16.gmra.mxu0 %v786
      %v3611 = vpop.f32.mrf.mxu0
      %v3612 = vadd.f32 %v3568, %v3611
      %v3613 = vpop.f32.mrf.mxu0
      %v3614 = vadd.f32 %v3570, %v3613
      %3615 = vmatmul.bf16.gmra.mxu0 %v791
      %v3616 = vpop.f32.mrf.mxu0
      %v3617 = vadd.f32 %v3573, %v3616
      %v3618 = vpop.f32.mrf.mxu0
      %v3619 = vadd.f32 %v3575, %v3618
      %3620 = vmatmul.bf16.gmra.mxu0 %v796
      %v3621 = vpop.f32.mrf.mxu0
      %v3622 = vadd.f32 %v3578, %v3621
      %v3623 = vpop.f32.mrf.mxu0
      %v3624 = vadd.f32 %v3580, %v3623
      %3625 = vmatmul.bf16.gmra.mxu0 %v801
      %v3626 = vpop.f32.mrf.mxu0
      %v3627 = vadd.f32 %v3583, %v3626
      %v3628 = vpop.f32.mrf.mxu0
      %v3629 = vadd.f32 %v3585, %v3628
      %3630 = vmatmul.bf16.gmra.mxu0 %v806
      %v3631 = vpop.f32.mrf.mxu0
      %v3632 = vadd.f32 %v3588, %v3631
      %v3633 = vpop.f32.mrf.mxu0
      %v3634 = vadd.f32 %v3590, %v3633
      %3635 = vmatmul.bf16.gmra.mxu0 %v811
      %v3636 = vpop.f32.mrf.mxu0
      %v3637 = vadd.f32 %v3593, %v3636
      %v3638 = vpop.f32.mrf.mxu0
      %v3639 = vadd.f32 %v3595, %v3638
      %3640 = vdwg.mxu0
      %3641 = vmatpush.bf16.msra.mxu0 %v2362
      %3642 = vmatpush.bf16.msra.mxu0 %v2352
      %3643 = vmatpush.bf16.msra.mxu0 %v2342
      %3644 = vmatpush.bf16.msra.mxu0 %v2332
      %3645 = vmatpush.bf16.msra.mxu0 %v2322
      %3646 = vmatpush.bf16.msra.mxu0 %v2312
      %3647 = vmatpush.bf16.msra.mxu0 %v2302
      %3648 = vmatpush.bf16.msra.mxu0 %v2292
      %3649 = vmatmul.bf16.gmra.mxu0 %v782
      %v3650 = vpop.f32.mrf.mxu0
      %v3651 = vadd.f32 %v3607, %v3650
      %v3652 = vpop.f32.mrf.mxu0
      %v3653 = vadd.f32 %v3609, %v3652
      %3654 = vmatmul.bf16.gmra.mxu0 %v787
      %v3655 = vpop.f32.mrf.mxu0
      %v3656 = vadd.f32 %v3612, %v3655
      %v3657 = vpop.f32.mrf.mxu0
      %v3658 = vadd.f32 %v3614, %v3657
      %3659 = vmatmul.bf16.gmra.mxu0 %v792
      %v3660 = vpop.f32.mrf.mxu0
      %v3661 = vadd.f32 %v3617, %v3660
      %v3662 = vpop.f32.mrf.mxu0
      %v3663 = vadd.f32 %v3619, %v3662
      %3664 = vmatmul.bf16.gmra.mxu0 %v797
      %v3665 = vpop.f32.mrf.mxu0
      %v3666 = vadd.f32 %v3622, %v3665
      %v3667 = vpop.f32.mrf.mxu0
      %v3668 = vadd.f32 %v3624, %v3667
      %3669 = vmatmul.bf16.gmra.mxu0 %v802
      %v3670 = vpop.f32.mrf.mxu0
      %v3671 = vadd.f32 %v3627, %v3670
      %v3672 = vpop.f32.mrf.mxu0
      %v3673 = vadd.f32 %v3629, %v3672
      %3674 = vmatmul.bf16.gmra.mxu0 %v807
      %v3675 = vpop.f32.mrf.mxu0
      %v3676 = vadd.f32 %v3632, %v3675
      %v3677 = vpop.f32.mrf.mxu0
      %v3678 = vadd.f32 %v3634, %v3677
      %3679 = vmatmul.bf16.gmra.mxu0 %v812
      %v3680 = vpop.f32.mrf.mxu0
      %v3681 = vadd.f32 %v3637, %v3680
      %v3682 = vpop.f32.mrf.mxu0
      %v3683 = vadd.f32 %v3639, %v3682
      %3684 = vdwg.mxu0
      %3685 = vmatpush.bf16.msra.mxu0 %v2442
      %3686 = vmatpush.bf16.msra.mxu0 %v2432
      %3687 = vmatpush.bf16.msra.mxu0 %v2422
      %3688 = vmatpush.bf16.msra.mxu0 %v2412
      %3689 = vmatpush.bf16.msra.mxu0 %v2402
      %3690 = vmatpush.bf16.msra.mxu0 %v2392
      %3691 = vmatpush.bf16.msra.mxu0 %v2382
      %3692 = vmatpush.bf16.msra.mxu0 %v2372
      %3693 = vmatmul.bf16.gmra.mxu0 %v783
      %v3694 = vpop.f32.mrf.mxu0
      %v3695 = vadd.f32 %v3651, %v3694
      %v3696 = vpop.f32.mrf.mxu0
      %v3697 = vadd.f32 %v3653, %v3696
      %3698 = vmatmul.bf16.gmra.mxu0 %v788
      %v3699 = vpop.f32.mrf.mxu0
      %v3700 = vadd.f32 %v3656, %v3699
      %v3701 = vpop.f32.mrf.mxu0
      %v3702 = vadd.f32 %v3658, %v3701
      %3703 = vmatmul.bf16.gmra.mxu0 %v793
      %v3704 = vpop.f32.mrf.mxu0
      %v3705 = vadd.f32 %v3661, %v3704
      %v3706 = vpop.f32.mrf.mxu0
      %v3707 = vadd.f32 %v3663, %v3706
      %3708 = vmatmul.bf16.gmra.mxu0 %v798
      %v3709 = vpop.f32.mrf.mxu0
      %v3710 = vadd.f32 %v3666, %v3709
      %v3711 = vpop.f32.mrf.mxu0
      %v3712 = vadd.f32 %v3668, %v3711
      %3713 = vmatmul.bf16.gmra.mxu0 %v803
      %v3714 = vpop.f32.mrf.mxu0
      %v3715 = vadd.f32 %v3671, %v3714
      %v3716 = vpop.f32.mrf.mxu0
      %v3717 = vadd.f32 %v3673, %v3716
      %3718 = vmatmul.bf16.gmra.mxu0 %v808
      %v3719 = vpop.f32.mrf.mxu0
      %v3720 = vadd.f32 %v3676, %v3719
      %v3721 = vpop.f32.mrf.mxu0
      %v3722 = vadd.f32 %v3678, %v3721
      %3723 = vmatmul.bf16.gmra.mxu0 %v813
      %v3724 = vpop.f32.mrf.mxu0
      %v3725 = vadd.f32 %v3681, %v3724
      %v3726 = vpop.f32.mrf.mxu0
      %v3727 = vadd.f32 %v3683, %v3726
      %3728 = vdwg.mxu0
      %3729 = vmatpush.bf16.msra.mxu0 %v2123
      %3730 = vmatpush.bf16.msra.mxu0 %v2113
      %3731 = vmatpush.bf16.msra.mxu0 %v2103
      %3732 = vmatpush.bf16.msra.mxu0 %v2093
      %3733 = vmatpush.bf16.msra.mxu0 %v2083
      %3734 = vmatpush.bf16.msra.mxu0 %v2073
      %3735 = vmatpush.bf16.msra.mxu0 %v2063
      %3736 = vmatpush.bf16.msra.mxu0 %v2053
      %3737 = vmatmul.bf16.gmra.mxu0 %v779
      %v3738 = vpop.f32.mrf.mxu0
      %v3739 = vadd.f32 0.0, %v3738
      %v3740 = vpop.f32.mrf.mxu0
      %v3741 = vadd.f32 0.0, %v3740
      %3742 = vmatmul.bf16.gmra.mxu0 %v784
      %v3743 = vpop.f32.mrf.mxu0
      %v3744 = vadd.f32 0.0, %v3743
      %v3745 = vpop.f32.mrf.mxu0
      %v3746 = vadd.f32 0.0, %v3745
      %3747 = vmatmul.bf16.gmra.mxu0 %v789
      %v3748 = vpop.f32.mrf.mxu0
      %v3749 = vadd.f32 0.0, %v3748
      %v3750 = vpop.f32.mrf.mxu0
      %v3751 = vadd.f32 0.0, %v3750
      %3752 = vmatmul.bf16.gmra.mxu0 %v794
      %v3753 = vpop.f32.mrf.mxu0
      %v3754 = vadd.f32 0.0, %v3753
      %v3755 = vpop.f32.mrf.mxu0
      %v3756 = vadd.f32 0.0, %v3755
      %3757 = vmatmul.bf16.gmra.mxu0 %v799
      %v3758 = vpop.f32.mrf.mxu0
      %v3759 = vadd.f32 0.0, %v3758
      %v3760 = vpop.f32.mrf.mxu0
      %v3761 = vadd.f32 0.0, %v3760
      %3762 = vmatmul.bf16.gmra.mxu0 %v804
      %v3763 = vpop.f32.mrf.mxu0
      %v3764 = vadd.f32 0.0, %v3763
      %v3765 = vpop.f32.mrf.mxu0
      %v3766 = vadd.f32 0.0, %v3765
      %3767 = vmatmul.bf16.gmra.mxu0 %v809
      %v3768 = vpop.f32.mrf.mxu0
      %v3769 = vadd.f32 0.0, %v3768
      %v3770 = vpop.f32.mrf.mxu0
      %v3771 = vadd.f32 0.0, %v3770
      %3772 = vdwg.mxu0
      %3773 = vmatpush.bf16.msra.mxu0 %v2203
      %3774 = vmatpush.bf16.msra.mxu0 %v2193
      %3775 = vmatpush.bf16.msra.mxu0 %v2183
      %3776 = vmatpush.bf16.msra.mxu0 %v2173
      %3777 = vmatpush.bf16.msra.mxu0 %v2163
      %3778 = vmatpush.bf16.msra.mxu0 %v2153
      %3779 = vmatpush.bf16.msra.mxu0 %v2143
      %3780 = vmatpush.bf16.msra.mxu0 %v2133
      %3781 = vmatmul.bf16.gmra.mxu0 %v780
      %v3782 = vpop.f32.mrf.mxu0
      %v3783 = vadd.f32 %v3739, %v3782
      %v3784 = vpop.f32.mrf.mxu0
      %v3785 = vadd.f32 %v3741, %v3784
      %3786 = vmatmul.bf16.gmra.mxu0 %v785
      %v3787 = vpop.f32.mrf.mxu0
      %v3788 = vadd.f32 %v3744, %v3787
      %v3789 = vpop.f32.mrf.mxu0
      %v3790 = vadd.f32 %v3746, %v3789
      %3791 = vmatmul.bf16.gmra.mxu0 %v790
      %v3792 = vpop.f32.mrf.mxu0
      %v3793 = vadd.f32 %v3749, %v3792
      %v3794 = vpop.f32.mrf.mxu0
      %v3795 = vadd.f32 %v3751, %v3794
      %3796 = vmatmul.bf16.gmra.mxu0 %v795
      %v3797 = vpop.f32.mrf.mxu0
      %v3798 = vadd.f32 %v3754, %v3797
      %v3799 = vpop.f32.mrf.mxu0
      %v3800 = vadd.f32 %v3756, %v3799
      %3801 = vmatmul.bf16.gmra.mxu0 %v800
      %v3802 = vpop.f32.mrf.mxu0
      %v3803 = vadd.f32 %v3759, %v3802
      %v3804 = vpop.f32.mrf.mxu0
      %v3805 = vadd.f32 %v3761, %v3804
      %3806 = vmatmul.bf16.gmra.mxu0 %v805
      %v3807 = vpop.f32.mrf.mxu0
      %v3808 = vadd.f32 %v3764, %v3807
      %v3809 = vpop.f32.mrf.mxu0
      %v3810 = vadd.f32 %v3766, %v3809
      %3811 = vmatmul.bf16.gmra.mxu0 %v810
      %v3812 = vpop.f32.mrf.mxu0
      %v3813 = vadd.f32 %v3769, %v3812
      %v3814 = vpop.f32.mrf.mxu0
      %v3815 = vadd.f32 %v3771, %v3814
      %3816 = vdwg.mxu0
      %3817 = vmatpush.bf16.msra.mxu0 %v2283
      %3818 = vmatpush.bf16.msra.mxu0 %v2273
      %3819 = vmatpush.bf16.msra.mxu0 %v2263
      %3820 = vmatpush.bf16.msra.mxu0 %v2253
      %3821 = vmatpush.bf16.msra.mxu0 %v2243
      %3822 = vmatpush.bf16.msra.mxu0 %v2233
      %3823 = vmatpush.bf16.msra.mxu0 %v2223
      %3824 = vmatpush.bf16.msra.mxu0 %v2213
      %3825 = vmatmul.bf16.gmra.mxu0 %v781
      %v3826 = vpop.f32.mrf.mxu0
      %v3827 = vadd.f32 %v3783, %v3826
      %v3828 = vpop.f32.mrf.mxu0
      %v3829 = vadd.f32 %v3785, %v3828
      %3830 = vmatmul.bf16.gmra.mxu0 %v786
      %v3831 = vpop.f32.mrf.mxu0
      %v3832 = vadd.f32 %v3788, %v3831
      %v3833 = vpop.f32.mrf.mxu0
      %v3834 = vadd.f32 %v3790, %v3833
      %3835 = vmatmul.bf16.gmra.mxu0 %v791
      %v3836 = vpop.f32.mrf.mxu0
      %v3837 = vadd.f32 %v3793, %v3836
      %v3838 = vpop.f32.mrf.mxu0
      %v3839 = vadd.f32 %v3795, %v3838
      %3840 = vmatmul.bf16.gmra.mxu0 %v796
      %v3841 = vpop.f32.mrf.mxu0
      %v3842 = vadd.f32 %v3798, %v3841
      %v3843 = vpop.f32.mrf.mxu0
      %v3844 = vadd.f32 %v3800, %v3843
      %3845 = vmatmul.bf16.gmra.mxu0 %v801
      %v3846 = vpop.f32.mrf.mxu0
      %v3847 = vadd.f32 %v3803, %v3846
      %v3848 = vpop.f32.mrf.mxu0
      %v3849 = vadd.f32 %v3805, %v3848
      %3850 = vmatmul.bf16.gmra.mxu0 %v806
      %v3851 = vpop.f32.mrf.mxu0
      %v3852 = vadd.f32 %v3808, %v3851
      %v3853 = vpop.f32.mrf.mxu0
      %v3854 = vadd.f32 %v3810, %v3853
      %3855 = vmatmul.bf16.gmra.mxu0 %v811
      %v3856 = vpop.f32.mrf.mxu0
      %v3857 = vadd.f32 %v3813, %v3856
      %v3858 = vpop.f32.mrf.mxu0
      %v3859 = vadd.f32 %v3815, %v3858
      %3860 = vdwg.mxu0
      %3861 = vmatpush.bf16.msra.mxu0 %v2363
      %3862 = vmatpush.bf16.msra.mxu0 %v2353
      %3863 = vmatpush.bf16.msra.mxu0 %v2343
      %3864 = vmatpush.bf16.msra.mxu0 %v2333
      %3865 = vmatpush.bf16.msra.mxu0 %v2323
      %3866 = vmatpush.bf16.msra.mxu0 %v2313
      %3867 = vmatpush.bf16.msra.mxu0 %v2303
      %3868 = vmatpush.bf16.msra.mxu0 %v2293
      %3869 = vmatmul.bf16.gmra.mxu0 %v782
      %v3870 = vpop.f32.mrf.mxu0
      %v3871 = vadd.f32 %v3827, %v3870
      %v3872 = vpop.f32.mrf.mxu0
      %v3873 = vadd.f32 %v3829, %v3872
      %3874 = vmatmul.bf16.gmra.mxu0 %v787
      %v3875 = vpop.f32.mrf.mxu0
      %v3876 = vadd.f32 %v3832, %v3875
      %v3877 = vpop.f32.mrf.mxu0
      %v3878 = vadd.f32 %v3834, %v3877
      %3879 = vmatmul.bf16.gmra.mxu0 %v792
      %v3880 = vpop.f32.mrf.mxu0
      %v3881 = vadd.f32 %v3837, %v3880
      %v3882 = vpop.f32.mrf.mxu0
      %v3883 = vadd.f32 %v3839, %v3882
      %3884 = vmatmul.bf16.gmra.mxu0 %v797
      %v3885 = vpop.f32.mrf.mxu0
      %v3886 = vadd.f32 %v3842, %v3885
      %v3887 = vpop.f32.mrf.mxu0
      %v3888 = vadd.f32 %v3844, %v3887
      %3889 = vmatmul.bf16.gmra.mxu0 %v802
      %v3890 = vpop.f32.mrf.mxu0
      %v3891 = vadd.f32 %v3847, %v3890
      %v3892 = vpop.f32.mrf.mxu0
      %v3893 = vadd.f32 %v3849, %v3892
      %3894 = vmatmul.bf16.gmra.mxu0 %v807
      %v3895 = vpop.f32.mrf.mxu0
      %v3896 = vadd.f32 %v3852, %v3895
      %v3897 = vpop.f32.mrf.mxu0
      %v3898 = vadd.f32 %v3854, %v3897
      %3899 = vmatmul.bf16.gmra.mxu0 %v812
      %v3900 = vpop.f32.mrf.mxu0
      %v3901 = vadd.f32 %v3857, %v3900
      %v3902 = vpop.f32.mrf.mxu0
      %v3903 = vadd.f32 %v3859, %v3902
      %3904 = vdwg.mxu0
      %3905 = vmatpush.bf16.msra.mxu0 %v2443
      %3906 = vmatpush.bf16.msra.mxu0 %v2433
      %3907 = vmatpush.bf16.msra.mxu0 %v2423
      %3908 = vmatpush.bf16.msra.mxu0 %v2413
      %3909 = vmatpush.bf16.msra.mxu0 %v2403
      %3910 = vmatpush.bf16.msra.mxu0 %v2393
      %3911 = vmatpush.bf16.msra.mxu0 %v2383
      %3912 = vmatpush.bf16.msra.mxu0 %v2373
      %3913 = vmatmul.bf16.gmra.mxu0 %v783
      %v3914 = vpop.f32.mrf.mxu0
      %v3915 = vadd.f32 %v3871, %v3914
      %v3916 = vpop.f32.mrf.mxu0
      %v3917 = vadd.f32 %v3873, %v3916
      %3918 = vmatmul.bf16.gmra.mxu0 %v788
      %v3919 = vpop.f32.mrf.mxu0
      %v3920 = vadd.f32 %v3876, %v3919
      %v3921 = vpop.f32.mrf.mxu0
      %v3922 = vadd.f32 %v3878, %v3921
      %3923 = vmatmul.bf16.gmra.mxu0 %v793
      %v3924 = vpop.f32.mrf.mxu0
      %v3925 = vadd.f32 %v3881, %v3924
      %v3926 = vpop.f32.mrf.mxu0
      %v3927 = vadd.f32 %v3883, %v3926
      %3928 = vmatmul.bf16.gmra.mxu0 %v798
      %v3929 = vpop.f32.mrf.mxu0
      %v3930 = vadd.f32 %v3886, %v3929
      %v3931 = vpop.f32.mrf.mxu0
      %v3932 = vadd.f32 %v3888, %v3931
      %3933 = vmatmul.bf16.gmra.mxu0 %v803
      %v3934 = vpop.f32.mrf.mxu0
      %v3935 = vadd.f32 %v3891, %v3934
      %v3936 = vpop.f32.mrf.mxu0
      %v3937 = vadd.f32 %v3893, %v3936
      %3938 = vmatmul.bf16.gmra.mxu0 %v808
      %v3939 = vpop.f32.mrf.mxu0
      %v3940 = vadd.f32 %v3896, %v3939
      %v3941 = vpop.f32.mrf.mxu0
      %v3942 = vadd.f32 %v3898, %v3941
      %3943 = vmatmul.bf16.gmra.mxu0 %v813
      %v3944 = vpop.f32.mrf.mxu0
      %v3945 = vadd.f32 %v3901, %v3944
      %v3946 = vpop.f32.mrf.mxu0
      %v3947 = vadd.f32 %v3903, %v3946
      %3948 = vdwg.mxu0
      %3949 = vmatpush.bf16.msra.mxu0 %v2124
      %3950 = vmatpush.bf16.msra.mxu0 %v2114
      %3951 = vmatpush.bf16.msra.mxu0 %v2104
      %3952 = vmatpush.bf16.msra.mxu0 %v2094
      %3953 = vmatpush.bf16.msra.mxu0 %v2084
      %3954 = vmatpush.bf16.msra.mxu0 %v2074
      %3955 = vmatpush.bf16.msra.mxu0 %v2064
      %3956 = vmatpush.bf16.msra.mxu0 %v2054
      %3957 = vmatmul.bf16.gmra.mxu0 %v779
      %v3958 = vpop.f32.mrf.mxu0
      %v3959 = vadd.f32 0.0, %v3958
      %v3960 = vpop.f32.mrf.mxu0
      %v3961 = vadd.f32 0.0, %v3960
      %3962 = vmatmul.bf16.gmra.mxu0 %v784
      %v3963 = vpop.f32.mrf.mxu0
      %v3964 = vadd.f32 0.0, %v3963
      %v3965 = vpop.f32.mrf.mxu0
      %v3966 = vadd.f32 0.0, %v3965
      %3967 = vmatmul.bf16.gmra.mxu0 %v789
      %v3968 = vpop.f32.mrf.mxu0
      %v3969 = vadd.f32 0.0, %v3968
      %v3970 = vpop.f32.mrf.mxu0
      %v3971 = vadd.f32 0.0, %v3970
      %3972 = vmatmul.bf16.gmra.mxu0 %v794
      %v3973 = vpop.f32.mrf.mxu0
      %v3974 = vadd.f32 0.0, %v3973
      %v3975 = vpop.f32.mrf.mxu0
      %v3976 = vadd.f32 0.0, %v3975
      %3977 = vmatmul.bf16.gmra.mxu0 %v799
      %v3978 = vpop.f32.mrf.mxu0
      %v3979 = vadd.f32 0.0, %v3978
      %v3980 = vpop.f32.mrf.mxu0
      %v3981 = vadd.f32 0.0, %v3980
      %3982 = vmatmul.bf16.gmra.mxu0 %v804
      %v3983 = vpop.f32.mrf.mxu0
      %v3984 = vadd.f32 0.0, %v3983
      %v3985 = vpop.f32.mrf.mxu0
      %v3986 = vadd.f32 0.0, %v3985
      %3987 = vmatmul.bf16.gmra.mxu0 %v809
      %v3988 = vpop.f32.mrf.mxu0
      %v3989 = vadd.f32 0.0, %v3988
      %v3990 = vpop.f32.mrf.mxu0
      %v3991 = vadd.f32 0.0, %v3990
      %3992 = vdwg.mxu0
      %3993 = vmatpush.bf16.msra.mxu0 %v2204
      %3994 = vmatpush.bf16.msra.mxu0 %v2194
      %3995 = vmatpush.bf16.msra.mxu0 %v2184
      %3996 = vmatpush.bf16.msra.mxu0 %v2174
      %3997 = vmatpush.bf16.msra.mxu0 %v2164
      %3998 = vmatpush.bf16.msra.mxu0 %v2154
      %3999 = vmatpush.bf16.msra.mxu0 %v2144
      %4000 = vmatpush.bf16.msra.mxu0 %v2134
      %4001 = vmatmul.bf16.gmra.mxu0 %v780
      %v4002 = vpop.f32.mrf.mxu0
      %v4003 = vadd.f32 %v3959, %v4002
      %v4004 = vpop.f32.mrf.mxu0
      %v4005 = vadd.f32 %v3961, %v4004
      %4006 = vmatmul.bf16.gmra.mxu0 %v785
      %v4007 = vpop.f32.mrf.mxu0
      %v4008 = vadd.f32 %v3964, %v4007
      %v4009 = vpop.f32.mrf.mxu0
      %v4010 = vadd.f32 %v3966, %v4009
      %4011 = vmatmul.bf16.gmra.mxu0 %v790
      %v4012 = vpop.f32.mrf.mxu0
      %v4013 = vadd.f32 %v3969, %v4012
      %v4014 = vpop.f32.mrf.mxu0
      %v4015 = vadd.f32 %v3971, %v4014
      %4016 = vmatmul.bf16.gmra.mxu0 %v795
      %v4017 = vpop.f32.mrf.mxu0
      %v4018 = vadd.f32 %v3974, %v4017
      %v4019 = vpop.f32.mrf.mxu0
      %v4020 = vadd.f32 %v3976, %v4019
      %4021 = vmatmul.bf16.gmra.mxu0 %v800
      %v4022 = vpop.f32.mrf.mxu0
      %v4023 = vadd.f32 %v3979, %v4022
      %v4024 = vpop.f32.mrf.mxu0
      %v4025 = vadd.f32 %v3981, %v4024
      %4026 = vmatmul.bf16.gmra.mxu0 %v805
      %v4027 = vpop.f32.mrf.mxu0
      %v4028 = vadd.f32 %v3984, %v4027
      %v4029 = vpop.f32.mrf.mxu0
      %v4030 = vadd.f32 %v3986, %v4029
      %4031 = vmatmul.bf16.gmra.mxu0 %v810
      %v4032 = vpop.f32.mrf.mxu0
      %v4033 = vadd.f32 %v3989, %v4032
      %v4034 = vpop.f32.mrf.mxu0
      %v4035 = vadd.f32 %v3991, %v4034
      %4036 = vdwg.mxu0
      %4037 = vmatpush.bf16.msra.mxu0 %v2284
      %4038 = vmatpush.bf16.msra.mxu0 %v2274
      %4039 = vmatpush.bf16.msra.mxu0 %v2264
      %4040 = vmatpush.bf16.msra.mxu0 %v2254
      %4041 = vmatpush.bf16.msra.mxu0 %v2244
      %4042 = vmatpush.bf16.msra.mxu0 %v2234
      %4043 = vmatpush.bf16.msra.mxu0 %v2224
      %4044 = vmatpush.bf16.msra.mxu0 %v2214
      %4045 = vmatmul.bf16.gmra.mxu0 %v781
      %v4046 = vpop.f32.mrf.mxu0
      %v4047 = vadd.f32 %v4003, %v4046
      %v4048 = vpop.f32.mrf.mxu0
      %v4049 = vadd.f32 %v4005, %v4048
      %4050 = vmatmul.bf16.gmra.mxu0 %v786
      %v4051 = vpop.f32.mrf.mxu0
      %v4052 = vadd.f32 %v4008, %v4051
      %v4053 = vpop.f32.mrf.mxu0
      %v4054 = vadd.f32 %v4010, %v4053
      %4055 = vmatmul.bf16.gmra.mxu0 %v791
      %v4056 = vpop.f32.mrf.mxu0
      %v4057 = vadd.f32 %v4013, %v4056
      %v4058 = vpop.f32.mrf.mxu0
      %v4059 = vadd.f32 %v4015, %v4058
      %4060 = vmatmul.bf16.gmra.mxu0 %v796
      %v4061 = vpop.f32.mrf.mxu0
      %v4062 = vadd.f32 %v4018, %v4061
      %v4063 = vpop.f32.mrf.mxu0
      %v4064 = vadd.f32 %v4020, %v4063
      %4065 = vmatmul.bf16.gmra.mxu0 %v801
      %v4066 = vpop.f32.mrf.mxu0
      %v4067 = vadd.f32 %v4023, %v4066
      %v4068 = vpop.f32.mrf.mxu0
      %v4069 = vadd.f32 %v4025, %v4068
      %4070 = vmatmul.bf16.gmra.mxu0 %v806
      %v4071 = vpop.f32.mrf.mxu0
      %v4072 = vadd.f32 %v4028, %v4071
      %v4073 = vpop.f32.mrf.mxu0
      %v4074 = vadd.f32 %v4030, %v4073
      %4075 = vmatmul.bf16.gmra.mxu0 %v811
      %v4076 = vpop.f32.mrf.mxu0
      %v4077 = vadd.f32 %v4033, %v4076
      %v4078 = vpop.f32.mrf.mxu0
      %v4079 = vadd.f32 %v4035, %v4078
      %4080 = vdwg.mxu0
      %4081 = vmatpush.bf16.msra.mxu0 %v2364
      %4082 = vmatpush.bf16.msra.mxu0 %v2354
      %4083 = vmatpush.bf16.msra.mxu0 %v2344
      %4084 = vmatpush.bf16.msra.mxu0 %v2334
      %4085 = vmatpush.bf16.msra.mxu0 %v2324
      %4086 = vmatpush.bf16.msra.mxu0 %v2314
      %4087 = vmatpush.bf16.msra.mxu0 %v2304
      %4088 = vmatpush.bf16.msra.mxu0 %v2294
      %4089 = vmatmul.bf16.gmra.mxu0 %v782
      %v4090 = vpop.f32.mrf.mxu0
      %v4091 = vadd.f32 %v4047, %v4090
      %v4092 = vpop.f32.mrf.mxu0
      %v4093 = vadd.f32 %v4049, %v4092
      %4094 = vmatmul.bf16.gmra.mxu0 %v787
      %v4095 = vpop.f32.mrf.mxu0
      %v4096 = vadd.f32 %v4052, %v4095
      %v4097 = vpop.f32.mrf.mxu0
      %v4098 = vadd.f32 %v4054, %v4097
      %4099 = vmatmul.bf16.gmra.mxu0 %v792
      %v4100 = vpop.f32.mrf.mxu0
      %v4101 = vadd.f32 %v4057, %v4100
      %v4102 = vpop.f32.mrf.mxu0
      %v4103 = vadd.f32 %v4059, %v4102
      %4104 = vmatmul.bf16.gmra.mxu0 %v797
      %v4105 = vpop.f32.mrf.mxu0
      %v4106 = vadd.f32 %v4062, %v4105
      %v4107 = vpop.f32.mrf.mxu0
      %v4108 = vadd.f32 %v4064, %v4107
      %4109 = vmatmul.bf16.gmra.mxu0 %v802
      %v4110 = vpop.f32.mrf.mxu0
      %v4111 = vadd.f32 %v4067, %v4110
      %v4112 = vpop.f32.mrf.mxu0
      %v4113 = vadd.f32 %v4069, %v4112
      %4114 = vmatmul.bf16.gmra.mxu0 %v807
      %v4115 = vpop.f32.mrf.mxu0
      %v4116 = vadd.f32 %v4072, %v4115
      %v4117 = vpop.f32.mrf.mxu0
      %v4118 = vadd.f32 %v4074, %v4117
      %4119 = vmatmul.bf16.gmra.mxu0 %v812
      %v4120 = vpop.f32.mrf.mxu0
      %v4121 = vadd.f32 %v4077, %v4120
      %v4122 = vpop.f32.mrf.mxu0
      %v4123 = vadd.f32 %v4079, %v4122
      %4124 = vdwg.mxu0
      %4125 = vmatpush.bf16.msra.mxu0 %v2444
      %4126 = vmatpush.bf16.msra.mxu0 %v2434
      %4127 = vmatpush.bf16.msra.mxu0 %v2424
      %4128 = vmatpush.bf16.msra.mxu0 %v2414
      %4129 = vmatpush.bf16.msra.mxu0 %v2404
      %4130 = vmatpush.bf16.msra.mxu0 %v2394
      %4131 = vmatpush.bf16.msra.mxu0 %v2384
      %4132 = vmatpush.bf16.msra.mxu0 %v2374
      %4133 = vmatmul.bf16.gmra.mxu0 %v783
      %v4134 = vpop.f32.mrf.mxu0
      %v4135 = vadd.f32 %v4091, %v4134
      %v4136 = vpop.f32.mrf.mxu0
      %v4137 = vadd.f32 %v4093, %v4136
      %4138 = vmatmul.bf16.gmra.mxu0 %v788
      %v4139 = vpop.f32.mrf.mxu0
      %v4140 = vadd.f32 %v4096, %v4139
      %v4141 = vpop.f32.mrf.mxu0
      %v4142 = vadd.f32 %v4098, %v4141
      %4143 = vmatmul.bf16.gmra.mxu0 %v793
      %v4144 = vpop.f32.mrf.mxu0
      %v4145 = vadd.f32 %v4101, %v4144
      %v4146 = vpop.f32.mrf.mxu0
      %v4147 = vadd.f32 %v4103, %v4146
      %4148 = vmatmul.bf16.gmra.mxu0 %v798
      %v4149 = vpop.f32.mrf.mxu0
      %v4150 = vadd.f32 %v4106, %v4149
      %v4151 = vpop.f32.mrf.mxu0
      %v4152 = vadd.f32 %v4108, %v4151
      %4153 = vmatmul.bf16.gmra.mxu0 %v803
      %v4154 = vpop.f32.mrf.mxu0
      %v4155 = vadd.f32 %v4111, %v4154
      %v4156 = vpop.f32.mrf.mxu0
      %v4157 = vadd.f32 %v4113, %v4156
      %4158 = vmatmul.bf16.gmra.mxu0 %v808
      %v4159 = vpop.f32.mrf.mxu0
      %v4160 = vadd.f32 %v4116, %v4159
      %v4161 = vpop.f32.mrf.mxu0
      %v4162 = vadd.f32 %v4118, %v4161
      %4163 = vmatmul.bf16.gmra.mxu0 %v813
      %v4164 = vpop.f32.mrf.mxu0
      %v4165 = vadd.f32 %v4121, %v4164
      %v4166 = vpop.f32.mrf.mxu0
      %v4167 = vadd.f32 %v4123, %v4166
      %4168 = vdwg.mxu0
      %4169 = vmatpush.bf16.msra.mxu0 %v2125
      %4170 = vmatpush.bf16.msra.mxu0 %v2115
      %4171 = vmatpush.bf16.msra.mxu0 %v2105
      %4172 = vmatpush.bf16.msra.mxu0 %v2095
      %4173 = vmatpush.bf16.msra.mxu0 %v2085
      %4174 = vmatpush.bf16.msra.mxu0 %v2075
      %4175 = vmatpush.bf16.msra.mxu0 %v2065
      %4176 = vmatpush.bf16.msra.mxu0 %v2055
      %4177 = vmatmul.bf16.gmra.mxu0 %v779
      %v4178 = vpop.f32.mrf.mxu0
      %v4179 = vadd.f32 0.0, %v4178
      %v4180 = vpop.f32.mrf.mxu0
      %v4181 = vadd.f32 0.0, %v4180
      %4182 = vmatmul.bf16.gmra.mxu0 %v784
      %v4183 = vpop.f32.mrf.mxu0
      %v4184 = vadd.f32 0.0, %v4183
      %v4185 = vpop.f32.mrf.mxu0
      %v4186 = vadd.f32 0.0, %v4185
      %4187 = vmatmul.bf16.gmra.mxu0 %v789
      %v4188 = vpop.f32.mrf.mxu0
      %v4189 = vadd.f32 0.0, %v4188
      %v4190 = vpop.f32.mrf.mxu0
      %v4191 = vadd.f32 0.0, %v4190
      %4192 = vmatmul.bf16.gmra.mxu0 %v794
      %v4193 = vpop.f32.mrf.mxu0
      %v4194 = vadd.f32 0.0, %v4193
      %v4195 = vpop.f32.mrf.mxu0
      %v4196 = vadd.f32 0.0, %v4195
      %4197 = vmatmul.bf16.gmra.mxu0 %v799
      %v4198 = vpop.f32.mrf.mxu0
      %v4199 = vadd.f32 0.0, %v4198
      %v4200 = vpop.f32.mrf.mxu0
      %v4201 = vadd.f32 0.0, %v4200
      %4202 = vmatmul.bf16.gmra.mxu0 %v804
      %v4203 = vpop.f32.mrf.mxu0
      %v4204 = vadd.f32 0.0, %v4203
      %v4205 = vpop.f32.mrf.mxu0
      %v4206 = vadd.f32 0.0, %v4205
      %4207 = vmatmul.bf16.gmra.mxu0 %v809
      %v4208 = vpop.f32.mrf.mxu0
      %v4209 = vadd.f32 0.0, %v4208
      %v4210 = vpop.f32.mrf.mxu0
      %v4211 = vadd.f32 0.0, %v4210
      %4212 = vdwg.mxu0
      %4213 = vmatpush.bf16.msra.mxu0 %v2205
      %4214 = vmatpush.bf16.msra.mxu0 %v2195
      %4215 = vmatpush.bf16.msra.mxu0 %v2185
      %4216 = vmatpush.bf16.msra.mxu0 %v2175
      %4217 = vmatpush.bf16.msra.mxu0 %v2165
      %4218 = vmatpush.bf16.msra.mxu0 %v2155
      %4219 = vmatpush.bf16.msra.mxu0 %v2145
      %4220 = vmatpush.bf16.msra.mxu0 %v2135
      %4221 = vmatmul.bf16.gmra.mxu0 %v780
      %v4222 = vpop.f32.mrf.mxu0
      %v4223 = vadd.f32 %v4179, %v4222
      %v4224 = vpop.f32.mrf.mxu0
      %v4225 = vadd.f32 %v4181, %v4224
      %4226 = vmatmul.bf16.gmra.mxu0 %v785
      %v4227 = vpop.f32.mrf.mxu0
      %v4228 = vadd.f32 %v4184, %v4227
      %v4229 = vpop.f32.mrf.mxu0
      %v4230 = vadd.f32 %v4186, %v4229
      %4231 = vmatmul.bf16.gmra.mxu0 %v790
      %v4232 = vpop.f32.mrf.mxu0
      %v4233 = vadd.f32 %v4189, %v4232
      %v4234 = vpop.f32.mrf.mxu0
      %v4235 = vadd.f32 %v4191, %v4234
      %4236 = vmatmul.bf16.gmra.mxu0 %v795
      %v4237 = vpop.f32.mrf.mxu0
      %v4238 = vadd.f32 %v4194, %v4237
      %v4239 = vpop.f32.mrf.mxu0
      %v4240 = vadd.f32 %v4196, %v4239
      %4241 = vmatmul.bf16.gmra.mxu0 %v800
      %v4242 = vpop.f32.mrf.mxu0
      %v4243 = vadd.f32 %v4199, %v4242
      %v4244 = vpop.f32.mrf.mxu0
      %v4245 = vadd.f32 %v4201, %v4244
      %4246 = vmatmul.bf16.gmra.mxu0 %v805
      %v4247 = vpop.f32.mrf.mxu0
      %v4248 = vadd.f32 %v4204, %v4247
      %v4249 = vpop.f32.mrf.mxu0
      %v4250 = vadd.f32 %v4206, %v4249
      %4251 = vmatmul.bf16.gmra.mxu0 %v810
      %v4252 = vpop.f32.mrf.mxu0
      %v4253 = vadd.f32 %v4209, %v4252
      %v4254 = vpop.f32.mrf.mxu0
      %v4255 = vadd.f32 %v4211, %v4254
      %4256 = vdwg.mxu0
      %4257 = vmatpush.bf16.msra.mxu0 %v2285
      %4258 = vmatpush.bf16.msra.mxu0 %v2275
      %4259 = vmatpush.bf16.msra.mxu0 %v2265
      %4260 = vmatpush.bf16.msra.mxu0 %v2255
      %4261 = vmatpush.bf16.msra.mxu0 %v2245
      %4262 = vmatpush.bf16.msra.mxu0 %v2235
      %4263 = vmatpush.bf16.msra.mxu0 %v2225
      %4264 = vmatpush.bf16.msra.mxu0 %v2215
      %4265 = vmatmul.bf16.gmra.mxu0 %v781
      %v4266 = vpop.f32.mrf.mxu0
      %v4267 = vadd.f32 %v4223, %v4266
      %v4268 = vpop.f32.mrf.mxu0
      %v4269 = vadd.f32 %v4225, %v4268
      %4270 = vmatmul.bf16.gmra.mxu0 %v786
      %v4271 = vpop.f32.mrf.mxu0
      %v4272 = vadd.f32 %v4228, %v4271
      %v4273 = vpop.f32.mrf.mxu0
      %v4274 = vadd.f32 %v4230, %v4273
      %4275 = vmatmul.bf16.gmra.mxu0 %v791
      %v4276 = vpop.f32.mrf.mxu0
      %v4277 = vadd.f32 %v4233, %v4276
      %v4278 = vpop.f32.mrf.mxu0
      %v4279 = vadd.f32 %v4235, %v4278
      %4280 = vmatmul.bf16.gmra.mxu0 %v796
      %v4281 = vpop.f32.mrf.mxu0
      %v4282 = vadd.f32 %v4238, %v4281
      %v4283 = vpop.f32.mrf.mxu0
      %v4284 = vadd.f32 %v4240, %v4283
      %4285 = vmatmul.bf16.gmra.mxu0 %v801
      %v4286 = vpop.f32.mrf.mxu0
      %v4287 = vadd.f32 %v4243, %v4286
      %v4288 = vpop.f32.mrf.mxu0
      %v4289 = vadd.f32 %v4245, %v4288
      %4290 = vmatmul.bf16.gmra.mxu0 %v806
      %v4291 = vpop.f32.mrf.mxu0
      %v4292 = vadd.f32 %v4248, %v4291
      %v4293 = vpop.f32.mrf.mxu0
      %v4294 = vadd.f32 %v4250, %v4293
      %4295 = vmatmul.bf16.gmra.mxu0 %v811
      %v4296 = vpop.f32.mrf.mxu0
      %v4297 = vadd.f32 %v4253, %v4296
      %v4298 = vpop.f32.mrf.mxu0
      %v4299 = vadd.f32 %v4255, %v4298
      %4300 = vdwg.mxu0
      %4301 = vmatpush.bf16.msra.mxu0 %v2365
      %4302 = vmatpush.bf16.msra.mxu0 %v2355
      %4303 = vmatpush.bf16.msra.mxu0 %v2345
      %4304 = vmatpush.bf16.msra.mxu0 %v2335
      %4305 = vmatpush.bf16.msra.mxu0 %v2325
      %4306 = vmatpush.bf16.msra.mxu0 %v2315
      %4307 = vmatpush.bf16.msra.mxu0 %v2305
      %4308 = vmatpush.bf16.msra.mxu0 %v2295
      %4309 = vmatmul.bf16.gmra.mxu0 %v782
      %v4310 = vpop.f32.mrf.mxu0
      %v4311 = vadd.f32 %v4267, %v4310
      %v4312 = vpop.f32.mrf.mxu0
      %v4313 = vadd.f32 %v4269, %v4312
      %4314 = vmatmul.bf16.gmra.mxu0 %v787
      %v4315 = vpop.f32.mrf.mxu0
      %v4316 = vadd.f32 %v4272, %v4315
      %v4317 = vpop.f32.mrf.mxu0
      %v4318 = vadd.f32 %v4274, %v4317
      %4319 = vmatmul.bf16.gmra.mxu0 %v792
      %v4320 = vpop.f32.mrf.mxu0
      %v4321 = vadd.f32 %v4277, %v4320
      %v4322 = vpop.f32.mrf.mxu0
      %v4323 = vadd.f32 %v4279, %v4322
      %4324 = vmatmul.bf16.gmra.mxu0 %v797
      %v4325 = vpop.f32.mrf.mxu0
      %v4326 = vadd.f32 %v4282, %v4325
      %v4327 = vpop.f32.mrf.mxu0
      %v4328 = vadd.f32 %v4284, %v4327
      %4329 = vmatmul.bf16.gmra.mxu0 %v802
      %v4330 = vpop.f32.mrf.mxu0
      %v4331 = vadd.f32 %v4287, %v4330
      %v4332 = vpop.f32.mrf.mxu0
      %v4333 = vadd.f32 %v4289, %v4332
      %4334 = vmatmul.bf16.gmra.mxu0 %v807
      %v4335 = vpop.f32.mrf.mxu0
      %v4336 = vadd.f32 %v4292, %v4335
      %v4337 = vpop.f32.mrf.mxu0
      %v4338 = vadd.f32 %v4294, %v4337
      %4339 = vmatmul.bf16.gmra.mxu0 %v812
      %v4340 = vpop.f32.mrf.mxu0
      %v4341 = vadd.f32 %v4297, %v4340
      %v4342 = vpop.f32.mrf.mxu0
      %v4343 = vadd.f32 %v4299, %v4342
      %4344 = vdwg.mxu0
      %4345 = vmatpush.bf16.msra.mxu0 %v2445
      %4346 = vmatpush.bf16.msra.mxu0 %v2435
      %4347 = vmatpush.bf16.msra.mxu0 %v2425
      %4348 = vmatpush.bf16.msra.mxu0 %v2415
      %4349 = vmatpush.bf16.msra.mxu0 %v2405
      %4350 = vmatpush.bf16.msra.mxu0 %v2395
      %4351 = vmatpush.bf16.msra.mxu0 %v2385
      %4352 = vmatpush.bf16.msra.mxu0 %v2375
      %4353 = vmatmul.bf16.gmra.mxu0 %v783
      %v4354 = vpop.f32.mrf.mxu0
      %v4355 = vadd.f32 %v4311, %v4354
      %v4356 = vpop.f32.mrf.mxu0
      %v4357 = vadd.f32 %v4313, %v4356
      %4358 = vmatmul.bf16.gmra.mxu0 %v788
      %v4359 = vpop.f32.mrf.mxu0
      %v4360 = vadd.f32 %v4316, %v4359
      %v4361 = vpop.f32.mrf.mxu0
      %v4362 = vadd.f32 %v4318, %v4361
      %4363 = vmatmul.bf16.gmra.mxu0 %v793
      %v4364 = vpop.f32.mrf.mxu0
      %v4365 = vadd.f32 %v4321, %v4364
      %v4366 = vpop.f32.mrf.mxu0
      %v4367 = vadd.f32 %v4323, %v4366
      %4368 = vmatmul.bf16.gmra.mxu0 %v798
      %v4369 = vpop.f32.mrf.mxu0
      %v4370 = vadd.f32 %v4326, %v4369
      %v4371 = vpop.f32.mrf.mxu0
      %v4372 = vadd.f32 %v4328, %v4371
      %4373 = vmatmul.bf16.gmra.mxu0 %v803
      %v4374 = vpop.f32.mrf.mxu0
      %v4375 = vadd.f32 %v4331, %v4374
      %v4376 = vpop.f32.mrf.mxu0
      %v4377 = vadd.f32 %v4333, %v4376
      %4378 = vmatmul.bf16.gmra.mxu0 %v808
      %v4379 = vpop.f32.mrf.mxu0
      %v4380 = vadd.f32 %v4336, %v4379
      %v4381 = vpop.f32.mrf.mxu0
      %v4382 = vadd.f32 %v4338, %v4381
      %4383 = vmatmul.bf16.gmra.mxu0 %v813
      %v4384 = vpop.f32.mrf.mxu0
      %v4385 = vadd.f32 %v4341, %v4384
      %v4386 = vpop.f32.mrf.mxu0
      %v4387 = vadd.f32 %v4343, %v4386
      %4388 = vdwg.mxu0
      %4389 = vmatpush.bf16.msra.mxu0 %v2126
      %4390 = vmatpush.bf16.msra.mxu0 %v2116
      %4391 = vmatpush.bf16.msra.mxu0 %v2106
      %4392 = vmatpush.bf16.msra.mxu0 %v2096
      %4393 = vmatpush.bf16.msra.mxu0 %v2086
      %4394 = vmatpush.bf16.msra.mxu0 %v2076
      %4395 = vmatpush.bf16.msra.mxu0 %v2066
      %4396 = vmatpush.bf16.msra.mxu0 %v2056
      %4397 = vmatmul.bf16.gmra.mxu0 %v779
      %v4398 = vpop.f32.mrf.mxu0
      %v4399 = vadd.f32 0.0, %v4398
      %v4400 = vpop.f32.mrf.mxu0
      %v4401 = vadd.f32 0.0, %v4400
      %4402 = vmatmul.bf16.gmra.mxu0 %v784
      %v4403 = vpop.f32.mrf.mxu0
      %v4404 = vadd.f32 0.0, %v4403
      %v4405 = vpop.f32.mrf.mxu0
      %v4406 = vadd.f32 0.0, %v4405
      %4407 = vmatmul.bf16.gmra.mxu0 %v789
      %v4408 = vpop.f32.mrf.mxu0
      %v4409 = vadd.f32 0.0, %v4408
      %v4410 = vpop.f32.mrf.mxu0
      %v4411 = vadd.f32 0.0, %v4410
      %4412 = vmatmul.bf16.gmra.mxu0 %v794
      %v4413 = vpop.f32.mrf.mxu0
      %v4414 = vadd.f32 0.0, %v4413
      %v4415 = vpop.f32.mrf.mxu0
      %v4416 = vadd.f32 0.0, %v4415
      %4417 = vmatmul.bf16.gmra.mxu0 %v799
      %v4418 = vpop.f32.mrf.mxu0
      %v4419 = vadd.f32 0.0, %v4418
      %v4420 = vpop.f32.mrf.mxu0
      %v4421 = vadd.f32 0.0, %v4420
      %4422 = vmatmul.bf16.gmra.mxu0 %v804
      %v4423 = vpop.f32.mrf.mxu0
      %v4424 = vadd.f32 0.0, %v4423
      %v4425 = vpop.f32.mrf.mxu0
      %v4426 = vadd.f32 0.0, %v4425
      %4427 = vmatmul.bf16.gmra.mxu0 %v809
      %v4428 = vpop.f32.mrf.mxu0
      %v4429 = vadd.f32 0.0, %v4428
      %v4430 = vpop.f32.mrf.mxu0
      %v4431 = vadd.f32 0.0, %v4430
      %4432 = vdwg.mxu0
      %4433 = vmatpush.bf16.msra.mxu0 %v2206
      %4434 = vmatpush.bf16.msra.mxu0 %v2196
      %4435 = vmatpush.bf16.msra.mxu0 %v2186
      %4436 = vmatpush.bf16.msra.mxu0 %v2176
      %4437 = vmatpush.bf16.msra.mxu0 %v2166
      %4438 = vmatpush.bf16.msra.mxu0 %v2156
      %4439 = vmatpush.bf16.msra.mxu0 %v2146
      %4440 = vmatpush.bf16.msra.mxu0 %v2136
      %4441 = vmatmul.bf16.gmra.mxu0 %v780
      %v4442 = vpop.f32.mrf.mxu0
      %v4443 = vadd.f32 %v4399, %v4442
      %v4444 = vpop.f32.mrf.mxu0
      %v4445 = vadd.f32 %v4401, %v4444
      %4446 = vmatmul.bf16.gmra.mxu0 %v785
      %v4447 = vpop.f32.mrf.mxu0
      %v4448 = vadd.f32 %v4404, %v4447
      %v4449 = vpop.f32.mrf.mxu0
      %v4450 = vadd.f32 %v4406, %v4449
      %4451 = vmatmul.bf16.gmra.mxu0 %v790
      %v4452 = vpop.f32.mrf.mxu0
      %v4453 = vadd.f32 %v4409, %v4452
      %v4454 = vpop.f32.mrf.mxu0
      %v4455 = vadd.f32 %v4411, %v4454
      %4456 = vmatmul.bf16.gmra.mxu0 %v795
      %v4457 = vpop.f32.mrf.mxu0
      %v4458 = vadd.f32 %v4414, %v4457
      %v4459 = vpop.f32.mrf.mxu0
      %v4460 = vadd.f32 %v4416, %v4459
      %4461 = vmatmul.bf16.gmra.mxu0 %v800
      %v4462 = vpop.f32.mrf.mxu0
      %v4463 = vadd.f32 %v4419, %v4462
      %v4464 = vpop.f32.mrf.mxu0
      %v4465 = vadd.f32 %v4421, %v4464
      %4466 = vmatmul.bf16.gmra.mxu0 %v805
      %v4467 = vpop.f32.mrf.mxu0
      %v4468 = vadd.f32 %v4424, %v4467
      %v4469 = vpop.f32.mrf.mxu0
      %v4470 = vadd.f32 %v4426, %v4469
      %4471 = vmatmul.bf16.gmra.mxu0 %v810
      %v4472 = vpop.f32.mrf.mxu0
      %v4473 = vadd.f32 %v4429, %v4472
      %v4474 = vpop.f32.mrf.mxu0
      %v4475 = vadd.f32 %v4431, %v4474
      %4476 = vdwg.mxu0
      %4477 = vmatpush.bf16.msra.mxu0 %v2286
      %4478 = vmatpush.bf16.msra.mxu0 %v2276
      %4479 = vmatpush.bf16.msra.mxu0 %v2266
      %4480 = vmatpush.bf16.msra.mxu0 %v2256
      %4481 = vmatpush.bf16.msra.mxu0 %v2246
      %4482 = vmatpush.bf16.msra.mxu0 %v2236
      %4483 = vmatpush.bf16.msra.mxu0 %v2226
      %4484 = vmatpush.bf16.msra.mxu0 %v2216
      %4485 = vmatmul.bf16.gmra.mxu0 %v781
      %v4486 = vpop.f32.mrf.mxu0
      %v4487 = vadd.f32 %v4443, %v4486
      %v4488 = vpop.f32.mrf.mxu0
      %v4489 = vadd.f32 %v4445, %v4488
      %4490 = vmatmul.bf16.gmra.mxu0 %v786
      %v4491 = vpop.f32.mrf.mxu0
      %v4492 = vadd.f32 %v4448, %v4491
      %v4493 = vpop.f32.mrf.mxu0
      %v4494 = vadd.f32 %v4450, %v4493
      %4495 = vmatmul.bf16.gmra.mxu0 %v791
      %v4496 = vpop.f32.mrf.mxu0
      %v4497 = vadd.f32 %v4453, %v4496
      %v4498 = vpop.f32.mrf.mxu0
      %v4499 = vadd.f32 %v4455, %v4498
      %4500 = vmatmul.bf16.gmra.mxu0 %v796
      %v4501 = vpop.f32.mrf.mxu0
      %v4502 = vadd.f32 %v4458, %v4501
      %v4503 = vpop.f32.mrf.mxu0
      %v4504 = vadd.f32 %v4460, %v4503
      %4505 = vmatmul.bf16.gmra.mxu0 %v801
      %v4506 = vpop.f32.mrf.mxu0
      %v4507 = vadd.f32 %v4463, %v4506
      %v4508 = vpop.f32.mrf.mxu0
      %v4509 = vadd.f32 %v4465, %v4508
      %4510 = vmatmul.bf16.gmra.mxu0 %v806
      %v4511 = vpop.f32.mrf.mxu0
      %v4512 = vadd.f32 %v4468, %v4511
      %v4513 = vpop.f32.mrf.mxu0
      %v4514 = vadd.f32 %v4470, %v4513
      %4515 = vmatmul.bf16.gmra.mxu0 %v811
      %v4516 = vpop.f32.mrf.mxu0
      %v4517 = vadd.f32 %v4473, %v4516
      %v4518 = vpop.f32.mrf.mxu0
      %v4519 = vadd.f32 %v4475, %v4518
      %4520 = vdwg.mxu0
      %4521 = vmatpush.bf16.msra.mxu0 %v2366
      %4522 = vmatpush.bf16.msra.mxu0 %v2356
      %4523 = vmatpush.bf16.msra.mxu0 %v2346
      %4524 = vmatpush.bf16.msra.mxu0 %v2336
      %4525 = vmatpush.bf16.msra.mxu0 %v2326
      %4526 = vmatpush.bf16.msra.mxu0 %v2316
      %4527 = vmatpush.bf16.msra.mxu0 %v2306
      %4528 = vmatpush.bf16.msra.mxu0 %v2296
      %4529 = vmatmul.bf16.gmra.mxu0 %v782
      %v4530 = vpop.f32.mrf.mxu0
      %v4531 = vadd.f32 %v4487, %v4530
      %v4532 = vpop.f32.mrf.mxu0
      %v4533 = vadd.f32 %v4489, %v4532
      %4534 = vmatmul.bf16.gmra.mxu0 %v787
      %v4535 = vpop.f32.mrf.mxu0
      %v4536 = vadd.f32 %v4492, %v4535
      %v4537 = vpop.f32.mrf.mxu0
      %v4538 = vadd.f32 %v4494, %v4537
      %4539 = vmatmul.bf16.gmra.mxu0 %v792
      %v4540 = vpop.f32.mrf.mxu0
      %v4541 = vadd.f32 %v4497, %v4540
      %v4542 = vpop.f32.mrf.mxu0
      %v4543 = vadd.f32 %v4499, %v4542
      %4544 = vmatmul.bf16.gmra.mxu0 %v797
      %v4545 = vpop.f32.mrf.mxu0
      %v4546 = vadd.f32 %v4502, %v4545
      %v4547 = vpop.f32.mrf.mxu0
      %v4548 = vadd.f32 %v4504, %v4547
      %4549 = vmatmul.bf16.gmra.mxu0 %v802
      %v4550 = vpop.f32.mrf.mxu0
      %v4551 = vadd.f32 %v4507, %v4550
      %v4552 = vpop.f32.mrf.mxu0
      %v4553 = vadd.f32 %v4509, %v4552
      %4554 = vmatmul.bf16.gmra.mxu0 %v807
      %v4555 = vpop.f32.mrf.mxu0
      %v4556 = vadd.f32 %v4512, %v4555
      %v4557 = vpop.f32.mrf.mxu0
      %v4558 = vadd.f32 %v4514, %v4557
      %4559 = vmatmul.bf16.gmra.mxu0 %v812
      %v4560 = vpop.f32.mrf.mxu0
      %v4561 = vadd.f32 %v4517, %v4560
      %v4562 = vpop.f32.mrf.mxu0
      %v4563 = vadd.f32 %v4519, %v4562
      %4564 = vdwg.mxu0
      %4565 = vmatpush.bf16.msra.mxu0 %v2446
      %4566 = vmatpush.bf16.msra.mxu0 %v2436
      %4567 = vmatpush.bf16.msra.mxu0 %v2426
      %4568 = vmatpush.bf16.msra.mxu0 %v2416
      %4569 = vmatpush.bf16.msra.mxu0 %v2406
      %4570 = vmatpush.bf16.msra.mxu0 %v2396
      %4571 = vmatpush.bf16.msra.mxu0 %v2386
      %4572 = vmatpush.bf16.msra.mxu0 %v2376
      %4573 = vmatmul.bf16.gmra.mxu0 %v783
      %v4574 = vpop.f32.mrf.mxu0
      %v4575 = vadd.f32 %v4531, %v4574
      %v4576 = vpop.f32.mrf.mxu0
      %v4577 = vadd.f32 %v4533, %v4576
      %4578 = vmatmul.bf16.gmra.mxu0 %v788
      %v4579 = vpop.f32.mrf.mxu0
      %v4580 = vadd.f32 %v4536, %v4579
      %v4581 = vpop.f32.mrf.mxu0
      %v4582 = vadd.f32 %v4538, %v4581
      %4583 = vmatmul.bf16.gmra.mxu0 %v793
      %v4584 = vpop.f32.mrf.mxu0
      %v4585 = vadd.f32 %v4541, %v4584
      %v4586 = vpop.f32.mrf.mxu0
      %v4587 = vadd.f32 %v4543, %v4586
      %4588 = vmatmul.bf16.gmra.mxu0 %v798
      %v4589 = vpop.f32.mrf.mxu0
      %v4590 = vadd.f32 %v4546, %v4589
      %v4591 = vpop.f32.mrf.mxu0
      %v4592 = vadd.f32 %v4548, %v4591
      %4593 = vmatmul.bf16.gmra.mxu0 %v803
      %v4594 = vpop.f32.mrf.mxu0
      %v4595 = vadd.f32 %v4551, %v4594
      %v4596 = vpop.f32.mrf.mxu0
      %v4597 = vadd.f32 %v4553, %v4596
      %4598 = vmatmul.bf16.gmra.mxu0 %v808
      %v4599 = vpop.f32.mrf.mxu0
      %v4600 = vadd.f32 %v4556, %v4599
      %v4601 = vpop.f32.mrf.mxu0
      %v4602 = vadd.f32 %v4558, %v4601
      %4603 = vmatmul.bf16.gmra.mxu0 %v813
      %v4604 = vpop.f32.mrf.mxu0
      %v4605 = vadd.f32 %v4561, %v4604
      %v4606 = vpop.f32.mrf.mxu0
      %v4607 = vadd.f32 %v4563, %v4606
      %4608 = vdwg.mxu0
      %4609 = vmatpush.bf16.msra.mxu0 %v2127
      %4610 = vmatpush.bf16.msra.mxu0 %v2117
      %4611 = vmatpush.bf16.msra.mxu0 %v2107
      %4612 = vmatpush.bf16.msra.mxu0 %v2097
      %4613 = vmatpush.bf16.msra.mxu0 %v2087
      %4614 = vmatpush.bf16.msra.mxu0 %v2077
      %4615 = vmatpush.bf16.msra.mxu0 %v2067
      %4616 = vmatpush.bf16.msra.mxu0 %v2057
      %4617 = vmatmul.bf16.gmra.mxu0 %v779
      %v4618 = vpop.f32.mrf.mxu0
      %v4619 = vadd.f32 0.0, %v4618
      %v4620 = vpop.f32.mrf.mxu0
      %v4621 = vadd.f32 0.0, %v4620
      %4622 = vmatmul.bf16.gmra.mxu0 %v784
      %v4623 = vpop.f32.mrf.mxu0
      %v4624 = vadd.f32 0.0, %v4623
      %v4625 = vpop.f32.mrf.mxu0
      %v4626 = vadd.f32 0.0, %v4625
      %4627 = vmatmul.bf16.gmra.mxu0 %v789
      %v4628 = vpop.f32.mrf.mxu0
      %v4629 = vadd.f32 0.0, %v4628
      %v4630 = vpop.f32.mrf.mxu0
      %v4631 = vadd.f32 0.0, %v4630
      %4632 = vmatmul.bf16.gmra.mxu0 %v794
      %v4633 = vpop.f32.mrf.mxu0
      %v4634 = vadd.f32 0.0, %v4633
      %v4635 = vpop.f32.mrf.mxu0
      %v4636 = vadd.f32 0.0, %v4635
      %4637 = vmatmul.bf16.gmra.mxu0 %v799
      %v4638 = vpop.f32.mrf.mxu0
      %v4639 = vadd.f32 0.0, %v4638
      %v4640 = vpop.f32.mrf.mxu0
      %v4641 = vadd.f32 0.0, %v4640
      %4642 = vmatmul.bf16.gmra.mxu0 %v804
      %v4643 = vpop.f32.mrf.mxu0
      %v4644 = vadd.f32 0.0, %v4643
      %v4645 = vpop.f32.mrf.mxu0
      %v4646 = vadd.f32 0.0, %v4645
      %4647 = vmatmul.bf16.gmra.mxu0 %v809
      %v4648 = vpop.f32.mrf.mxu0
      %v4649 = vadd.f32 0.0, %v4648
      %v4650 = vpop.f32.mrf.mxu0
      %v4651 = vadd.f32 0.0, %v4650
      %4652 = vdwg.mxu0
      %4653 = vmatpush.bf16.msra.mxu0 %v2207
      %4654 = vmatpush.bf16.msra.mxu0 %v2197
      %4655 = vmatpush.bf16.msra.mxu0 %v2187
      %4656 = vmatpush.bf16.msra.mxu0 %v2177
      %4657 = vmatpush.bf16.msra.mxu0 %v2167
      %4658 = vmatpush.bf16.msra.mxu0 %v2157
      %4659 = vmatpush.bf16.msra.mxu0 %v2147
      %4660 = vmatpush.bf16.msra.mxu0 %v2137
      %4661 = vmatmul.bf16.gmra.mxu0 %v780
      %v4662 = vpop.f32.mrf.mxu0
      %v4663 = vadd.f32 %v4619, %v4662
      %v4664 = vpop.f32.mrf.mxu0
      %v4665 = vadd.f32 %v4621, %v4664
      %4666 = vmatmul.bf16.gmra.mxu0 %v785
      %v4667 = vpop.f32.mrf.mxu0
      %v4668 = vadd.f32 %v4624, %v4667
      %v4669 = vpop.f32.mrf.mxu0
      %v4670 = vadd.f32 %v4626, %v4669
      %4671 = vmatmul.bf16.gmra.mxu0 %v790
      %v4672 = vpop.f32.mrf.mxu0
      %v4673 = vadd.f32 %v4629, %v4672
      %v4674 = vpop.f32.mrf.mxu0
      %v4675 = vadd.f32 %v4631, %v4674
      %4676 = vmatmul.bf16.gmra.mxu0 %v795
      %v4677 = vpop.f32.mrf.mxu0
      %v4678 = vadd.f32 %v4634, %v4677
      %v4679 = vpop.f32.mrf.mxu0
      %v4680 = vadd.f32 %v4636, %v4679
      %4681 = vmatmul.bf16.gmra.mxu0 %v800
      %v4682 = vpop.f32.mrf.mxu0
      %v4683 = vadd.f32 %v4639, %v4682
      %v4684 = vpop.f32.mrf.mxu0
      %v4685 = vadd.f32 %v4641, %v4684
      %4686 = vmatmul.bf16.gmra.mxu0 %v805
      %v4687 = vpop.f32.mrf.mxu0
      %v4688 = vadd.f32 %v4644, %v4687
      %v4689 = vpop.f32.mrf.mxu0
      %v4690 = vadd.f32 %v4646, %v4689
      %4691 = vmatmul.bf16.gmra.mxu0 %v810
      %v4692 = vpop.f32.mrf.mxu0
      %v4693 = vadd.f32 %v4649, %v4692
      %v4694 = vpop.f32.mrf.mxu0
      %v4695 = vadd.f32 %v4651, %v4694
      %4696 = vdwg.mxu0
      %4697 = vmatpush.bf16.msra.mxu0 %v2287
      %4698 = vmatpush.bf16.msra.mxu0 %v2277
      %4699 = vmatpush.bf16.msra.mxu0 %v2267
      %4700 = vmatpush.bf16.msra.mxu0 %v2257
      %4701 = vmatpush.bf16.msra.mxu0 %v2247
      %4702 = vmatpush.bf16.msra.mxu0 %v2237
      %4703 = vmatpush.bf16.msra.mxu0 %v2227
      %4704 = vmatpush.bf16.msra.mxu0 %v2217
      %4705 = vmatmul.bf16.gmra.mxu0 %v781
      %v4706 = vpop.f32.mrf.mxu0
      %v4707 = vadd.f32 %v4663, %v4706
      %v4708 = vpop.f32.mrf.mxu0
      %v4709 = vadd.f32 %v4665, %v4708
      %4710 = vmatmul.bf16.gmra.mxu0 %v786
      %v4711 = vpop.f32.mrf.mxu0
      %v4712 = vadd.f32 %v4668, %v4711
      %v4713 = vpop.f32.mrf.mxu0
      %v4714 = vadd.f32 %v4670, %v4713
      %4715 = vmatmul.bf16.gmra.mxu0 %v791
      %v4716 = vpop.f32.mrf.mxu0
      %v4717 = vadd.f32 %v4673, %v4716
      %v4718 = vpop.f32.mrf.mxu0
      %v4719 = vadd.f32 %v4675, %v4718
      %4720 = vmatmul.bf16.gmra.mxu0 %v796
      %v4721 = vpop.f32.mrf.mxu0
      %v4722 = vadd.f32 %v4678, %v4721
      %v4723 = vpop.f32.mrf.mxu0
      %v4724 = vadd.f32 %v4680, %v4723
      %4725 = vmatmul.bf16.gmra.mxu0 %v801
      %v4726 = vpop.f32.mrf.mxu0
      %v4727 = vadd.f32 %v4683, %v4726
      %v4728 = vpop.f32.mrf.mxu0
      %v4729 = vadd.f32 %v4685, %v4728
      %4730 = vmatmul.bf16.gmra.mxu0 %v806
      %v4731 = vpop.f32.mrf.mxu0
      %v4732 = vadd.f32 %v4688, %v4731
      %v4733 = vpop.f32.mrf.mxu0
      %v4734 = vadd.f32 %v4690, %v4733
      %4735 = vmatmul.bf16.gmra.mxu0 %v811
      %v4736 = vpop.f32.mrf.mxu0
      %v4737 = vadd.f32 %v4693, %v4736
      %v4738 = vpop.f32.mrf.mxu0
      %v4739 = vadd.f32 %v4695, %v4738
      %4740 = vdwg.mxu0
      %4741 = vmatpush.bf16.msra.mxu0 %v2367
      %4742 = vmatpush.bf16.msra.mxu0 %v2357
      %4743 = vmatpush.bf16.msra.mxu0 %v2347
      %4744 = vmatpush.bf16.msra.mxu0 %v2337
      %4745 = vmatpush.bf16.msra.mxu0 %v2327
      %4746 = vmatpush.bf16.msra.mxu0 %v2317
      %4747 = vmatpush.bf16.msra.mxu0 %v2307
      %4748 = vmatpush.bf16.msra.mxu0 %v2297
      %4749 = vmatmul.bf16.gmra.mxu0 %v782
      %v4750 = vpop.f32.mrf.mxu0
      %v4751 = vadd.f32 %v4707, %v4750
      %v4752 = vpop.f32.mrf.mxu0
      %v4753 = vadd.f32 %v4709, %v4752
      %4754 = vmatmul.bf16.gmra.mxu0 %v787
      %v4755 = vpop.f32.mrf.mxu0
      %v4756 = vadd.f32 %v4712, %v4755
      %v4757 = vpop.f32.mrf.mxu0
      %v4758 = vadd.f32 %v4714, %v4757
      %4759 = vmatmul.bf16.gmra.mxu0 %v792
      %v4760 = vpop.f32.mrf.mxu0
      %v4761 = vadd.f32 %v4717, %v4760
      %v4762 = vpop.f32.mrf.mxu0
      %v4763 = vadd.f32 %v4719, %v4762
      %4764 = vmatmul.bf16.gmra.mxu0 %v797
      %v4765 = vpop.f32.mrf.mxu0
      %v4766 = vadd.f32 %v4722, %v4765
      %v4767 = vpop.f32.mrf.mxu0
      %v4768 = vadd.f32 %v4724, %v4767
      %4769 = vmatmul.bf16.gmra.mxu0 %v802
      %v4770 = vpop.f32.mrf.mxu0
      %v4771 = vadd.f32 %v4727, %v4770
      %v4772 = vpop.f32.mrf.mxu0
      %v4773 = vadd.f32 %v4729, %v4772
      %4774 = vmatmul.bf16.gmra.mxu0 %v807
      %v4775 = vpop.f32.mrf.mxu0
      %v4776 = vadd.f32 %v4732, %v4775
      %v4777 = vpop.f32.mrf.mxu0
      %v4778 = vadd.f32 %v4734, %v4777
      %4779 = vmatmul.bf16.gmra.mxu0 %v812
      %v4780 = vpop.f32.mrf.mxu0
      %v4781 = vadd.f32 %v4737, %v4780
      %v4782 = vpop.f32.mrf.mxu0
      %v4783 = vadd.f32 %v4739, %v4782
      %4784 = vdwg.mxu0
      %4785 = vmatpush.bf16.msra.mxu0 %v2447
      %4786 = vmatpush.bf16.msra.mxu0 %v2437
      %4787 = vmatpush.bf16.msra.mxu0 %v2427
      %4788 = vmatpush.bf16.msra.mxu0 %v2417
      %4789 = vmatpush.bf16.msra.mxu0 %v2407
      %4790 = vmatpush.bf16.msra.mxu0 %v2397
      %4791 = vmatpush.bf16.msra.mxu0 %v2387
      %4792 = vmatpush.bf16.msra.mxu0 %v2377
      %4793 = vmatmul.bf16.gmra.mxu0 %v783
      %v4794 = vpop.f32.mrf.mxu0
      %v4795 = vadd.f32 %v4751, %v4794
      %v4796 = vpop.f32.mrf.mxu0
      %v4797 = vadd.f32 %v4753, %v4796
      %4798 = vmatmul.bf16.gmra.mxu0 %v788
      %v4799 = vpop.f32.mrf.mxu0
      %v4800 = vadd.f32 %v4756, %v4799
      %v4801 = vpop.f32.mrf.mxu0
      %v4802 = vadd.f32 %v4758, %v4801
      %4803 = vmatmul.bf16.gmra.mxu0 %v793
      %v4804 = vpop.f32.mrf.mxu0
      %v4805 = vadd.f32 %v4761, %v4804
      %v4806 = vpop.f32.mrf.mxu0
      %v4807 = vadd.f32 %v4763, %v4806
      %4808 = vmatmul.bf16.gmra.mxu0 %v798
      %v4809 = vpop.f32.mrf.mxu0
      %v4810 = vadd.f32 %v4766, %v4809
      %v4811 = vpop.f32.mrf.mxu0
      %v4812 = vadd.f32 %v4768, %v4811
      %4813 = vmatmul.bf16.gmra.mxu0 %v803
      %v4814 = vpop.f32.mrf.mxu0
      %v4815 = vadd.f32 %v4771, %v4814
      %v4816 = vpop.f32.mrf.mxu0
      %v4817 = vadd.f32 %v4773, %v4816
      %4818 = vmatmul.bf16.gmra.mxu0 %v808
      %v4819 = vpop.f32.mrf.mxu0
      %v4820 = vadd.f32 %v4776, %v4819
      %v4821 = vpop.f32.mrf.mxu0
      %v4822 = vadd.f32 %v4778, %v4821
      %4823 = vmatmul.bf16.gmra.mxu0 %v813
      %v4824 = vpop.f32.mrf.mxu0
      %v4825 = vadd.f32 %v4781, %v4824
      %v4826 = vpop.f32.mrf.mxu0
      %v4827 = vadd.f32 %v4783, %v4826
      %4828 = vdwg.mxu0
      %4829 = vmatpush.bf16.msra.mxu0 %v2128
      %4830 = vmatpush.bf16.msra.mxu0 %v2118
      %4831 = vmatpush.bf16.msra.mxu0 %v2108
      %4832 = vmatpush.bf16.msra.mxu0 %v2098
      %4833 = vmatpush.bf16.msra.mxu0 %v2088
      %4834 = vmatpush.bf16.msra.mxu0 %v2078
      %4835 = vmatpush.bf16.msra.mxu0 %v2068
      %4836 = vmatpush.bf16.msra.mxu0 %v2058
      %4837 = vmatmul.bf16.gmra.mxu0 %v779
      %v4838 = vpop.f32.mrf.mxu0
      %v4839 = vadd.f32 0.0, %v4838
      %v4840 = vpop.f32.mrf.mxu0
      %v4841 = vadd.f32 0.0, %v4840
      %4842 = vmatmul.bf16.gmra.mxu0 %v784
      %v4843 = vpop.f32.mrf.mxu0
      %v4844 = vadd.f32 0.0, %v4843
      %v4845 = vpop.f32.mrf.mxu0
      %v4846 = vadd.f32 0.0, %v4845
      %4847 = vmatmul.bf16.gmra.mxu0 %v789
      %v4848 = vpop.f32.mrf.mxu0
      %v4849 = vadd.f32 0.0, %v4848
      %v4850 = vpop.f32.mrf.mxu0
      %v4851 = vadd.f32 0.0, %v4850
      %4852 = vmatmul.bf16.gmra.mxu0 %v794
      %v4853 = vpop.f32.mrf.mxu0
      %v4854 = vadd.f32 0.0, %v4853
      %v4855 = vpop.f32.mrf.mxu0
      %v4856 = vadd.f32 0.0, %v4855
      %4857 = vmatmul.bf16.gmra.mxu0 %v799
      %v4858 = vpop.f32.mrf.mxu0
      %v4859 = vadd.f32 0.0, %v4858
      %v4860 = vpop.f32.mrf.mxu0
      %v4861 = vadd.f32 0.0, %v4860
      %4862 = vmatmul.bf16.gmra.mxu0 %v804
      %v4863 = vpop.f32.mrf.mxu0
      %v4864 = vadd.f32 0.0, %v4863
      %v4865 = vpop.f32.mrf.mxu0
      %v4866 = vadd.f32 0.0, %v4865
      %4867 = vmatmul.bf16.gmra.mxu0 %v809
      %v4868 = vpop.f32.mrf.mxu0
      %v4869 = vadd.f32 0.0, %v4868
      %v4870 = vpop.f32.mrf.mxu0
      %v4871 = vadd.f32 0.0, %v4870
      %4872 = vdwg.mxu0
      %4873 = vmatpush.bf16.msra.mxu0 %v2208
      %4874 = vmatpush.bf16.msra.mxu0 %v2198
      %4875 = vmatpush.bf16.msra.mxu0 %v2188
      %4876 = vmatpush.bf16.msra.mxu0 %v2178
      %4877 = vmatpush.bf16.msra.mxu0 %v2168
      %4878 = vmatpush.bf16.msra.mxu0 %v2158
      %4879 = vmatpush.bf16.msra.mxu0 %v2148
      %4880 = vmatpush.bf16.msra.mxu0 %v2138
      %4881 = vmatmul.bf16.gmra.mxu0 %v780
      %v4882 = vpop.f32.mrf.mxu0
      %v4883 = vadd.f32 %v4839, %v4882
      %v4884 = vpop.f32.mrf.mxu0
      %v4885 = vadd.f32 %v4841, %v4884
      %4886 = vmatmul.bf16.gmra.mxu0 %v785
      %v4887 = vpop.f32.mrf.mxu0
      %v4888 = vadd.f32 %v4844, %v4887
      %v4889 = vpop.f32.mrf.mxu0
      %v4890 = vadd.f32 %v4846, %v4889
      %4891 = vmatmul.bf16.gmra.mxu0 %v790
      %v4892 = vpop.f32.mrf.mxu0
      %v4893 = vadd.f32 %v4849, %v4892
      %v4894 = vpop.f32.mrf.mxu0
      %v4895 = vadd.f32 %v4851, %v4894
      %4896 = vmatmul.bf16.gmra.mxu0 %v795
      %v4897 = vpop.f32.mrf.mxu0
      %v4898 = vadd.f32 %v4854, %v4897
      %v4899 = vpop.f32.mrf.mxu0
      %v4900 = vadd.f32 %v4856, %v4899
      %4901 = vmatmul.bf16.gmra.mxu0 %v800
      %v4902 = vpop.f32.mrf.mxu0
      %v4903 = vadd.f32 %v4859, %v4902
      %v4904 = vpop.f32.mrf.mxu0
      %v4905 = vadd.f32 %v4861, %v4904
      %4906 = vmatmul.bf16.gmra.mxu0 %v805
      %v4907 = vpop.f32.mrf.mxu0
      %v4908 = vadd.f32 %v4864, %v4907
      %v4909 = vpop.f32.mrf.mxu0
      %v4910 = vadd.f32 %v4866, %v4909
      %4911 = vmatmul.bf16.gmra.mxu0 %v810
      %v4912 = vpop.f32.mrf.mxu0
      %v4913 = vadd.f32 %v4869, %v4912
      %v4914 = vpop.f32.mrf.mxu0
      %v4915 = vadd.f32 %v4871, %v4914
      %4916 = vdwg.mxu0
      %4917 = vmatpush.bf16.msra.mxu0 %v2288
      %4918 = vmatpush.bf16.msra.mxu0 %v2278
      %4919 = vmatpush.bf16.msra.mxu0 %v2268
      %4920 = vmatpush.bf16.msra.mxu0 %v2258
      %4921 = vmatpush.bf16.msra.mxu0 %v2248
      %4922 = vmatpush.bf16.msra.mxu0 %v2238
      %4923 = vmatpush.bf16.msra.mxu0 %v2228
      %4924 = vmatpush.bf16.msra.mxu0 %v2218
      %4925 = vmatmul.bf16.gmra.mxu0 %v781
      %v4926 = vpop.f32.mrf.mxu0
      %v4927 = vadd.f32 %v4883, %v4926
      %v4928 = vpop.f32.mrf.mxu0
      %v4929 = vadd.f32 %v4885, %v4928
      %4930 = vmatmul.bf16.gmra.mxu0 %v786
      %v4931 = vpop.f32.mrf.mxu0
      %v4932 = vadd.f32 %v4888, %v4931
      %v4933 = vpop.f32.mrf.mxu0
      %v4934 = vadd.f32 %v4890, %v4933
      %4935 = vmatmul.bf16.gmra.mxu0 %v791
      %v4936 = vpop.f32.mrf.mxu0
      %v4937 = vadd.f32 %v4893, %v4936
      %v4938 = vpop.f32.mrf.mxu0
      %v4939 = vadd.f32 %v4895, %v4938
      %4940 = vmatmul.bf16.gmra.mxu0 %v796
      %v4941 = vpop.f32.mrf.mxu0
      %v4942 = vadd.f32 %v4898, %v4941
      %v4943 = vpop.f32.mrf.mxu0
      %v4944 = vadd.f32 %v4900, %v4943
      %4945 = vmatmul.bf16.gmra.mxu0 %v801
      %v4946 = vpop.f32.mrf.mxu0
      %v4947 = vadd.f32 %v4903, %v4946
      %v4948 = vpop.f32.mrf.mxu0
      %v4949 = vadd.f32 %v4905, %v4948
      %4950 = vmatmul.bf16.gmra.mxu0 %v806
      %v4951 = vpop.f32.mrf.mxu0
      %v4952 = vadd.f32 %v4908, %v4951
      %v4953 = vpop.f32.mrf.mxu0
      %v4954 = vadd.f32 %v4910, %v4953
      %4955 = vmatmul.bf16.gmra.mxu0 %v811
      %v4956 = vpop.f32.mrf.mxu0
      %v4957 = vadd.f32 %v4913, %v4956
      %v4958 = vpop.f32.mrf.mxu0
      %v4959 = vadd.f32 %v4915, %v4958
      %4960 = vdwg.mxu0
      %4961 = vmatpush.bf16.msra.mxu0 %v2368
      %4962 = vmatpush.bf16.msra.mxu0 %v2358
      %4963 = vmatpush.bf16.msra.mxu0 %v2348
      %4964 = vmatpush.bf16.msra.mxu0 %v2338
      %4965 = vmatpush.bf16.msra.mxu0 %v2328
      %4966 = vmatpush.bf16.msra.mxu0 %v2318
      %4967 = vmatpush.bf16.msra.mxu0 %v2308
      %4968 = vmatpush.bf16.msra.mxu0 %v2298
      %4969 = vmatmul.bf16.gmra.mxu0 %v782
      %v4970 = vpop.f32.mrf.mxu0
      %v4971 = vadd.f32 %v4927, %v4970
      %v4972 = vpop.f32.mrf.mxu0
      %v4973 = vadd.f32 %v4929, %v4972
      %4974 = vmatmul.bf16.gmra.mxu0 %v787
      %v4975 = vpop.f32.mrf.mxu0
      %v4976 = vadd.f32 %v4932, %v4975
      %v4977 = vpop.f32.mrf.mxu0
      %v4978 = vadd.f32 %v4934, %v4977
      %4979 = vmatmul.bf16.gmra.mxu0 %v792
      %v4980 = vpop.f32.mrf.mxu0
      %v4981 = vadd.f32 %v4937, %v4980
      %v4982 = vpop.f32.mrf.mxu0
      %v4983 = vadd.f32 %v4939, %v4982
      %4984 = vmatmul.bf16.gmra.mxu0 %v797
      %v4985 = vpop.f32.mrf.mxu0
      %v4986 = vadd.f32 %v4942, %v4985
      %v4987 = vpop.f32.mrf.mxu0
      %v4988 = vadd.f32 %v4944, %v4987
      %4989 = vmatmul.bf16.gmra.mxu0 %v802
      %v4990 = vpop.f32.mrf.mxu0
      %v4991 = vadd.f32 %v4947, %v4990
      %v4992 = vpop.f32.mrf.mxu0
      %v4993 = vadd.f32 %v4949, %v4992
      %4994 = vmatmul.bf16.gmra.mxu0 %v807
      %v4995 = vpop.f32.mrf.mxu0
      %v4996 = vadd.f32 %v4952, %v4995
      %v4997 = vpop.f32.mrf.mxu0
      %v4998 = vadd.f32 %v4954, %v4997
      %4999 = vmatmul.bf16.gmra.mxu0 %v812
      %v5000 = vpop.f32.mrf.mxu0
      %v5001 = vadd.f32 %v4957, %v5000
      %v5002 = vpop.f32.mrf.mxu0
      %v5003 = vadd.f32 %v4959, %v5002
      %5004 = vdwg.mxu0
      %5005 = vmatpush.bf16.msra.mxu0 %v2448
      %5006 = vmatpush.bf16.msra.mxu0 %v2438
      %5007 = vmatpush.bf16.msra.mxu0 %v2428
      %5008 = vmatpush.bf16.msra.mxu0 %v2418
      %5009 = vmatpush.bf16.msra.mxu0 %v2408
      %5010 = vmatpush.bf16.msra.mxu0 %v2398
      %5011 = vmatpush.bf16.msra.mxu0 %v2388
      %5012 = vmatpush.bf16.msra.mxu0 %v2378
      %5013 = vmatmul.bf16.gmra.mxu0 %v783
      %v5014 = vpop.f32.mrf.mxu0
      %v5015 = vadd.f32 %v4971, %v5014
      %v5016 = vpop.f32.mrf.mxu0
      %v5017 = vadd.f32 %v4973, %v5016
      %5018 = vmatmul.bf16.gmra.mxu0 %v788
      %v5019 = vpop.f32.mrf.mxu0
      %v5020 = vadd.f32 %v4976, %v5019
      %v5021 = vpop.f32.mrf.mxu0
      %v5022 = vadd.f32 %v4978, %v5021
      %5023 = vmatmul.bf16.gmra.mxu0 %v793
      %v5024 = vpop.f32.mrf.mxu0
      %v5025 = vadd.f32 %v4981, %v5024
      %v5026 = vpop.f32.mrf.mxu0
      %v5027 = vadd.f32 %v4983, %v5026
      %5028 = vmatmul.bf16.gmra.mxu0 %v798
      %v5029 = vpop.f32.mrf.mxu0
      %v5030 = vadd.f32 %v4986, %v5029
      %v5031 = vpop.f32.mrf.mxu0
      %v5032 = vadd.f32 %v4988, %v5031
      %5033 = vmatmul.bf16.gmra.mxu0 %v803
      %v5034 = vpop.f32.mrf.mxu0
      %v5035 = vadd.f32 %v4991, %v5034
      %v5036 = vpop.f32.mrf.mxu0
      %v5037 = vadd.f32 %v4993, %v5036
      %5038 = vmatmul.bf16.gmra.mxu0 %v808
      %v5039 = vpop.f32.mrf.mxu0
      %v5040 = vadd.f32 %v4996, %v5039
      %v5041 = vpop.f32.mrf.mxu0
      %v5042 = vadd.f32 %v4998, %v5041
      %5043 = vmatmul.bf16.gmra.mxu0 %v813
      %v5044 = vpop.f32.mrf.mxu0
      %v5045 = vadd.f32 %v5001, %v5044
      %v5046 = vpop.f32.mrf.mxu0
      %v5047 = vadd.f32 %v5003, %v5046
      %5048 = vdwg.mxu0
      %5049 = vst [vmem:[#allocation2] sm:$0xff] %v3035
      %5050 = vst [vmem:[#allocation2 + $0x8] sm:$0xff] %v3255
      %5051 = vst [vmem:[#allocation2 + $0x10] sm:$0xff] %v3475
      %5052 = vst [vmem:[#allocation2 + $0x18] sm:$0xff] %v3695
      %5053 = vst [vmem:[#allocation2 + $0x20] sm:$0xff] %v3915
      %5054 = vst [vmem:[#allocation2 + $0x28] sm:$0xff] %v4135
      %5055 = vst [vmem:[#allocation2 + $0x30] sm:$0xff] %v4355
      %5056 = vst [vmem:[#allocation2 + $0x38] sm:$0xff] %v4575
      %5057 = vst [vmem:[#allocation2 + $0x40] sm:$0xff] %v4795
      %5058 = vst [vmem:[#allocation2 + $0x48] sm:$0xff] %v5015
      %5059 = vst [vmem:[#allocation2 + $0x50] sm:$0xff] %v3037
      %5060 = vst [vmem:[#allocation2 + $0x58] sm:$0xff] %v3257
      %5061 = vst [vmem:[#allocation2 + $0x60] sm:$0xff] %v3477
      %5062 = vst [vmem:[#allocation2 + $0x68] sm:$0xff] %v3697
      %5063 = vst [vmem:[#allocation2 + $0x70] sm:$0xff] %v3917
      %5064 = vst [vmem:[#allocation2 + $0x78] sm:$0xff] %v4137
      %5065 = vst [vmem:[#allocation2 + $0x80] sm:$0xff] %v4357
      %5066 = vst [vmem:[#allocation2 + $0x88] sm:$0xff] %v4577
      %5067 = vst [vmem:[#allocation2 + $0x90] sm:$0xff] %v4797
      %5068 = vst [vmem:[#allocation2 + $0x98] sm:$0xff] %v5017
      %5069 = vst [vmem:[#allocation2 + $0xa0] sm:$0xff] %v3040
      %5070 = vst [vmem:[#allocation2 + $0xa8] sm:$0xff] %v3260
      %5071 = vst [vmem:[#allocation2 + $0xb0] sm:$0xff] %v3480
      %5072 = vst [vmem:[#allocation2 + $0xb8] sm:$0xff] %v3700
      %5073 = vst [vmem:[#allocation2 + $0xc0] sm:$0xff] %v3920
      %5074 = vst [vmem:[#allocation2 + $0xc8] sm:$0xff] %v4140
      %5075 = vst [vmem:[#allocation2 + $0xd0] sm:$0xff] %v4360
      %5076 = vst [vmem:[#allocation2 + $0xd8] sm:$0xff] %v4580
      %5077 = vst [vmem:[#allocation2 + $0xe0] sm:$0xff] %v4800
      %5078 = vst [vmem:[#allocation2 + $0xe8] sm:$0xff] %v5020
      %5079 = vst [vmem:[#allocation2 + $0xf0] sm:$0xff] %v3042
      %5080 = vst [vmem:[#allocation2 + $0xf8] sm:$0xff] %v3262
      %5081 = vst [vmem:[#allocation2 + $0x100] sm:$0xff] %v3482
      %5082 = vst [vmem:[#allocation2 + $0x108] sm:$0xff] %v3702
      %5083 = vst [vmem:[#allocation2 + $0x110] sm:$0xff] %v3922
      %5084 = vst [vmem:[#allocation2 + $0x118] sm:$0xff] %v4142
      %5085 = vst [vmem:[#allocation2 + $0x120] sm:$0xff] %v4362
      %5086 = vst [vmem:[#allocation2 + $0x128] sm:$0xff] %v4582
      %5087 = vst [vmem:[#allocation2 + $0x130] sm:$0xff] %v4802
      %5088 = vst [vmem:[#allocation2 + $0x138] sm:$0xff] %v5022
      %5089 = vst [vmem:[#allocation2 + $0x140] sm:$0xff] %v3045
      %5090 = vst [vmem:[#allocation2 + $0x148] sm:$0xff] %v3265
      %5091 = vst [vmem:[#allocation2 + $0x150] sm:$0xff] %v3485
      %5092 = vst [vmem:[#allocation2 + $0x158] sm:$0xff] %v3705
      %5093 = vst [vmem:[#allocation2 + $0x160] sm:$0xff] %v3925
      %5094 = vst [vmem:[#allocation2 + $0x168] sm:$0xff] %v4145
      %5095 = vst [vmem:[#allocation2 + $0x170] sm:$0xff] %v4365
      %5096 = vst [vmem:[#allocation2 + $0x178] sm:$0xff] %v4585
      %5097 = vst [vmem:[#allocation2 + $0x180] sm:$0xff] %v4805
      %5098 = vst [vmem:[#allocation2 + $0x188] sm:$0xff] %v5025
      %5099 = vst [vmem:[#allocation2 + $0x190] sm:$0xff] %v3047
      %5100 = vst [vmem:[#allocation2 + $0x198] sm:$0xff] %v3267
      %5101 = vst [vmem:[#allocation2 + $0x1a0] sm:$0xff] %v3487
      %5102 = vst [vmem:[#allocation2 + $0x1a8] sm:$0xff] %v3707
      %5103 = vst [vmem:[#allocation2 + $0x1b0] sm:$0xff] %v3927
      %5104 = vst [vmem:[#allocation2 + $0x1b8] sm:$0xff] %v4147
      %5105 = vst [vmem:[#allocation2 + $0x1c0] sm:$0xff] %v4367
      %5106 = vst [vmem:[#allocation2 + $0x1c8] sm:$0xff] %v4587
      %5107 = vst [vmem:[#allocation2 + $0x1d0] sm:$0xff] %v4807
      %5108 = vst [vmem:[#allocation2 + $0x1d8] sm:$0xff] %v5027
      %5109 = vst [vmem:[#allocation2 + $0x1e0] sm:$0xff] %v3050
      %5110 = vst [vmem:[#allocation2 + $0x1e8] sm:$0xff] %v3270
      %5111 = vst [vmem:[#allocation2 + $0x1f0] sm:$0xff] %v3490
      %5112 = vst [vmem:[#allocation2 + $0x1f8] sm:$0xff] %v3710
      %5113 = vst [vmem:[#allocation2 + $0x200] sm:$0xff] %v3930
      %5114 = vst [vmem:[#allocation2 + $0x208] sm:$0xff] %v4150
      %5115 = vst [vmem:[#allocation2 + $0x210] sm:$0xff] %v4370
      %5116 = vst [vmem:[#allocation2 + $0x218] sm:$0xff] %v4590
      %5117 = vst [vmem:[#allocation2 + $0x220] sm:$0xff] %v4810
      %5118 = vst [vmem:[#allocation2 + $0x228] sm:$0xff] %v5030
      %5119 = vst [vmem:[#allocation2 + $0x230] sm:$0xff] %v3052
      %5120 = vst [vmem:[#allocation2 + $0x238] sm:$0xff] %v3272
      %5121 = vst [vmem:[#allocation2 + $0x240] sm:$0xff] %v3492
      %5122 = vst [vmem:[#allocation2 + $0x248] sm:$0xff] %v3712
      %5123 = vst [vmem:[#allocation2 + $0x250] sm:$0xff] %v3932
      %5124 = vst [vmem:[#allocation2 + $0x258] sm:$0xff] %v4152
      %5125 = vst [vmem:[#allocation2 + $0x260] sm:$0xff] %v4372
      %5126 = vst [vmem:[#allocation2 + $0x268] sm:$0xff] %v4592
      %5127 = vst [vmem:[#allocation2 + $0x270] sm:$0xff] %v4812
      %5128 = vst [vmem:[#allocation2 + $0x278] sm:$0xff] %v5032
      %5129 = vst [vmem:[#allocation2 + $0x280] sm:$0xff] %v3055
      %5130 = vst [vmem:[#allocation2 + $0x288] sm:$0xff] %v3275
      %5131 = vst [vmem:[#allocation2 + $0x290] sm:$0xff] %v3495
      %5132 = vst [vmem:[#allocation2 + $0x298] sm:$0xff] %v3715
      %5133 = vst [vmem:[#allocation2 + $0x2a0] sm:$0xff] %v3935
      %5134 = vst [vmem:[#allocation2 + $0x2a8] sm:$0xff] %v4155
      %5135 = vst [vmem:[#allocation2 + $0x2b0] sm:$0xff] %v4375
      %5136 = vst [vmem:[#allocation2 + $0x2b8] sm:$0xff] %v4595
      %5137 = vst [vmem:[#allocation2 + $0x2c0] sm:$0xff] %v4815
      %5138 = vst [vmem:[#allocation2 + $0x2c8] sm:$0xff] %v5035
      %5139 = vst [vmem:[#allocation2 + $0x2d0] sm:$0xff] %v3057
      %5140 = vst [vmem:[#allocation2 + $0x2d8] sm:$0xff] %v3277
      %5141 = vst [vmem:[#allocation2 + $0x2e0] sm:$0xff] %v3497
      %5142 = vst [vmem:[#allocation2 + $0x2e8] sm:$0xff] %v3717
      %5143 = vst [vmem:[#allocation2 + $0x2f0] sm:$0xff] %v3937
      %5144 = vst [vmem:[#allocation2 + $0x2f8] sm:$0xff] %v4157
      %5145 = vst [vmem:[#allocation2 + $0x300] sm:$0xff] %v4377
      %5146 = vst [vmem:[#allocation2 + $0x308] sm:$0xff] %v4597
      %5147 = vst [vmem:[#allocation2 + $0x310] sm:$0xff] %v4817
      %5148 = vst [vmem:[#allocation2 + $0x318] sm:$0xff] %v5037
      %5149 = vst [vmem:[#allocation2 + $0x320] sm:$0xff] %v3060
      %5150 = vst [vmem:[#allocation2 + $0x328] sm:$0xff] %v3280
      %5151 = vst [vmem:[#allocation2 + $0x330] sm:$0xff] %v3500
      %5152 = vst [vmem:[#allocation2 + $0x338] sm:$0xff] %v3720
      %5153 = vst [vmem:[#allocation2 + $0x340] sm:$0xff] %v3940
      %5154 = vst [vmem:[#allocation2 + $0x348] sm:$0xff] %v4160
      %5155 = vst [vmem:[#allocation2 + $0x350] sm:$0xff] %v4380
      %5156 = vst [vmem:[#allocation2 + $0x358] sm:$0xff] %v4600
      %5157 = vst [vmem:[#allocation2 + $0x360] sm:$0xff] %v4820
      %5158 = vst [vmem:[#allocation2 + $0x368] sm:$0xff] %v5040
      %5159 = vst [vmem:[#allocation2 + $0x370] sm:$0xff] %v3062
      %5160 = vst [vmem:[#allocation2 + $0x378] sm:$0xff] %v3282
      %5161 = vst [vmem:[#allocation2 + $0x380] sm:$0xff] %v3502
      %5162 = vst [vmem:[#allocation2 + $0x388] sm:$0xff] %v3722
      %5163 = vst [vmem:[#allocation2 + $0x390] sm:$0xff] %v3942
      %5164 = vst [vmem:[#allocation2 + $0x398] sm:$0xff] %v4162
      %5165 = vst [vmem:[#allocation2 + $0x3a0] sm:$0xff] %v4382
      %5166 = vst [vmem:[#allocation2 + $0x3a8] sm:$0xff] %v4602
      %5167 = vst [vmem:[#allocation2 + $0x3b0] sm:$0xff] %v4822
      %5168 = vst [vmem:[#allocation2 + $0x3b8] sm:$0xff] %v5042
      %5169 = vst [vmem:[#allocation2 + $0x3c0] sm:$0xff] %v3065
      %5170 = vst [vmem:[#allocation2 + $0x3c8] sm:$0xff] %v3285
      %5171 = vst [vmem:[#allocation2 + $0x3d0] sm:$0xff] %v3505
      %5172 = vst [vmem:[#allocation2 + $0x3d8] sm:$0xff] %v3725
      %5173 = vst [vmem:[#allocation2 + $0x3e0] sm:$0xff] %v3945
      %5174 = vst [vmem:[#allocation2 + $0x3e8] sm:$0xff] %v4165
      %5175 = vst [vmem:[#allocation2 + $0x3f0] sm:$0xff] %v4385
      %5176 = vst [vmem:[#allocation2 + $0x3f8] sm:$0xff] %v4605
      %5177 = vst [vmem:[#allocation2 + $0x400] sm:$0xff] %v4825
      %5178 = vst [vmem:[#allocation2 + $0x408] sm:$0xff] %v5045
      %5179 = vst [vmem:[#allocation2 + $0x410] sm:$0xff] %v3067
      %5180 = vst [vmem:[#allocation2 + $0x418] sm:$0xff] %v3287
      %5181 = vst [vmem:[#allocation2 + $0x420] sm:$0xff] %v3507
      %5182 = vst [vmem:[#allocation2 + $0x428] sm:$0xff] %v3727
      %5183 = vst [vmem:[#allocation2 + $0x430] sm:$0xff] %v3947
      %5184 = vst [vmem:[#allocation2 + $0x438] sm:$0xff] %v4167
      %5185 = vst [vmem:[#allocation2 + $0x440] sm:$0xff] %v4387
      %5186 = vst [vmem:[#allocation2 + $0x448] sm:$0xff] %v4607
      %5187 = vst [vmem:[#allocation2 + $0x450] sm:$0xff] %v4827
      %5188 = vst [vmem:[#allocation2 + $0x458] sm:$0xff] %v5047
      %v5189 = vld [vmem:[#allocation2] sm:$0xff]
      %v5190 = vld [vmem:[#allocation2 + $0x8] sm:$0xff]
      %v5191 = vld [vmem:[#allocation2 + $0x10] sm:$0xff]
      %v5192 = vld [vmem:[#allocation2 + $0x18] sm:$0xff]
      %v5193 = vld [vmem:[#allocation2 + $0x20] sm:$0xff]
      %v5194 = vld [vmem:[#allocation2 + $0x50] sm:$0xff]
      %v5195 = vld [vmem:[#allocation2 + $0x58] sm:$0xff]
      %v5196 = vld [vmem:[#allocation2 + $0x60] sm:$0xff]
      %v5197 = vld [vmem:[#allocation2 + $0x68] sm:$0xff]
      %v5198 = vld [vmem:[#allocation2 + $0x70] sm:$0xff]
      %v5199 = vld [vmem:[#allocation2 + $0xa0] sm:$0xff]
      %v5200 = vld [vmem:[#allocation2 + $0xa8] sm:$0xff]
      %v5201 = vld [vmem:[#allocation2 + $0xb0] sm:$0xff]
      %v5202 = vld [vmem:[#allocation2 + $0xb8] sm:$0xff]
      %v5203 = vld [vmem:[#allocation2 + $0xc0] sm:$0xff]
      %v5204 = vld [vmem:[#allocation2 + $0xf0] sm:$0xff]
      %v5205 = vld [vmem:[#allocation2 + $0xf8] sm:$0xff]
      %v5206 = vld [vmem:[#allocation2 + $0x100] sm:$0xff]
      %v5207 = vld [vmem:[#allocation2 + $0x108] sm:$0xff]
      %v5208 = vld [vmem:[#allocation2 + $0x110] sm:$0xff]
      %v5209 = vld [vmem:[#allocation2 + $0x140] sm:$0xff]
      %v5210 = vld [vmem:[#allocation2 + $0x148] sm:$0xff]
      %v5211 = vld [vmem:[#allocation2 + $0x150] sm:$0xff]
      %v5212 = vld [vmem:[#allocation2 + $0x158] sm:$0xff]
      %v5213 = vld [vmem:[#allocation2 + $0x160] sm:$0xff]
      %v5214 = vld [vmem:[#allocation2 + $0x190] sm:$0xff]
      %v5215 = vld [vmem:[#allocation2 + $0x198] sm:$0xff]
      %v5216 = vld [vmem:[#allocation2 + $0x1a0] sm:$0xff]
      %v5217 = vld [vmem:[#allocation2 + $0x1a8] sm:$0xff]
      %v5218 = vld [vmem:[#allocation2 + $0x1b0] sm:$0xff]
      %v5219 = vld [vmem:[#allocation2 + $0x1e0] sm:$0xff]
      %v5220 = vld [vmem:[#allocation2 + $0x1e8] sm:$0xff]
      %v5221 = vld [vmem:[#allocation2 + $0x1f0] sm:$0xff]
      %v5222 = vld [vmem:[#allocation2 + $0x1f8] sm:$0xff]
      %v5223 = vld [vmem:[#allocation2 + $0x200] sm:$0xff]
      %v5224 = vld [vmem:[#allocation2 + $0x230] sm:$0xff]
      %v5225 = vld [vmem:[#allocation2 + $0x238] sm:$0xff]
      %v5226 = vld [vmem:[#allocation2 + $0x240] sm:$0xff]
      %v5227 = vld [vmem:[#allocation2 + $0x248] sm:$0xff]
      %v5228 = vld [vmem:[#allocation2 + $0x250] sm:$0xff]
      %v5229 = vld [vmem:[#allocation2 + $0x280] sm:$0xff]
      %v5230 = vld [vmem:[#allocation2 + $0x288] sm:$0xff]
      %v5231 = vld [vmem:[#allocation2 + $0x290] sm:$0xff]
      %v5232 = vld [vmem:[#allocation2 + $0x298] sm:$0xff]
      %v5233 = vld [vmem:[#allocation2 + $0x2a0] sm:$0xff]
      %v5234 = vld [vmem:[#allocation2 + $0x2d0] sm:$0xff]
      %v5235 = vld [vmem:[#allocation2 + $0x2d8] sm:$0xff]
      %v5236 = vld [vmem:[#allocation2 + $0x2e0] sm:$0xff]
      %v5237 = vld [vmem:[#allocation2 + $0x2e8] sm:$0xff]
      %v5238 = vld [vmem:[#allocation2 + $0x2f0] sm:$0xff]
      %v5239 = vld [vmem:[#allocation2 + $0x320] sm:$0xff]
      %v5240 = vld [vmem:[#allocation2 + $0x328] sm:$0xff]
      %v5241 = vld [vmem:[#allocation2 + $0x330] sm:$0xff]
      %v5242 = vld [vmem:[#allocation2 + $0x338] sm:$0xff]
      %v5243 = vld [vmem:[#allocation2 + $0x340] sm:$0xff]
      %v5244 = vld [vmem:[#allocation2 + $0x370] sm:$0xff]
      %v5245 = vld [vmem:[#allocation2 + $0x378] sm:$0xff]
      %v5246 = vld [vmem:[#allocation2 + $0x380] sm:$0xff]
      %v5247 = vld [vmem:[#allocation2 + $0x388] sm:$0xff]
      %v5248 = vld [vmem:[#allocation2 + $0x390] sm:$0xff]
      %v5249 = vld [vmem:[#allocation2 + $0x3c0] sm:$0xff]
      %v5250 = vld [vmem:[#allocation2 + $0x3c8] sm:$0xff]
      %v5251 = vld [vmem:[#allocation2 + $0x3d0] sm:$0xff]
      %v5252 = vld [vmem:[#allocation2 + $0x3d8] sm:$0xff]
      %v5253 = vld [vmem:[#allocation2 + $0x3e0] sm:$0xff]
      %v5254 = vld [vmem:[#allocation2 + $0x410] sm:$0xff]
      %v5255 = vld [vmem:[#allocation2 + $0x418] sm:$0xff]
      %v5256 = vld [vmem:[#allocation2 + $0x420] sm:$0xff]
      %v5257 = vld [vmem:[#allocation2 + $0x428] sm:$0xff]
      %v5258 = vld [vmem:[#allocation2 + $0x430] sm:$0xff]
      %v5259 = vld [vmem:[#allocation2 + $0x28] sm:$0xff]
      %v5260 = vld [vmem:[#allocation2 + $0x30] sm:$0xff]
      %v5261 = vld [vmem:[#allocation2 + $0x38] sm:$0xff]
      %v5262 = vld [vmem:[#allocation2 + $0x40] sm:$0xff]
      %v5263 = vld [vmem:[#allocation2 + $0x48] sm:$0xff]
      %v5264 = vld [vmem:[#allocation2 + $0x78] sm:$0xff]
      %v5265 = vld [vmem:[#allocation2 + $0x80] sm:$0xff]
      %v5266 = vld [vmem:[#allocation2 + $0x88] sm:$0xff]
      %v5267 = vld [vmem:[#allocation2 + $0x90] sm:$0xff]
      %v5268 = vld [vmem:[#allocation2 + $0x98] sm:$0xff]
      %v5269 = vld [vmem:[#allocation2 + $0xc8] sm:$0xff]
      %v5270 = vld [vmem:[#allocation2 + $0xd0] sm:$0xff]
      %v5271 = vld [vmem:[#allocation2 + $0xd8] sm:$0xff]
      %v5272 = vld [vmem:[#allocation2 + $0xe0] sm:$0xff]
      %v5273 = vld [vmem:[#allocation2 + $0xe8] sm:$0xff]
      %v5274 = vld [vmem:[#allocation2 + $0x118] sm:$0xff]
      %v5275 = vld [vmem:[#allocation2 + $0x120] sm:$0xff]
      %v5276 = vld [vmem:[#allocation2 + $0x128] sm:$0xff]
      %v5277 = vld [vmem:[#allocation2 + $0x130] sm:$0xff]
      %v5278 = vld [vmem:[#allocation2 + $0x138] sm:$0xff]
      %v5279 = vld [vmem:[#allocation2 + $0x168] sm:$0xff]
      %v5280 = vld [vmem:[#allocation2 + $0x170] sm:$0xff]
      %v5281 = vld [vmem:[#allocation2 + $0x178] sm:$0xff]
      %v5282 = vld [vmem:[#allocation2 + $0x180] sm:$0xff]
      %v5283 = vld [vmem:[#allocation2 + $0x188] sm:$0xff]
      %v5284 = vld [vmem:[#allocation2 + $0x1b8] sm:$0xff]
      %v5285 = vld [vmem:[#allocation2 + $0x1c0] sm:$0xff]
      %v5286 = vld [vmem:[#allocation2 + $0x1c8] sm:$0xff]
      %v5287 = vld [vmem:[#allocation2 + $0x1d0] sm:$0xff]
      %v5288 = vld [vmem:[#allocation2 + $0x1d8] sm:$0xff]
      %v5289 = vld [vmem:[#allocation2 + $0x208] sm:$0xff]
      %v5290 = vld [vmem:[#allocation2 + $0x210] sm:$0xff]
      %v5291 = vld [vmem:[#allocation2 + $0x218] sm:$0xff]
      %v5292 = vld [vmem:[#allocation2 + $0x220] sm:$0xff]
      %v5293 = vld [vmem:[#allocation2 + $0x228] sm:$0xff]
      %v5294 = vld [vmem:[#allocation2 + $0x258] sm:$0xff]
      %v5295 = vld [vmem:[#allocation2 + $0x260] sm:$0xff]
      %v5296 = vld [vmem:[#allocation2 + $0x268] sm:$0xff]
      %v5297 = vld [vmem:[#allocation2 + $0x270] sm:$0xff]
      %v5298 = vld [vmem:[#allocation2 + $0x278] sm:$0xff]
      %v5299 = vld [vmem:[#allocation2 + $0x2a8] sm:$0xff]
      %v5300 = vld [vmem:[#allocation2 + $0x2b0] sm:$0xff]
      %v5301 = vld [vmem:[#allocation2 + $0x2b8] sm:$0xff]
      %v5302 = vld [vmem:[#allocation2 + $0x2c0] sm:$0xff]
      %v5303 = vld [vmem:[#allocation2 + $0x2c8] sm:$0xff]
      %v5304 = vld [vmem:[#allocation2 + $0x2f8] sm:$0xff]
      %v5305 = vld [vmem:[#allocation2 + $0x300] sm:$0xff]
      %v5306 = vld [vmem:[#allocation2 + $0x308] sm:$0xff]
      %v5307 = vld [vmem:[#allocation2 + $0x310] sm:$0xff]
      %v5308 = vld [vmem:[#allocation2 + $0x318] sm:$0xff]
      %v5309 = vld [vmem:[#allocation2 + $0x348] sm:$0xff]
      %v5310 = vld [vmem:[#allocation2 + $0x350] sm:$0xff]
      %v5311 = vld [vmem:[#allocation2 + $0x358] sm:$0xff]
      %v5312 = vld [vmem:[#allocation2 + $0x360] sm:$0xff]
      %v5313 = vld [vmem:[#allocation2 + $0x368] sm:$0xff]
      %v5314 = vld [vmem:[#allocation2 + $0x398] sm:$0xff]
      %v5315 = vld [vmem:[#allocation2 + $0x3a0] sm:$0xff]
      %v5316 = vld [vmem:[#allocation2 + $0x3a8] sm:$0xff]
      %v5317 = vld [vmem:[#allocation2 + $0x3b0] sm:$0xff]
      %v5318 = vld [vmem:[#allocation2 + $0x3b8] sm:$0xff]
      %v5319 = vld [vmem:[#allocation2 + $0x3e8] sm:$0xff]
      %v5320 = vld [vmem:[#allocation2 + $0x3f0] sm:$0xff]
      %v5321 = vld [vmem:[#allocation2 + $0x3f8] sm:$0xff]
      %v5322 = vld [vmem:[#allocation2 + $0x400] sm:$0xff]
      %v5323 = vld [vmem:[#allocation2 + $0x408] sm:$0xff]
      %v5324 = vld [vmem:[#allocation2 + $0x438] sm:$0xff]
      %v5325 = vld [vmem:[#allocation2 + $0x440] sm:$0xff]
      %v5326 = vld [vmem:[#allocation2 + $0x448] sm:$0xff]
      %v5327 = vld [vmem:[#allocation2 + $0x450] sm:$0xff]
      %v5328 = vld [vmem:[#allocation2 + $0x458] sm:$0xff]
      %v5329 = vmul.f32 %v5189, %v5189
      %v5330 = vmul.f32 %v5190, %v5190
      %v5331 = vmul.f32 %v5191, %v5191
      %v5332 = vmul.f32 %v5192, %v5192
      %v5333 = vmul.f32 %v5193, %v5193
      %v5334 = vmul.f32 %v5194, %v5194
      %v5335 = vmul.f32 %v5195, %v5195
      %v5336 = vmul.f32 %v5196, %v5196
      %v5337 = vmul.f32 %v5197, %v5197
      %v5338 = vmul.f32 %v5198, %v5198
      %v5339 = vmul.f32 %v5199, %v5199
      %v5340 = vmul.f32 %v5200, %v5200
      %v5341 = vmul.f32 %v5201, %v5201
      %v5342 = vmul.f32 %v5202, %v5202
      %v5343 = vmul.f32 %v5203, %v5203
      %v5344 = vmul.f32 %v5204, %v5204
      %v5345 = vmul.f32 %v5205, %v5205
      %v5346 = vmul.f32 %v5206, %v5206
      %v5347 = vmul.f32 %v5207, %v5207
      %v5348 = vmul.f32 %v5208, %v5208
      %v5349 = vmul.f32 %v5209, %v5209
      %v5350 = vmul.f32 %v5210, %v5210
      %v5351 = vmul.f32 %v5211, %v5211
      %v5352 = vmul.f32 %v5212, %v5212
      %v5353 = vmul.f32 %v5213, %v5213
      %v5354 = vmul.f32 %v5214, %v5214
      %v5355 = vmul.f32 %v5215, %v5215
      %v5356 = vmul.f32 %v5216, %v5216
      %v5357 = vmul.f32 %v5217, %v5217
      %v5358 = vmul.f32 %v5218, %v5218
      %v5359 = vmul.f32 %v5219, %v5219
      %v5360 = vmul.f32 %v5220, %v5220
      %v5361 = vmul.f32 %v5221, %v5221
      %v5362 = vmul.f32 %v5222, %v5222
      %v5363 = vmul.f32 %v5223, %v5223
      %v5364 = vmul.f32 %v5224, %v5224
      %v5365 = vmul.f32 %v5225, %v5225
      %v5366 = vmul.f32 %v5226, %v5226
      %v5367 = vmul.f32 %v5227, %v5227
      %v5368 = vmul.f32 %v5228, %v5228
      %v5369 = vmul.f32 %v5229, %v5229
      %v5370 = vmul.f32 %v5230, %v5230
      %v5371 = vmul.f32 %v5231, %v5231
      %v5372 = vmul.f32 %v5232, %v5232
      %v5373 = vmul.f32 %v5233, %v5233
      %v5374 = vmul.f32 %v5234, %v5234
      %v5375 = vmul.f32 %v5235, %v5235
      %v5376 = vmul.f32 %v5236, %v5236
      %v5377 = vmul.f32 %v5237, %v5237
      %v5378 = vmul.f32 %v5238, %v5238
      %v5379 = vmul.f32 %v5239, %v5239
      %v5380 = vmul.f32 %v5240, %v5240
      %v5381 = vmul.f32 %v5241, %v5241
      %v5382 = vmul.f32 %v5242, %v5242
      %v5383 = vmul.f32 %v5243, %v5243
      %v5384 = vmul.f32 %v5244, %v5244
      %v5385 = vmul.f32 %v5245, %v5245
      %v5386 = vmul.f32 %v5246, %v5246
      %v5387 = vmul.f32 %v5247, %v5247
      %v5388 = vmul.f32 %v5248, %v5248
      %v5389 = vmul.f32 %v5249, %v5249
      %v5390 = vmul.f32 %v5250, %v5250
      %v5391 = vmul.f32 %v5251, %v5251
      %v5392 = vmul.f32 %v5252, %v5252
      %v5393 = vmul.f32 %v5253, %v5253
      %v5394 = vmul.f32 %v5254, %v5254
      %v5395 = vmul.f32 %v5255, %v5255
      %v5396 = vmul.f32 %v5256, %v5256
      %v5397 = vmul.f32 %v5257, %v5257
      %v5398 = vmul.f32 %v5258, %v5258
      %v5399 = vmul.f32 %v5259, %v5259
      %v5400 = vmul.f32 %v5260, %v5260
      %v5401 = vmul.f32 %v5261, %v5261
      %v5402 = vmul.f32 %v5262, %v5262
      %v5403 = vmul.f32 %v5263, %v5263
      %v5404 = vmul.f32 %v5264, %v5264
      %v5405 = vmul.f32 %v5265, %v5265
      %v5406 = vmul.f32 %v5266, %v5266
      %v5407 = vmul.f32 %v5267, %v5267
      %v5408 = vmul.f32 %v5268, %v5268
      %v5409 = vmul.f32 %v5269, %v5269
      %v5410 = vmul.f32 %v5270, %v5270
      %v5411 = vmul.f32 %v5271, %v5271
      %v5412 = vmul.f32 %v5272, %v5272
      %v5413 = vmul.f32 %v5273, %v5273
      %v5414 = vmul.f32 %v5274, %v5274
      %v5415 = vmul.f32 %v5275, %v5275
      %v5416 = vmul.f32 %v5276, %v5276
      %v5417 = vmul.f32 %v5277, %v5277
      %v5418 = vmul.f32 %v5278, %v5278
      %v5419 = vmul.f32 %v5279, %v5279
      %v5420 = vmul.f32 %v5280, %v5280
      %v5421 = vmul.f32 %v5281, %v5281
      %v5422 = vmul.f32 %v5282, %v5282
      %v5423 = vmul.f32 %v5283, %v5283
      %v5424 = vmul.f32 %v5284, %v5284
      %v5425 = vmul.f32 %v5285, %v5285
      %v5426 = vmul.f32 %v5286, %v5286
      %v5427 = vmul.f32 %v5287, %v5287
      %v5428 = vmul.f32 %v5288, %v5288
      %v5429 = vmul.f32 %v5289, %v5289
      %v5430 = vmul.f32 %v5290, %v5290
      %v5431 = vmul.f32 %v5291, %v5291
      %v5432 = vmul.f32 %v5292, %v5292
      %v5433 = vmul.f32 %v5293, %v5293
      %v5434 = vmul.f32 %v5294, %v5294
      %v5435 = vmul.f32 %v5295, %v5295
      %v5436 = vmul.f32 %v5296, %v5296
      %v5437 = vmul.f32 %v5297, %v5297
      %v5438 = vmul.f32 %v5298, %v5298
      %v5439 = vmul.f32 %v5299, %v5299
      %v5440 = vmul.f32 %v5300, %v5300
      %v5441 = vmul.f32 %v5301, %v5301
      %v5442 = vmul.f32 %v5302, %v5302
      %v5443 = vmul.f32 %v5303, %v5303
      %v5444 = vmul.f32 %v5304, %v5304
      %v5445 = vmul.f32 %v5305, %v5305
      %v5446 = vmul.f32 %v5306, %v5306
      %v5447 = vmul.f32 %v5307, %v5307
      %v5448 = vmul.f32 %v5308, %v5308
      %v5449 = vmul.f32 %v5309, %v5309
      %v5450 = vmul.f32 %v5310, %v5310
      %v5451 = vmul.f32 %v5311, %v5311
      %v5452 = vmul.f32 %v5312, %v5312
      %v5453 = vmul.f32 %v5313, %v5313
      %v5454 = vmul.f32 %v5314, %v5314
      %v5455 = vmul.f32 %v5315, %v5315
      %v5456 = vmul.f32 %v5316, %v5316
      %v5457 = vmul.f32 %v5317, %v5317
      %v5458 = vmul.f32 %v5318, %v5318
      %v5459 = vmul.f32 %v5319, %v5319
      %v5460 = vmul.f32 %v5320, %v5320
      %v5461 = vmul.f32 %v5321, %v5321
      %v5462 = vmul.f32 %v5322, %v5322
      %v5463 = vmul.f32 %v5323, %v5323
      %v5464 = vmul.f32 %v5324, %v5324
      %v5465 = vmul.f32 %v5325, %v5325
      %v5466 = vmul.f32 %v5326, %v5326
      %v5467 = vmul.f32 %v5327, %v5327
      %v5468 = vmul.f32 %v5328, %v5328
      %v5469 = vadd.f32 %v5329, %v5399
      %v5470 = vadd.f32 %v5330, %v5400
      %v5471 = vadd.f32 %v5331, %v5401
      %v5472 = vadd.f32 %v5332, %v5402
      %v5473 = vadd.f32 %v5333, %v5403
      %v5474 = vadd.f32 %v5334, %v5404
      %v5475 = vadd.f32 %v5335, %v5405
      %v5476 = vadd.f32 %v5336, %v5406
      %v5477 = vadd.f32 %v5337, %v5407
      %v5478 = vadd.f32 %v5338, %v5408
      %v5479 = vadd.f32 %v5339, %v5409
      %v5480 = vadd.f32 %v5340, %v5410
      %v5481 = vadd.f32 %v5341, %v5411
      %v5482 = vadd.f32 %v5342, %v5412
      %v5483 = vadd.f32 %v5343, %v5413
      %v5484 = vadd.f32 %v5344, %v5414
      %v5485 = vadd.f32 %v5345, %v5415
      %v5486 = vadd.f32 %v5346, %v5416
      %v5487 = vadd.f32 %v5347, %v5417
      %v5488 = vadd.f32 %v5348, %v5418
      %v5489 = vadd.f32 %v5349, %v5419
      %v5490 = vadd.f32 %v5350, %v5420
      %v5491 = vadd.f32 %v5351, %v5421
      %v5492 = vadd.f32 %v5352, %v5422
      %v5493 = vadd.f32 %v5353, %v5423
      %v5494 = vadd.f32 %v5354, %v5424
      %v5495 = vadd.f32 %v5355, %v5425
      %v5496 = vadd.f32 %v5356, %v5426
      %v5497 = vadd.f32 %v5357, %v5427
      %v5498 = vadd.f32 %v5358, %v5428
      %v5499 = vadd.f32 %v5359, %v5429
      %v5500 = vadd.f32 %v5360, %v5430
      %v5501 = vadd.f32 %v5361, %v5431
      %v5502 = vadd.f32 %v5362, %v5432
      %v5503 = vadd.f32 %v5363, %v5433
      %v5504 = vadd.f32 %v5364, %v5434
      %v5505 = vadd.f32 %v5365, %v5435
      %v5506 = vadd.f32 %v5366, %v5436
      %v5507 = vadd.f32 %v5367, %v5437
      %v5508 = vadd.f32 %v5368, %v5438
      %v5509 = vadd.f32 %v5369, %v5439
      %v5510 = vadd.f32 %v5370, %v5440
      %v5511 = vadd.f32 %v5371, %v5441
      %v5512 = vadd.f32 %v5372, %v5442
      %v5513 = vadd.f32 %v5373, %v5443
      %v5514 = vadd.f32 %v5374, %v5444
      %v5515 = vadd.f32 %v5375, %v5445
      %v5516 = vadd.f32 %v5376, %v5446
      %v5517 = vadd.f32 %v5377, %v5447
      %v5518 = vadd.f32 %v5378, %v5448
      %v5519 = vadd.f32 %v5379, %v5449
      %v5520 = vadd.f32 %v5380, %v5450
      %v5521 = vadd.f32 %v5381, %v5451
      %v5522 = vadd.f32 %v5382, %v5452
      %v5523 = vadd.f32 %v5383, %v5453
      %v5524 = vadd.f32 %v5384, %v5454
      %v5525 = vadd.f32 %v5385, %v5455
      %v5526 = vadd.f32 %v5386, %v5456
      %v5527 = vadd.f32 %v5387, %v5457
      %v5528 = vadd.f32 %v5388, %v5458
      %v5529 = vadd.f32 %v5389, %v5459
      %v5530 = vadd.f32 %v5390, %v5460
      %v5531 = vadd.f32 %v5391, %v5461
      %v5532 = vadd.f32 %v5392, %v5462
      %v5533 = vadd.f32 %v5393, %v5463
      %v5534 = vadd.f32 %v5394, %v5464
      %v5535 = vadd.f32 %v5395, %v5465
      %v5536 = vadd.f32 %v5396, %v5466
      %v5537 = vadd.f32 %v5397, %v5467
      %v5538 = vadd.f32 %v5398, %v5468
      %v5539 = vpack.c.bf16 %v5474, %v5469
      %v5540 = vpack.c.bf16 %v5475, %v5470
      %v5541 = vpack.c.bf16 %v5476, %v5471
      %v5542 = vpack.c.bf16 %v5477, %v5472
      %v5543 = vpack.c.bf16 %v5478, %v5473
      %v5544 = vpack.c.bf16 %v5484, %v5479
      %v5545 = vpack.c.bf16 %v5485, %v5480
      %v5546 = vpack.c.bf16 %v5486, %v5481
      %v5547 = vpack.c.bf16 %v5487, %v5482
      %v5548 = vpack.c.bf16 %v5488, %v5483
      %v5549 = vpack.c.bf16 %v5494, %v5489
      %v5550 = vpack.c.bf16 %v5495, %v5490
      %v5551 = vpack.c.bf16 %v5496, %v5491
      %v5552 = vpack.c.bf16 %v5497, %v5492
      %v5553 = vpack.c.bf16 %v5498, %v5493
      %v5554 = vpack.c.bf16 %v5504, %v5499
      %v5555 = vpack.c.bf16 %v5505, %v5500
      %v5556 = vpack.c.bf16 %v5506, %v5501
      %v5557 = vpack.c.bf16 %v5507, %v5502
      %v5558 = vpack.c.bf16 %v5508, %v5503
      %v5559 = vpack.c.bf16 %v5514, %v5509
      %v5560 = vpack.c.bf16 %v5515, %v5510
      %v5561 = vpack.c.bf16 %v5516, %v5511
      %v5562 = vpack.c.bf16 %v5517, %v5512
      %v5563 = vpack.c.bf16 %v5518, %v5513
      %v5564 = vpack.c.bf16 %v5524, %v5519
      %v5565 = vpack.c.bf16 %v5525, %v5520
      %v5566 = vpack.c.bf16 %v5526, %v5521
      %v5567 = vpack.c.bf16 %v5527, %v5522
      %v5568 = vpack.c.bf16 %v5528, %v5523
      %v5569 = vpack.c.bf16 %v5534, %v5529
      %v5570 = vpack.c.bf16 %v5535, %v5530
      %v5571 = vpack.c.bf16 %v5536, %v5531
      %v5572 = vpack.c.bf16 %v5537, %v5532
      %v5573 = vpack.c.bf16 %v5538, %v5533
      %v5574 = vld [vmem:[%s2] sm:$0xf]
      %v5575 = vld [vmem:[%s2 + $0x4] sm:$0xf]
      %v5576 = vld [vmem:[%s2 + $0x8] sm:$0xf]
      %v5577 = vld [vmem:[%s2 + $0xc] sm:$0xf]
      %v5578 = vld [vmem:[%s2 + $0x10] sm:$0xf]
      %v5579 = vld [vmem:[%s2 + $0x14] sm:$0xf]
      %v5580 = vld [vmem:[%s2 + $0x18] sm:$0xf]
      %v5581 = vld [vmem:[%s2 + $0x1c] sm:$0xf]
      %v5582 = vld [vmem:[%s2 + $0x20] sm:$0xf]
      %v5583 = vld [vmem:[%s2 + $0x24] sm:$0xf]
      %v5584 = vld [vmem:[%s2 + $0x28] sm:$0xf]
      %v5585 = vld [vmem:[%s2 + $0x2c] sm:$0xf]
      %v5586 = vld [vmem:[%s2 + $0x30] sm:$0xf]
      %v5587 = vld [vmem:[%s2 + $0x34] sm:$0xf]
      %v5588 = vld [vmem:[%s2 + $0x38] sm:$0xf]
      %v5589 = vld [vmem:[%s2 + $0x3c] sm:$0xf]
      %v5590 = vld [vmem:[%s2 + $0x40] sm:$0xf]
      %v5591 = vld [vmem:[%s2 + $0x44] sm:$0xf]
      %v5592 = vld [vmem:[%s2 + $0x48] sm:$0xf]
      %v5593 = vld [vmem:[%s2 + $0x4c] sm:$0xf]
      %v5594 = vld [vmem:[%s2 + $0x50] sm:$0xf]
      %v5595 = vld [vmem:[%s2 + $0x54] sm:$0xf]
      %v5596 = vld [vmem:[%s2 + $0x58] sm:$0xf]
      %v5597 = vld [vmem:[%s2 + $0x5c] sm:$0xf]
      %v5598 = vld [vmem:[%s2 + $0x60] sm:$0xf]
      %v5599 = vld [vmem:[%s2 + $0x64] sm:$0xf]
      %v5600 = vld [vmem:[%s2 + $0x68] sm:$0xf]
      %v5601 = vld [vmem:[%s2 + $0x6c] sm:$0xf]
      %v5602 = vld [vmem:[%s2 + $0x70] sm:$0xf]
      %v5603 = vld [vmem:[%s2 + $0x74] sm:$0xf]
      %v5604 = vld [vmem:[%s2 + $0x78] sm:$0xf]
      %v5605 = vld [vmem:[%s2 + $0x7c] sm:$0xf]
      %v5606 = vld [vmem:[%s2 + $0x80] sm:$0xf]
      %v5607 = vld [vmem:[%s2 + $0x84] sm:$0xf]
      %v5608 = vld [vmem:[%s2 + $0x88] sm:$0xf]
      %v5609 = vld [vmem:[%s2 + $0x8c] sm:$0xf]
      %v5610 = vld [vmem:[%s2 + $0x90] sm:$0xf]
      %v5611 = vld [vmem:[%s2 + $0x94] sm:$0xf]
      %v5612 = vld [vmem:[%s2 + $0x98] sm:$0xf]
      %v5613 = vld [vmem:[%s2 + $0x9c] sm:$0xf]
      %v5614 = vld [vmem:[%s2 + $0xa0] sm:$0xf]
      %v5615 = vld [vmem:[%s2 + $0xa4] sm:$0xf]
      %v5616 = vld [vmem:[%s2 + $0xa8] sm:$0xf]
      %v5617 = vld [vmem:[%s2 + $0xac] sm:$0xf]
      %v5618 = vld [vmem:[%s2 + $0xb0] sm:$0xf]
      %v5619 = vld [vmem:[%s2 + $0xb4] sm:$0xf]
      %v5620 = vld [vmem:[%s2 + $0xb8] sm:$0xf]
      %v5621 = vld [vmem:[%s2 + $0xbc] sm:$0xf]
      %v5622 = vld [vmem:[%s2 + $0xc0] sm:$0xf]
      %v5623 = vld [vmem:[%s2 + $0xc4] sm:$0xf]
      %v5624 = vld [vmem:[%s2 + $0xc8] sm:$0xf]
      %v5625 = vld [vmem:[%s2 + $0xcc] sm:$0xf]
      %v5626 = vld [vmem:[%s2 + $0xd0] sm:$0xf]
      %v5627 = vld [vmem:[%s2 + $0xd4] sm:$0xf]
      %v5628 = vld [vmem:[%s2 + $0xd8] sm:$0xf]
      %v5629 = vld [vmem:[%s2 + $0xdc] sm:$0xf]
      %v5630 = vld [vmem:[%s2 + $0xe0] sm:$0xf]
      %v5631 = vld [vmem:[%s2 + $0xe4] sm:$0xf]
      %v5632 = vld [vmem:[%s2 + $0xe8] sm:$0xf]
      %v5633 = vld [vmem:[%s2 + $0xec] sm:$0xf]
      %v5634 = vld [vmem:[%s2 + $0xf0] sm:$0xf]
      %v5635 = vld [vmem:[%s2 + $0xf4] sm:$0xf]
      %v5636 = vld [vmem:[%s2 + $0xf8] sm:$0xf]
      %v5637 = vld [vmem:[%s2 + $0xfc] sm:$0xf]
      %v5638 = vld [vmem:[%s2 + $0x100] sm:$0xf]
      %v5639 = vld [vmem:[%s2 + $0x104] sm:$0xf]
      %v5640 = vld [vmem:[%s2 + $0x108] sm:$0xf]
      %v5641 = vld [vmem:[%s2 + $0x10c] sm:$0xf]
      %v5642 = vld [vmem:[%s2 + $0x110] sm:$0xf]
      %v5643 = vld [vmem:[%s2 + $0x114] sm:$0xf]
      %v5644 = vld [vmem:[%s2 + $0x118] sm:$0xf]
      %v5645 = vld [vmem:[%s2 + $0x11c] sm:$0xf]
      %v5646 = vld [vmem:[%s2 + $0x120] sm:$0xf]
      %v5647 = vld [vmem:[%s2 + $0x124] sm:$0xf]
      %v5648 = vld [vmem:[%s2 + $0x128] sm:$0xf]
      %v5649 = vld [vmem:[%s2 + $0x12c] sm:$0xf]
      %v5650 = vld [vmem:[%s2 + $0x130] sm:$0xf]
      %v5651 = vld [vmem:[%s2 + $0x134] sm:$0xf]
      %v5652 = vld [vmem:[%s2 + $0x138] sm:$0xf]
      %v5653 = vld [vmem:[%s2 + $0x13c] sm:$0xf]
      %v5734 = vunpack.c.l.b16 %v5574
      %v5735 = vunpack.c.l.b16 %v5575
      %v5736 = vunpack.c.l.b16 %v5576
      %v5737 = vunpack.c.l.b16 %v5577
      %v5738 = vunpack.c.l.b16 %v5578
      %v5739 = vunpack.c.l.b16 %v5579
      %v5740 = vunpack.c.l.b16 %v5580
      %v5741 = vunpack.c.l.b16 %v5581
      %v5742 = vunpack.c.l.b16 %v5582
      %v5743 = vunpack.c.l.b16 %v5583
      %v5744 = vunpack.c.l.b16 %v5584
      %v5745 = vunpack.c.l.b16 %v5585
      %v5746 = vunpack.c.l.b16 %v5586
      %v5747 = vunpack.c.l.b16 %v5587
      %v5748 = vunpack.c.l.b16 %v5588
      %v5749 = vunpack.c.l.b16 %v5589
      %v5750 = vunpack.c.l.b16 %v5590
      %v5751 = vunpack.c.l.b16 %v5591
      %v5752 = vunpack.c.l.b16 %v5592
      %v5753 = vunpack.c.l.b16 %v5593
      %v5754 = vunpack.c.l.b16 %v5594
      %v5755 = vunpack.c.l.b16 %v5595
      %v5756 = vunpack.c.l.b16 %v5596
      %v5757 = vunpack.c.l.b16 %v5597
      %v5758 = vunpack.c.l.b16 %v5598
      %v5759 = vunpack.c.l.b16 %v5599
      %v5760 = vunpack.c.l.b16 %v5600
      %v5761 = vunpack.c.l.b16 %v5601
      %v5762 = vunpack.c.l.b16 %v5602
      %v5763 = vunpack.c.l.b16 %v5603
      %v5764 = vunpack.c.l.b16 %v5604
      %v5765 = vunpack.c.l.b16 %v5605
      %v5766 = vunpack.c.l.b16 %v5606
      %v5767 = vunpack.c.l.b16 %v5607
      %v5768 = vunpack.c.l.b16 %v5608
      %v5769 = vunpack.c.l.b16 %v5609
      %v5770 = vunpack.c.l.b16 %v5610
      %v5771 = vunpack.c.l.b16 %v5611
      %v5772 = vunpack.c.l.b16 %v5612
      %v5773 = vunpack.c.l.b16 %v5613
      %v5774 = vunpack.c.l.b16 %v5614
      %v5775 = vunpack.c.l.b16 %v5615
      %v5776 = vunpack.c.l.b16 %v5616
      %v5777 = vunpack.c.l.b16 %v5617
      %v5778 = vunpack.c.l.b16 %v5618
      %v5779 = vunpack.c.l.b16 %v5619
      %v5780 = vunpack.c.l.b16 %v5620
      %v5781 = vunpack.c.l.b16 %v5621
      %v5782 = vunpack.c.l.b16 %v5622
      %v5783 = vunpack.c.l.b16 %v5623
      %v5784 = vunpack.c.l.b16 %v5624
      %v5785 = vunpack.c.l.b16 %v5625
      %v5786 = vunpack.c.l.b16 %v5626
      %v5787 = vunpack.c.l.b16 %v5627
      %v5788 = vunpack.c.l.b16 %v5628
      %v5789 = vunpack.c.l.b16 %v5629
      %v5790 = vunpack.c.l.b16 %v5630
      %v5791 = vunpack.c.l.b16 %v5631
      %v5792 = vunpack.c.l.b16 %v5632
      %v5793 = vunpack.c.l.b16 %v5633
      %v5794 = vunpack.c.l.b16 %v5634
      %v5795 = vunpack.c.l.b16 %v5635
      %v5796 = vunpack.c.l.b16 %v5636
      %v5797 = vunpack.c.l.b16 %v5637
      %v5798 = vunpack.c.l.b16 %v5638
      %v5799 = vunpack.c.l.b16 %v5639
      %v5800 = vunpack.c.l.b16 %v5640
      %v5801 = vunpack.c.l.b16 %v5641
      %v5802 = vunpack.c.l.b16 %v5642
      %v5803 = vunpack.c.l.b16 %v5643
      %v5804 = vunpack.c.l.b16 %v5644
      %v5805 = vunpack.c.l.b16 %v5645
      %v5806 = vunpack.c.l.b16 %v5646
      %v5807 = vunpack.c.l.b16 %v5647
      %v5808 = vunpack.c.l.b16 %v5648
      %v5809 = vunpack.c.l.b16 %v5649
      %v5810 = vunpack.c.l.b16 %v5650
      %v5811 = vunpack.c.l.b16 %v5651
      %v5812 = vunpack.c.l.b16 %v5652
      %v5813 = vunpack.c.l.b16 %v5653
      %v5814 = vpack.c.b16 %v5735, %v5734
      %v5815 = vpack.c.b16 %v5737, %v5736
      %v5816 = vpack.c.b16 %v5739, %v5738
      %v5817 = vpack.c.b16 %v5741, %v5740
      %v5818 = vpack.c.b16 %v5743, %v5742
      %v5819 = vpack.c.b16 %v5745, %v5744
      %v5820 = vpack.c.b16 %v5747, %v5746
      %v5821 = vpack.c.b16 %v5749, %v5748
      %v5822 = vpack.c.b16 %v5751, %v5750
      %v5823 = vpack.c.b16 %v5753, %v5752
      %v5824 = vpack.c.b16 %v5755, %v5754
      %v5825 = vpack.c.b16 %v5757, %v5756
      %v5826 = vpack.c.b16 %v5759, %v5758
      %v5827 = vpack.c.b16 %v5761, %v5760
      %v5828 = vpack.c.b16 %v5763, %v5762
      %v5829 = vpack.c.b16 %v5765, %v5764
      %v5830 = vpack.c.b16 %v5767, %v5766
      %v5831 = vpack.c.b16 %v5769, %v5768
      %v5832 = vpack.c.b16 %v5771, %v5770
      %v5833 = vpack.c.b16 %v5773, %v5772
      %v5834 = vpack.c.b16 %v5775, %v5774
      %v5835 = vpack.c.b16 %v5777, %v5776
      %v5836 = vpack.c.b16 %v5779, %v5778
      %v5837 = vpack.c.b16 %v5781, %v5780
      %v5838 = vpack.c.b16 %v5783, %v5782
      %v5839 = vpack.c.b16 %v5785, %v5784
      %v5840 = vpack.c.b16 %v5787, %v5786
      %v5841 = vpack.c.b16 %v5789, %v5788
      %v5842 = vpack.c.b16 %v5791, %v5790
      %v5843 = vpack.c.b16 %v5793, %v5792
      %v5844 = vpack.c.b16 %v5795, %v5794
      %v5845 = vpack.c.b16 %v5797, %v5796
      %v5846 = vpack.c.b16 %v5799, %v5798
      %v5847 = vpack.c.b16 %v5801, %v5800
      %v5848 = vpack.c.b16 %v5803, %v5802
      %v5849 = vpack.c.b16 %v5805, %v5804
      %v5850 = vpack.c.b16 %v5807, %v5806
      %v5851 = vpack.c.b16 %v5809, %v5808
      %v5852 = vpack.c.b16 %v5811, %v5810
      %v5853 = vpack.c.b16 %v5813, %v5812
      %5894 = vmatpush.bf16.msra.mxu0 %v5821
      %5895 = vmatpush.bf16.msra.mxu0 %v5820
      %5896 = vmatpush.bf16.msra.mxu0 %v5819
      %5897 = vmatpush.bf16.msra.mxu0 %v5818
      %5898 = vmatpush.bf16.msra.mxu0 %v5817
      %5899 = vmatpush.bf16.msra.mxu0 %v5816
      %5900 = vmatpush.bf16.msra.mxu0 %v5815
      %5901 = vmatpush.bf16.msra.mxu0 %v5814
      %5902 = vmatmul.bf16.gmra.mxu0 %v5539
      %v5903 = vpop.f32.mrf.mxu0
      %v5904 = vadd.f32 0.0, %v5903
      %v5905 = vpop.f32.mrf.mxu0
      %v5906 = vadd.f32 0.0, %v5905
      %5907 = vmatmul.bf16.gmra.mxu0 %v5544
      %v5908 = vpop.f32.mrf.mxu0
      %v5909 = vadd.f32 0.0, %v5908
      %v5910 = vpop.f32.mrf.mxu0
      %v5911 = vadd.f32 0.0, %v5910
      %5912 = vmatmul.bf16.gmra.mxu0 %v5549
      %v5913 = vpop.f32.mrf.mxu0
      %v5914 = vadd.f32 0.0, %v5913
      %v5915 = vpop.f32.mrf.mxu0
      %v5916 = vadd.f32 0.0, %v5915
      %5917 = vmatmul.bf16.gmra.mxu0 %v5554
      %v5918 = vpop.f32.mrf.mxu0
      %v5919 = vadd.f32 0.0, %v5918
      %v5920 = vpop.f32.mrf.mxu0
      %v5921 = vadd.f32 0.0, %v5920
      %5922 = vmatmul.bf16.gmra.mxu0 %v5559
      %v5923 = vpop.f32.mrf.mxu0
      %v5924 = vadd.f32 0.0, %v5923
      %v5925 = vpop.f32.mrf.mxu0
      %v5926 = vadd.f32 0.0, %v5925
      %5927 = vmatmul.bf16.gmra.mxu0 %v5564
      %v5928 = vpop.f32.mrf.mxu0
      %v5929 = vadd.f32 0.0, %v5928
      %v5930 = vpop.f32.mrf.mxu0
      %v5931 = vadd.f32 0.0, %v5930
      %5932 = vmatmul.bf16.gmra.mxu0 %v5569
      %v5933 = vpop.f32.mrf.mxu0
      %v5934 = vadd.f32 0.0, %v5933
      %v5935 = vpop.f32.mrf.mxu0
      %v5936 = vadd.f32 0.0, %v5935
      %5937 = vdwg.mxu0
      %5938 = vmatpush.bf16.msra.mxu0 %v5829
      %5939 = vmatpush.bf16.msra.mxu0 %v5828
      %5940 = vmatpush.bf16.msra.mxu0 %v5827
      %5941 = vmatpush.bf16.msra.mxu0 %v5826
      %5942 = vmatpush.bf16.msra.mxu0 %v5825
      %5943 = vmatpush.bf16.msra.mxu0 %v5824
      %5944 = vmatpush.bf16.msra.mxu0 %v5823
      %5945 = vmatpush.bf16.msra.mxu0 %v5822
      %5946 = vmatmul.bf16.gmra.mxu0 %v5540
      %v5947 = vpop.f32.mrf.mxu0
      %v5948 = vadd.f32 %v5904, %v5947
      %v5949 = vpop.f32.mrf.mxu0
      %v5950 = vadd.f32 %v5906, %v5949
      %5951 = vmatmul.bf16.gmra.mxu0 %v5545
      %v5952 = vpop.f32.mrf.mxu0
      %v5953 = vadd.f32 %v5909, %v5952
      %v5954 = vpop.f32.mrf.mxu0
      %v5955 = vadd.f32 %v5911, %v5954
      %5956 = vmatmul.bf16.gmra.mxu0 %v5550
      %v5957 = vpop.f32.mrf.mxu0
      %v5958 = vadd.f32 %v5914, %v5957
      %v5959 = vpop.f32.mrf.mxu0
      %v5960 = vadd.f32 %v5916, %v5959
      %5961 = vmatmul.bf16.gmra.mxu0 %v5555
      %v5962 = vpop.f32.mrf.mxu0
      %v5963 = vadd.f32 %v5919, %v5962
      %v5964 = vpop.f32.mrf.mxu0
      %v5965 = vadd.f32 %v5921, %v5964
      %5966 = vmatmul.bf16.gmra.mxu0 %v5560
      %v5967 = vpop.f32.mrf.mxu0
      %v5968 = vadd.f32 %v5924, %v5967
      %v5969 = vpop.f32.mrf.mxu0
      %v5970 = vadd.f32 %v5926, %v5969
      %5971 = vmatmul.bf16.gmra.mxu0 %v5565
      %v5972 = vpop.f32.mrf.mxu0
      %v5973 = vadd.f32 %v5929, %v5972
      %v5974 = vpop.f32.mrf.mxu0
      %v5975 = vadd.f32 %v5931, %v5974
      %5976 = vmatmul.bf16.gmra.mxu0 %v5570
      %v5977 = vpop.f32.mrf.mxu0
      %v5978 = vadd.f32 %v5934, %v5977
      %v5979 = vpop.f32.mrf.mxu0
      %v5980 = vadd.f32 %v5936, %v5979
      %5981 = vdwg.mxu0
      %5982 = vmatpush.bf16.msra.mxu0 %v5837
      %5983 = vmatpush.bf16.msra.mxu0 %v5836
      %5984 = vmatpush.bf16.msra.mxu0 %v5835
      %5985 = vmatpush.bf16.msra.mxu0 %v5834
      %5986 = vmatpush.bf16.msra.mxu0 %v5833
      %5987 = vmatpush.bf16.msra.mxu0 %v5832
      %5988 = vmatpush.bf16.msra.mxu0 %v5831
      %5989 = vmatpush.bf16.msra.mxu0 %v5830
      %5990 = vmatmul.bf16.gmra.mxu0 %v5541
      %v5991 = vpop.f32.mrf.mxu0
      %v5992 = vadd.f32 %v5948, %v5991
      %v5993 = vpop.f32.mrf.mxu0
      %v5994 = vadd.f32 %v5950, %v5993
      %5995 = vmatmul.bf16.gmra.mxu0 %v5546
      %v5996 = vpop.f32.mrf.mxu0
      %v5997 = vadd.f32 %v5953, %v5996
      %v5998 = vpop.f32.mrf.mxu0
      %v5999 = vadd.f32 %v5955, %v5998
      %6000 = vmatmul.bf16.gmra.mxu0 %v5551
      %v6001 = vpop.f32.mrf.mxu0
      %v6002 = vadd.f32 %v5958, %v6001
      %v6003 = vpop.f32.mrf.mxu0
      %v6004 = vadd.f32 %v5960, %v6003
      %6005 = vmatmul.bf16.gmra.mxu0 %v5556
      %v6006 = vpop.f32.mrf.mxu0
      %v6007 = vadd.f32 %v5963, %v6006
      %v6008 = vpop.f32.mrf.mxu0
      %v6009 = vadd.f32 %v5965, %v6008
      %6010 = vmatmul.bf16.gmra.mxu0 %v5561
      %v6011 = vpop.f32.mrf.mxu0
      %v6012 = vadd.f32 %v5968, %v6011
      %v6013 = vpop.f32.mrf.mxu0
      %v6014 = vadd.f32 %v5970, %v6013
      %6015 = vmatmul.bf16.gmra.mxu0 %v5566
      %v6016 = vpop.f32.mrf.mxu0
      %v6017 = vadd.f32 %v5973, %v6016
      %v6018 = vpop.f32.mrf.mxu0
      %v6019 = vadd.f32 %v5975, %v6018
      %6020 = vmatmul.bf16.gmra.mxu0 %v5571
      %v6021 = vpop.f32.mrf.mxu0
      %v6022 = vadd.f32 %v5978, %v6021
      %v6023 = vpop.f32.mrf.mxu0
      %v6024 = vadd.f32 %v5980, %v6023
      %6025 = vdwg.mxu0
      %6026 = vmatpush.bf16.msra.mxu0 %v5845
      %6027 = vmatpush.bf16.msra.mxu0 %v5844
      %6028 = vmatpush.bf16.msra.mxu0 %v5843
      %6029 = vmatpush.bf16.msra.mxu0 %v5842
      %6030 = vmatpush.bf16.msra.mxu0 %v5841
      %6031 = vmatpush.bf16.msra.mxu0 %v5840
      %6032 = vmatpush.bf16.msra.mxu0 %v5839
      %6033 = vmatpush.bf16.msra.mxu0 %v5838
      %6034 = vmatmul.bf16.gmra.mxu0 %v5542
      %v6035 = vpop.f32.mrf.mxu0
      %v6036 = vadd.f32 %v5992, %v6035
      %v6037 = vpop.f32.mrf.mxu0
      %v6038 = vadd.f32 %v5994, %v6037
      %6039 = vmatmul.bf16.gmra.mxu0 %v5547
      %v6040 = vpop.f32.mrf.mxu0
      %v6041 = vadd.f32 %v5997, %v6040
      %v6042 = vpop.f32.mrf.mxu0
      %v6043 = vadd.f32 %v5999, %v6042
      %6044 = vmatmul.bf16.gmra.mxu0 %v5552
      %v6045 = vpop.f32.mrf.mxu0
      %v6046 = vadd.f32 %v6002, %v6045
      %v6047 = vpop.f32.mrf.mxu0
      %v6048 = vadd.f32 %v6004, %v6047
      %6049 = vmatmul.bf16.gmra.mxu0 %v5557
      %v6050 = vpop.f32.mrf.mxu0
      %v6051 = vadd.f32 %v6007, %v6050
      %v6052 = vpop.f32.mrf.mxu0
      %v6053 = vadd.f32 %v6009, %v6052
      %6054 = vmatmul.bf16.gmra.mxu0 %v5562
      %v6055 = vpop.f32.mrf.mxu0
      %v6056 = vadd.f32 %v6012, %v6055
      %v6057 = vpop.f32.mrf.mxu0
      %v6058 = vadd.f32 %v6014, %v6057
      %6059 = vmatmul.bf16.gmra.mxu0 %v5567
      %v6060 = vpop.f32.mrf.mxu0
      %v6061 = vadd.f32 %v6017, %v6060
      %v6062 = vpop.f32.mrf.mxu0
      %v6063 = vadd.f32 %v6019, %v6062
      %6064 = vmatmul.bf16.gmra.mxu0 %v5572
      %v6065 = vpop.f32.mrf.mxu0
      %v6066 = vadd.f32 %v6022, %v6065
      %v6067 = vpop.f32.mrf.mxu0
      %v6068 = vadd.f32 %v6024, %v6067
      %6069 = vdwg.mxu0
      %6070 = vmatpush.bf16.msra.mxu0 %v5853
      %6071 = vmatpush.bf16.msra.mxu0 %v5852
      %6072 = vmatpush.bf16.msra.mxu0 %v5851
      %6073 = vmatpush.bf16.msra.mxu0 %v5850
      %6074 = vmatpush.bf16.msra.mxu0 %v5849
      %6075 = vmatpush.bf16.msra.mxu0 %v5848
      %6076 = vmatpush.bf16.msra.mxu0 %v5847
      %6077 = vmatpush.bf16.msra.mxu0 %v5846
      %6078 = vmatmul.bf16.gmra.mxu0 %v5543
      %v6079 = vpop.f32.mrf.mxu0
      %v6080 = vadd.f32 %v6036, %v6079
      %v6081 = vpop.f32.mrf.mxu0
      %v6082 = vadd.f32 %v6038, %v6081
      %6083 = vmatmul.bf16.gmra.mxu0 %v5548
      %v6084 = vpop.f32.mrf.mxu0
      %v6085 = vadd.f32 %v6041, %v6084
      %v6086 = vpop.f32.mrf.mxu0
      %v6087 = vadd.f32 %v6043, %v6086
      %6088 = vmatmul.bf16.gmra.mxu0 %v5553
      %v6089 = vpop.f32.mrf.mxu0
      %v6090 = vadd.f32 %v6046, %v6089
      %v6091 = vpop.f32.mrf.mxu0
      %v6092 = vadd.f32 %v6048, %v6091
      %6093 = vmatmul.bf16.gmra.mxu0 %v5558
      %v6094 = vpop.f32.mrf.mxu0
      %v6095 = vadd.f32 %v6051, %v6094
      %v6096 = vpop.f32.mrf.mxu0
      %v6097 = vadd.f32 %v6053, %v6096
      %6098 = vmatmul.bf16.gmra.mxu0 %v5563
      %v6099 = vpop.f32.mrf.mxu0
      %v6100 = vadd.f32 %v6056, %v6099
      %v6101 = vpop.f32.mrf.mxu0
      %v6102 = vadd.f32 %v6058, %v6101
      %6103 = vmatmul.bf16.gmra.mxu0 %v5568
      %v6104 = vpop.f32.mrf.mxu0
      %v6105 = vadd.f32 %v6061, %v6104
      %v6106 = vpop.f32.mrf.mxu0
      %v6107 = vadd.f32 %v6063, %v6106
      %6108 = vmatmul.bf16.gmra.mxu0 %v5573
      %v6109 = vpop.f32.mrf.mxu0
      %v6110 = vadd.f32 %v6066, %v6109
      %v6111 = vpop.f32.mrf.mxu0
      %v6112 = vadd.f32 %v6068, %v6111
      %6113 = vdwg.mxu0
      %v6114 = vmax.f32 %v6080, 1e-10
      %v6115 = vmax.f32 %v6082, 1e-10
      %v6116 = vmax.f32 %v6085, 1e-10
      %v6117 = vmax.f32 %v6087, 1e-10
      %v6118 = vmax.f32 %v6090, 1e-10
      %v6119 = vmax.f32 %v6092, 1e-10
      %v6120 = vmax.f32 %v6095, 1e-10
      %v6121 = vmax.f32 %v6097, 1e-10
      %v6122 = vmax.f32 %v6100, 1e-10
      %v6123 = vmax.f32 %v6102, 1e-10
      %v6124 = vmax.f32 %v6105, 1e-10
      %v6125 = vmax.f32 %v6107, 1e-10
      %v6126 = vmax.f32 %v6110, 1e-10
      %v6127 = vmax.f32 %v6112, 1e-10
      %v6128 = vlog2.pop %v6114
      %v6129 = vmul.f32 %v6128, 0.6931472
      %v6130 = vlog2.pop %v6115
      %v6131 = vmul.f32 %v6130, 0.6931472
      %v6132 = vlog2.pop %v6116
      %v6133 = vmul.f32 %v6132, 0.6931472
      %v6134 = vlog2.pop %v6117
      %v6135 = vmul.f32 %v6134, 0.6931472
      %v6136 = vlog2.pop %v6118
      %v6137 = vmul.f32 %v6136, 0.6931472
      %v6138 = vlog2.pop %v6119
      %v6139 = vmul.f32 %v6138, 0.6931472
      %v6140 = vlog2.pop %v6120
      %v6141 = vmul.f32 %v6140, 0.6931472
      %v6142 = vlog2.pop %v6121
      %v6143 = vmul.f32 %v6142, 0.6931472
      %v6144 = vlog2.pop %v6122
      %v6145 = vmul.f32 %v6144, 0.6931472
      %v6146 = vlog2.pop %v6123
      %v6147 = vmul.f32 %v6146, 0.6931472
      %v6148 = vlog2.pop %v6124
      %v6149 = vmul.f32 %v6148, 0.6931472
      %v6150 = vlog2.pop %v6125
      %v6151 = vmul.f32 %v6150, 0.6931472
      %v6152 = vlog2.pop %v6126
      %v6153 = vmul.f32 %v6152, 0.6931472
      %v6154 = vlog2.pop %v6127
      %v6155 = vmul.f32 %v6154, 0.6931472
      %v6156 = vmul.f32 %v6129, 8.685889
      %v6157 = vmul.f32 %v6131, 8.685889
      %v6158 = vmul.f32 %v6133, 8.685889
      %v6159 = vmul.f32 %v6135, 8.685889
      %v6160 = vmul.f32 %v6137, 8.685889
      %v6161 = vmul.f32 %v6139, 8.685889
      %v6162 = vmul.f32 %v6141, 8.685889
      %v6163 = vmul.f32 %v6143, 8.685889
      %v6164 = vmul.f32 %v6145, 8.685889
      %v6165 = vmul.f32 %v6147, 8.685889
      %v6166 = vmul.f32 %v6149, 8.685889
      %v6167 = vmul.f32 %v6151, 8.685889
      %v6168 = vmul.f32 %v6153, 8.685889
      %v6169 = vmul.f32 %v6155, 8.685889
      %v6170 = vmax.f32 %v6156, %v6160
      %v6171 = vmax.f32 %v6157, %v6161
      %v6172 = vmax.f32 %v6158, %v6162
      %v6173 = vmax.f32 %v6159, %v6163
      %v6174 = vmax.f32 %v6170, %v6164
      %v6175 = vmax.f32 %v6171, %v6165
      %v6176 = vmax.f32 %v6172, %v6166
      %v6177 = vmax.f32 %v6173, %v6167
      %v6178 = vmax.f32 %v6174, %v6168
      %v6179 = vmax.f32 %v6175, %v6169
      %v6180 = vmax.f32 %v6178, %v6179
      %v6181 = vmax.f32 %v6176, %v6177
      %v6182 = vmax.f32 %v6180, %v6181
      %6183 = vmax.xlane.f32.xlu0 %v6182
      %v6184 = vpop.xlane.xlu0 %6183
      %v6185 = vrot.slane %v6184, 4
      %v6186 = vmax.f32 %v6184, %v6185
      %v6187 = vrot.slane %v6186, 2
      %v6188 = vmax.f32 %v6186, %v6187
      %v6189 = vrot.slane %v6188, 1
      %v6190 = vmax.f32 %v6188, %v6189
      %s6191 = vtos %v6190
      %s6192 = ssub.f32 %s6191, 80.0
      %v6193 = vstv %s6192
      %v6194 = vmax.f32 %v6156, %v6193
      %v6195 = vmax.f32 %v6157, %v6193
      %v6196 = vmax.f32 %v6158, %v6193
      %v6197 = vmax.f32 %v6159, %v6193
      %v6198 = vmax.f32 %v6160, %v6193
      %v6199 = vmax.f32 %v6161, %v6193
      %v6200 = vmax.f32 %v6162, %v6193
      %v6201 = vmax.f32 %v6163, %v6193
      %v6202 = vmax.f32 %v6164, %v6193
      %v6203 = vmax.f32 %v6165, %v6193
      %v6204 = vmax.f32 %v6166, %v6193
      %v6205 = vmax.f32 %v6167, %v6193
      %v6206 = vmax.f32 %v6168, %v6193
      %v6207 = vmax.f32 %v6169, %v6193
      %6208 = vst [vmem:[%s224] sm:$0xff] %v6194
      %6209 = vst [vmem:[%s224 + $0x8] sm:$0xff] %v6195
      %6210 = vst [vmem:[%s224 + $0x10] sm:$0xff] %v6196
      %6211 = vst [vmem:[%s224 + $0x18] sm:$0xff] %v6197
      %6212 = vst [vmem:[%s224 + $0x20] sm:$0xff] %v6198
      %6213 = vst [vmem:[%s224 + $0x28] sm:$0xff] %v6199
      %6214 = vst [vmem:[%s224 + $0x30] sm:$0xff] %v6200
      %s6215 = scalar_lea.vmem %s224, 56
      %6216 = vst [vmem:[%s6215] sm:$0xff] %v6201
      %6217 = vst [vmem:[%s6215 + $0x8] sm:$0xff] %v6202
      %6218 = vst [vmem:[%s6215 + $0x10] sm:$0xff] %v6203
      %6219 = vst [vmem:[%s6215 + $0x18] sm:$0xff] %v6204
      %6220 = vst [vmem:[%s6215 + $0x20] sm:$0xff] %v6205
      %6221 = vst [vmem:[%s6215 + $0x28] sm:$0xff] %v6206
      %6222 = vst [vmem:[%s6215 + $0x30] sm:$0xff] %v6207
      %v6223 = vld [vmem:[#allocation2] sm:$0xff]
      %v6224 = vld [vmem:[#allocation2 + $0x8] sm:$0xff]
      %v6225 = vld [vmem:[#allocation2 + $0x10] sm:$0xff]
      %v6226 = vld [vmem:[#allocation2 + $0x18] sm:$0xff]
      %v6227 = vld [vmem:[#allocation2 + $0x20] sm:$0xff]
      %v6228 = vld [vmem:[#allocation2 + $0x50] sm:$0xff]
      %v6229 = vld [vmem:[#allocation2 + $0x58] sm:$0xff]
      %v6230 = vld [vmem:[#allocation2 + $0x60] sm:$0xff]
      %v6231 = vld [vmem:[#allocation2 + $0x68] sm:$0xff]
      %v6232 = vld [vmem:[#allocation2 + $0x70] sm:$0xff]
      %v6233 = vld [vmem:[#allocation2 + $0xa0] sm:$0xff]
      %v6234 = vld [vmem:[#allocation2 + $0xa8] sm:$0xff]
      %v6235 = vld [vmem:[#allocation2 + $0xb0] sm:$0xff]
      %v6236 = vld [vmem:[#allocation2 + $0xb8] sm:$0xff]
      %v6237 = vld [vmem:[#allocation2 + $0xc0] sm:$0xff]
      %v6238 = vld [vmem:[#allocation2 + $0xf0] sm:$0xff]
      %v6239 = vld [vmem:[#allocation2 + $0xf8] sm:$0xff]
      %v6240 = vld [vmem:[#allocation2 + $0x100] sm:$0xff]
      %v6241 = vld [vmem:[#allocation2 + $0x108] sm:$0xff]
      %v6242 = vld [vmem:[#allocation2 + $0x110] sm:$0xff]
      %v6243 = vld [vmem:[#allocation2 + $0x140] sm:$0xff]
      %v6244 = vld [vmem:[#allocation2 + $0x148] sm:$0xff]
      %v6245 = vld [vmem:[#allocation2 + $0x150] sm:$0xff]
      %v6246 = vld [vmem:[#allocation2 + $0x158] sm:$0xff]
      %v6247 = vld [vmem:[#allocation2 + $0x160] sm:$0xff]
      %v6248 = vld [vmem:[#allocation2 + $0x190] sm:$0xff]
      %v6249 = vld [vmem:[#allocation2 + $0x198] sm:$0xff]
      %v6250 = vld [vmem:[#allocation2 + $0x1a0] sm:$0xff]
      %v6251 = vld [vmem:[#allocation2 + $0x1a8] sm:$0xff]
      %v6252 = vld [vmem:[#allocation2 + $0x1b0] sm:$0xff]
      %v6253 = vld [vmem:[#allocation2 + $0x1e0] sm:$0xff]
      %v6254 = vld [vmem:[#allocation2 + $0x1e8] sm:$0xff]
      %v6255 = vld [vmem:[#allocation2 + $0x1f0] sm:$0xff]
      %v6256 = vld [vmem:[#allocation2 + $0x1f8] sm:$0xff]
      %v6257 = vld [vmem:[#allocation2 + $0x200] sm:$0xff]
      %v6258 = vld [vmem:[#allocation2 + $0x28] sm:$0xff]
      %v6259 = vld [vmem:[#allocation2 + $0x30] sm:$0xff]
      %v6260 = vld [vmem:[#allocation2 + $0x38] sm:$0xff]
      %v6261 = vld [vmem:[#allocation2 + $0x40] sm:$0xff]
      %v6262 = vld [vmem:[#allocation2 + $0x48] sm:$0xff]
      %v6263 = vld [vmem:[#allocation2 + $0x78] sm:$0xff]
      %v6264 = vld [vmem:[#allocation2 + $0x80] sm:$0xff]
      %v6265 = vld [vmem:[#allocation2 + $0x88] sm:$0xff]
      %v6266 = vld [vmem:[#allocation2 + $0x90] sm:$0xff]
      %v6267 = vld [vmem:[#allocation2 + $0x98] sm:$0xff]
      %v6268 = vld [vmem:[#allocation2 + $0xc8] sm:$0xff]
      %v6269 = vld [vmem:[#allocation2 + $0xd0] sm:$0xff]
      %v6270 = vld [vmem:[#allocation2 + $0xd8] sm:$0xff]
      %v6271 = vld [vmem:[#allocation2 + $0xe0] sm:$0xff]
      %v6272 = vld [vmem:[#allocation2 + $0xe8] sm:$0xff]
      %v6273 = vld [vmem:[#allocation2 + $0x118] sm:$0xff]
      %v6274 = vld [vmem:[#allocation2 + $0x120] sm:$0xff]
      %v6275 = vld [vmem:[#allocation2 + $0x128] sm:$0xff]
      %v6276 = vld [vmem:[#allocation2 + $0x130] sm:$0xff]
      %v6277 = vld [vmem:[#allocation2 + $0x138] sm:$0xff]
      %v6278 = vld [vmem:[#allocation2 + $0x168] sm:$0xff]
      %v6279 = vld [vmem:[#allocation2 + $0x170] sm:$0xff]
      %v6280 = vld [vmem:[#allocation2 + $0x178] sm:$0xff]
      %v6281 = vld [vmem:[#allocation2 + $0x180] sm:$0xff]
      %v6282 = vld [vmem:[#allocation2 + $0x188] sm:$0xff]
      %v6283 = vld [vmem:[#allocation2 + $0x1b8] sm:$0xff]
      %v6284 = vld [vmem:[#allocation2 + $0x1c0] sm:$0xff]
      %v6285 = vld [vmem:[#allocation2 + $0x1c8] sm:$0xff]
      %v6286 = vld [vmem:[#allocation2 + $0x1d0] sm:$0xff]
      %v6287 = vld [vmem:[#allocation2 + $0x1d8] sm:$0xff]
      %v6288 = vld [vmem:[#allocation2 + $0x208] sm:$0xff]
      %v6289 = vld [vmem:[#allocation2 + $0x210] sm:$0xff]
      %v6290 = vld [vmem:[#allocation2 + $0x218] sm:$0xff]
      %v6291 = vld [vmem:[#allocation2 + $0x220] sm:$0xff]
      %v6292 = vld [vmem:[#allocation2 + $0x228] sm:$0xff]
      %v6293 = vld [vmem:[#allocation2 + $0x230] sm:$0xff]
      %v6294 = vld [vmem:[#allocation2 + $0x238] sm:$0xff]
      %v6295 = vld [vmem:[#allocation2 + $0x240] sm:$0xff]
      %v6296 = vld [vmem:[#allocation2 + $0x248] sm:$0xff]
      %v6297 = vld [vmem:[#allocation2 + $0x250] sm:$0xff]
      %v6298 = vld [vmem:[#allocation2 + $0x280] sm:$0xff]
      %v6299 = vld [vmem:[#allocation2 + $0x288] sm:$0xff]
      %v6300 = vld [vmem:[#allocation2 + $0x290] sm:$0xff]
      %v6301 = vld [vmem:[#allocation2 + $0x298] sm:$0xff]
      %v6302 = vld [vmem:[#allocation2 + $0x2a0] sm:$0xff]
      %v6303 = vld [vmem:[#allocation2 + $0x2d0] sm:$0xff]
      %v6304 = vld [vmem:[#allocation2 + $0x2d8] sm:$0xff]
      %v6305 = vld [vmem:[#allocation2 + $0x2e0] sm:$0xff]
      %v6306 = vld [vmem:[#allocation2 + $0x2e8] sm:$0xff]
      %v6307 = vld [vmem:[#allocation2 + $0x2f0] sm:$0xff]
      %v6308 = vld [vmem:[#allocation2 + $0x320] sm:$0xff]
      %v6309 = vld [vmem:[#allocation2 + $0x328] sm:$0xff]
      %v6310 = vld [vmem:[#allocation2 + $0x330] sm:$0xff]
      %v6311 = vld [vmem:[#allocation2 + $0x338] sm:$0xff]
      %v6312 = vld [vmem:[#allocation2 + $0x340] sm:$0xff]
      %v6313 = vld [vmem:[#allocation2 + $0x370] sm:$0xff]
      %v6314 = vld [vmem:[#allocation2 + $0x378] sm:$0xff]
      %v6315 = vld [vmem:[#allocation2 + $0x380] sm:$0xff]
      %v6316 = vld [vmem:[#allocation2 + $0x388] sm:$0xff]
      %v6317 = vld [vmem:[#allocation2 + $0x390] sm:$0xff]
      %v6318 = vld [vmem:[#allocation2 + $0x3c0] sm:$0xff]
      %v6319 = vld [vmem:[#allocation2 + $0x3c8] sm:$0xff]
      %v6320 = vld [vmem:[#allocation2 + $0x3d0] sm:$0xff]
      %v6321 = vld [vmem:[#allocation2 + $0x3d8] sm:$0xff]
      %v6322 = vld [vmem:[#allocation2 + $0x3e0] sm:$0xff]
      %v6323 = vld [vmem:[#allocation2 + $0x410] sm:$0xff]
      %v6324 = vld [vmem:[#allocation2 + $0x418] sm:$0xff]
      %v6325 = vld [vmem:[#allocation2 + $0x420] sm:$0xff]
      %v6326 = vld [vmem:[#allocation2 + $0x428] sm:$0xff]
      %v6327 = vld [vmem:[#allocation2 + $0x430] sm:$0xff]
      %v6328 = vld [vmem:[#allocation2 + $0x258] sm:$0xff]
      %v6329 = vld [vmem:[#allocation2 + $0x260] sm:$0xff]
      %v6330 = vld [vmem:[#allocation2 + $0x268] sm:$0xff]
      %v6331 = vld [vmem:[#allocation2 + $0x270] sm:$0xff]
      %v6332 = vld [vmem:[#allocation2 + $0x278] sm:$0xff]
      %v6333 = vld [vmem:[#allocation2 + $0x2a8] sm:$0xff]
      %v6334 = vld [vmem:[#allocation2 + $0x2b0] sm:$0xff]
      %v6335 = vld [vmem:[#allocation2 + $0x2b8] sm:$0xff]
      %v6336 = vld [vmem:[#allocation2 + $0x2c0] sm:$0xff]
      %v6337 = vld [vmem:[#allocation2 + $0x2c8] sm:$0xff]
      %v6338 = vld [vmem:[#allocation2 + $0x2f8] sm:$0xff]
      %v6339 = vld [vmem:[#allocation2 + $0x300] sm:$0xff]
      %v6340 = vld [vmem:[#allocation2 + $0x308] sm:$0xff]
      %v6341 = vld [vmem:[#allocation2 + $0x310] sm:$0xff]
      %v6342 = vld [vmem:[#allocation2 + $0x318] sm:$0xff]
      %v6343 = vld [vmem:[#allocation2 + $0x348] sm:$0xff]
      %v6344 = vld [vmem:[#allocation2 + $0x350] sm:$0xff]
      %v6345 = vld [vmem:[#allocation2 + $0x358] sm:$0xff]
      %v6346 = vld [vmem:[#allocation2 + $0x360] sm:$0xff]
      %v6347 = vld [vmem:[#allocation2 + $0x368] sm:$0xff]
      %v6348 = vld [vmem:[#allocation2 + $0x398] sm:$0xff]
      %v6349 = vld [vmem:[#allocation2 + $0x3a0] sm:$0xff]
      %v6350 = vld [vmem:[#allocation2 + $0x3a8] sm:$0xff]
      %v6351 = vld [vmem:[#allocation2 + $0x3b0] sm:$0xff]
      %v6352 = vld [vmem:[#allocation2 + $0x3b8] sm:$0xff]
      %v6353 = vld [vmem:[#allocation2 + $0x3e8] sm:$0xff]
      %v6354 = vld [vmem:[#allocation2 + $0x3f0] sm:$0xff]
      %v6355 = vld [vmem:[#allocation2 + $0x3f8] sm:$0xff]
      %v6356 = vld [vmem:[#allocation2 + $0x400] sm:$0xff]
      %v6357 = vld [vmem:[#allocation2 + $0x408] sm:$0xff]
      %v6358 = vld [vmem:[#allocation2 + $0x438] sm:$0xff]
      %v6359 = vld [vmem:[#allocation2 + $0x440] sm:$0xff]
      %v6360 = vld [vmem:[#allocation2 + $0x448] sm:$0xff]
      %v6361 = vld [vmem:[#allocation2 + $0x450] sm:$0xff]
      %v6362 = vld [vmem:[#allocation2 + $0x458] sm:$0xff]
      %v6363 = vmul.f32 %v6223, %v6293
      %v6364 = vmul.f32 %v6224, %v6294
      %v6365 = vmul.f32 %v6225, %v6295
      %v6366 = vmul.f32 %v6226, %v6296
      %v6367 = vmul.f32 %v6227, %v6297
      %v6368 = vmul.f32 %v6228, %v6298
      %v6369 = vmul.f32 %v6229, %v6299
      %v6370 = vmul.f32 %v6230, %v6300
      %v6371 = vmul.f32 %v6231, %v6301
      %v6372 = vmul.f32 %v6232, %v6302
      %v6373 = vmul.f32 %v6233, %v6303
      %v6374 = vmul.f32 %v6234, %v6304
      %v6375 = vmul.f32 %v6235, %v6305
      %v6376 = vmul.f32 %v6236, %v6306
      %v6377 = vmul.f32 %v6237, %v6307
      %v6378 = vmul.f32 %v6238, %v6308
      %v6379 = vmul.f32 %v6239, %v6309
      %v6380 = vmul.f32 %v6240, %v6310
      %v6381 = vmul.f32 %v6241, %v6311
      %v6382 = vmul.f32 %v6242, %v6312
      %v6383 = vmul.f32 %v6243, %v6313
      %v6384 = vmul.f32 %v6244, %v6314
      %v6385 = vmul.f32 %v6245, %v6315
      %v6386 = vmul.f32 %v6246, %v6316
      %v6387 = vmul.f32 %v6247, %v6317
      %v6388 = vmul.f32 %v6248, %v6318
      %v6389 = vmul.f32 %v6249, %v6319
      %v6390 = vmul.f32 %v6250, %v6320
      %v6391 = vmul.f32 %v6251, %v6321
      %v6392 = vmul.f32 %v6252, %v6322
      %v6393 = vmul.f32 %v6253, %v6323
      %v6394 = vmul.f32 %v6254, %v6324
      %v6395 = vmul.f32 %v6255, %v6325
      %v6396 = vmul.f32 %v6256, %v6326
      %v6397 = vmul.f32 %v6257, %v6327
      %v6398 = vmul.f32 %v6258, %v6328
      %v6399 = vmul.f32 %v6259, %v6329
      %v6400 = vmul.f32 %v6260, %v6330
      %v6401 = vmul.f32 %v6261, %v6331
      %v6402 = vmul.f32 %v6262, %v6332
      %v6403 = vmul.f32 %v6263, %v6333
      %v6404 = vmul.f32 %v6264, %v6334
      %v6405 = vmul.f32 %v6265, %v6335
      %v6406 = vmul.f32 %v6266, %v6336
      %v6407 = vmul.f32 %v6267, %v6337
      %v6408 = vmul.f32 %v6268, %v6338
      %v6409 = vmul.f32 %v6269, %v6339
      %v6410 = vmul.f32 %v6270, %v6340
      %v6411 = vmul.f32 %v6271, %v6341
      %v6412 = vmul.f32 %v6272, %v6342
      %v6413 = vmul.f32 %v6273, %v6343
      %v6414 = vmul.f32 %v6274, %v6344
      %v6415 = vmul.f32 %v6275, %v6345
      %v6416 = vmul.f32 %v6276, %v6346
      %v6417 = vmul.f32 %v6277, %v6347
      %v6418 = vmul.f32 %v6278, %v6348
      %v6419 = vmul.f32 %v6279, %v6349
      %v6420 = vmul.f32 %v6280, %v6350
      %v6421 = vmul.f32 %v6281, %v6351
      %v6422 = vmul.f32 %v6282, %v6352
      %v6423 = vmul.f32 %v6283, %v6353
      %v6424 = vmul.f32 %v6284, %v6354
      %v6425 = vmul.f32 %v6285, %v6355
      %v6426 = vmul.f32 %v6286, %v6356
      %v6427 = vmul.f32 %v6287, %v6357
      %v6428 = vmul.f32 %v6288, %v6358
      %v6429 = vmul.f32 %v6289, %v6359
      %v6430 = vmul.f32 %v6290, %v6360
      %v6431 = vmul.f32 %v6291, %v6361
      %v6432 = vmul.f32 %v6292, %v6362
      %v6433 = vadd.f32 %v6363, %v6398
      %v6434 = vadd.f32 %v6364, %v6399
      %v6435 = vadd.f32 %v6365, %v6400
      %v6436 = vadd.f32 %v6366, %v6401
      %v6437 = vadd.f32 %v6367, %v6402
      %v6438 = vadd.f32 %v6368, %v6403
      %v6439 = vadd.f32 %v6369, %v6404
      %v6440 = vadd.f32 %v6370, %v6405
      %v6441 = vadd.f32 %v6371, %v6406
      %v6442 = vadd.f32 %v6372, %v6407
      %v6443 = vadd.f32 %v6373, %v6408
      %v6444 = vadd.f32 %v6374, %v6409
      %v6445 = vadd.f32 %v6375, %v6410
      %v6446 = vadd.f32 %v6376, %v6411
      %v6447 = vadd.f32 %v6377, %v6412
      %v6448 = vadd.f32 %v6378, %v6413
      %v6449 = vadd.f32 %v6379, %v6414
      %v6450 = vadd.f32 %v6380, %v6415
      %v6451 = vadd.f32 %v6381, %v6416
      %v6452 = vadd.f32 %v6382, %v6417
      %v6453 = vadd.f32 %v6383, %v6418
      %v6454 = vadd.f32 %v6384, %v6419
      %v6455 = vadd.f32 %v6385, %v6420
      %v6456 = vadd.f32 %v6386, %v6421
      %v6457 = vadd.f32 %v6387, %v6422
      %v6458 = vadd.f32 %v6388, %v6423
      %v6459 = vadd.f32 %v6389, %v6424
      %v6460 = vadd.f32 %v6390, %v6425
      %v6461 = vadd.f32 %v6391, %v6426
      %v6462 = vadd.f32 %v6392, %v6427
      %v6463 = vadd.f32 %v6393, %v6428
      %v6464 = vadd.f32 %v6394, %v6429
      %v6465 = vadd.f32 %v6395, %v6430
      %v6466 = vadd.f32 %v6396, %v6431
      %v6467 = vadd.f32 %v6397, %v6432
      %v6468 = vmul.f32 %v6258, %v6293
      %v6469 = vmul.f32 %v6259, %v6294
      %v6470 = vmul.f32 %v6260, %v6295
      %v6471 = vmul.f32 %v6261, %v6296
      %v6472 = vmul.f32 %v6262, %v6297
      %v6473 = vmul.f32 %v6263, %v6298
      %v6474 = vmul.f32 %v6264, %v6299
      %v6475 = vmul.f32 %v6265, %v6300
      %v6476 = vmul.f32 %v6266, %v6301
      %v6477 = vmul.f32 %v6267, %v6302
      %v6478 = vmul.f32 %v6268, %v6303
      %v6479 = vmul.f32 %v6269, %v6304
      %v6480 = vmul.f32 %v6270, %v6305
      %v6481 = vmul.f32 %v6271, %v6306
      %v6482 = vmul.f32 %v6272, %v6307
      %v6483 = vmul.f32 %v6273, %v6308
      %v6484 = vmul.f32 %v6274, %v6309
      %v6485 = vmul.f32 %v6275, %v6310
      %v6486 = vmul.f32 %v6276, %v6311
      %v6487 = vmul.f32 %v6277, %v6312
      %v6488 = vmul.f32 %v6278, %v6313
      %v6489 = vmul.f32 %v6279, %v6314
      %v6490 = vmul.f32 %v6280, %v6315
      %v6491 = vmul.f32 %v6281, %v6316
      %v6492 = vmul.f32 %v6282, %v6317
      %v6493 = vmul.f32 %v6283, %v6318
      %v6494 = vmul.f32 %v6284, %v6319
      %v6495 = vmul.f32 %v6285, %v6320
      %v6496 = vmul.f32 %v6286, %v6321
      %v6497 = vmul.f32 %v6287, %v6322
      %v6498 = vmul.f32 %v6288, %v6323
      %v6499 = vmul.f32 %v6289, %v6324
      %v6500 = vmul.f32 %v6290, %v6325
      %v6501 = vmul.f32 %v6291, %v6326
      %v6502 = vmul.f32 %v6292, %v6327
      %v6503 = vmul.f32 %v6223, %v6328
      %v6504 = vmul.f32 %v6224, %v6329
      %v6505 = vmul.f32 %v6225, %v6330
      %v6506 = vmul.f32 %v6226, %v6331
      %v6507 = vmul.f32 %v6227, %v6332
      %v6508 = vmul.f32 %v6228, %v6333
      %v6509 = vmul.f32 %v6229, %v6334
      %v6510 = vmul.f32 %v6230, %v6335
      %v6511 = vmul.f32 %v6231, %v6336
      %v6512 = vmul.f32 %v6232, %v6337
      %v6513 = vmul.f32 %v6233, %v6338
      %v6514 = vmul.f32 %v6234, %v6339
      %v6515 = vmul.f32 %v6235, %v6340
      %v6516 = vmul.f32 %v6236, %v6341
      %v6517 = vmul.f32 %v6237, %v6342
      %v6518 = vmul.f32 %v6238, %v6343
      %v6519 = vmul.f32 %v6239, %v6344
      %v6520 = vmul.f32 %v6240, %v6345
      %v6521 = vmul.f32 %v6241, %v6346
      %v6522 = vmul.f32 %v6242, %v6347
      %v6523 = vmul.f32 %v6243, %v6348
      %v6524 = vmul.f32 %v6244, %v6349
      %v6525 = vmul.f32 %v6245, %v6350
      %v6526 = vmul.f32 %v6246, %v6351
      %v6527 = vmul.f32 %v6247, %v6352
      %v6528 = vmul.f32 %v6248, %v6353
      %v6529 = vmul.f32 %v6249, %v6354
      %v6530 = vmul.f32 %v6250, %v6355
      %v6531 = vmul.f32 %v6251, %v6356
      %v6532 = vmul.f32 %v6252, %v6357
      %v6533 = vmul.f32 %v6253, %v6358
      %v6534 = vmul.f32 %v6254, %v6359
      %v6535 = vmul.f32 %v6255, %v6360
      %v6536 = vmul.f32 %v6256, %v6361
      %v6537 = vmul.f32 %v6257, %v6362
      %v6538 = vsub.f32 %v6468, %v6503
      %v6539 = vsub.f32 %v6469, %v6504
      %v6540 = vsub.f32 %v6470, %v6505
      %v6541 = vsub.f32 %v6471, %v6506
      %v6542 = vsub.f32 %v6472, %v6507
      %v6543 = vsub.f32 %v6473, %v6508
      %v6544 = vsub.f32 %v6474, %v6509
      %v6545 = vsub.f32 %v6475, %v6510
      %v6546 = vsub.f32 %v6476, %v6511
      %v6547 = vsub.f32 %v6477, %v6512
      %v6548 = vsub.f32 %v6478, %v6513
      %v6549 = vsub.f32 %v6479, %v6514
      %v6550 = vsub.f32 %v6480, %v6515
      %v6551 = vsub.f32 %v6481, %v6516
      %v6552 = vsub.f32 %v6482, %v6517
      %v6553 = vsub.f32 %v6483, %v6518
      %v6554 = vsub.f32 %v6484, %v6519
      %v6555 = vsub.f32 %v6485, %v6520
      %v6556 = vsub.f32 %v6486, %v6521
      %v6557 = vsub.f32 %v6487, %v6522
      %v6558 = vsub.f32 %v6488, %v6523
      %v6559 = vsub.f32 %v6489, %v6524
      %v6560 = vsub.f32 %v6490, %v6525
      %v6561 = vsub.f32 %v6491, %v6526
      %v6562 = vsub.f32 %v6492, %v6527
      %v6563 = vsub.f32 %v6493, %v6528
      %v6564 = vsub.f32 %v6494, %v6529
      %v6565 = vsub.f32 %v6495, %v6530
      %v6566 = vsub.f32 %v6496, %v6531
      %v6567 = vsub.f32 %v6497, %v6532
      %v6568 = vsub.f32 %v6498, %v6533
      %v6569 = vsub.f32 %v6499, %v6534
      %v6570 = vsub.f32 %v6500, %v6535
      %v6571 = vsub.f32 %v6501, %v6536
      %v6572 = vsub.f32 %v6502, %v6537
      %v6573 = vmul.f32 %v6433, %v6433
      %v6574 = vmul.f32 %v6434, %v6434
      %v6575 = vmul.f32 %v6435, %v6435
      %v6576 = vmul.f32 %v6436, %v6436
      %v6577 = vmul.f32 %v6437, %v6437
      %v6578 = vmul.f32 %v6438, %v6438
      %v6579 = vmul.f32 %v6439, %v6439
      %v6580 = vmul.f32 %v6440, %v6440
      %v6581 = vmul.f32 %v6441, %v6441
      %v6582 = vmul.f32 %v6442, %v6442
      %v6583 = vmul.f32 %v6443, %v6443
      %v6584 = vmul.f32 %v6444, %v6444
      %v6585 = vmul.f32 %v6445, %v6445
      %v6586 = vmul.f32 %v6446, %v6446
      %v6587 = vmul.f32 %v6447, %v6447
      %v6588 = vmul.f32 %v6448, %v6448
      %v6589 = vmul.f32 %v6449, %v6449
      %v6590 = vmul.f32 %v6450, %v6450
      %v6591 = vmul.f32 %v6451, %v6451
      %v6592 = vmul.f32 %v6452, %v6452
      %v6593 = vmul.f32 %v6453, %v6453
      %v6594 = vmul.f32 %v6454, %v6454
      %v6595 = vmul.f32 %v6455, %v6455
      %v6596 = vmul.f32 %v6456, %v6456
      %v6597 = vmul.f32 %v6457, %v6457
      %v6598 = vmul.f32 %v6458, %v6458
      %v6599 = vmul.f32 %v6459, %v6459
      %v6600 = vmul.f32 %v6460, %v6460
      %v6601 = vmul.f32 %v6461, %v6461
      %v6602 = vmul.f32 %v6462, %v6462
      %v6603 = vmul.f32 %v6463, %v6463
      %v6604 = vmul.f32 %v6464, %v6464
      %v6605 = vmul.f32 %v6465, %v6465
      %v6606 = vmul.f32 %v6466, %v6466
      %v6607 = vmul.f32 %v6467, %v6467
      %v6608 = vmul.f32 %v6538, %v6538
      %v6609 = vmul.f32 %v6539, %v6539
      %v6610 = vmul.f32 %v6540, %v6540
      %v6611 = vmul.f32 %v6541, %v6541
      %v6612 = vmul.f32 %v6542, %v6542
      %v6613 = vmul.f32 %v6543, %v6543
      %v6614 = vmul.f32 %v6544, %v6544
      %v6615 = vmul.f32 %v6545, %v6545
      %v6616 = vmul.f32 %v6546, %v6546
      %v6617 = vmul.f32 %v6547, %v6547
      %v6618 = vmul.f32 %v6548, %v6548
      %v6619 = vmul.f32 %v6549, %v6549
      %v6620 = vmul.f32 %v6550, %v6550
      %v6621 = vmul.f32 %v6551, %v6551
      %v6622 = vmul.f32 %v6552, %v6552
      %v6623 = vmul.f32 %v6553, %v6553
      %v6624 = vmul.f32 %v6554, %v6554
      %v6625 = vmul.f32 %v6555, %v6555
      %v6626 = vmul.f32 %v6556, %v6556
      %v6627 = vmul.f32 %v6557, %v6557
      %v6628 = vmul.f32 %v6558, %v6558
      %v6629 = vmul.f32 %v6559, %v6559
      %v6630 = vmul.f32 %v6560, %v6560
      %v6631 = vmul.f32 %v6561, %v6561
      %v6632 = vmul.f32 %v6562, %v6562
      %v6633 = vmul.f32 %v6563, %v6563
      %v6634 = vmul.f32 %v6564, %v6564
      %v6635 = vmul.f32 %v6565, %v6565
      %v6636 = vmul.f32 %v6566, %v6566
      %v6637 = vmul.f32 %v6567, %v6567
      %v6638 = vmul.f32 %v6568, %v6568
      %v6639 = vmul.f32 %v6569, %v6569
      %v6640 = vmul.f32 %v6570, %v6570
      %v6641 = vmul.f32 %v6571, %v6571
      %v6642 = vmul.f32 %v6572, %v6572
      %v6643 = vadd.f32 %v6573, %v6608
      %v6644 = vadd.f32 %v6574, %v6609
      %v6645 = vadd.f32 %v6575, %v6610
      %v6646 = vadd.f32 %v6576, %v6611
      %v6647 = vadd.f32 %v6577, %v6612
      %v6648 = vadd.f32 %v6578, %v6613
      %v6649 = vadd.f32 %v6579, %v6614
      %v6650 = vadd.f32 %v6580, %v6615
      %v6651 = vadd.f32 %v6581, %v6616
      %v6652 = vadd.f32 %v6582, %v6617
      %v6653 = vadd.f32 %v6583, %v6618
      %v6654 = vadd.f32 %v6584, %v6619
      %v6655 = vadd.f32 %v6585, %v6620
      %v6656 = vadd.f32 %v6586, %v6621
      %v6657 = vadd.f32 %v6587, %v6622
      %v6658 = vadd.f32 %v6588, %v6623
      %v6659 = vadd.f32 %v6589, %v6624
      %v6660 = vadd.f32 %v6590, %v6625
      %v6661 = vadd.f32 %v6591, %v6626
      %v6662 = vadd.f32 %v6592, %v6627
      %v6663 = vadd.f32 %v6593, %v6628
      %v6664 = vadd.f32 %v6594, %v6629
      %v6665 = vadd.f32 %v6595, %v6630
      %v6666 = vadd.f32 %v6596, %v6631
      %v6667 = vadd.f32 %v6597, %v6632
      %v6668 = vadd.f32 %v6598, %v6633
      %v6669 = vadd.f32 %v6599, %v6634
      %v6670 = vadd.f32 %v6600, %v6635
      %v6671 = vadd.f32 %v6601, %v6636
      %v6672 = vadd.f32 %v6602, %v6637
      %v6673 = vadd.f32 %v6603, %v6638
      %v6674 = vadd.f32 %v6604, %v6639
      %v6675 = vadd.f32 %v6605, %v6640
      %v6676 = vadd.f32 %v6606, %v6641
      %v6677 = vadd.f32 %v6607, %v6642
      %vm6678 = vcmp.gt.f32.partialorder %v6643, 0.0
      %vm6679 = vcmp.gt.f32.partialorder %v6644, 0.0
      %vm6680 = vcmp.gt.f32.partialorder %v6645, 0.0
      %vm6681 = vcmp.gt.f32.partialorder %v6646, 0.0
      %vm6682 = vcmp.gt.f32.partialorder %v6647, 0.0
      %vm6683 = vcmp.gt.f32.partialorder %v6648, 0.0
      %vm6684 = vcmp.gt.f32.partialorder %v6649, 0.0
      %vm6685 = vcmp.gt.f32.partialorder %v6650, 0.0
      %vm6686 = vcmp.gt.f32.partialorder %v6651, 0.0
      %vm6687 = vcmp.gt.f32.partialorder %v6652, 0.0
      %vm6688 = vcmp.gt.f32.partialorder %v6653, 0.0
      %vm6689 = vcmp.gt.f32.partialorder %v6654, 0.0
      %vm6690 = vcmp.gt.f32.partialorder %v6655, 0.0
      %vm6691 = vcmp.gt.f32.partialorder %v6656, 0.0
      %vm6692 = vcmp.gt.f32.partialorder %v6657, 0.0
      %vm6693 = vcmp.gt.f32.partialorder %v6658, 0.0
      %vm6694 = vcmp.gt.f32.partialorder %v6659, 0.0
      %vm6695 = vcmp.gt.f32.partialorder %v6660, 0.0
      %vm6696 = vcmp.gt.f32.partialorder %v6661, 0.0
      %vm6697 = vcmp.gt.f32.partialorder %v6662, 0.0
      %vm6698 = vcmp.gt.f32.partialorder %v6663, 0.0
      %vm6699 = vcmp.gt.f32.partialorder %v6664, 0.0
      %vm6700 = vcmp.gt.f32.partialorder %v6665, 0.0
      %vm6701 = vcmp.gt.f32.partialorder %v6666, 0.0
      %vm6702 = vcmp.gt.f32.partialorder %v6667, 0.0
      %vm6703 = vcmp.gt.f32.partialorder %v6668, 0.0
      %vm6704 = vcmp.gt.f32.partialorder %v6669, 0.0
      %vm6705 = vcmp.gt.f32.partialorder %v6670, 0.0
      %vm6706 = vcmp.gt.f32.partialorder %v6671, 0.0
      %vm6707 = vcmp.gt.f32.partialorder %v6672, 0.0
      %vm6708 = vcmp.gt.f32.partialorder %v6673, 0.0
      %vm6709 = vcmp.gt.f32.partialorder %v6674, 0.0
      %vm6710 = vcmp.gt.f32.partialorder %v6675, 0.0
      %vm6711 = vcmp.gt.f32.partialorder %v6676, 0.0
      %vm6712 = vcmp.gt.f32.partialorder %v6677, 0.0
      %v6713 = vsel %vm6678, %v6643, 1.0
      %v6714 = vsel %vm6679, %v6644, 1.0
      %v6715 = vsel %vm6680, %v6645, 1.0
      %v6716 = vsel %vm6681, %v6646, 1.0
      %v6717 = vsel %vm6682, %v6647, 1.0
      %v6718 = vsel %vm6683, %v6648, 1.0
      %v6719 = vsel %vm6684, %v6649, 1.0
      %v6720 = vsel %vm6685, %v6650, 1.0
      %v6721 = vsel %vm6686, %v6651, 1.0
      %v6722 = vsel %vm6687, %v6652, 1.0
      %v6723 = vsel %vm6688, %v6653, 1.0
      %v6724 = vsel %vm6689, %v6654, 1.0
      %v6725 = vsel %vm6690, %v6655, 1.0
      %v6726 = vsel %vm6691, %v6656, 1.0
      %v6727 = vsel %vm6692, %v6657, 1.0
      %v6728 = vsel %vm6693, %v6658, 1.0
      %v6729 = vsel %vm6694, %v6659, 1.0
      %v6730 = vsel %vm6695, %v6660, 1.0
      %v6731 = vsel %vm6696, %v6661, 1.0
      %v6732 = vsel %vm6697, %v6662, 1.0
      %v6733 = vsel %vm6698, %v6663, 1.0
      %v6734 = vsel %vm6699, %v6664, 1.0
      %v6735 = vsel %vm6700, %v6665, 1.0
      %v6736 = vsel %vm6701, %v6666, 1.0
      %v6737 = vsel %vm6702, %v6667, 1.0
      %v6738 = vsel %vm6703, %v6668, 1.0
      %v6739 = vsel %vm6704, %v6669, 1.0
      %v6740 = vsel %vm6705, %v6670, 1.0
      %v6741 = vsel %vm6706, %v6671, 1.0
      %v6742 = vsel %vm6707, %v6672, 1.0
      %v6743 = vsel %vm6708, %v6673, 1.0
      %v6744 = vsel %vm6709, %v6674, 1.0
      %v6745 = vsel %vm6710, %v6675, 1.0
      %v6746 = vsel %vm6711, %v6676, 1.0
      %v6747 = vsel %vm6712, %v6677, 1.0
      %v6748 = vrsqrt.pop %v6713
      %v6749 = vmul.f32 %v6748, %v6713
      %v6750 = vmul.f32 %v6749, %v6748
      %v6751 = vmul.f32 0.5, %v6750
      %v6752 = vsub.f32 1.5, %v6751
      %v6753 = vmul.f32 %v6748, %v6752
      %vm6754 = vweird.f32 %v6713
      %vm6755 = vweird.f32 %v6748
      %vm6756 = vmor %vm6754, %vm6755
      %v6757 = vsel %vm6756, %v6748, %v6753
      %v6758 = vrsqrt.pop %v6714
      %v6759 = vmul.f32 %v6758, %v6714
      %v6760 = vmul.f32 %v6759, %v6758
      %v6761 = vmul.f32 0.5, %v6760
      %v6762 = vsub.f32 1.5, %v6761
      %v6763 = vmul.f32 %v6758, %v6762
      %vm6764 = vweird.f32 %v6714
      %vm6765 = vweird.f32 %v6758
      %vm6766 = vmor %vm6764, %vm6765
      %v6767 = vsel %vm6766, %v6758, %v6763
      %v6768 = vrsqrt.pop %v6715
      %v6769 = vmul.f32 %v6768, %v6715
      %v6770 = vmul.f32 %v6769, %v6768
      %v6771 = vmul.f32 0.5, %v6770
      %v6772 = vsub.f32 1.5, %v6771
      %v6773 = vmul.f32 %v6768, %v6772
      %vm6774 = vweird.f32 %v6715
      %vm6775 = vweird.f32 %v6768
      %vm6776 = vmor %vm6774, %vm6775
      %v6777 = vsel %vm6776, %v6768, %v6773
      %v6778 = vrsqrt.pop %v6716
      %v6779 = vmul.f32 %v6778, %v6716
      %v6780 = vmul.f32 %v6779, %v6778
      %v6781 = vmul.f32 0.5, %v6780
      %v6782 = vsub.f32 1.5, %v6781
      %v6783 = vmul.f32 %v6778, %v6782
      %vm6784 = vweird.f32 %v6716
      %vm6785 = vweird.f32 %v6778
      %vm6786 = vmor %vm6784, %vm6785
      %v6787 = vsel %vm6786, %v6778, %v6783
      %v6788 = vrsqrt.pop %v6717
      %v6789 = vmul.f32 %v6788, %v6717
      %v6790 = vmul.f32 %v6789, %v6788
      %v6791 = vmul.f32 0.5, %v6790
      %v6792 = vsub.f32 1.5, %v6791
      %v6793 = vmul.f32 %v6788, %v6792
      %vm6794 = vweird.f32 %v6717
      %vm6795 = vweird.f32 %v6788
      %vm6796 = vmor %vm6794, %vm6795
      %v6797 = vsel %vm6796, %v6788, %v6793
      %v6798 = vrsqrt.pop %v6718
      %v6799 = vmul.f32 %v6798, %v6718
      %v6800 = vmul.f32 %v6799, %v6798
      %v6801 = vmul.f32 0.5, %v6800
      %v6802 = vsub.f32 1.5, %v6801
      %v6803 = vmul.f32 %v6798, %v6802
      %vm6804 = vweird.f32 %v6718
      %vm6805 = vweird.f32 %v6798
      %vm6806 = vmor %vm6804, %vm6805
      %v6807 = vsel %vm6806, %v6798, %v6803
      %v6808 = vrsqrt.pop %v6719
      %v6809 = vmul.f32 %v6808, %v6719
      %v6810 = vmul.f32 %v6809, %v6808
      %v6811 = vmul.f32 0.5, %v6810
      %v6812 = vsub.f32 1.5, %v6811
      %v6813 = vmul.f32 %v6808, %v6812
      %vm6814 = vweird.f32 %v6719
      %vm6815 = vweird.f32 %v6808
      %vm6816 = vmor %vm6814, %vm6815
      %v6817 = vsel %vm6816, %v6808, %v6813
      %v6818 = vrsqrt.pop %v6720
      %v6819 = vmul.f32 %v6818, %v6720
      %v6820 = vmul.f32 %v6819, %v6818
      %v6821 = vmul.f32 0.5, %v6820
      %v6822 = vsub.f32 1.5, %v6821
      %v6823 = vmul.f32 %v6818, %v6822
      %vm6824 = vweird.f32 %v6720
      %vm6825 = vweird.f32 %v6818
      %vm6826 = vmor %vm6824, %vm6825
      %v6827 = vsel %vm6826, %v6818, %v6823
      %v6828 = vrsqrt.pop %v6721
      %v6829 = vmul.f32 %v6828, %v6721
      %v6830 = vmul.f32 %v6829, %v6828
      %v6831 = vmul.f32 0.5, %v6830
      %v6832 = vsub.f32 1.5, %v6831
      %v6833 = vmul.f32 %v6828, %v6832
      %vm6834 = vweird.f32 %v6721
      %vm6835 = vweird.f32 %v6828
      %vm6836 = vmor %vm6834, %vm6835
      %v6837 = vsel %vm6836, %v6828, %v6833
      %v6838 = vrsqrt.pop %v6722
      %v6839 = vmul.f32 %v6838, %v6722
      %v6840 = vmul.f32 %v6839, %v6838
      %v6841 = vmul.f32 0.5, %v6840
      %v6842 = vsub.f32 1.5, %v6841
      %v6843 = vmul.f32 %v6838, %v6842
      %vm6844 = vweird.f32 %v6722
      %vm6845 = vweird.f32 %v6838
      %vm6846 = vmor %vm6844, %vm6845
      %v6847 = vsel %vm6846, %v6838, %v6843
      %v6848 = vrsqrt.pop %v6723
      %v6849 = vmul.f32 %v6848, %v6723
      %v6850 = vmul.f32 %v6849, %v6848
      %v6851 = vmul.f32 0.5, %v6850
      %v6852 = vsub.f32 1.5, %v6851
      %v6853 = vmul.f32 %v6848, %v6852
      %vm6854 = vweird.f32 %v6723
      %vm6855 = vweird.f32 %v6848
      %vm6856 = vmor %vm6854, %vm6855
      %v6857 = vsel %vm6856, %v6848, %v6853
      %v6858 = vrsqrt.pop %v6724
      %v6859 = vmul.f32 %v6858, %v6724
      %v6860 = vmul.f32 %v6859, %v6858
      %v6861 = vmul.f32 0.5, %v6860
      %v6862 = vsub.f32 1.5, %v6861
      %v6863 = vmul.f32 %v6858, %v6862
      %vm6864 = vweird.f32 %v6724
      %vm6865 = vweird.f32 %v6858
      %vm6866 = vmor %vm6864, %vm6865
      %v6867 = vsel %vm6866, %v6858, %v6863
      %v6868 = vrsqrt.pop %v6725
      %v6869 = vmul.f32 %v6868, %v6725
      %v6870 = vmul.f32 %v6869, %v6868
      %v6871 = vmul.f32 0.5, %v6870
      %v6872 = vsub.f32 1.5, %v6871
      %v6873 = vmul.f32 %v6868, %v6872
      %vm6874 = vweird.f32 %v6725
      %vm6875 = vweird.f32 %v6868
      %vm6876 = vmor %vm6874, %vm6875
      %v6877 = vsel %vm6876, %v6868, %v6873
      %v6878 = vrsqrt.pop %v6726
      %v6879 = vmul.f32 %v6878, %v6726
      %v6880 = vmul.f32 %v6879, %v6878
      %v6881 = vmul.f32 0.5, %v6880
      %v6882 = vsub.f32 1.5, %v6881
      %v6883 = vmul.f32 %v6878, %v6882
      %vm6884 = vweird.f32 %v6726
      %vm6885 = vweird.f32 %v6878
      %vm6886 = vmor %vm6884, %vm6885
      %v6887 = vsel %vm6886, %v6878, %v6883
      %v6888 = vrsqrt.pop %v6727
      %v6889 = vmul.f32 %v6888, %v6727
      %v6890 = vmul.f32 %v6889, %v6888
      %v6891 = vmul.f32 0.5, %v6890
      %v6892 = vsub.f32 1.5, %v6891
      %v6893 = vmul.f32 %v6888, %v6892
      %vm6894 = vweird.f32 %v6727
      %vm6895 = vweird.f32 %v6888
      %vm6896 = vmor %vm6894, %vm6895
      %v6897 = vsel %vm6896, %v6888, %v6893
      %v6898 = vrsqrt.pop %v6728
      %v6899 = vmul.f32 %v6898, %v6728
      %v6900 = vmul.f32 %v6899, %v6898
      %v6901 = vmul.f32 0.5, %v6900
      %v6902 = vsub.f32 1.5, %v6901
      %v6903 = vmul.f32 %v6898, %v6902
      %vm6904 = vweird.f32 %v6728
      %vm6905 = vweird.f32 %v6898
      %vm6906 = vmor %vm6904, %vm6905
      %v6907 = vsel %vm6906, %v6898, %v6903
      %v6908 = vrsqrt.pop %v6729
      %v6909 = vmul.f32 %v6908, %v6729
      %v6910 = vmul.f32 %v6909, %v6908
      %v6911 = vmul.f32 0.5, %v6910
      %v6912 = vsub.f32 1.5, %v6911
      %v6913 = vmul.f32 %v6908, %v6912
      %vm6914 = vweird.f32 %v6729
      %vm6915 = vweird.f32 %v6908
      %vm6916 = vmor %vm6914, %vm6915
      %v6917 = vsel %vm6916, %v6908, %v6913
      %v6918 = vrsqrt.pop %v6730
      %v6919 = vmul.f32 %v6918, %v6730
      %v6920 = vmul.f32 %v6919, %v6918
      %v6921 = vmul.f32 0.5, %v6920
      %v6922 = vsub.f32 1.5, %v6921
      %v6923 = vmul.f32 %v6918, %v6922
      %vm6924 = vweird.f32 %v6730
      %vm6925 = vweird.f32 %v6918
      %vm6926 = vmor %vm6924, %vm6925
      %v6927 = vsel %vm6926, %v6918, %v6923
      %v6928 = vrsqrt.pop %v6731
      %v6929 = vmul.f32 %v6928, %v6731
      %v6930 = vmul.f32 %v6929, %v6928
      %v6931 = vmul.f32 0.5, %v6930
      %v6932 = vsub.f32 1.5, %v6931
      %v6933 = vmul.f32 %v6928, %v6932
      %vm6934 = vweird.f32 %v6731
      %vm6935 = vweird.f32 %v6928
      %vm6936 = vmor %vm6934, %vm6935
      %v6937 = vsel %vm6936, %v6928, %v6933
      %v6938 = vrsqrt.pop %v6732
      %v6939 = vmul.f32 %v6938, %v6732
      %v6940 = vmul.f32 %v6939, %v6938
      %v6941 = vmul.f32 0.5, %v6940
      %v6942 = vsub.f32 1.5, %v6941
      %v6943 = vmul.f32 %v6938, %v6942
      %vm6944 = vweird.f32 %v6732
      %vm6945 = vweird.f32 %v6938
      %vm6946 = vmor %vm6944, %vm6945
      %v6947 = vsel %vm6946, %v6938, %v6943
      %v6948 = vrsqrt.pop %v6733
      %v6949 = vmul.f32 %v6948, %v6733
      %v6950 = vmul.f32 %v6949, %v6948
      %v6951 = vmul.f32 0.5, %v6950
      %v6952 = vsub.f32 1.5, %v6951
      %v6953 = vmul.f32 %v6948, %v6952
      %vm6954 = vweird.f32 %v6733
      %vm6955 = vweird.f32 %v6948
      %vm6956 = vmor %vm6954, %vm6955
      %v6957 = vsel %vm6956, %v6948, %v6953
      %v6958 = vrsqrt.pop %v6734
      %v6959 = vmul.f32 %v6958, %v6734
      %v6960 = vmul.f32 %v6959, %v6958
      %v6961 = vmul.f32 0.5, %v6960
      %v6962 = vsub.f32 1.5, %v6961
      %v6963 = vmul.f32 %v6958, %v6962
      %vm6964 = vweird.f32 %v6734
      %vm6965 = vweird.f32 %v6958
      %vm6966 = vmor %vm6964, %vm6965
      %v6967 = vsel %vm6966, %v6958, %v6963
      %v6968 = vrsqrt.pop %v6735
      %v6969 = vmul.f32 %v6968, %v6735
      %v6970 = vmul.f32 %v6969, %v6968
      %v6971 = vmul.f32 0.5, %v6970
      %v6972 = vsub.f32 1.5, %v6971
      %v6973 = vmul.f32 %v6968, %v6972
      %vm6974 = vweird.f32 %v6735
      %vm6975 = vweird.f32 %v6968
      %vm6976 = vmor %vm6974, %vm6975
      %v6977 = vsel %vm6976, %v6968, %v6973
      %v6978 = vrsqrt.pop %v6736
      %v6979 = vmul.f32 %v6978, %v6736
      %v6980 = vmul.f32 %v6979, %v6978
      %v6981 = vmul.f32 0.5, %v6980
      %v6982 = vsub.f32 1.5, %v6981
      %v6983 = vmul.f32 %v6978, %v6982
      %vm6984 = vweird.f32 %v6736
      %vm6985 = vweird.f32 %v6978
      %vm6986 = vmor %vm6984, %vm6985
      %v6987 = vsel %vm6986, %v6978, %v6983
      %v6988 = vrsqrt.pop %v6737
      %v6989 = vmul.f32 %v6988, %v6737
      %v6990 = vmul.f32 %v6989, %v6988
      %v6991 = vmul.f32 0.5, %v6990
      %v6992 = vsub.f32 1.5, %v6991
      %v6993 = vmul.f32 %v6988, %v6992
      %vm6994 = vweird.f32 %v6737
      %vm6995 = vweird.f32 %v6988
      %vm6996 = vmor %vm6994, %vm6995
      %v6997 = vsel %vm6996, %v6988, %v6993
      %v6998 = vrsqrt.pop %v6738
      %v6999 = vmul.f32 %v6998, %v6738
      %v7000 = vmul.f32 %v6999, %v6998
      %v7001 = vmul.f32 0.5, %v7000
      %v7002 = vsub.f32 1.5, %v7001
      %v7003 = vmul.f32 %v6998, %v7002
      %vm7004 = vweird.f32 %v6738
      %vm7005 = vweird.f32 %v6998
      %vm7006 = vmor %vm7004, %vm7005
      %v7007 = vsel %vm7006, %v6998, %v7003
      %v7008 = vrsqrt.pop %v6739
      %v7009 = vmul.f32 %v7008, %v6739
      %v7010 = vmul.f32 %v7009, %v7008
      %v7011 = vmul.f32 0.5, %v7010
      %v7012 = vsub.f32 1.5, %v7011
      %v7013 = vmul.f32 %v7008, %v7012
      %vm7014 = vweird.f32 %v6739
      %vm7015 = vweird.f32 %v7008
      %vm7016 = vmor %vm7014, %vm7015
      %v7017 = vsel %vm7016, %v7008, %v7013
      %v7018 = vrsqrt.pop %v6740
      %v7019 = vmul.f32 %v7018, %v6740
      %v7020 = vmul.f32 %v7019, %v7018
      %v7021 = vmul.f32 0.5, %v7020
      %v7022 = vsub.f32 1.5, %v7021
      %v7023 = vmul.f32 %v7018, %v7022
      %vm7024 = vweird.f32 %v6740
      %vm7025 = vweird.f32 %v7018
      %vm7026 = vmor %vm7024, %vm7025
      %v7027 = vsel %vm7026, %v7018, %v7023
      %v7028 = vrsqrt.pop %v6741
      %v7029 = vmul.f32 %v7028, %v6741
      %v7030 = vmul.f32 %v7029, %v7028
      %v7031 = vmul.f32 0.5, %v7030
      %v7032 = vsub.f32 1.5, %v7031
      %v7033 = vmul.f32 %v7028, %v7032
      %vm7034 = vweird.f32 %v6741
      %vm7035 = vweird.f32 %v7028
      %vm7036 = vmor %vm7034, %vm7035
      %v7037 = vsel %vm7036, %v7028, %v7033
      %v7038 = vrsqrt.pop %v6742
      %v7039 = vmul.f32 %v7038, %v6742
      %v7040 = vmul.f32 %v7039, %v7038
      %v7041 = vmul.f32 0.5, %v7040
      %v7042 = vsub.f32 1.5, %v7041
      %v7043 = vmul.f32 %v7038, %v7042
      %vm7044 = vweird.f32 %v6742
      %vm7045 = vweird.f32 %v7038
      %vm7046 = vmor %vm7044, %vm7045
      %v7047 = vsel %vm7046, %v7038, %v7043
      %v7048 = vrsqrt.pop %v6743
      %v7049 = vmul.f32 %v7048, %v6743
      %v7050 = vmul.f32 %v7049, %v7048
      %v7051 = vmul.f32 0.5, %v7050
      %v7052 = vsub.f32 1.5, %v7051
      %v7053 = vmul.f32 %v7048, %v7052
      %vm7054 = vweird.f32 %v6743
      %vm7055 = vweird.f32 %v7048
      %vm7056 = vmor %vm7054, %vm7055
      %v7057 = vsel %vm7056, %v7048, %v7053
      %v7058 = vrsqrt.pop %v6744
      %v7059 = vmul.f32 %v7058, %v6744
      %v7060 = vmul.f32 %v7059, %v7058
      %v7061 = vmul.f32 0.5, %v7060
      %v7062 = vsub.f32 1.5, %v7061
      %v7063 = vmul.f32 %v7058, %v7062
      %vm7064 = vweird.f32 %v6744
      %vm7065 = vweird.f32 %v7058
      %vm7066 = vmor %vm7064, %vm7065
      %v7067 = vsel %vm7066, %v7058, %v7063
      %v7068 = vrsqrt.pop %v6745
      %v7069 = vmul.f32 %v7068, %v6745
      %v7070 = vmul.f32 %v7069, %v7068
      %v7071 = vmul.f32 0.5, %v7070
      %v7072 = vsub.f32 1.5, %v7071
      %v7073 = vmul.f32 %v7068, %v7072
      %vm7074 = vweird.f32 %v6745
      %vm7075 = vweird.f32 %v7068
      %vm7076 = vmor %vm7074, %vm7075
      %v7077 = vsel %vm7076, %v7068, %v7073
      %v7078 = vrsqrt.pop %v6746
      %v7079 = vmul.f32 %v7078, %v6746
      %v7080 = vmul.f32 %v7079, %v7078
      %v7081 = vmul.f32 0.5, %v7080
      %v7082 = vsub.f32 1.5, %v7081
      %v7083 = vmul.f32 %v7078, %v7082
      %vm7084 = vweird.f32 %v6746
      %vm7085 = vweird.f32 %v7078
      %vm7086 = vmor %vm7084, %vm7085
      %v7087 = vsel %vm7086, %v7078, %v7083
      %v7088 = vrsqrt.pop %v6747
      %v7089 = vmul.f32 %v7088, %v6747
      %v7090 = vmul.f32 %v7089, %v7088
      %v7091 = vmul.f32 0.5, %v7090
      %v7092 = vsub.f32 1.5, %v7091
      %v7093 = vmul.f32 %v7088, %v7092
      %vm7094 = vweird.f32 %v6747
      %vm7095 = vweird.f32 %v7088
      %vm7096 = vmor %vm7094, %vm7095
      %v7097 = vsel %vm7096, %v7088, %v7093
      %v7098 = vmul.f32 %v6433, %v6757
      %v7099 = vmul.f32 %v6434, %v6767
      %v7100 = vmul.f32 %v6435, %v6777
      %v7101 = vmul.f32 %v6436, %v6787
      %v7102 = vmul.f32 %v6437, %v6797
      %v7103 = vmul.f32 %v6438, %v6807
      %v7104 = vmul.f32 %v6439, %v6817
      %v7105 = vmul.f32 %v6440, %v6827
      %v7106 = vmul.f32 %v6441, %v6837
      %v7107 = vmul.f32 %v6442, %v6847
      %v7108 = vmul.f32 %v6443, %v6857
      %v7109 = vmul.f32 %v6444, %v6867
      %v7110 = vmul.f32 %v6445, %v6877
      %v7111 = vmul.f32 %v6446, %v6887
      %v7112 = vmul.f32 %v6447, %v6897
      %v7113 = vmul.f32 %v6448, %v6907
      %v7114 = vmul.f32 %v6449, %v6917
      %v7115 = vmul.f32 %v6450, %v6927
      %v7116 = vmul.f32 %v6451, %v6937
      %v7117 = vmul.f32 %v6452, %v6947
      %v7118 = vmul.f32 %v6453, %v6957
      %v7119 = vmul.f32 %v6454, %v6967
      %v7120 = vmul.f32 %v6455, %v6977
      %v7121 = vmul.f32 %v6456, %v6987
      %v7122 = vmul.f32 %v6457, %v6997
      %v7123 = vmul.f32 %v6458, %v7007
      %v7124 = vmul.f32 %v6459, %v7017
      %v7125 = vmul.f32 %v6460, %v7027
      %v7126 = vmul.f32 %v6461, %v7037
      %v7127 = vmul.f32 %v6462, %v7047
      %v7128 = vmul.f32 %v6463, %v7057
      %v7129 = vmul.f32 %v6464, %v7067
      %v7130 = vmul.f32 %v6465, %v7077
      %v7131 = vmul.f32 %v6466, %v7087
      %v7132 = vmul.f32 %v6467, %v7097
      %v7133 = vsel %vm6678, %v7098, 1.0
      %v7134 = vsel %vm6679, %v7099, 1.0
      %v7135 = vsel %vm6680, %v7100, 1.0
      %v7136 = vsel %vm6681, %v7101, 1.0
      %v7137 = vsel %vm6682, %v7102, 1.0
      %v7138 = vsel %vm6683, %v7103, 1.0
      %v7139 = vsel %vm6684, %v7104, 1.0
      %v7140 = vsel %vm6685, %v7105, 1.0
      %v7141 = vsel %vm6686, %v7106, 1.0
      %v7142 = vsel %vm6687, %v7107, 1.0
      %v7143 = vsel %vm6688, %v7108, 1.0
      %v7144 = vsel %vm6689, %v7109, 1.0
      %v7145 = vsel %vm6690, %v7110, 1.0
      %v7146 = vsel %vm6691, %v7111, 1.0
      %v7147 = vsel %vm6692, %v7112, 1.0
      %v7148 = vsel %vm6693, %v7113, 1.0
      %v7149 = vsel %vm6694, %v7114, 1.0
      %v7150 = vsel %vm6695, %v7115, 1.0
      %v7151 = vsel %vm6696, %v7116, 1.0
      %v7152 = vsel %vm6697, %v7117, 1.0
      %v7153 = vsel %vm6698, %v7118, 1.0
      %v7154 = vsel %vm6699, %v7119, 1.0
      %v7155 = vsel %vm6700, %v7120, 1.0
      %v7156 = vsel %vm6701, %v7121, 1.0
      %v7157 = vsel %vm6702, %v7122, 1.0
      %v7158 = vsel %vm6703, %v7123, 1.0
      %v7159 = vsel %vm6704, %v7124, 1.0
      %v7160 = vsel %vm6705, %v7125, 1.0
      %v7161 = vsel %vm6706, %v7126, 1.0
      %v7162 = vsel %vm6707, %v7127, 1.0
      %v7163 = vsel %vm6708, %v7128, 1.0
      %v7164 = vsel %vm6709, %v7129, 1.0
      %v7165 = vsel %vm6710, %v7130, 1.0
      %v7166 = vsel %vm6711, %v7131, 1.0
      %v7167 = vsel %vm6712, %v7132, 1.0
      %v7168 = vmul.f32 %v6538, %v6757
      %v7169 = vmul.f32 %v6539, %v6767
      %v7170 = vmul.f32 %v6540, %v6777
      %v7171 = vmul.f32 %v6541, %v6787
      %v7172 = vmul.f32 %v6542, %v6797
      %v7173 = vmul.f32 %v6543, %v6807
      %v7174 = vmul.f32 %v6544, %v6817
      %v7175 = vmul.f32 %v6545, %v6827
      %v7176 = vmul.f32 %v6546, %v6837
      %v7177 = vmul.f32 %v6547, %v6847
      %v7178 = vmul.f32 %v6548, %v6857
      %v7179 = vmul.f32 %v6549, %v6867
      %v7180 = vmul.f32 %v6550, %v6877
      %v7181 = vmul.f32 %v6551, %v6887
      %v7182 = vmul.f32 %v6552, %v6897
      %v7183 = vmul.f32 %v6553, %v6907
      %v7184 = vmul.f32 %v6554, %v6917
      %v7185 = vmul.f32 %v6555, %v6927
      %v7186 = vmul.f32 %v6556, %v6937
      %v7187 = vmul.f32 %v6557, %v6947
      %v7188 = vmul.f32 %v6558, %v6957
      %v7189 = vmul.f32 %v6559, %v6967
      %v7190 = vmul.f32 %v6560, %v6977
      %v7191 = vmul.f32 %v6561, %v6987
      %v7192 = vmul.f32 %v6562, %v6997
      %v7193 = vmul.f32 %v6563, %v7007
      %v7194 = vmul.f32 %v6564, %v7017
      %v7195 = vmul.f32 %v6565, %v7027
      %v7196 = vmul.f32 %v6566, %v7037
      %v7197 = vmul.f32 %v6567, %v7047
      %v7198 = vmul.f32 %v6568, %v7057
      %v7199 = vmul.f32 %v6569, %v7067
      %v7200 = vmul.f32 %v6570, %v7077
      %v7201 = vmul.f32 %v6571, %v7087
      %v7202 = vmul.f32 %v6572, %v7097
      %v7203 = vsel %vm6678, %v7168, 0.0
      %v7204 = vsel %vm6679, %v7169, 0.0
      %v7205 = vsel %vm6680, %v7170, 0.0
      %v7206 = vsel %vm6681, %v7171, 0.0
      %v7207 = vsel %vm6682, %v7172, 0.0
      %v7208 = vsel %vm6683, %v7173, 0.0
      %v7209 = vsel %vm6684, %v7174, 0.0
      %v7210 = vsel %vm6685, %v7175, 0.0
      %v7211 = vsel %vm6686, %v7176, 0.0
      %v7212 = vsel %vm6687, %v7177, 0.0
      %v7213 = vsel %vm6688, %v7178, 0.0
      %v7214 = vsel %vm6689, %v7179, 0.0
      %v7215 = vsel %vm6690, %v7180, 0.0
      %v7216 = vsel %vm6691, %v7181, 0.0
      %v7217 = vsel %vm6692, %v7182, 0.0
      %v7218 = vsel %vm6693, %v7183, 0.0
      %v7219 = vsel %vm6694, %v7184, 0.0
      %v7220 = vsel %vm6695, %v7185, 0.0
      %v7221 = vsel %vm6696, %v7186, 0.0
      %v7222 = vsel %vm6697, %v7187, 0.0
      %v7223 = vsel %vm6698, %v7188, 0.0
      %v7224 = vsel %vm6699, %v7189, 0.0
      %v7225 = vsel %vm6700, %v7190, 0.0
      %v7226 = vsel %vm6701, %v7191, 0.0
      %v7227 = vsel %vm6702, %v7192, 0.0
      %v7228 = vsel %vm6703, %v7193, 0.0
      %v7229 = vsel %vm6704, %v7194, 0.0
      %v7230 = vsel %vm6705, %v7195, 0.0
      %v7231 = vsel %vm6706, %v7196, 0.0
      %v7232 = vsel %vm6707, %v7197, 0.0
      %v7233 = vsel %vm6708, %v7198, 0.0
      %v7234 = vsel %vm6709, %v7199, 0.0
      %v7235 = vsel %vm6710, %v7200, 0.0
      %v7236 = vsel %vm6711, %v7201, 0.0
      %v7237 = vsel %vm6712, %v7202, 0.0
      %v7238 = vpack.c.bf16 %v7138, %v7133
      %v7239 = vpack.c.bf16 %v7139, %v7134
      %v7240 = vpack.c.bf16 %v7140, %v7135
      %v7241 = vpack.c.bf16 %v7141, %v7136
      %v7242 = vpack.c.bf16 %v7142, %v7137
      %v7243 = vpack.c.bf16 %v7148, %v7143
      %v7244 = vpack.c.bf16 %v7149, %v7144
      %v7245 = vpack.c.bf16 %v7150, %v7145
      %v7246 = vpack.c.bf16 %v7151, %v7146
      %v7247 = vpack.c.bf16 %v7152, %v7147
      %v7248 = vpack.c.bf16 %v7158, %v7153
      %v7249 = vpack.c.bf16 %v7159, %v7154
      %v7250 = vpack.c.bf16 %v7160, %v7155
      %v7251 = vpack.c.bf16 %v7161, %v7156
      %v7252 = vpack.c.bf16 %v7162, %v7157
      %v7253 = vpack.c.bf16 %v7163, %v7163
      %v7254 = vpack.c.bf16 %v7164, %v7164
      %v7255 = vpack.c.bf16 %v7165, %v7165
      %v7256 = vpack.c.bf16 %v7166, %v7166
      %v7257 = vpack.c.bf16 %v7167, %v7167
      %v7258 = vld [vmem:[%s3] sm:$0xf]
      %v7259 = vld [vmem:[%s3 + $0x4] sm:$0xf]
      %v7260 = vld [vmem:[%s3 + $0x8] sm:$0xf]
      %v7261 = vld [vmem:[%s3 + $0xc] sm:$0xf]
      %v7262 = vld [vmem:[%s3 + $0x10] sm:$0xf]
      %v7263 = vld [vmem:[%s3 + $0x14] sm:$0xf]
      %v7264 = vld [vmem:[%s3 + $0x18] sm:$0xf]
      %v7265 = vld [vmem:[%s3 + $0x1c] sm:$0xf]
      %v7266 = vld [vmem:[%s3 + $0x20] sm:$0xf]
      %v7267 = vld [vmem:[%s3 + $0x24] sm:$0xf]
      %v7268 = vld [vmem:[%s3 + $0x28] sm:$0xf]
      %v7269 = vld [vmem:[%s3 + $0x2c] sm:$0xf]
      %v7270 = vld [vmem:[%s3 + $0x30] sm:$0xf]
      %v7271 = vld [vmem:[%s3 + $0x34] sm:$0xf]
      %v7272 = vld [vmem:[%s3 + $0x38] sm:$0xf]
      %v7273 = vld [vmem:[%s3 + $0x3c] sm:$0xf]
      %v7274 = vld [vmem:[%s3 + $0x40] sm:$0xf]
      %v7275 = vld [vmem:[%s3 + $0x44] sm:$0xf]
      %v7276 = vld [vmem:[%s3 + $0x48] sm:$0xf]
      %v7277 = vld [vmem:[%s3 + $0x4c] sm:$0xf]
      %v7278 = vld [vmem:[%s3 + $0x50] sm:$0xf]
      %v7279 = vld [vmem:[%s3 + $0x54] sm:$0xf]
      %v7280 = vld [vmem:[%s3 + $0x58] sm:$0xf]
      %v7281 = vld [vmem:[%s3 + $0x5c] sm:$0xf]
      %v7282 = vld [vmem:[%s3 + $0x60] sm:$0xf]
      %v7283 = vld [vmem:[%s3 + $0x64] sm:$0xf]
      %v7284 = vld [vmem:[%s3 + $0x68] sm:$0xf]
      %v7285 = vld [vmem:[%s3 + $0x6c] sm:$0xf]
      %v7286 = vld [vmem:[%s3 + $0x70] sm:$0xf]
      %v7287 = vld [vmem:[%s3 + $0x74] sm:$0xf]
      %v7288 = vld [vmem:[%s3 + $0x78] sm:$0xf]
      %v7289 = vld [vmem:[%s3 + $0x7c] sm:$0xf]
      %v7290 = vld [vmem:[%s3 + $0x80] sm:$0xf]
      %v7291 = vld [vmem:[%s3 + $0x84] sm:$0xf]
      %v7292 = vld [vmem:[%s3 + $0x88] sm:$0xf]
      %v7293 = vld [vmem:[%s3 + $0x8c] sm:$0xf]
      %v7294 = vld [vmem:[%s3 + $0x90] sm:$0xf]
      %v7295 = vld [vmem:[%s3 + $0x94] sm:$0xf]
      %v7296 = vld [vmem:[%s3 + $0x98] sm:$0xf]
      %v7297 = vld [vmem:[%s3 + $0x9c] sm:$0xf]
      %v7298 = vld [vmem:[%s3 + $0xa0] sm:$0xf]
      %v7299 = vld [vmem:[%s3 + $0xa4] sm:$0xf]
      %v7300 = vld [vmem:[%s3 + $0xa8] sm:$0xf]
      %v7301 = vld [vmem:[%s3 + $0xac] sm:$0xf]
      %v7302 = vld [vmem:[%s3 + $0xb0] sm:$0xf]
      %v7303 = vld [vmem:[%s3 + $0xb4] sm:$0xf]
      %v7304 = vld [vmem:[%s3 + $0xb8] sm:$0xf]
      %v7305 = vld [vmem:[%s3 + $0xbc] sm:$0xf]
      %v7306 = vld [vmem:[%s3 + $0xc0] sm:$0xf]
      %v7307 = vld [vmem:[%s3 + $0xc4] sm:$0xf]
      %v7308 = vld [vmem:[%s3 + $0xc8] sm:$0xf]
      %v7309 = vld [vmem:[%s3 + $0xcc] sm:$0xf]
      %v7310 = vld [vmem:[%s3 + $0xd0] sm:$0xf]
      %v7311 = vld [vmem:[%s3 + $0xd4] sm:$0xf]
      %v7312 = vld [vmem:[%s3 + $0xd8] sm:$0xf]
      %v7313 = vld [vmem:[%s3 + $0xdc] sm:$0xf]
      %v7314 = vld [vmem:[%s3 + $0xe0] sm:$0xf]
      %v7315 = vld [vmem:[%s3 + $0xe4] sm:$0xf]
      %v7316 = vld [vmem:[%s3 + $0xe8] sm:$0xf]
      %v7317 = vld [vmem:[%s3 + $0xec] sm:$0xf]
      %v7318 = vld [vmem:[%s3 + $0xf0] sm:$0xf]
      %v7319 = vld [vmem:[%s3 + $0xf4] sm:$0xf]
      %v7320 = vld [vmem:[%s3 + $0xf8] sm:$0xf]
      %v7321 = vld [vmem:[%s3 + $0xfc] sm:$0xf]
      %v7322 = vld [vmem:[%s3 + $0x100] sm:$0xf]
      %v7323 = vld [vmem:[%s3 + $0x104] sm:$0xf]
      %v7324 = vld [vmem:[%s3 + $0x108] sm:$0xf]
      %v7325 = vld [vmem:[%s3 + $0x10c] sm:$0xf]
      %v7326 = vld [vmem:[%s3 + $0x110] sm:$0xf]
      %v7327 = vld [vmem:[%s3 + $0x114] sm:$0xf]
      %v7328 = vld [vmem:[%s3 + $0x118] sm:$0xf]
      %v7329 = vld [vmem:[%s3 + $0x11c] sm:$0xf]
      %v7330 = vld [vmem:[%s3 + $0x120] sm:$0xf]
      %v7331 = vld [vmem:[%s3 + $0x124] sm:$0xf]
      %v7332 = vld [vmem:[%s3 + $0x128] sm:$0xf]
      %v7333 = vld [vmem:[%s3 + $0x12c] sm:$0xf]
      %v7334 = vld [vmem:[%s3 + $0x130] sm:$0xf]
      %v7335 = vld [vmem:[%s3 + $0x134] sm:$0xf]
      %v7336 = vld [vmem:[%s3 + $0x138] sm:$0xf]
      %v7337 = vld [vmem:[%s3 + $0x13c] sm:$0xf]
      %v7338 = vpack.c.bf16 %v7208, %v7203
      %v7339 = vpack.c.bf16 %v7209, %v7204
      %v7340 = vpack.c.bf16 %v7210, %v7205
      %v7341 = vpack.c.bf16 %v7211, %v7206
      %v7342 = vpack.c.bf16 %v7212, %v7207
      %v7343 = vpack.c.bf16 %v7218, %v7213
      %v7344 = vpack.c.bf16 %v7219, %v7214
      %v7345 = vpack.c.bf16 %v7220, %v7215
      %v7346 = vpack.c.bf16 %v7221, %v7216
      %v7347 = vpack.c.bf16 %v7222, %v7217
      %v7348 = vpack.c.bf16 %v7228, %v7223
      %v7349 = vpack.c.bf16 %v7229, %v7224
      %v7350 = vpack.c.bf16 %v7230, %v7225
      %v7351 = vpack.c.bf16 %v7231, %v7226
      %v7352 = vpack.c.bf16 %v7232, %v7227
      %v7353 = vpack.c.bf16 %v7233, %v7233
      %v7354 = vpack.c.bf16 %v7234, %v7234
      %v7355 = vpack.c.bf16 %v7235, %v7235
      %v7356 = vpack.c.bf16 %v7236, %v7236
      %v7357 = vpack.c.bf16 %v7237, %v7237
      %v7358 = vld [vmem:[%s4] sm:$0xf]
      %v7359 = vld [vmem:[%s4 + $0x4] sm:$0xf]
      %v7360 = vld [vmem:[%s4 + $0x8] sm:$0xf]
      %v7361 = vld [vmem:[%s4 + $0xc] sm:$0xf]
      %v7362 = vld [vmem:[%s4 + $0x10] sm:$0xf]
      %v7363 = vld [vmem:[%s4 + $0x14] sm:$0xf]
      %v7364 = vld [vmem:[%s4 + $0x18] sm:$0xf]
      %v7365 = vld [vmem:[%s4 + $0x1c] sm:$0xf]
      %v7366 = vld [vmem:[%s4 + $0x20] sm:$0xf]
      %v7367 = vld [vmem:[%s4 + $0x24] sm:$0xf]
      %v7368 = vld [vmem:[%s4 + $0x28] sm:$0xf]
      %v7369 = vld [vmem:[%s4 + $0x2c] sm:$0xf]
      %v7370 = vld [vmem:[%s4 + $0x30] sm:$0xf]
      %v7371 = vld [vmem:[%s4 + $0x34] sm:$0xf]
      %v7372 = vld [vmem:[%s4 + $0x38] sm:$0xf]
      %v7373 = vld [vmem:[%s4 + $0x3c] sm:$0xf]
      %v7374 = vld [vmem:[%s4 + $0x40] sm:$0xf]
      %v7375 = vld [vmem:[%s4 + $0x44] sm:$0xf]
      %v7376 = vld [vmem:[%s4 + $0x48] sm:$0xf]
      %v7377 = vld [vmem:[%s4 + $0x4c] sm:$0xf]
      %v7378 = vld [vmem:[%s4 + $0x50] sm:$0xf]
      %v7379 = vld [vmem:[%s4 + $0x54] sm:$0xf]
      %v7380 = vld [vmem:[%s4 + $0x58] sm:$0xf]
      %v7381 = vld [vmem:[%s4 + $0x5c] sm:$0xf]
      %v7382 = vld [vmem:[%s4 + $0x60] sm:$0xf]
      %v7383 = vld [vmem:[%s4 + $0x64] sm:$0xf]
      %v7384 = vld [vmem:[%s4 + $0x68] sm:$0xf]
      %v7385 = vld [vmem:[%s4 + $0x6c] sm:$0xf]
      %v7386 = vld [vmem:[%s4 + $0x70] sm:$0xf]
      %v7387 = vld [vmem:[%s4 + $0x74] sm:$0xf]
      %v7388 = vld [vmem:[%s4 + $0x78] sm:$0xf]
      %v7389 = vld [vmem:[%s4 + $0x7c] sm:$0xf]
      %v7390 = vld [vmem:[%s4 + $0x80] sm:$0xf]
      %v7391 = vld [vmem:[%s4 + $0x84] sm:$0xf]
      %v7392 = vld [vmem:[%s4 + $0x88] sm:$0xf]
      %v7393 = vld [vmem:[%s4 + $0x8c] sm:$0xf]
      %v7394 = vld [vmem:[%s4 + $0x90] sm:$0xf]
      %v7395 = vld [vmem:[%s4 + $0x94] sm:$0xf]
      %v7396 = vld [vmem:[%s4 + $0x98] sm:$0xf]
      %v7397 = vld [vmem:[%s4 + $0x9c] sm:$0xf]
      %v7398 = vld [vmem:[%s4 + $0xa0] sm:$0xf]
      %v7399 = vld [vmem:[%s4 + $0xa4] sm:$0xf]
      %v7400 = vld [vmem:[%s4 + $0xa8] sm:$0xf]
      %v7401 = vld [vmem:[%s4 + $0xac] sm:$0xf]
      %v7402 = vld [vmem:[%s4 + $0xb0] sm:$0xf]
      %v7403 = vld [vmem:[%s4 + $0xb4] sm:$0xf]
      %v7404 = vld [vmem:[%s4 + $0xb8] sm:$0xf]
      %v7405 = vld [vmem:[%s4 + $0xbc] sm:$0xf]
      %v7406 = vld [vmem:[%s4 + $0xc0] sm:$0xf]
      %v7407 = vld [vmem:[%s4 + $0xc4] sm:$0xf]
      %v7408 = vld [vmem:[%s4 + $0xc8] sm:$0xf]
      %v7409 = vld [vmem:[%s4 + $0xcc] sm:$0xf]
      %v7410 = vld [vmem:[%s4 + $0xd0] sm:$0xf]
      %v7411 = vld [vmem:[%s4 + $0xd4] sm:$0xf]
      %v7412 = vld [vmem:[%s4 + $0xd8] sm:$0xf]
      %v7413 = vld [vmem:[%s4 + $0xdc] sm:$0xf]
      %v7414 = vld [vmem:[%s4 + $0xe0] sm:$0xf]
      %v7415 = vld [vmem:[%s4 + $0xe4] sm:$0xf]
      %v7416 = vld [vmem:[%s4 + $0xe8] sm:$0xf]
      %v7417 = vld [vmem:[%s4 + $0xec] sm:$0xf]
      %v7418 = vld [vmem:[%s4 + $0xf0] sm:$0xf]
      %v7419 = vld [vmem:[%s4 + $0xf4] sm:$0xf]
      %v7420 = vld [vmem:[%s4 + $0xf8] sm:$0xf]
      %v7421 = vld [vmem:[%s4 + $0xfc] sm:$0xf]
      %v7422 = vld [vmem:[%s4 + $0x100] sm:$0xf]
      %v7423 = vld [vmem:[%s4 + $0x104] sm:$0xf]
      %v7424 = vld [vmem:[%s4 + $0x108] sm:$0xf]
      %v7425 = vld [vmem:[%s4 + $0x10c] sm:$0xf]
      %v7426 = vld [vmem:[%s4 + $0x110] sm:$0xf]
      %v7427 = vld [vmem:[%s4 + $0x114] sm:$0xf]
      %v7428 = vld [vmem:[%s4 + $0x118] sm:$0xf]
      %v7429 = vld [vmem:[%s4 + $0x11c] sm:$0xf]
      %v7430 = vld [vmem:[%s4 + $0x120] sm:$0xf]
      %v7431 = vld [vmem:[%s4 + $0x124] sm:$0xf]
      %v7432 = vld [vmem:[%s4 + $0x128] sm:$0xf]
      %v7433 = vld [vmem:[%s4 + $0x12c] sm:$0xf]
      %v7434 = vld [vmem:[%s4 + $0x130] sm:$0xf]
      %v7435 = vld [vmem:[%s4 + $0x134] sm:$0xf]
      %v7436 = vld [vmem:[%s4 + $0x138] sm:$0xf]
      %v7437 = vld [vmem:[%s4 + $0x13c] sm:$0xf]
      %v7518 = vunpack.c.l.b16 %v7358
      %v7519 = vunpack.c.l.b16 %v7359
      %v7520 = vunpack.c.l.b16 %v7360
      %v7521 = vunpack.c.l.b16 %v7361
      %v7522 = vunpack.c.l.b16 %v7362
      %v7523 = vunpack.c.l.b16 %v7363
      %v7524 = vunpack.c.l.b16 %v7364
      %v7525 = vunpack.c.l.b16 %v7365
      %v7526 = vunpack.c.l.b16 %v7366
      %v7527 = vunpack.c.l.b16 %v7367
      %v7528 = vunpack.c.l.b16 %v7368
      %v7529 = vunpack.c.l.b16 %v7369
      %v7530 = vunpack.c.l.b16 %v7370
      %v7531 = vunpack.c.l.b16 %v7371
      %v7532 = vunpack.c.l.b16 %v7372
      %v7533 = vunpack.c.l.b16 %v7373
      %v7534 = vunpack.c.l.b16 %v7374
      %v7535 = vunpack.c.l.b16 %v7375
      %v7536 = vunpack.c.l.b16 %v7376
      %v7537 = vunpack.c.l.b16 %v7377
      %v7538 = vunpack.c.l.b16 %v7378
      %v7539 = vunpack.c.l.b16 %v7379
      %v7540 = vunpack.c.l.b16 %v7380
      %v7541 = vunpack.c.l.b16 %v7381
      %v7542 = vunpack.c.l.b16 %v7382
      %v7543 = vunpack.c.l.b16 %v7383
      %v7544 = vunpack.c.l.b16 %v7384
      %v7545 = vunpack.c.l.b16 %v7385
      %v7546 = vunpack.c.l.b16 %v7386
      %v7547 = vunpack.c.l.b16 %v7387
      %v7548 = vunpack.c.l.b16 %v7388
      %v7549 = vunpack.c.l.b16 %v7389
      %v7550 = vunpack.c.l.b16 %v7390
      %v7551 = vunpack.c.l.b16 %v7391
      %v7552 = vunpack.c.l.b16 %v7392
      %v7553 = vunpack.c.l.b16 %v7393
      %v7554 = vunpack.c.l.b16 %v7394
      %v7555 = vunpack.c.l.b16 %v7395
      %v7556 = vunpack.c.l.b16 %v7396
      %v7557 = vunpack.c.l.b16 %v7397
      %v7558 = vunpack.c.l.b16 %v7398
      %v7559 = vunpack.c.l.b16 %v7399
      %v7560 = vunpack.c.l.b16 %v7400
      %v7561 = vunpack.c.l.b16 %v7401
      %v7562 = vunpack.c.l.b16 %v7402
      %v7563 = vunpack.c.l.b16 %v7403
      %v7564 = vunpack.c.l.b16 %v7404
      %v7565 = vunpack.c.l.b16 %v7405
      %v7566 = vunpack.c.l.b16 %v7406
      %v7567 = vunpack.c.l.b16 %v7407
      %v7568 = vunpack.c.l.b16 %v7408
      %v7569 = vunpack.c.l.b16 %v7409
      %v7570 = vunpack.c.l.b16 %v7410
      %v7571 = vunpack.c.l.b16 %v7411
      %v7572 = vunpack.c.l.b16 %v7412
      %v7573 = vunpack.c.l.b16 %v7413
      %v7574 = vunpack.c.l.b16 %v7414
      %v7575 = vunpack.c.l.b16 %v7415
      %v7576 = vunpack.c.l.b16 %v7416
      %v7577 = vunpack.c.l.b16 %v7417
      %v7578 = vunpack.c.l.b16 %v7418
      %v7579 = vunpack.c.l.b16 %v7419
      %v7580 = vunpack.c.l.b16 %v7420
      %v7581 = vunpack.c.l.b16 %v7421
      %v7582 = vunpack.c.l.b16 %v7422
      %v7583 = vunpack.c.l.b16 %v7423
      %v7584 = vunpack.c.l.b16 %v7424
      %v7585 = vunpack.c.l.b16 %v7425
      %v7586 = vunpack.c.l.b16 %v7426
      %v7587 = vunpack.c.l.b16 %v7427
      %v7588 = vunpack.c.l.b16 %v7428
      %v7589 = vunpack.c.l.b16 %v7429
      %v7590 = vunpack.c.l.b16 %v7430
      %v7591 = vunpack.c.l.b16 %v7431
      %v7592 = vunpack.c.l.b16 %v7432
      %v7593 = vunpack.c.l.b16 %v7433
      %v7594 = vunpack.c.l.b16 %v7434
      %v7595 = vunpack.c.l.b16 %v7435
      %v7596 = vunpack.c.l.b16 %v7436
      %v7597 = vunpack.c.l.b16 %v7437
      %v7598 = vpack.c.b16 %v7519, %v7518
      %v7599 = vpack.c.b16 %v7521, %v7520
      %v7600 = vpack.c.b16 %v7523, %v7522
      %v7601 = vpack.c.b16 %v7525, %v7524
      %v7602 = vpack.c.b16 %v7527, %v7526
      %v7603 = vpack.c.b16 %v7529, %v7528
      %v7604 = vpack.c.b16 %v7531, %v7530
      %v7605 = vpack.c.b16 %v7533, %v7532
      %v7606 = vpack.c.b16 %v7535, %v7534
      %v7607 = vpack.c.b16 %v7537, %v7536
      %v7608 = vpack.c.b16 %v7539, %v7538
      %v7609 = vpack.c.b16 %v7541, %v7540
      %v7610 = vpack.c.b16 %v7543, %v7542
      %v7611 = vpack.c.b16 %v7545, %v7544
      %v7612 = vpack.c.b16 %v7547, %v7546
      %v7613 = vpack.c.b16 %v7549, %v7548
      %v7614 = vpack.c.b16 %v7551, %v7550
      %v7615 = vpack.c.b16 %v7553, %v7552
      %v7616 = vpack.c.b16 %v7555, %v7554
      %v7617 = vpack.c.b16 %v7557, %v7556
      %v7618 = vpack.c.b16 %v7559, %v7558
      %v7619 = vpack.c.b16 %v7561, %v7560
      %v7620 = vpack.c.b16 %v7563, %v7562
      %v7621 = vpack.c.b16 %v7565, %v7564
      %v7622 = vpack.c.b16 %v7567, %v7566
      %v7623 = vpack.c.b16 %v7569, %v7568
      %v7624 = vpack.c.b16 %v7571, %v7570
      %v7625 = vpack.c.b16 %v7573, %v7572
      %v7626 = vpack.c.b16 %v7575, %v7574
      %v7627 = vpack.c.b16 %v7577, %v7576
      %v7628 = vpack.c.b16 %v7579, %v7578
      %v7629 = vpack.c.b16 %v7581, %v7580
      %v7630 = vpack.c.b16 %v7583, %v7582
      %v7631 = vpack.c.b16 %v7585, %v7584
      %v7632 = vpack.c.b16 %v7587, %v7586
      %v7633 = vpack.c.b16 %v7589, %v7588
      %v7634 = vpack.c.b16 %v7591, %v7590
      %v7635 = vpack.c.b16 %v7593, %v7592
      %v7636 = vpack.c.b16 %v7595, %v7594
      %v7637 = vpack.c.b16 %v7597, %v7596
      %7678 = vmatpush.bf16.msra.mxu0 %v7605
      %7679 = vmatpush.bf16.msra.mxu0 %v7604
      %7680 = vmatpush.bf16.msra.mxu0 %v7603
      %7681 = vmatpush.bf16.msra.mxu0 %v7602
      %7682 = vmatpush.bf16.msra.mxu0 %v7601
      %7683 = vmatpush.bf16.msra.mxu0 %v7600
      %7684 = vmatpush.bf16.msra.mxu0 %v7599
      %7685 = vmatpush.bf16.msra.mxu0 %v7598
      %7686 = vmatmul.bf16.gmra.mxu0 %v7338
      %v7687 = vpop.f32.mrf.mxu0
      %v7688 = vadd.f32 0.0, %v7687
      %v7689 = vpop.f32.mrf.mxu0
      %v7690 = vadd.f32 0.0, %v7689
      %7691 = vmatmul.bf16.gmra.mxu0 %v7343
      %v7692 = vpop.f32.mrf.mxu0
      %v7693 = vadd.f32 0.0, %v7692
      %v7694 = vpop.f32.mrf.mxu0
      %v7695 = vadd.f32 0.0, %v7694
      %7696 = vmatmul.bf16.gmra.mxu0 %v7348
      %v7697 = vpop.f32.mrf.mxu0
      %v7698 = vadd.f32 0.0, %v7697
      %v7699 = vpop.f32.mrf.mxu0
      %v7700 = vadd.f32 0.0, %v7699
      %7701 = vmatmul.bf16.gmra.mxu0 %v7353
      %v7702 = vpop.f32.mrf.mxu0
      %v7703 = vadd.f32 0.0, %v7702
      %v7704 = vpop.f32.mrf.mxu0
      %7705 = vdwg.mxu0
      %7706 = vmatpush.bf16.msra.mxu0 %v7613
      %7707 = vmatpush.bf16.msra.mxu0 %v7612
      %7708 = vmatpush.bf16.msra.mxu0 %v7611
      %7709 = vmatpush.bf16.msra.mxu0 %v7610
      %7710 = vmatpush.bf16.msra.mxu0 %v7609
      %7711 = vmatpush.bf16.msra.mxu0 %v7608
      %7712 = vmatpush.bf16.msra.mxu0 %v7607
      %7713 = vmatpush.bf16.msra.mxu0 %v7606
      %7714 = vmatmul.bf16.gmra.mxu0 %v7339
      %v7715 = vpop.f32.mrf.mxu0
      %v7716 = vadd.f32 %v7688, %v7715
      %v7717 = vpop.f32.mrf.mxu0
      %v7718 = vadd.f32 %v7690, %v7717
      %7719 = vmatmul.bf16.gmra.mxu0 %v7344
      %v7720 = vpop.f32.mrf.mxu0
      %v7721 = vadd.f32 %v7693, %v7720
      %v7722 = vpop.f32.mrf.mxu0
      %v7723 = vadd.f32 %v7695, %v7722
      %7724 = vmatmul.bf16.gmra.mxu0 %v7349
      %v7725 = vpop.f32.mrf.mxu0
      %v7726 = vadd.f32 %v7698, %v7725
      %v7727 = vpop.f32.mrf.mxu0
      %v7728 = vadd.f32 %v7700, %v7727
      %7729 = vmatmul.bf16.gmra.mxu0 %v7354
      %v7730 = vpop.f32.mrf.mxu0
      %v7731 = vadd.f32 %v7703, %v7730
      %v7732 = vpop.f32.mrf.mxu0
      %7733 = vdwg.mxu0
      %7734 = vmatpush.bf16.msra.mxu0 %v7621
      %7735 = vmatpush.bf16.msra.mxu0 %v7620
      %7736 = vmatpush.bf16.msra.mxu0 %v7619
      %7737 = vmatpush.bf16.msra.mxu0 %v7618
      %7738 = vmatpush.bf16.msra.mxu0 %v7617
      %7739 = vmatpush.bf16.msra.mxu0 %v7616
      %7740 = vmatpush.bf16.msra.mxu0 %v7615
      %7741 = vmatpush.bf16.msra.mxu0 %v7614
      %7742 = vmatmul.bf16.gmra.mxu0 %v7340
      %v7743 = vpop.f32.mrf.mxu0
      %v7744 = vadd.f32 %v7716, %v7743
      %v7745 = vpop.f32.mrf.mxu0
      %v7746 = vadd.f32 %v7718, %v7745
      %7747 = vmatmul.bf16.gmra.mxu0 %v7345
      %v7748 = vpop.f32.mrf.mxu0
      %v7749 = vadd.f32 %v7721, %v7748
      %v7750 = vpop.f32.mrf.mxu0
      %v7751 = vadd.f32 %v7723, %v7750
      %7752 = vmatmul.bf16.gmra.mxu0 %v7350
      %v7753 = vpop.f32.mrf.mxu0
      %v7754 = vadd.f32 %v7726, %v7753
      %v7755 = vpop.f32.mrf.mxu0
      %v7756 = vadd.f32 %v7728, %v7755
      %7757 = vmatmul.bf16.gmra.mxu0 %v7355
      %v7758 = vpop.f32.mrf.mxu0
      %v7759 = vadd.f32 %v7731, %v7758
      %v7760 = vpop.f32.mrf.mxu0
      %7761 = vdwg.mxu0
      %7762 = vmatpush.bf16.msra.mxu0 %v7629
      %7763 = vmatpush.bf16.msra.mxu0 %v7628
      %7764 = vmatpush.bf16.msra.mxu0 %v7627
      %7765 = vmatpush.bf16.msra.mxu0 %v7626
      %7766 = vmatpush.bf16.msra.mxu0 %v7625
      %7767 = vmatpush.bf16.msra.mxu0 %v7624
      %7768 = vmatpush.bf16.msra.mxu0 %v7623
      %7769 = vmatpush.bf16.msra.mxu0 %v7622
      %7770 = vmatmul.bf16.gmra.mxu0 %v7341
      %v7771 = vpop.f32.mrf.mxu0
      %v7772 = vadd.f32 %v7744, %v7771
      %v7773 = vpop.f32.mrf.mxu0
      %v7774 = vadd.f32 %v7746, %v7773
      %7775 = vmatmul.bf16.gmra.mxu0 %v7346
      %v7776 = vpop.f32.mrf.mxu0
      %v7777 = vadd.f32 %v7749, %v7776
      %v7778 = vpop.f32.mrf.mxu0
      %v7779 = vadd.f32 %v7751, %v7778
      %7780 = vmatmul.bf16.gmra.mxu0 %v7351
      %v7781 = vpop.f32.mrf.mxu0
      %v7782 = vadd.f32 %v7754, %v7781
      %v7783 = vpop.f32.mrf.mxu0
      %v7784 = vadd.f32 %v7756, %v7783
      %7785 = vmatmul.bf16.gmra.mxu0 %v7356
      %v7786 = vpop.f32.mrf.mxu0
      %v7787 = vadd.f32 %v7759, %v7786
      %v7788 = vpop.f32.mrf.mxu0
      %7789 = vdwg.mxu0
      %7790 = vmatpush.bf16.msra.mxu0 %v7637
      %7791 = vmatpush.bf16.msra.mxu0 %v7636
      %7792 = vmatpush.bf16.msra.mxu0 %v7635
      %7793 = vmatpush.bf16.msra.mxu0 %v7634
      %7794 = vmatpush.bf16.msra.mxu0 %v7633
      %7795 = vmatpush.bf16.msra.mxu0 %v7632
      %7796 = vmatpush.bf16.msra.mxu0 %v7631
      %7797 = vmatpush.bf16.msra.mxu0 %v7630
      %7798 = vmatmul.bf16.gmra.mxu0 %v7342
      %v7799 = vpop.f32.mrf.mxu0
      %v7800 = vadd.f32 %v7772, %v7799
      %v7801 = vpop.f32.mrf.mxu0
      %v7802 = vadd.f32 %v7774, %v7801
      %7803 = vmatmul.bf16.gmra.mxu0 %v7347
      %v7804 = vpop.f32.mrf.mxu0
      %v7805 = vadd.f32 %v7777, %v7804
      %v7806 = vpop.f32.mrf.mxu0
      %v7807 = vadd.f32 %v7779, %v7806
      %7808 = vmatmul.bf16.gmra.mxu0 %v7352
      %v7809 = vpop.f32.mrf.mxu0
      %v7810 = vadd.f32 %v7782, %v7809
      %v7811 = vpop.f32.mrf.mxu0
      %v7812 = vadd.f32 %v7784, %v7811
      %7813 = vmatmul.bf16.gmra.mxu0 %v7357
      %v7814 = vpop.f32.mrf.mxu0
      %v7815 = vadd.f32 %v7787, %v7814
      %v7816 = vpop.f32.mrf.mxu0
      %7817 = vdwg.mxu0
      %v7898 = vunpack.c.l.b16 %v7258
      %v7899 = vunpack.c.l.b16 %v7259
      %v7900 = vunpack.c.l.b16 %v7260
      %v7901 = vunpack.c.l.b16 %v7261
      %v7902 = vunpack.c.l.b16 %v7262
      %v7903 = vunpack.c.l.b16 %v7263
      %v7904 = vunpack.c.l.b16 %v7264
      %v7905 = vunpack.c.l.b16 %v7265
      %v7906 = vunpack.c.l.b16 %v7266
      %v7907 = vunpack.c.l.b16 %v7267
      %v7908 = vunpack.c.l.b16 %v7268
      %v7909 = vunpack.c.l.b16 %v7269
      %v7910 = vunpack.c.l.b16 %v7270
      %v7911 = vunpack.c.l.b16 %v7271
      %v7912 = vunpack.c.l.b16 %v7272
      %v7913 = vunpack.c.l.b16 %v7273
      %v7914 = vunpack.c.l.b16 %v7274
      %v7915 = vunpack.c.l.b16 %v7275
      %v7916 = vunpack.c.l.b16 %v7276
      %v7917 = vunpack.c.l.b16 %v7277
      %v7918 = vunpack.c.l.b16 %v7278
      %v7919 = vunpack.c.l.b16 %v7279
      %v7920 = vunpack.c.l.b16 %v7280
      %v7921 = vunpack.c.l.b16 %v7281
      %v7922 = vunpack.c.l.b16 %v7282
      %v7923 = vunpack.c.l.b16 %v7283
      %v7924 = vunpack.c.l.b16 %v7284
      %v7925 = vunpack.c.l.b16 %v7285
      %v7926 = vunpack.c.l.b16 %v7286
      %v7927 = vunpack.c.l.b16 %v7287
      %v7928 = vunpack.c.l.b16 %v7288
      %v7929 = vunpack.c.l.b16 %v7289
      %v7930 = vunpack.c.l.b16 %v7290
      %v7931 = vunpack.c.l.b16 %v7291
      %v7932 = vunpack.c.l.b16 %v7292
      %v7933 = vunpack.c.l.b16 %v7293
      %v7934 = vunpack.c.l.b16 %v7294
      %v7935 = vunpack.c.l.b16 %v7295
      %v7936 = vunpack.c.l.b16 %v7296
      %v7937 = vunpack.c.l.b16 %v7297
      %v7938 = vunpack.c.l.b16 %v7298
      %v7939 = vunpack.c.l.b16 %v7299
      %v7940 = vunpack.c.l.b16 %v7300
      %v7941 = vunpack.c.l.b16 %v7301
      %v7942 = vunpack.c.l.b16 %v7302
      %v7943 = vunpack.c.l.b16 %v7303
      %v7944 = vunpack.c.l.b16 %v7304
      %v7945 = vunpack.c.l.b16 %v7305
      %v7946 = vunpack.c.l.b16 %v7306
      %v7947 = vunpack.c.l.b16 %v7307
      %v7948 = vunpack.c.l.b16 %v7308
      %v7949 = vunpack.c.l.b16 %v7309
      %v7950 = vunpack.c.l.b16 %v7310
      %v7951 = vunpack.c.l.b16 %v7311
      %v7952 = vunpack.c.l.b16 %v7312
      %v7953 = vunpack.c.l.b16 %v7313
      %v7954 = vunpack.c.l.b16 %v7314
      %v7955 = vunpack.c.l.b16 %v7315
      %v7956 = vunpack.c.l.b16 %v7316
      %v7957 = vunpack.c.l.b16 %v7317
      %v7958 = vunpack.c.l.b16 %v7318
      %v7959 = vunpack.c.l.b16 %v7319
      %v7960 = vunpack.c.l.b16 %v7320
      %v7961 = vunpack.c.l.b16 %v7321
      %v7962 = vunpack.c.l.b16 %v7322
      %v7963 = vunpack.c.l.b16 %v7323
      %v7964 = vunpack.c.l.b16 %v7324
      %v7965 = vunpack.c.l.b16 %v7325
      %v7966 = vunpack.c.l.b16 %v7326
      %v7967 = vunpack.c.l.b16 %v7327
      %v7968 = vunpack.c.l.b16 %v7328
      %v7969 = vunpack.c.l.b16 %v7329
      %v7970 = vunpack.c.l.b16 %v7330
      %v7971 = vunpack.c.l.b16 %v7331
      %v7972 = vunpack.c.l.b16 %v7332
      %v7973 = vunpack.c.l.b16 %v7333
      %v7974 = vunpack.c.l.b16 %v7334
      %v7975 = vunpack.c.l.b16 %v7335
      %v7976 = vunpack.c.l.b16 %v7336
      %v7977 = vunpack.c.l.b16 %v7337
      %v7978 = vpack.c.b16 %v7899, %v7898
      %v7979 = vpack.c.b16 %v7901, %v7900
      %v7980 = vpack.c.b16 %v7903, %v7902
      %v7981 = vpack.c.b16 %v7905, %v7904
      %v7982 = vpack.c.b16 %v7907, %v7906
      %v7983 = vpack.c.b16 %v7909, %v7908
      %v7984 = vpack.c.b16 %v7911, %v7910
      %v7985 = vpack.c.b16 %v7913, %v7912
      %v7986 = vpack.c.b16 %v7915, %v7914
      %v7987 = vpack.c.b16 %v7917, %v7916
      %v7988 = vpack.c.b16 %v7919, %v7918
      %v7989 = vpack.c.b16 %v7921, %v7920
      %v7990 = vpack.c.b16 %v7923, %v7922
      %v7991 = vpack.c.b16 %v7925, %v7924
      %v7992 = vpack.c.b16 %v7927, %v7926
      %v7993 = vpack.c.b16 %v7929, %v7928
      %v7994 = vpack.c.b16 %v7931, %v7930
      %v7995 = vpack.c.b16 %v7933, %v7932
      %v7996 = vpack.c.b16 %v7935, %v7934
      %v7997 = vpack.c.b16 %v7937, %v7936
      %v7998 = vpack.c.b16 %v7939, %v7938
      %v7999 = vpack.c.b16 %v7941, %v7940
      %v8000 = vpack.c.b16 %v7943, %v7942
      %v8001 = vpack.c.b16 %v7945, %v7944
      %v8002 = vpack.c.b16 %v7947, %v7946
      %v8003 = vpack.c.b16 %v7949, %v7948
      %v8004 = vpack.c.b16 %v7951, %v7950
      %v8005 = vpack.c.b16 %v7953, %v7952
      %v8006 = vpack.c.b16 %v7955, %v7954
      %v8007 = vpack.c.b16 %v7957, %v7956
      %v8008 = vpack.c.b16 %v7959, %v7958
      %v8009 = vpack.c.b16 %v7961, %v7960
      %v8010 = vpack.c.b16 %v7963, %v7962
      %v8011 = vpack.c.b16 %v7965, %v7964
      %v8012 = vpack.c.b16 %v7967, %v7966
      %v8013 = vpack.c.b16 %v7969, %v7968
      %v8014 = vpack.c.b16 %v7971, %v7970
      %v8015 = vpack.c.b16 %v7973, %v7972
      %v8016 = vpack.c.b16 %v7975, %v7974
      %v8017 = vpack.c.b16 %v7977, %v7976
      %8058 = vmatpush.bf16.msra.mxu0 %v7985
      %8059 = vmatpush.bf16.msra.mxu0 %v7984
      %8060 = vmatpush.bf16.msra.mxu0 %v7983
      %8061 = vmatpush.bf16.msra.mxu0 %v7982
      %8062 = vmatpush.bf16.msra.mxu0 %v7981
      %8063 = vmatpush.bf16.msra.mxu0 %v7980
      %8064 = vmatpush.bf16.msra.mxu0 %v7979
      %8065 = vmatpush.bf16.msra.mxu0 %v7978
      %8066 = vmatmul.bf16.gmra.mxu0 %v7238
      %v8067 = vpop.f32.mrf.mxu0
      %v8068 = vadd.f32 %v7800, %v8067
      %v8069 = vpop.f32.mrf.mxu0
      %v8070 = vadd.f32 %v7802, %v8069
      %8071 = vmatmul.bf16.gmra.mxu0 %v7243
      %v8072 = vpop.f32.mrf.mxu0
      %v8073 = vadd.f32 %v7805, %v8072
      %v8074 = vpop.f32.mrf.mxu0
      %v8075 = vadd.f32 %v7807, %v8074
      %8076 = vmatmul.bf16.gmra.mxu0 %v7248
      %v8077 = vpop.f32.mrf.mxu0
      %v8078 = vadd.f32 %v7810, %v8077
      %v8079 = vpop.f32.mrf.mxu0
      %v8080 = vadd.f32 %v7812, %v8079
      %8081 = vmatmul.bf16.gmra.mxu0 %v7253
      %v8082 = vpop.f32.mrf.mxu0
      %v8083 = vadd.f32 %v7815, %v8082
      %v8084 = vpop.f32.mrf.mxu0
      %8085 = vdwg.mxu0
      %8086 = vmatpush.bf16.msra.mxu0 %v7993
      %8087 = vmatpush.bf16.msra.mxu0 %v7992
      %8088 = vmatpush.bf16.msra.mxu0 %v7991
      %8089 = vmatpush.bf16.msra.mxu0 %v7990
      %8090 = vmatpush.bf16.msra.mxu0 %v7989
      %8091 = vmatpush.bf16.msra.mxu0 %v7988
      %8092 = vmatpush.bf16.msra.mxu0 %v7987
      %8093 = vmatpush.bf16.msra.mxu0 %v7986
      %8094 = vmatmul.bf16.gmra.mxu0 %v7239
      %v8095 = vpop.f32.mrf.mxu0
      %v8096 = vadd.f32 %v8068, %v8095
      %v8097 = vpop.f32.mrf.mxu0
      %v8098 = vadd.f32 %v8070, %v8097
      %8099 = vmatmul.bf16.gmra.mxu0 %v7244
      %v8100 = vpop.f32.mrf.mxu0
      %v8101 = vadd.f32 %v8073, %v8100
      %v8102 = vpop.f32.mrf.mxu0
      %v8103 = vadd.f32 %v8075, %v8102
      %8104 = vmatmul.bf16.gmra.mxu0 %v7249
      %v8105 = vpop.f32.mrf.mxu0
      %v8106 = vadd.f32 %v8078, %v8105
      %v8107 = vpop.f32.mrf.mxu0
      %v8108 = vadd.f32 %v8080, %v8107
      %8109 = vmatmul.bf16.gmra.mxu0 %v7254
      %v8110 = vpop.f32.mrf.mxu0
      %v8111 = vadd.f32 %v8083, %v8110
      %v8112 = vpop.f32.mrf.mxu0
      %8113 = vdwg.mxu0
      %8114 = vmatpush.bf16.msra.mxu0 %v8001
      %8115 = vmatpush.bf16.msra.mxu0 %v8000
      %8116 = vmatpush.bf16.msra.mxu0 %v7999
      %8117 = vmatpush.bf16.msra.mxu0 %v7998
      %8118 = vmatpush.bf16.msra.mxu0 %v7997
      %8119 = vmatpush.bf16.msra.mxu0 %v7996
      %8120 = vmatpush.bf16.msra.mxu0 %v7995
      %8121 = vmatpush.bf16.msra.mxu0 %v7994
      %8122 = vmatmul.bf16.gmra.mxu0 %v7240
      %v8123 = vpop.f32.mrf.mxu0
      %v8124 = vadd.f32 %v8096, %v8123
      %v8125 = vpop.f32.mrf.mxu0
      %v8126 = vadd.f32 %v8098, %v8125
      %8127 = vmatmul.bf16.gmra.mxu0 %v7245
      %v8128 = vpop.f32.mrf.mxu0
      %v8129 = vadd.f32 %v8101, %v8128
      %v8130 = vpop.f32.mrf.mxu0
      %v8131 = vadd.f32 %v8103, %v8130
      %8132 = vmatmul.bf16.gmra.mxu0 %v7250
      %v8133 = vpop.f32.mrf.mxu0
      %v8134 = vadd.f32 %v8106, %v8133
      %v8135 = vpop.f32.mrf.mxu0
      %v8136 = vadd.f32 %v8108, %v8135
      %8137 = vmatmul.bf16.gmra.mxu0 %v7255
      %v8138 = vpop.f32.mrf.mxu0
      %v8139 = vadd.f32 %v8111, %v8138
      %v8140 = vpop.f32.mrf.mxu0
      %8141 = vdwg.mxu0
      %8142 = vmatpush.bf16.msra.mxu0 %v8009
      %8143 = vmatpush.bf16.msra.mxu0 %v8008
      %8144 = vmatpush.bf16.msra.mxu0 %v8007
      %8145 = vmatpush.bf16.msra.mxu0 %v8006
      %8146 = vmatpush.bf16.msra.mxu0 %v8005
      %8147 = vmatpush.bf16.msra.mxu0 %v8004
      %8148 = vmatpush.bf16.msra.mxu0 %v8003
      %8149 = vmatpush.bf16.msra.mxu0 %v8002
      %8150 = vmatmul.bf16.gmra.mxu0 %v7241
      %v8151 = vpop.f32.mrf.mxu0
      %v8152 = vadd.f32 %v8124, %v8151
      %v8153 = vpop.f32.mrf.mxu0
      %v8154 = vadd.f32 %v8126, %v8153
      %8155 = vmatmul.bf16.gmra.mxu0 %v7246
      %v8156 = vpop.f32.mrf.mxu0
      %v8157 = vadd.f32 %v8129, %v8156
      %v8158 = vpop.f32.mrf.mxu0
      %v8159 = vadd.f32 %v8131, %v8158
      %8160 = vmatmul.bf16.gmra.mxu0 %v7251
      %v8161 = vpop.f32.mrf.mxu0
      %v8162 = vadd.f32 %v8134, %v8161
      %v8163 = vpop.f32.mrf.mxu0
      %v8164 = vadd.f32 %v8136, %v8163
      %8165 = vmatmul.bf16.gmra.mxu0 %v7256
      %v8166 = vpop.f32.mrf.mxu0
      %v8167 = vadd.f32 %v8139, %v8166
      %v8168 = vpop.f32.mrf.mxu0
      %8169 = vdwg.mxu0
      %8170 = vmatpush.bf16.msra.mxu0 %v8017
      %8171 = vmatpush.bf16.msra.mxu0 %v8016
      %8172 = vmatpush.bf16.msra.mxu0 %v8015
      %8173 = vmatpush.bf16.msra.mxu0 %v8014
      %8174 = vmatpush.bf16.msra.mxu0 %v8013
      %8175 = vmatpush.bf16.msra.mxu0 %v8012
      %8176 = vmatpush.bf16.msra.mxu0 %v8011
      %8177 = vmatpush.bf16.msra.mxu0 %v8010
      %8178 = vmatmul.bf16.gmra.mxu0 %v7242
      %v8179 = vpop.f32.mrf.mxu0
      %v8180 = vadd.f32 %v8152, %v8179
      %v8181 = vpop.f32.mrf.mxu0
      %v8182 = vadd.f32 %v8154, %v8181
      %8183 = vmatmul.bf16.gmra.mxu0 %v7247
      %v8184 = vpop.f32.mrf.mxu0
      %v8185 = vadd.f32 %v8157, %v8184
      %v8186 = vpop.f32.mrf.mxu0
      %v8187 = vadd.f32 %v8159, %v8186
      %8188 = vmatmul.bf16.gmra.mxu0 %v7252
      %v8189 = vpop.f32.mrf.mxu0
      %v8190 = vadd.f32 %v8162, %v8189
      %v8191 = vpop.f32.mrf.mxu0
      %v8192 = vadd.f32 %v8164, %v8191
      %8193 = vmatmul.bf16.gmra.mxu0 %v7257
      %v8194 = vpop.f32.mrf.mxu0
      %v8195 = vadd.f32 %v8167, %v8194
      %v8196 = vpop.f32.mrf.mxu0
      %8197 = vdwg.mxu0
      %s8198 = scalar_lea.vmem %s224, 112
      %8199 = vst [vmem:[%s8198] sm:$0xff] %v8180
      %8200 = vst [vmem:[%s8198 + $0x8] sm:$0xff] %v8182
      %8201 = vst [vmem:[%s8198 + $0x10] sm:$0xff] %v8185
      %8202 = vst [vmem:[%s8198 + $0x18] sm:$0xff] %v8187
      %8203 = vst [vmem:[%s8198 + $0x20] sm:$0xff] %v8190
      %8204 = vst [vmem:[%s8198 + $0x28] sm:$0xff] %v8192
      %8205 = vst [vmem:[%s8198 + $0x30] sm:$0xff] %v8195
      %p8206 = scmp.lt.s32.totalorder %s16, 1
      %s8207 = scalar_select %p8206, %s16, 1
      %s8208 = smul.addr %s8207, 21
      %s8209 = smul.addr %s8208, 8
      %s8210 = scalar_lea.vmem %s5, %s8209
      // Predicated region
      $region41: #{_lambda_.2} parent=39 // pred_check
        %p8211 = pneg %p144
      $region42: #{_lambda_.2} parent=39 // pred_check_branch
        %8213 = sbr.rel (%p8211) target = $region44
      $region43: #{_lambda_.2} parent=39 // pred_region
        _
      $region44: #{_lambda_.2} parent=39 // pred_fallthru
        _
    $region40: #{_lambda_.2} parent=5 // pred_fallthru
      _
    %p8214 = scmp.le.s32.totalorder 2, %s11
    // Predicated region
    $region45: #{_lambda_.2} parent=5 // pred_check
      %p8215 = pneg %p8214
    $region46: #{_lambda_.2} parent=5 // pred_check_branch
      %8217 = sbr.rel (%p8215) target = $region48
    $region47: #{_lambda_.2} parent=5 // pred_region
      %s8218 = ssub.s32 %s11, 2
      // Predicated region
      $region49: #{_lambda_.2} parent=47 // pred_check
        %p8219 = pneg %p150
      $region50: #{_lambda_.2} parent=47 // pred_check_branch
        %8221 = sbr.rel (%p8219) target = $region52
      $region51: #{_lambda_.2} parent=47 // pred_region
        %p8222 = scmp.lt.s32.totalorder %s17, 1
        %s8223 = scalar_select %p8222, %s17, 1
        %s8224 = smul.addr %s8223, 21
        %s8225 = smul.addr %s8224, 8
        %s8226 = scalar_lea.vmem %s5, %s8225
      $region52: #{_lambda_.2} parent=47 // pred_fallthru
        _
    $region48: #{_lambda_.2} parent=5 // pred_fallthru
      _
  $region6: #{_lambda_.2} parent=0 // loop_footer
    %s15 = sadd.s32 1, %s11
  $region7: #{_lambda_.2} parent=0 // loop_footer_branch
    %10 = sbr.rel target = $region3
  $region8: #{_lambda_.2} parent=0 // loop_exit
    _

</llo_original>
